<compile_context>
chip_gen: v7x
topology: tpu7x:2x2x1
jax: 0.10.0
libtpu: 0.0.40
codegen_flags: <defaults>
</compile_context>

<pallas_src>
import functools

import jax
import jax.numpy as jnp
from jax.experimental import pallas as pl
from jax.experimental.pallas import tpu as pltpu

LANE = 128  # channel padding / Cout tile: lane-dense stores, MXU-aligned N/K


def _round_up(x, m):
    return ((x + m - 1) // m) * m


# ------------------------------- Pallas kernel -------------------------------

def _conv3x3_bn_kernel(*refs, stride, ho, wo, row_chunk, apply_relu,
                       has_residual):
    """One (batch, cout-tile) block: fused 3x3 conv + affine (+res) (+ReLU).

    xph_ref : (s*s, Hph, Wph, Cin_p)   phase-decomposed, spatially padded input
    w_ref   : (9*Cin_p, TC)            weights, tap-major rows
    scale/bias : (1, TC)               folded BatchNorm affine (f32)
    res_ref : (1, Ho, Wo, TC)          optional residual
    out_ref : (1, Ho, Wo, TC)
    col_ref : (row_chunk*Wo, 9*Cin_p)  im2col VMEM scratch
    """
    if has_residual:
        xph_ref, w_ref, scale_ref, bias_ref, res_ref, out_ref, col_ref = refs
    else:
        xph_ref, w_ref, scale_ref, bias_ref, out_ref, col_ref = refs
        res_ref = None

    s = stride
    cin = xph_ref.shape[-1]
    tc = out_ref.shape[-1]

    # Hoisted once per grid step (not per row-chunk / per tap).
    scale = scale_ref[...].astype(jnp.float32)      # (1, tc)
    bias = bias_ref[...].astype(jnp.float32)        # (1, tc)

    for h0 in range(0, ho, row_chunk):              # static row-chunk loop
        th = min(row_chunk, ho - h0)
        m = th * wo
        # Build the im2col slab: column block t = kh*3+kw holds tap (kh, kw).
        # All slices are static and lane-aligned (cin is a multiple of 128).
        for kh in range(3):
            for kw in range(3):
                t = kh * 3 + kw
                ph = (kh % s) * s + (kw % s)        # which spatial phase plane
                r0 = h0 + kh // s
                c0 = kw // s
                tap = xph_ref[ph, r0:r0 + th, c0:c0 + wo, :]
                col_ref[0:m, t * cin:(t + 1) * cin] = tap.reshape(m, cin)

        # Single K = 9*Cin contraction on the MXU, f32 accumulation,
        # operands stay in the input dtype (bf16 fast path when given bf16).
        acc = jnp.dot(col_ref[0:m, :], w_ref[...],
                      preferred_element_type=jnp.float32)

        y = acc * scale + bias                       # f32 epilogue
        if res_ref is not None:
            y = y + res_ref[0, h0:h0 + th].reshape(m, tc).astype(jnp.float32)
        if apply_relu:
            y = jnp.maximum(y, 0.0)
        out_ref[0, h0:h0 + th] = y.reshape(th, wo, tc).astype(out_ref.dtype)


# ------------------------------ wrapper helpers ------------------------------

def _make_phases(x_nhwc, stride):
    """Zero-pad by 1 and split into stride^2 spatial phase planes.

    Returns (xph, ho, wo, hph, wph) where xph has shape (N*s*s, Hph, Wph, C)
    and xph[n*s*s + a*s + b, p, q, :] == xpad[n, p*s + a, q*s + b, :].
    A stride-s 3x3 conv then only needs stride-1 contiguous slices of xph.
    """
    n, h, w, c = x_nhwc.shape
    s = stride
    ho = (h - 1) // s + 1
    wo = (w - 1) // s + 1
    hph = ho + 2 // s
    wph = wo + 2 // s
    hpad_total = hph * s
    wpad_total = wph * s
    xpad = jnp.pad(x_nhwc, ((0, 0),
                            (1, hpad_total - h - 1),
                            (1, wpad_total - w - 1),
                            (0, 0)))
    xph = xpad.reshape(n, hph, s, wph, s, c)
    xph = jnp.transpose(xph, (0, 2, 4, 1, 3, 5))     # (n, s, s, hph, wph, c)
    return xph.reshape(n * s * s, hph, wph, c), ho, wo, hph, wph


def _pad_channels(x, c_to):
    c = x.shape[-1]
    if c == c_to:
        return x
    pad = ((0, 0),) * (x.ndim - 1) + ((0, c_to - c),)
    return jnp.pad(x, pad)


def _fold_bn(gamma, beta, mean, var, eps=1e-5):
    scale = gamma / jnp.sqrt(var + eps)
    bias = beta - mean * scale
    return scale, bias


def conv3x3_bn(x_cpad, w, scale, bias, *, stride, cout_pad, apply_relu,
               residual=None, row_chunk=16):
    """Fused 3x3 conv (stride via phase decomposition) + BN affine
    (+ residual) (+ ReLU) on a channel-padded NHWC input."""
    n, _, _, cin_p = x_cpad.shape
    dtype = x_cpad.dtype
    itemsize = dtype.itemsize
    cin, cout = w.shape[2], w.shape[3]
    s = stride

    # Lane-dense, MXU-aligned parameters (zero padding is exact: padded input
    # channels are zero and padded output channels get scale=bias=0).
    w_p = jnp.zeros((3, 3, cin_p, cout_pad), dtype)
    w_p = w_p.at[:, :, :cin, :cout].set(w.astype(dtype))
    w2d = w_p.reshape(9 * cin_p, cout_pad)                  # tap-major rows
    scale_p = jnp.zeros((1, cout_pad), jnp.float32).at[0, :cout].set(
        scale.astype(jnp.float32))
    bias_p = jnp.zeros((1, cout_pad), jnp.float32).at[0, :cout].set(
        bias.astype(jnp.float32))

    xph, ho, wo, hph, wph = _make_phases(x_cpad, s)

    tc = min(LANE, cout_pad)
    n_co = cout_pad // tc
    row_chunk = min(row_chunk, ho)

    inputs = [xph, w2d, scale_p, bias_p]
    in_specs = [
        pl.BlockSpec((s * s, hph, wph, cin_p), lambda b, co: (b, 0, 0, 0)),
        pl.BlockSpec((9 * cin_p, tc), lambda b, co: (0, co)),
        pl.BlockSpec((1, tc), lambda b, co: (0, co)),
        pl.BlockSpec((1, tc), lambda b, co: (0, co)),
    ]
    block_bytes = [s * s * hph * wph * cin_p * itemsize,
                   9 * cin_p * tc * itemsize, tc * 4, tc * 4]

    has_residual = residual is not None
    if has_residual:
        inputs.append(residual)
        in_specs.append(
            pl.BlockSpec((1, ho, wo, tc), lambda b, co: (b, 0, 0, co)))
        block_bytes.append(ho * wo * tc * itemsize)

    out_spec = pl.BlockSpec((1, ho, wo, tc), lambda b, co: (b, 0, 0, co))
    block_bytes.append(ho * wo * tc * itemsize)

    # Per-step VMEM estimate (double-buffered blocks + im2col scratch); only
    # raise the scoped limit if needed, capped safely below v7x's 64 MiB.
    scratch_bytes = row_chunk * wo * 9 * cin_p * itemsize
    est_vmem = 2 * sum(block_bytes) + scratch_bytes
    vmem_limit = None
    if est_vmem > 24 * 1024 * 1024:
        vmem_limit = min(int(est_vmem * 1.5), 56 * 1024 * 1024)

    kernel = functools.partial(
        _conv3x3_bn_kernel, stride=s, ho=ho, wo=wo, row_chunk=row_chunk,
        apply_relu=apply_relu, has_residual=has_residual)

    flops = 2 * n * ho * wo * (9 * cin_p) * cout_pad
    bytes_accessed = (xph.size * itemsize + w2d.size * itemsize
                      + (scale_p.size + bias_p.size) * 4
                      + n * ho * wo * cout_pad * itemsize
                      + (residual.size * itemsize if has_residual else 0))

    return pl.pallas_call(
        kernel,
        out_shape=jax.ShapeDtypeStruct((n, ho, wo, cout_pad), dtype),
        grid_spec=pltpu.PrefetchScalarGridSpec(
            num_scalar_prefetch=0,
            grid=(n, n_co),
            in_specs=in_specs,
            out_specs=out_spec,
            scratch_shapes=[pltpu.VMEM((row_chunk * wo, 9 * cin_p), dtype)],
        ),
        compiler_params=pltpu.CompilerParams(
            dimension_semantics=("parallel", "parallel"),
            vmem_limit_bytes=vmem_limit),
        cost_estimate=pl.CostEstimate(flops=flops, transcendentals=0,
                                      bytes_accessed=bytes_accessed),
    )(*inputs)


def basic_block_forward(x_nchw, params, *, stride=1, down_stride=2,
                        has_downsample=False, compute_dtype=None):
    """BasicBlock.forward; NCHW in/out (PyTorch convention)."""
    # TODO(synk): BatchNorm is inference-mode (folded running statistics);
    # training-mode batch statistics / running-stat updates are not reproduced.
    x = jnp.transpose(x_nchw, (0, 2, 3, 1))               # NCHW -> NHWC
    if compute_dtype is not None:
        x = x.astype(compute_dtype)

    cin = x.shape[-1]
    cout = params["w1"].shape[-1]
    cin_p = _round_up(cin, LANE)
    cout_p = _round_up(cout, LANE)
    x_p = _pad_channels(x, cin_p)

    s1, b1 = _fold_bn(*params["bn1"])
    s2, b2 = _fold_bn(*params["bn2"])

    # conv1 + bn1 + relu1 (stride folded into the kernel via phase planes)
    y1 = conv3x3_bn(x_p, params["w1"], s1, b1, stride=stride,
                    cout_pad=cout_p, apply_relu=True)

    if has_downsample:
        sd, bd = _fold_bn(*params["bn_ds"])
        res = conv3x3_bn(x_p, params["w_ds"], sd, bd, stride=down_stride,
                         cout_pad=cout_p, apply_relu=False)
    else:
        res = x_p          # identity residual (requires cin==cout, stride==1)

    # conv2 + bn2 + residual add + relu2, fully fused in the kernel
    out = conv3x3_bn(y1, params["w2"], s2, b2, stride=1, cout_pad=cout_p,
                     apply_relu=True, residual=res)
    out = out[..., :cout]
    return jnp.transpose(out, (0, 3, 1, 2))               # NHWC -> NCHW


# ----------------------------- reference & setup -----------------------------

def _conv_ref(x_nhwc, w_hwio, stride, dtype):
    return jax.lax.conv_general_dilated(
        x_nhwc, w_hwio.astype(dtype), window_strides=(stride, stride),
        padding=((1, 1), (1, 1)),
        dimension_numbers=("NHWC", "HWIO", "NHWC"),
        preferred_element_type=jnp.float32,
        precision=jax.lax.Precision.HIGHEST)


def basic_block_ref(x_nchw, params, *, stride, down_stride, has_downsample,
                    compute_dtype=None):
    x = jnp.transpose(x_nchw, (0, 2, 3, 1))
    if compute_dtype is not None:
        x = x.astype(compute_dtype)
    dtype = x.dtype
    s1, b1 = _fold_bn(*params["bn1"])
    s2, b2 = _fold_bn(*params["bn2"])
    y1 = jnp.maximum(_conv_ref(x, params["w1"], stride, dtype) * s1 + b1,
                     0.0).astype(dtype)
    y2 = _conv_ref(y1, params["w2"], 1, dtype) * s2 + b2
    if has_downsample:
        sd, bd = _fold_bn(*params["bn_ds"])
        res = (_conv_ref(x, params["w_ds"], down_stride, dtype) * sd
               + bd).astype(dtype)
    else:
        res = x
    out = jnp.maximum(y2 + res.astype(jnp.float32), 0.0).astype(dtype)
    return jnp.transpose(out, (0, 3, 1, 2))


def init_params(key, cin, cout, has_downsample):
    keys = iter(jax.random.split(key, 16))

    def conv_w(ci, co):
        return 0.1 * jax.random.normal(next(keys), (3, 3, ci, co), jnp.float32)

    def bn_params(c):
        gamma = 1.0 + 0.1 * jax.random.normal(next(keys), (c,), jnp.float32)
        beta = 0.1 * jax.random.normal(next(keys), (c,), jnp.float32)
        mean = 0.05 * jax.random.normal(next(keys), (c,), jnp.float32)
        var = 1.0 + 0.1 * jax.random.uniform(next(keys), (c,), jnp.float32)
        return gamma, beta, mean, var

    p = {"w1": conv_w(cin, cout), "bn1": bn_params(cout),
         "w2": conv_w(cout, cout), "bn2": bn_params(cout)}
    if has_downsample:
        p["w_ds"] = conv_w(cin, cout)
        p["bn_ds"] = bn_params(cout)
    return p


if __name__ == "__main__":
    key = jax.random.PRNGKey(0)
    kx, kp_a, kp_b = jax.random.split(key, 3)

    # PyTorch-style NCHW input: batch=2, channels=4, spatial=16x16
    x = jax.random.normal(kx, (2, 4, 16, 16), jnp.float32)

    # Case A: kernels_in == kernels_out, stride 1, identity residual (f32).
    p_a = init_params(kp_a, 4, 4, has_downsample=False)
    fwd_a = jax.jit(functools.partial(basic_block_forward, stride=1,
                                      has_downsample=False))
    out_a = jax.block_until_ready(fwd_a(x, p_a))
    ref_a = basic_block_ref(x, p_a, stride=1, down_stride=2,
                            has_downsample=False)
    assert out_a.shape == (2, 4, 16, 16)
    assert jnp.allclose(out_a, ref_a, atol=1e-4, rtol=1e-4), "case A mismatch"

    # Case B: channel expansion + stride-2 conv1 + stride-2 downsample (f32).
    p_b = init_params(kp_b, 4, 8, has_downsample=True)
    fwd_b = jax.jit(functools.partial(basic_block_forward, stride=2,
                                      down_stride=2, has_downsample=True))
    out_b = jax.block_until_ready(fwd_b(x, p_b))
    ref_b = basic_block_ref(x, p_b, stride=2, down_stride=2,
                            has_downsample=True)
    assert out_b.shape == (2, 8, 8, 8)
    assert jnp.allclose(out_b, ref_b, atol=1e-4, rtol=1e-4), "case B mismatch"

    # Case C: bf16 operands feeding the MXU, f32 accumulate in-kernel.
    fwd_c = jax.jit(functools.partial(basic_block_forward, stride=2,
                                      down_stride=2, has_downsample=True,
                                      compute_dtype=jnp.bfloat16))
    out_c = jax.block_until_ready(fwd_c(x, p_b))
    ref_c = basic_block_ref(x, p_b, stride=2, down_stride=2,
                            has_downsample=True, compute_dtype=jnp.bfloat16)
    assert out_c.dtype == jnp.bfloat16
    assert jnp.allclose(out_c.astype(jnp.float32), ref_c.astype(jnp.float32),
                        atol=5e-2, rtol=5e-2), "case C mismatch"

    print("KERNEL_OK")
</pallas_src>

<mosaic_0001>
module attributes {stable_mosaic.version = 11 : i64} {
  func.func @_conv3x3_bn_kernel(%arg0: i32, %arg1: i32, %arg2: memref<1x18x18x128xf32, #tpu.memory_space<vmem>>, %arg3: memref<1152x128xf32, #tpu.memory_space<vmem>>, %arg4: memref<1x128xf32, #tpu.memory_space<vmem>>, %arg5: memref<1x128xf32, #tpu.memory_space<vmem>>, %arg6: memref<1x16x16x128xf32, #tpu.memory_space<vmem>>, %arg7: memref<1x16x16x128xf32, #tpu.memory_space<vmem>>, %arg8: memref<256x1152xf32, #tpu.memory_space<vmem>>) attributes {dimension_semantics = [#tpu.dimension_semantics<parallel>, #tpu.dimension_semantics<parallel>], iteration_bounds = array<i64: 2, 1>, scalar_prefetch = 0 : i64, scratch_operands = 1 : i64, tpu.core_type = #tpu.core_type<tc>, window_params = [{transform_indices = @transform_0, window_bounds = array<i64: 1, 18, 18, 128>}, {transform_indices = @transform_1, window_bounds = array<i64: 1152, 128>}, {transform_indices = @transform_2, window_bounds = array<i64: 1, 128>}, {transform_indices = @transform_3, window_bounds = array<i64: 1, 128>}, {transform_indices = @transform_4, window_bounds = array<i64: 1, 16, 16, 128>}, {transform_indices = @transform_5, window_bounds = array<i64: 1, 16, 16, 128>}]} {
    %c0 = arith.constant 0 : index
    %c0_0 = arith.constant 0 : index
    %0 = vector.load %arg4[%c0, %c0_0] : memref<1x128xf32, #tpu.memory_space<vmem>>, vector<1x128xf32>
    %c0_1 = arith.constant 0 : index
    %c0_2 = arith.constant 0 : index
    %1 = vector.load %arg5[%c0_1, %c0_2] : memref<1x128xf32, #tpu.memory_space<vmem>>, vector<1x128xf32>
    %c0_3 = arith.constant 0 : index
    %c0_4 = arith.constant 0 : index
    %c0_5 = arith.constant 0 : index
    %c0_6 = arith.constant 0 : index
    %2 = vector.load %arg2[%c0_3, %c0_4, %c0_5, %c0_6] : memref<1x18x18x128xf32, #tpu.memory_space<vmem>>, vector<1x16x16x128xf32>
    %3 = vector.shape_cast %2 : vector<1x16x16x128xf32> to vector<16x16x128xf32>
    %4 = vector.shape_cast %3 : vector<16x16x128xf32> to vector<256x128xf32>
    %c0_7 = arith.constant 0 : index
    %c0_8 = arith.constant 0 : index
    %5 = vector.load %arg8[%c0_7, %c0_8] : memref<256x1152xf32, #tpu.memory_space<vmem>>, vector<256x128xf32>
    tpu.vector_store %arg8[%c0_7, %c0_8], %4 {strides = array<i32>} : memref<256x1152xf32, #tpu.memory_space<vmem>>, vector<256x128xf32>,
    %c0_9 = arith.constant 0 : index
    %c0_10 = arith.constant 0 : index
    %c1 = arith.constant 1 : index
    %c0_11 = arith.constant 0 : index
    %6 = vector.load %arg2[%c0_9, %c0_10, %c1, %c0_11] : memref<1x18x18x128xf32, #tpu.memory_space<vmem>>, vector<1x16x16x128xf32>
    %7 = vector.shape_cast %6 : vector<1x16x16x128xf32> to vector<16x16x128xf32>
    %8 = vector.shape_cast %7 : vector<16x16x128xf32> to vector<256x128xf32>
    %c0_12 = arith.constant 0 : index
    %c128 = arith.constant 128 : index
    %9 = vector.load %arg8[%c0_12, %c128] : memref<256x1152xf32, #tpu.memory_space<vmem>>, vector<256x128xf32>
    tpu.vector_store %arg8[%c0_12, %c128], %8 {strides = array<i32>} : memref<256x1152xf32, #tpu.memory_space<vmem>>, vector<256x128xf32>,
    %c0_13 = arith.constant 0 : index
    %c0_14 = arith.constant 0 : index
    %c2 = arith.constant 2 : index
    %c0_15 = arith.constant 0 : index
    %10 = vector.load %arg2[%c0_13, %c0_14, %c2, %c0_15] : memref<1x18x18x128xf32, #tpu.memory_space<vmem>>, vector<1x16x16x128xf32>
    %11 = vector.shape_cast %10 : vector<1x16x16x128xf32> to vector<16x16x128xf32>
    %12 = vector.shape_cast %11 : vector<16x16x128xf32> to vector<256x128xf32>
    %c0_16 = arith.constant 0 : index
    %c256 = arith.constant 256 : index
    %13 = vector.load %arg8[%c0_16, %c256] : memref<256x1152xf32, #tpu.memory_space<vmem>>, vector<256x128xf32>
    tpu.vector_store %arg8[%c0_16, %c256], %12 {strides = array<i32>} : memref<256x1152xf32, #tpu.memory_space<vmem>>, vector<256x128xf32>,
    %c0_17 = arith.constant 0 : index
    %c1_18 = arith.constant 1 : index
    %c0_19 = arith.constant 0 : index
    %c0_20 = arith.constant 0 : index
    %14 = vector.load %arg2[%c0_17, %c1_18, %c0_19, %c0_20] : memref<1x18x18x128xf32, #tpu.memory_space<vmem>>, vector<1x16x16x128xf32>
    %15 = vector.shape_cast %14 : vector<1x16x16x128xf32> to vector<16x16x128xf32>
    %16 = vector.shape_cast %15 : vector<16x16x128xf32> to vector<256x128xf32>
    %c0_21 = arith.constant 0 : index
    %c384 = arith.constant 384 : index
    %17 = vector.load %arg8[%c0_21, %c384] : memref<256x1152xf32, #tpu.memory_space<vmem>>, vector<256x128xf32>
    tpu.vector_store %arg8[%c0_21, %c384], %16 {strides = array<i32>} : memref<256x1152xf32, #tpu.memory_space<vmem>>, vector<256x128xf32>,
    %c0_22 = arith.constant 0 : index
    %c1_23 = arith.constant 1 : index
    %c1_24 = arith.constant 1 : index
    %c0_25 = arith.constant 0 : index
    %18 = vector.load %arg2[%c0_22, %c1_23, %c1_24, %c0_25] : memref<1x18x18x128xf32, #tpu.memory_space<vmem>>, vector<1x16x16x128xf32>
    %19 = vector.shape_cast %18 : vector<1x16x16x128xf32> to vector<16x16x128xf32>
    %20 = vector.shape_cast %19 : vector<16x16x128xf32> to vector<256x128xf32>
    %c0_26 = arith.constant 0 : index
    %c512 = arith.constant 512 : index
    %21 = vector.load %arg8[%c0_26, %c512] : memref<256x1152xf32, #tpu.memory_space<vmem>>, vector<256x128xf32>
    tpu.vector_store %arg8[%c0_26, %c512], %20 {strides = array<i32>} : memref<256x1152xf32, #tpu.memory_space<vmem>>, vector<256x128xf32>,
    %c0_27 = arith.constant 0 : index
    %c1_28 = arith.constant 1 : index
    %c2_29 = arith.constant 2 : index
    %c0_30 = arith.constant 0 : index
    %22 = vector.load %arg2[%c0_27, %c1_28, %c2_29, %c0_30] : memref<1x18x18x128xf32, #tpu.memory_space<vmem>>, vector<1x16x16x128xf32>
    %23 = vector.shape_cast %22 : vector<1x16x16x128xf32> to vector<16x16x128xf32>
    %24 = vector.shape_cast %23 : vector<16x16x128xf32> to vector<256x128xf32>
    %c0_31 = arith.constant 0 : index
    %c640 = arith.constant 640 : index
    %25 = vector.load %arg8[%c0_31, %c640] : memref<256x1152xf32, #tpu.memory_space<vmem>>, vector<256x128xf32>
    tpu.vector_store %arg8[%c0_31, %c640], %24 {strides = array<i32>} : memref<256x1152xf32, #tpu.memory_space<vmem>>, vector<256x128xf32>,
    %c0_32 = arith.constant 0 : index
    %c2_33 = arith.constant 2 : index
    %c0_34 = arith.constant 0 : index
    %c0_35 = arith.constant 0 : index
    %26 = vector.load %arg2[%c0_32, %c2_33, %c0_34, %c0_35] : memref<1x18x18x128xf32, #tpu.memory_space<vmem>>, vector<1x16x16x128xf32>
    %27 = vector.shape_cast %26 : vector<1x16x16x128xf32> to vector<16x16x128xf32>
    %28 = vector.shape_cast %27 : vector<16x16x128xf32> to vector<256x128xf32>
    %c0_36 = arith.constant 0 : index
    %c768 = arith.constant 768 : index
    %29 = vector.load %arg8[%c0_36, %c768] : memref<256x1152xf32, #tpu.memory_space<vmem>>, vector<256x128xf32>
    tpu.vector_store %arg8[%c0_36, %c768], %28 {strides = array<i32>} : memref<256x1152xf32, #tpu.memory_space<vmem>>, vector<256x128xf32>,
    %c0_37 = arith.constant 0 : index
    %c2_38 = arith.constant 2 : index
    %c1_39 = arith.constant 1 : index
    %c0_40 = arith.constant 0 : index
    %30 = vector.load %arg2[%c0_37, %c2_38, %c1_39, %c0_40] : memref<1x18x18x128xf32, #tpu.memory_space<vmem>>, vector<1x16x16x128xf32>
    %31 = vector.shape_cast %30 : vector<1x16x16x128xf32> to vector<16x16x128xf32>
    %32 = vector.shape_cast %31 : vector<16x16x128xf32> to vector<256x128xf32>
    %c0_41 = arith.constant 0 : index
    %c896 = arith.constant 896 : index
    %33 = vector.load %arg8[%c0_41, %c896] : memref<256x1152xf32, #tpu.memory_space<vmem>>, vector<256x128xf32>
    tpu.vector_store %arg8[%c0_41, %c896], %32 {strides = array<i32>} : memref<256x1152xf32, #tpu.memory_space<vmem>>, vector<256x128xf32>,
    %c0_42 = arith.constant 0 : index
    %c2_43 = arith.constant 2 : index
    %c2_44 = arith.constant 2 : index
    %c0_45 = arith.constant 0 : index
    %34 = vector.load %arg2[%c0_42, %c2_43, %c2_44, %c0_45] : memref<1x18x18x128xf32, #tpu.memory_space<vmem>>, vector<1x16x16x128xf32>
    %35 = vector.shape_cast %34 : vector<1x16x16x128xf32> to vector<16x16x128xf32>
    %36 = vector.shape_cast %35 : vector<16x16x128xf32> to vector<256x128xf32>
    %c0_46 = arith.constant 0 : index
    %c1024 = arith.constant 1024 : index
    %37 = vector.load %arg8[%c0_46, %c1024] : memref<256x1152xf32, #tpu.memory_space<vmem>>, vector<256x128xf32>
    tpu.vector_store %arg8[%c0_46, %c1024], %36 {strides = array<i32>} : memref<256x1152xf32, #tpu.memory_space<vmem>>, vector<256x128xf32>,
    %c0_47 = arith.constant 0 : index
    %c0_48 = arith.constant 0 : index
    %38 = vector.load %arg8[%c0_47, %c0_48] : memref<256x1152xf32, #tpu.memory_space<vmem>>, vector<256x1152xf32>
    %c0_49 = arith.constant 0 : index
    %c0_50 = arith.constant 0 : index
    %39 = vector.load %arg3[%c0_49, %c0_50] : memref<1152x128xf32, #tpu.memory_space<vmem>>, vector<1152x128xf32>
    %cst = arith.constant dense<0.000000e+00> : vector<256x128xf32>
    %40 = tpu.matmul %38, %39, %cst {dimension_numbers = #tpu.dot_dimension_numbers<[1], [0], [0], [1], [0, 0, 1, 1], [], []>} : vector<256x1152xf32>, vector<1152x128xf32>, vector<256x128xf32> -> vector<256x128xf32>
    %41 = vector.broadcast %0 : vector<1x128xf32> to vector<256x128xf32>
    %42 = arith.mulf %40, %41 : vector<256x128xf32>
    %43 = vector.broadcast %1 : vector<1x128xf32> to vector<256x128xf32>
    %44 = arith.addf %42, %43 : vector<256x128xf32>
    %c0_51 = arith.constant 0 : index
    %c0_52 = arith.constant 0 : index
    %c0_53 = arith.constant 0 : index
    %c0_54 = arith.constant 0 : index
    %45 = vector.load %arg6[%c0_51, %c0_52, %c0_53, %c0_54] : memref<1x16x16x128xf32, #tpu.memory_space<vmem>>, vector<1x16x16x128xf32>
    %46 = vector.shape_cast %45 : vector<1x16x16x128xf32> to vector<16x16x128xf32>
    %47 = vector.shape_cast %46 : vector<16x16x128xf32> to vector<256x128xf32>
    %48 = arith.addf %44, %47 : vector<256x128xf32>
    %cst_55 = arith.constant 0.000000e+00 : f32
    %49 = vector.broadcast %cst_55 : f32 to vector<256x128xf32>
    %50 = arith.maximumf %48, %49 : vector<256x128xf32>
    %51 = vector.shape_cast %50 : vector<256x128xf32> to vector<16x16x128xf32>
    %c0_56 = arith.constant 0 : index
    %c0_57 = arith.constant 0 : index
    %c0_58 = arith.constant 0 : index
    %c0_59 = arith.constant 0 : index
    %52 = vector.load %arg7[%c0_56, %c0_57, %c0_58, %c0_59] : memref<1x16x16x128xf32, #tpu.memory_space<vmem>>, vector<1x16x16x128xf32>
    %53 = vector.shape_cast %52 : vector<1x16x16x128xf32> to vector<16x16x128xf32>
    %54 = vector.shape_cast %51 : vector<16x16x128xf32> to vector<1x16x16x128xf32>
    tpu.vector_store %arg7[%c0_56, %c0_57, %c0_58, %c0_59], %54 {strides = array<i32>} : memref<1x16x16x128xf32, #tpu.memory_space<vmem>>, vector<1x16x16x128xf32>,
    return
  }
  func.func @transform_0(%arg0: i32, %arg1: i32) -> (i32, i32, i32, i32) {
    %c0_i32 = arith.constant 0 : i32
    %c0_i32_0 = arith.constant 0 : i32
    %c0_i32_1 = arith.constant 0 : i32
    %c0_i32_2 = arith.constant 0 : i32
    return %arg0, %c0_i32, %c0_i32_0, %c0_i32_1 : i32, i32, i32, i32
  }
  func.func @transform_1(%arg0: i32, %arg1: i32) -> (i32, i32) {
    %c0_i32 = arith.constant 0 : i32
    %c0_i32_0 = arith.constant 0 : i32
    return %c0_i32, %arg1 : i32, i32
  }
  func.func @transform_2(%arg0: i32, %arg1: i32) -> (i32, i32) {
    %c0_i32 = arith.constant 0 : i32
    %c0_i32_0 = arith.constant 0 : i32
    return %c0_i32, %arg1 : i32, i32
  }
  func.func @transform_3(%arg0: i32, %arg1: i32) -> (i32, i32) {
    %c0_i32 = arith.constant 0 : i32
    %c0_i32_0 = arith.constant 0 : i32
    return %c0_i32, %arg1 : i32, i32
  }
  func.func @transform_4(%arg0: i32, %arg1: i32) -> (i32, i32, i32, i32) {
    %c0_i32 = arith.constant 0 : i32
    %c0_i32_0 = arith.constant 0 : i32
    %c0_i32_1 = arith.constant 0 : i32
    return %arg0, %c0_i32, %c0_i32_0, %arg1 : i32, i32, i32, i32
  }
  func.func @transform_5(%arg0: i32, %arg1: i32) -> (i32, i32, i32, i32) {
    %c0_i32 = arith.constant 0 : i32
    %c0_i32_0 = arith.constant 0 : i32
    %c0_i32_1 = arith.constant 0 : i32
    return %arg0, %c0_i32, %c0_i32_0, %arg1 : i32, i32, i32, i32
  }
}

module attributes {stable_mosaic.version = 11 : i64} {
  func.func @_conv3x3_bn_kernel(%arg0: i32, %arg1: i32, %arg2: memref<1x18x18x128xf32, #tpu.memory_space<vmem>>, %arg3: memref<1152x128xf32, #tpu.memory_space<vmem>>, %arg4: memref<1x128xf32, #tpu.memory_space<vmem>>, %arg5: memref<1x128xf32, #tpu.memory_space<vmem>>, %arg6: memref<1x16x16x128xf32, #tpu.memory_space<vmem>>, %arg7: memref<256x1152xf32, #tpu.memory_space<vmem>>) attributes {dimension_semantics = [#tpu.dimension_semantics<parallel>, #tpu.dimension_semantics<parallel>], iteration_bounds = array<i64: 2, 1>, scalar_prefetch = 0 : i64, scratch_operands = 1 : i64, tpu.core_type = #tpu.core_type<tc>, window_params = [{transform_indices = @transform_0, window_bounds = array<i64: 1, 18, 18, 128>}, {transform_indices = @transform_1, window_bounds = array<i64: 1152, 128>}, {transform_indices = @transform_2, window_bounds = array<i64: 1, 128>}, {transform_indices = @transform_3, window_bounds = array<i64: 1, 128>}, {transform_indices = @transform_4, window_bounds = array<i64: 1, 16, 16, 128>}]} {
    %c0 = arith.constant 0 : index
    %c0_0 = arith.constant 0 : index
    %0 = vector.load %arg4[%c0, %c0_0] : memref<1x128xf32, #tpu.memory_space<vmem>>, vector<1x128xf32>
    %c0_1 = arith.constant 0 : index
    %c0_2 = arith.constant 0 : index
    %1 = vector.load %arg5[%c0_1, %c0_2] : memref<1x128xf32, #tpu.memory_space<vmem>>, vector<1x128xf32>
    %c0_3 = arith.constant 0 : index
    %c0_4 = arith.constant 0 : index
    %c0_5 = arith.constant 0 : index
    %c0_6 = arith.constant 0 : index
    %2 = vector.load %arg2[%c0_3, %c0_4, %c0_5, %c0_6] : memref<1x18x18x128xf32, #tpu.memory_space<vmem>>, vector<1x16x16x128xf32>
    %3 = vector.shape_cast %2 : vector<1x16x16x128xf32> to vector<16x16x128xf32>
    %4 = vector.shape_cast %3 : vector<16x16x128xf32> to vector<256x128xf32>
    %c0_7 = arith.constant 0 : index
    %c0_8 = arith.constant 0 : index
    %5 = vector.load %arg7[%c0_7, %c0_8] : memref<256x1152xf32, #tpu.memory_space<vmem>>, vector<256x128xf32>
    tpu.vector_store %arg7[%c0_7, %c0_8], %4 {strides = array<i32>} : memref<256x1152xf32, #tpu.memory_space<vmem>>, vector<256x128xf32>,
    %c0_9 = arith.constant 0 : index
    %c0_10 = arith.constant 0 : index
    %c1 = arith.constant 1 : index
    %c0_11 = arith.constant 0 : index
    %6 = vector.load %arg2[%c0_9, %c0_10, %c1, %c0_11] : memref<1x18x18x128xf32, #tpu.memory_space<vmem>>, vector<1x16x16x128xf32>
    %7 = vector.shape_cast %6 : vector<1x16x16x128xf32> to vector<16x16x128xf32>
    %8 = vector.shape_cast %7 : vector<16x16x128xf32> to vector<256x128xf32>
    %c0_12 = arith.constant 0 : index
    %c128 = arith.constant 128 : index
    %9 = vector.load %arg7[%c0_12, %c128] : memref<256x1152xf32, #tpu.memory_space<vmem>>, vector<256x128xf32>
    tpu.vector_store %arg7[%c0_12, %c128], %8 {strides = array<i32>} : memref<256x1152xf32, #tpu.memory_space<vmem>>, vector<256x128xf32>,
    %c0_13 = arith.constant 0 : index
    %c0_14 = arith.constant 0 : index
    %c2 = arith.constant 2 : index
    %c0_15 = arith.constant 0 : index
    %10 = vector.load %arg2[%c0_13, %c0_14, %c2, %c0_15] : memref<1x18x18x128xf32, #tpu.memory_space<vmem>>, vector<1x16x16x128xf32>
    %11 = vector.shape_cast %10 : vector<1x16x16x128xf32> to vector<16x16x128xf32>
    %12 = vector.shape_cast %11 : vector<16x16x128xf32> to vector<256x128xf32>
    %c0_16 = arith.constant 0 : index
    %c256 = arith.constant 256 : index
    %13 = vector.load %arg7[%c0_16, %c256] : memref<256x1152xf32, #tpu.memory_space<vmem>>, vector<256x128xf32>
    tpu.vector_store %arg7[%c0_16, %c256], %12 {strides = array<i32>} : memref<256x1152xf32, #tpu.memory_space<vmem>>, vector<256x128xf32>,
    %c0_17 = arith.constant 0 : index
    %c1_18 = arith.constant 1 : index
    %c0_19 = arith.constant 0 : index
    %c0_20 = arith.constant 0 : index
    %14 = vector.load %arg2[%c0_17, %c1_18, %c0_19, %c0_20] : memref<1x18x18x128xf32, #tpu.memory_space<vmem>>, vector<1x16x16x128xf32>
    %15 = vector.shape_cast %14 : vector<1x16x16x128xf32> to vector<16x16x128xf32>
    %16 = vector.shape_cast %15 : vector<16x16x128xf32> to vector<256x128xf32>
    %c0_21 = arith.constant 0 : index
    %c384 = arith.constant 384 : index
    %17 = vector.load %arg7[%c0_21, %c384] : memref<256x1152xf32, #tpu.memory_space<vmem>>, vector<256x128xf32>
    tpu.vector_store %arg7[%c0_21, %c384], %16 {strides = array<i32>} : memref<256x1152xf32, #tpu.memory_space<vmem>>, vector<256x128xf32>,
    %c0_22 = arith.constant 0 : index
    %c1_23 = arith.constant 1 : index
    %c1_24 = arith.constant 1 : index
    %c0_25 = arith.constant 0 : index
    %18 = vector.load %arg2[%c0_22, %c1_23, %c1_24, %c0_25] : memref<1x18x18x128xf32, #tpu.memory_space<vmem>>, vector<1x16x16x128xf32>
    %19 = vector.shape_cast %18 : vector<1x16x16x128xf32> to vector<16x16x128xf32>
    %20 = vector.shape_cast %19 : vector<16x16x128xf32> to vector<256x128xf32>
    %c0_26 = arith.constant 0 : index
    %c512 = arith.constant 512 : index
    %21 = vector.load %arg7[%c0_26, %c512] : memref<256x1152xf32, #tpu.memory_space<vmem>>, vector<256x128xf32>
    tpu.vector_store %arg7[%c0_26, %c512], %20 {strides = array<i32>} : memref<256x1152xf32, #tpu.memory_space<vmem>>, vector<256x128xf32>,
    %c0_27 = arith.constant 0 : index
    %c1_28 = arith.constant 1 : index
    %c2_29 = arith.constant 2 : index
    %c0_30 = arith.constant 0 : index
    %22 = vector.load %arg2[%c0_27, %c1_28, %c2_29, %c0_30] : memref<1x18x18x128xf32, #tpu.memory_space<vmem>>, vector<1x16x16x128xf32>
    %23 = vector.shape_cast %22 : vector<1x16x16x128xf32> to vector<16x16x128xf32>
    %24 = vector.shape_cast %23 : vector<16x16x128xf32> to vector<256x128xf32>
    %c0_31 = arith.constant 0 : index
    %c640 = arith.constant 640 : index
    %25 = vector.load %arg7[%c0_31, %c640] : memref<256x1152xf32, #tpu.memory_space<vmem>>, vector<256x128xf32>
    tpu.vector_store %arg7[%c0_31, %c640], %24 {strides = array<i32>} : memref<256x1152xf32, #tpu.memory_space<vmem>>, vector<256x128xf32>,
    %c0_32 = arith.constant 0 : index
    %c2_33 = arith.constant 2 : index
    %c0_34 = arith.constant 0 : index
    %c0_35 = arith.constant 0 : index
    %26 = vector.load %arg2[%c0_32, %c2_33, %c0_34, %c0_35] : memref<1x18x18x128xf32, #tpu.memory_space<vmem>>, vector<1x16x16x128xf32>
    %27 = vector.shape_cast %26 : vector<1x16x16x128xf32> to vector<16x16x128xf32>
    %28 = vector.shape_cast %27 : vector<16x16x128xf32> to vector<256x128xf32>
    %c0_36 = arith.constant 0 : index
    %c768 = arith.constant 768 : index
    %29 = vector.load %arg7[%c0_36, %c768] : memref<256x1152xf32, #tpu.memory_space<vmem>>, vector<256x128xf32>
    tpu.vector_store %arg7[%c0_36, %c768], %28 {strides = array<i32>} : memref<256x1152xf32, #tpu.memory_space<vmem>>, vector<256x128xf32>,
    %c0_37 = arith.constant 0 : index
    %c2_38 = arith.constant 2 : index
    %c1_39 = arith.constant 1 : index
    %c0_40 = arith.constant 0 : index
    %30 = vector.load %arg2[%c0_37, %c2_38, %c1_39, %c0_40] : memref<1x18x18x128xf32, #tpu.memory_space<vmem>>, vector<1x16x16x128xf32>
    %31 = vector.shape_cast %30 : vector<1x16x16x128xf32> to vector<16x16x128xf32>
    %32 = vector.shape_cast %31 : vector<16x16x128xf32> to vector<256x128xf32>
    %c0_41 = arith.constant 0 : index
    %c896 = arith.constant 896 : index
    %33 = vector.load %arg7[%c0_41, %c896] : memref<256x1152xf32, #tpu.memory_space<vmem>>, vector<256x128xf32>
    tpu.vector_store %arg7[%c0_41, %c896], %32 {strides = array<i32>} : memref<256x1152xf32, #tpu.memory_space<vmem>>, vector<256x128xf32>,
    %c0_42 = arith.constant 0 : index
    %c2_43 = arith.constant 2 : index
    %c2_44 = arith.constant 2 : index
    %c0_45 = arith.constant 0 : index
    %34 = vector.load %arg2[%c0_42, %c2_43, %c2_44, %c0_45] : memref<1x18x18x128xf32, #tpu.memory_space<vmem>>, vector<1x16x16x128xf32>
    %35 = vector.shape_cast %34 : vector<1x16x16x128xf32> to vector<16x16x128xf32>
    %36 = vector.shape_cast %35 : vector<16x16x128xf32> to vector<256x128xf32>
    %c0_46 = arith.constant 0 : index
    %c1024 = arith.constant 1024 : index
    %37 = vector.load %arg7[%c0_46, %c1024] : memref<256x1152xf32, #tpu.memory_space<vmem>>, vector<256x128xf32>
    tpu.vector_store %arg7[%c0_46, %c1024], %36 {strides = array<i32>} : memref<256x1152xf32, #tpu.memory_space<vmem>>, vector<256x128xf32>,
    %c0_47 = arith.constant 0 : index
    %c0_48 = arith.constant 0 : index
    %38 = vector.load %arg7[%c0_47, %c0_48] : memref<256x1152xf32, #tpu.memory_space<vmem>>, vector<256x1152xf32>
    %c0_49 = arith.constant 0 : index
    %c0_50 = arith.constant 0 : index
    %39 = vector.load %arg3[%c0_49, %c0_50] : memref<1152x128xf32, #tpu.memory_space<vmem>>, vector<1152x128xf32>
    %cst = arith.constant dense<0.000000e+00> : vector<256x128xf32>
    %40 = tpu.matmul %38, %39, %cst {dimension_numbers = #tpu.dot_dimension_numbers<[1], [0], [0], [1], [0, 0, 1, 1], [], []>} : vector<256x1152xf32>, vector<1152x128xf32>, vector<256x128xf32> -> vector<256x128xf32>
    %41 = vector.broadcast %0 : vector<1x128xf32> to vector<256x128xf32>
    %42 = arith.mulf %40, %41 : vector<256x128xf32>
    %43 = vector.broadcast %1 : vector<1x128xf32> to vector<256x128xf32>
    %44 = arith.addf %42, %43 : vector<256x128xf32>
    %cst_51 = arith.constant 0.000000e+00 : f32
    %45 = vector.broadcast %cst_51 : f32 to vector<256x128xf32>
    %46 = arith.maximumf %44, %45 : vector<256x128xf32>
    %47 = vector.shape_cast %46 : vector<256x128xf32> to vector<16x16x128xf32>
    %c0_52 = arith.constant 0 : index
    %c0_53 = arith.constant 0 : index
    %c0_54 = arith.constant 0 : index
    %c0_55 = arith.constant 0 : index
    %48 = vector.load %arg6[%c0_52, %c0_53, %c0_54, %c0_55] : memref<1x16x16x128xf32, #tpu.memory_space<vmem>>, vector<1x16x16x128xf32>
    %49 = vector.shape_cast %48 : vector<1x16x16x128xf32> to vector<16x16x128xf32>
    %50 = vector.shape_cast %47 : vector<16x16x128xf32> to vector<1x16x16x128xf32>
    tpu.vector_store %arg6[%c0_52, %c0_53, %c0_54, %c0_55], %50 {strides = array<i32>} : memref<1x16x16x128xf32, #tpu.memory_space<vmem>>, vector<1x16x16x128xf32>,
    return
  }
  func.func @transform_0(%arg0: i32, %arg1: i32) -> (i32, i32, i32, i32) {
    %c0_i32 = arith.constant 0 : i32
    %c0_i32_0 = arith.constant 0 : i32
    %c0_i32_1 = arith.constant 0 : i32
    %c0_i32_2 = arith.constant 0 : i32
    return %arg0, %c0_i32, %c0_i32_0, %c0_i32_1 : i32, i32, i32, i32
  }
  func.func @transform_1(%arg0: i32, %arg1: i32) -> (i32, i32) {
    %c0_i32 = arith.constant 0 : i32
    %c0_i32_0 = arith.constant 0 : i32
    return %c0_i32, %arg1 : i32, i32
  }
  func.func @transform_2(%arg0: i32, %arg1: i32) -> (i32, i32) {
    %c0_i32 = arith.constant 0 : i32
    %c0_i32_0 = arith.constant 0 : i32
    return %c0_i32, %arg1 : i32, i32
  }
  func.func @transform_3(%arg0: i32, %arg1: i32) -> (i32, i32) {
    %c0_i32 = arith.constant 0 : i32
    %c0_i32_0 = arith.constant 0 : i32
    return %c0_i32, %arg1 : i32, i32
  }
  func.func @transform_4(%arg0: i32, %arg1: i32) -> (i32, i32, i32, i32) {
    %c0_i32 = arith.constant 0 : i32
    %c0_i32_0 = arith.constant 0 : i32
    %c0_i32_1 = arith.constant 0 : i32
    return %arg0, %c0_i32, %c0_i32_0, %arg1 : i32, i32, i32, i32
  }
}

</mosaic_0001>

<llo_original>
// kernel: basic_block_forward.3
$region0: #{basic_block_forward.3}
  #allocation0 [shape = 'u32[]', space=smem, size = 0x4, offset = 0x4, fixed_abs, tag = 'smem constant byte address 0x4 - core index']
  #allocation1 [shape = 'u32[144,128]{1,0:T(1,128)}', space=vmem, size = 0x12000, scoped, tag = 'internal scratch']
  #allocation2 [shape = 'f32[256,1152]{1,0:T(8,128)}', space=vmem, size = 0x120000, scoped, tag = 'scratch operand']
  %s0 = inlined_call_operand.vmem [shape: f32[2,18,18,128], index: 0, kind: input, shape index: {}]
  %s1 = inlined_call_operand.vmem [shape: f32[1152,128], index: 1, kind: input, shape index: {}]
  %s2 = inlined_call_operand.vmem [shape: f32[1,128], index: 2, kind: input, shape index: {}]
  %s3 = inlined_call_operand.vmem [shape: f32[1,128], index: 3, kind: input, shape index: {}]
  %s4 = inlined_call_operand.vmem [shape: f32[2,16,16,128], index: 4, kind: input, shape index: {}]
  %s5 = inlined_call_operand.vmem [shape: f32[2,16,16,128], index: 5, kind: output, shape index: {}]
  %s6 = sld [smem:[#allocation0]]
  $region53: #{basic_block_forward.3} parent=0
    _
  %s8 = ssub.s32 1, %s6
  %s9 = scalar_select 0, %s8, %s6
  loop: start=0, step=1, limit=4
  $region2: #{basic_block_forward.3} parent=0 // loop_pre_header
    _
  $region3: #{basic_block_forward.3} parent=0 // loop_header
    %s11 = sphi 0, %s15
    %p12 = scmp.ge.s32.totalorder %s11, 4
    %s18 = sphi 0, %s30
    %s19 = sphi 0, %s26
    %s20 = sphi 0, %s18
    %s21 = sphi 0, %s19
    %s22 = sphi 0, %s20
    %s23 = sphi 0, %s21
    %s33 = sphi 0, %s35
    %s36 = sphi 0, %s33
    %s37 = sphi 0, %s36
    %s53 = sphi 0, %s37
    %s59 = sphi 0, %s61
    %s62 = sphi 0, %s59
    %s63 = sphi 0, %s62
    %s79 = sphi 0, %s63
    %s85 = sphi 0, %s87
    %s88 = sphi 0, %s85
    %s89 = sphi 0, %s88
    %s105 = sphi 0, %s89
    %s111 = sphi 0, %s113
    %s114 = sphi 0, %s111
    %s115 = sphi 0, %s114
    %s131 = sphi 0, %s115
    %s139 = sphi 0, %s141
    %s142 = sphi 0, %s139
    %s143 = sphi 0, %s142
    %s159 = sphi 0, %s143
    %s167 = sphi 0, %s169
    %s170 = sphi 0, %s167
    %s171 = sphi 0, %s170
    %s187 = sphi 0, %s171
  $region4: #{basic_block_forward.3} parent=0 // loop_header_branch
    %14 = sbr.rel (%p12) target = $region8
  $region5: #{basic_block_forward.3} parent=0 // loop_body
    %s16 = ssub.s32 %s11, 1
    %s17 = ssub.s32 %s11, 2
    %s24 = sadd.s32 1, %s19
    %p25 = scmp.ge.s32.totalorder %s24, 1
    %s26 = scalar_select %p25, 0, %s24
    %s27 = sadd.s32 1, %s18
    %s28 = scalar_select %p25, %s27, %s18
    %p29 = scmp.ge.s32.totalorder %s28, 2
    %s30 = scalar_select %p29, 0, %s28
    %s31 = ssub.s32 %s18, %s30
    %p32 = scmp.eq.s32.totalorder %s31, 0
    %s34 = sadd.s32 %s33, 1
    %s35 = scalar_select %p32, %s33, %s34
    %p38 = pneg %p32
    %p39 = scmp.eq.s32.totalorder %s11, 1
    %p40 = por %p38, %p39
    %p41 = scmp.ne.s32.totalorder %s33, %s36
    %p42 = scmp.eq.s32.totalorder %s11, 0
    %p43 = por %p41, %p42
    %p44 = scmp.ne.s32.totalorder %s33, %s36
    %p45 = scmp.eq.s32.totalorder %s16, 1
    %p46 = por %p44, %p45
    %p47 = scmp.ne.s32.totalorder %s36, %s37
    %p48 = scmp.eq.s32.totalorder %s16, 0
    %p49 = por %p47, %p48
    %p50 = scmp.ne.s32.totalorder %s36, %s37
    %p51 = scmp.eq.s32.totalorder %s17, 1
    %p52 = por %p50, %p51
    %p54 = scmp.ne.s32.totalorder %s37, %s53
    %p55 = scmp.eq.s32.totalorder %s17, 0
    %p56 = por %p54, %p55
    %s57 = ssub.s32 %s19, %s26
    %p58 = scmp.eq.s32.totalorder %s57, 0
    %s60 = sadd.s32 %s59, 1
    %s61 = scalar_select %p58, %s59, %s60
    %p64 = pneg %p58
    %p65 = scmp.eq.s32.totalorder %s11, 1
    %p66 = por %p64, %p65
    %p67 = scmp.ne.s32.totalorder %s59, %s62
    %p68 = scmp.eq.s32.totalorder %s11, 0
    %p69 = por %p67, %p68
    %p70 = scmp.ne.s32.totalorder %s59, %s62
    %p71 = scmp.eq.s32.totalorder %s16, 1
    %p72 = por %p70, %p71
    %p73 = scmp.ne.s32.totalorder %s62, %s63
    %p74 = scmp.eq.s32.totalorder %s16, 0
    %p75 = por %p73, %p74
    %p76 = scmp.ne.s32.totalorder %s62, %s63
    %p77 = scmp.eq.s32.totalorder %s17, 1
    %p78 = por %p76, %p77
    %p80 = scmp.ne.s32.totalorder %s63, %s79
    %p81 = scmp.eq.s32.totalorder %s17, 0
    %p82 = por %p80, %p81
    %s83 = ssub.s32 %s19, %s26
    %p84 = scmp.eq.s32.totalorder %s83, 0
    %s86 = sadd.s32 %s85, 1
    %s87 = scalar_select %p84, %s85, %s86
    %p90 = pneg %p84
    %p91 = scmp.eq.s32.totalorder %s11, 1
    %p92 = por %p90, %p91
    %p93 = scmp.ne.s32.totalorder %s85, %s88
    %p94 = scmp.eq.s32.totalorder %s11, 0
    %p95 = por %p93, %p94
    %p96 = scmp.ne.s32.totalorder %s85, %s88
    %p97 = scmp.eq.s32.totalorder %s16, 1
    %p98 = por %p96, %p97
    %p99 = scmp.ne.s32.totalorder %s88, %s89
    %p100 = scmp.eq.s32.totalorder %s16, 0
    %p101 = por %p99, %p100
    %p102 = scmp.ne.s32.totalorder %s88, %s89
    %p103 = scmp.eq.s32.totalorder %s17, 1
    %p104 = por %p102, %p103
    %p106 = scmp.ne.s32.totalorder %s89, %s105
    %p107 = scmp.eq.s32.totalorder %s17, 0
    %p108 = por %p106, %p107
    %s109 = ssub.s32 %s19, %s26
    %p110 = scmp.eq.s32.totalorder %s109, 0
    %s112 = sadd.s32 %s111, 1
    %s113 = scalar_select %p110, %s111, %s112
    %p116 = pneg %p110
    %p117 = scmp.eq.s32.totalorder %s11, 1
    %p118 = por %p116, %p117
    %p119 = scmp.ne.s32.totalorder %s111, %s114
    %p120 = scmp.eq.s32.totalorder %s11, 0
    %p121 = por %p119, %p120
    %p122 = scmp.ne.s32.totalorder %s111, %s114
    %p123 = scmp.eq.s32.totalorder %s16, 1
    %p124 = por %p122, %p123
    %p125 = scmp.ne.s32.totalorder %s114, %s115
    %p126 = scmp.eq.s32.totalorder %s16, 0
    %p127 = por %p125, %p126
    %p128 = scmp.ne.s32.totalorder %s114, %s115
    %p129 = scmp.eq.s32.totalorder %s17, 1
    %p130 = por %p128, %p129
    %p132 = scmp.ne.s32.totalorder %s115, %s131
    %p133 = scmp.eq.s32.totalorder %s17, 0
    %p134 = por %p132, %p133
    %s135 = ssub.s32 %s18, %s30
    %s136 = ssub.s32 %s19, %s26
    %s137 = sor.u32 %s135, %s136
    %p138 = scmp.eq.s32.totalorder %s137, 0
    %s140 = sadd.s32 %s139, 1
    %s141 = scalar_select %p138, %s139, %s140
    %p144 = pneg %p138
    %p145 = scmp.eq.s32.totalorder %s11, 1
    %p146 = por %p144, %p145
    %p147 = scmp.ne.s32.totalorder %s139, %s142
    %p148 = scmp.eq.s32.totalorder %s11, 0
    %p149 = por %p147, %p148
    %p150 = scmp.ne.s32.totalorder %s139, %s142
    %p151 = scmp.eq.s32.totalorder %s16, 1
    %p152 = por %p150, %p151
    %p153 = scmp.ne.s32.totalorder %s142, %s143
    %p154 = scmp.eq.s32.totalorder %s16, 0
    %p155 = por %p153, %p154
    %p156 = scmp.ne.s32.totalorder %s142, %s143
    %p157 = scmp.eq.s32.totalorder %s17, 1
    %p158 = por %p156, %p157
    %p160 = scmp.ne.s32.totalorder %s143, %s159
    %p161 = scmp.eq.s32.totalorder %s17, 0
    %p162 = por %p160, %p161
    %s163 = ssub.s32 %s18, %s30
    %s164 = ssub.s32 %s19, %s26
    %s165 = sor.u32 %s163, %s164
    %p166 = scmp.eq.s32.totalorder %s165, 0
    %s168 = sadd.s32 %s167, 1
    %s169 = scalar_select %p166, %s167, %s168
    %p172 = pneg %p166
    %p173 = scmp.eq.s32.totalorder %s11, 1
    %p174 = por %p172, %p173
    %p175 = scmp.ne.s32.totalorder %s167, %s170
    %p176 = scmp.eq.s32.totalorder %s11, 0
    %p177 = por %p175, %p176
    %p178 = scmp.ne.s32.totalorder %s167, %s170
    %p179 = scmp.eq.s32.totalorder %s16, 1
    %p180 = por %p178, %p179
    %p181 = scmp.ne.s32.totalorder %s170, %s171
    %p182 = scmp.eq.s32.totalorder %s16, 0
    %p183 = por %p181, %p182
    %p184 = scmp.ne.s32.totalorder %s170, %s171
    %p185 = scmp.eq.s32.totalorder %s17, 1
    %p186 = por %p184, %p185
    %p188 = scmp.ne.s32.totalorder %s171, %s187
    %p189 = scmp.eq.s32.totalorder %s17, 0
    %p190 = por %p188, %p189
    %p191 = scmp.le.s32.totalorder 1, %s11
    %p192 = scmp.lt.s32.totalorder %s11, 3
    %p193 = pnand %p191, %p192
    %p194 = pneg %p193
    // Predicated region
    $region9: #{basic_block_forward.3} parent=5 // pred_check
      _
    $region10: #{basic_block_forward.3} parent=5 // pred_check_branch
      %196 = sbr.rel (%p193) target = $region12
    $region11: #{basic_block_forward.3} parent=5 // pred_region
      %s197 = ssub.s32 %s11, 1
      // Predicated region
      $region13: #{basic_block_forward.3} parent=11 // pred_check
        %p198 = pneg %p75
      $region14: #{basic_block_forward.3} parent=11 // pred_check_branch
        %200 = sbr.rel (%p198) target = $region16
      $region15: #{basic_block_forward.3} parent=11 // pred_region
        %p201 = scmp.lt.s32.totalorder %s21, 0
        %s202 = scalar_select %p201, %s21, 0
        %s203 = smul.addr %s202, 8
        %s204 = scalar_lea.vmem %s1, %s203
      $region16: #{basic_block_forward.3} parent=11 // pred_fallthru
        _
      // Predicated region
      $region17: #{basic_block_forward.3} parent=11 // pred_check
        %p205 = pneg %p101
      $region18: #{basic_block_forward.3} parent=11 // pred_check_branch
        %207 = sbr.rel (%p205) target = $region20
      $region19: #{basic_block_forward.3} parent=11 // pred_region
        %p208 = scmp.lt.s32.totalorder %s21, 0
        %s209 = scalar_select %p208, %s21, 0
        %s210 = scalar_lea.vmem %s2, %s209
      $region20: #{basic_block_forward.3} parent=11 // pred_fallthru
        _
      // Predicated region
      $region21: #{basic_block_forward.3} parent=11 // pred_check
        %p211 = pneg %p127
      $region22: #{basic_block_forward.3} parent=11 // pred_check_branch
        %213 = sbr.rel (%p211) target = $region24
      $region23: #{basic_block_forward.3} parent=11 // pred_region
        %p214 = scmp.lt.s32.totalorder %s21, 0
        %s215 = scalar_select %p214, %s21, 0
        %s216 = scalar_lea.vmem %s3, %s215
      $region24: #{basic_block_forward.3} parent=11 // pred_fallthru
        _
    $region12: #{basic_block_forward.3} parent=5 // pred_fallthru
      _
    %p217 = scmp.lt.s32.totalorder %s11, 2
    // Predicated region
    $region25: #{basic_block_forward.3} parent=5 // pred_check
      %p218 = pneg %p217
    $region26: #{basic_block_forward.3} parent=5 // pred_check_branch
      %220 = sbr.rel (%p218) target = $region28
    $region27: #{basic_block_forward.3} parent=5 // pred_region
      // Predicated region
      $region29: #{basic_block_forward.3} parent=27 // pred_check
        %p221 = pneg %p43
      $region30: #{basic_block_forward.3} parent=27 // pred_check_branch
        %223 = sbr.rel (%p221) target = $region32
      $region31: #{basic_block_forward.3} parent=27 // pred_region
        %p224 = scmp.lt.s32.totalorder %s18, 1
        %s225 = scalar_select %p224, %s18, 1
        %s226 = smul.addr %s225, 54
        %s227 = smul.addr %s226, 8
        %s228 = scalar_lea.vmem %s0, %s227
      $region32: #{basic_block_forward.3} parent=27 // pred_fallthru
        _
      // Predicated region
      $region33: #{basic_block_forward.3} parent=27 // pred_check
        %p229 = pneg %p149
      $region34: #{basic_block_forward.3} parent=27 // pred_check_branch
        %231 = sbr.rel (%p229) target = $region36
      $region35: #{basic_block_forward.3} parent=27 // pred_region
        %p232 = scmp.lt.s32.totalorder %s18, 1
        %s233 = scalar_select %p232, %s18, 1
        %p234 = scmp.lt.s32.totalorder %s19, 0
        %s235 = scalar_select %p234, %s19, 0
        %s236 = smul.addr %s233, 32
        %s237 = sadd.s32 %s235, %s236
        %s238 = smul.addr %s237, 8
        %s239 = scalar_lea.vmem %s4, %s238
      $region36: #{basic_block_forward.3} parent=27 // pred_fallthru
        _
    $region28: #{basic_block_forward.3} parent=5 // pred_fallthru
      _
    %p240 = scmp.le.s32.totalorder 1, %s11
    %p241 = scmp.lt.s32.totalorder %s11, 3
    %p242 = pnand %p240, %p241
    %p243 = pneg %p242
    // Predicated region
    $region37: #{basic_block_forward.3} parent=5 // pred_check
      _
    $region38: #{basic_block_forward.3} parent=5 // pred_check_branch
      %245 = sbr.rel (%p242) target = $region40
    $region39: #{basic_block_forward.3} parent=5 // pred_region
      %s246 = ssub.s32 %s11, 1
      %p247 = scmp.lt.s32.totalorder %s20, 1
      %s248 = scalar_select %p247, %s20, 1
      %s249 = smul.addr %s248, 54
      %s250 = smul.addr %s249, 8
      %s251 = scalar_lea.vmem %s0, %s250
      %p252 = pneg %p49
      %p253 = pneg %p46
      %p254 = scmp.lt.s32.totalorder %s21, 0
      %s255 = scalar_select %p254, %s21, 0
      %s256 = smul.addr %s255, 8
      %s257 = scalar_lea.vmem %s1, %s256
      %p258 = pneg %p75
      %p259 = pneg %p72
      %p260 = scmp.lt.s32.totalorder %s21, 0
      %s261 = scalar_select %p260, %s21, 0
      %s262 = scalar_lea.vmem %s2, %s261
      %p263 = pneg %p101
      %p264 = pneg %p98
      %p265 = scmp.lt.s32.totalorder %s21, 0
      %s266 = scalar_select %p265, %s21, 0
      %s267 = scalar_lea.vmem %s3, %s266
      %p268 = pneg %p127
      %p269 = pneg %p124
      %p270 = scmp.lt.s32.totalorder %s20, 1
      %s271 = scalar_select %p270, %s20, 1
      %p272 = scmp.lt.s32.totalorder %s21, 0
      %s273 = scalar_select %p272, %s21, 0
      %s274 = smul.addr %s271, 32
      %s275 = sadd.s32 %s273, %s274
      %s276 = smul.addr %s275, 8
      %s277 = scalar_lea.vmem %s4, %s276
      %p278 = pneg %p155
      %p279 = pneg %p152
      %p280 = pneg %p183
      %p281 = pneg %p180
      %p282 = scmp.lt.s32.totalorder %s20, 1
      %s283 = scalar_select %p282, %s20, 1
      %p284 = scmp.lt.s32.totalorder %s21, 0
      %s285 = scalar_select %p284, %s21, 0
      %s286 = smul.addr %s283, 32
      %s287 = sadd.s32 %s285, %s286
      %s288 = smul.addr %s287, 8
      %s289 = scalar_lea.vmem %s5, %s288
      %p290 = scmp.lt.s32.totalorder %s20, 1
      %s291 = scalar_select %p290, %s20, 1
      %s292 = smul.addr %s291, 54
      %s293 = smul.addr %s292, 8
      %s294 = scalar_lea.vmem %s0, %s293
      %p295 = scmp.lt.s32.totalorder %s21, 0
      %s296 = scalar_select %p295, %s21, 0
      %s297 = smul.addr %s296, 8
      %s298 = scalar_lea.vmem %s1, %s297
      %p299 = scmp.lt.s32.totalorder %s21, 0
      %s300 = scalar_select %p299, %s21, 0
      %s301 = scalar_lea.vmem %s2, %s300
      %p302 = scmp.lt.s32.totalorder %s21, 0
      %s303 = scalar_select %p302, %s21, 0
      %s304 = scalar_lea.vmem %s3, %s303
      %p305 = scmp.lt.s32.totalorder %s20, 1
      %s306 = scalar_select %p305, %s20, 1
      %p307 = scmp.lt.s32.totalorder %s21, 0
      %s308 = scalar_select %p307, %s21, 0
      %s309 = smul.addr %s306, 32
      %s310 = sadd.s32 %s308, %s309
      %s311 = smul.addr %s310, 8
      %s312 = scalar_lea.vmem %s4, %s311
      %p313 = scmp.lt.s32.totalorder %s20, 1
      %s314 = scalar_select %p313, %s20, 1
      %p315 = scmp.lt.s32.totalorder %s21, 0
      %s316 = scalar_select %p315, %s21, 0
      %s317 = smul.addr %s314, 32
      %s318 = sadd.s32 %s316, %s317
      %s319 = smul.addr %s318, 8
      %s320 = scalar_lea.vmem %s5, %s319
      %v321 = vld [vmem:[%s301] sm:$0x1]
      %v322 = vld [vmem:[%s304] sm:$0x1]
      %v323 = vld [vmem:[%s294] sm:$0xff]
      %v324 = vld [vmem:[%s294 + $0x8] sm:$0xff]
      %v325 = vld [vmem:[%s294 + $0x18] sm:$0xff]
      %v326 = vld [vmem:[%s294 + $0x20] sm:$0xff]
      %v327 = vld [vmem:[%s294 + $0x30] sm:$0xff]
      %v328 = vld [vmem:[%s294 + $0x38] sm:$0xff]
      %v329 = vld [vmem:[%s294 + $0x48] sm:$0xff]
      %v330 = vld [vmem:[%s294 + $0x50] sm:$0xff]
      %v331 = vld [vmem:[%s294 + $0x60] sm:$0xff]
      %v332 = vld [vmem:[%s294 + $0x68] sm:$0xff]
      %v333 = vld [vmem:[%s294 + $0x78] sm:$0xff]
      %v334 = vld [vmem:[%s294 + $0x80] sm:$0xff]
      %v335 = vld [vmem:[%s294 + $0x90] sm:$0xff]
      %v336 = vld [vmem:[%s294 + $0x98] sm:$0xff]
      %v337 = vld [vmem:[%s294 + $0xa8] sm:$0xff]
      %v338 = vld [vmem:[%s294 + $0xb0] sm:$0xff]
      %v339 = vld [vmem:[%s294 + $0xc0] sm:$0xff]
      %v340 = vld [vmem:[%s294 + $0xc8] sm:$0xff]
      %v341 = vld [vmem:[%s294 + $0xd8] sm:$0xff]
      %v342 = vld [vmem:[%s294 + $0xe0] sm:$0xff]
      %v343 = vld [vmem:[%s294 + $0xf0] sm:$0xff]
      %v344 = vld [vmem:[%s294 + $0xf8] sm:$0xff]
      %v345 = vld [vmem:[%s294 + $0x108] sm:$0xff]
      %v346 = vld [vmem:[%s294 + $0x110] sm:$0xff]
      %v347 = vld [vmem:[%s294 + $0x120] sm:$0xff]
      %v348 = vld [vmem:[%s294 + $0x128] sm:$0xff]
      %v349 = vld [vmem:[%s294 + $0x138] sm:$0xff]
      %v350 = vld [vmem:[%s294 + $0x140] sm:$0xff]
      %v351 = vld [vmem:[%s294 + $0x150] sm:$0xff]
      %v352 = vld [vmem:[%s294 + $0x158] sm:$0xff]
      %v353 = vld [vmem:[%s294 + $0x168] sm:$0xff]
      %v354 = vld [vmem:[%s294 + $0x170] sm:$0xff]
      %355 = vst [vmem:[#allocation2] sm:$0xff] %v323
      %356 = vst [vmem:[#allocation2 + $0x48] sm:$0xff] %v324
      %357 = vst [vmem:[#allocation2 + $0x90] sm:$0xff] %v325
      %358 = vst [vmem:[#allocation2 + $0xd8] sm:$0xff] %v326
      %359 = vst [vmem:[#allocation2 + $0x120] sm:$0xff] %v327
      %360 = vst [vmem:[#allocation2 + $0x168] sm:$0xff] %v328
      %361 = vst [vmem:[#allocation2 + $0x1b0] sm:$0xff] %v329
      %362 = vst [vmem:[#allocation2 + $0x1f8] sm:$0xff] %v330
      %363 = vst [vmem:[#allocation2 + $0x240] sm:$0xff] %v331
      %364 = vst [vmem:[#allocation2 + $0x288] sm:$0xff] %v332
      %365 = vst [vmem:[#allocation2 + $0x2d0] sm:$0xff] %v333
      %366 = vst [vmem:[#allocation2 + $0x318] sm:$0xff] %v334
      %367 = vst [vmem:[#allocation2 + $0x360] sm:$0xff] %v335
      %368 = vst [vmem:[#allocation2 + $0x3a8] sm:$0xff] %v336
      %369 = vst [vmem:[#allocation2 + $0x3f0] sm:$0xff] %v337
      %370 = vst [vmem:[#allocation2 + $0x438] sm:$0xff] %v338
      %371 = vst [vmem:[#allocation2 + $0x480] sm:$0xff] %v339
      %372 = vst [vmem:[#allocation2 + $0x4c8] sm:$0xff] %v340
      %373 = vst [vmem:[#allocation2 + $0x510] sm:$0xff] %v341
      %374 = vst [vmem:[#allocation2 + $0x558] sm:$0xff] %v342
      %375 = vst [vmem:[#allocation2 + $0x5a0] sm:$0xff] %v343
      %376 = vst [vmem:[#allocation2 + $0x5e8] sm:$0xff] %v344
      %377 = vst [vmem:[#allocation2 + $0x630] sm:$0xff] %v345
      %378 = vst [vmem:[#allocation2 + $0x678] sm:$0xff] %v346
      %379 = vst [vmem:[#allocation2 + $0x6c0] sm:$0xff] %v347
      %380 = vst [vmem:[#allocation2 + $0x708] sm:$0xff] %v348
      %381 = vst [vmem:[#allocation2 + $0x750] sm:$0xff] %v349
      %382 = vst [vmem:[#allocation2 + $0x798] sm:$0xff] %v350
      %383 = vst [vmem:[#allocation2 + $0x7e0] sm:$0xff] %v351
      %384 = vst [vmem:[#allocation2 + $0x828] sm:$0xff] %v352
      %385 = vst [vmem:[#allocation2 + $0x870] sm:$0xff] %v353
      %386 = vst [vmem:[#allocation2 + $0x8b8] sm:$0xff] %v354
      %v387 = vld [vmem:[%s294 + $0x1] sm:$0xff]
      %v388 = vld [vmem:[%s294 + $0x9] sm:$0xff]
      %v389 = vld [vmem:[%s294 + $0x19] sm:$0xff]
      %v390 = vld [vmem:[%s294 + $0x21] sm:$0xff]
      %v391 = vld [vmem:[%s294 + $0x31] sm:$0xff]
      %v392 = vld [vmem:[%s294 + $0x39] sm:$0xff]
      %v393 = vld [vmem:[%s294 + $0x49] sm:$0xff]
      %v394 = vld [vmem:[%s294 + $0x51] sm:$0xff]
      %v395 = vld [vmem:[%s294 + $0x61] sm:$0xff]
      %v396 = vld [vmem:[%s294 + $0x69] sm:$0xff]
      %v397 = vld [vmem:[%s294 + $0x79] sm:$0xff]
      %v398 = vld [vmem:[%s294 + $0x81] sm:$0xff]
      %v399 = vld [vmem:[%s294 + $0x91] sm:$0xff]
      %v400 = vld [vmem:[%s294 + $0x99] sm:$0xff]
      %v401 = vld [vmem:[%s294 + $0xa9] sm:$0xff]
      %v402 = vld [vmem:[%s294 + $0xb1] sm:$0xff]
      %v403 = vld [vmem:[%s294 + $0xc1] sm:$0xff]
      %v404 = vld [vmem:[%s294 + $0xc9] sm:$0xff]
      %v405 = vld [vmem:[%s294 + $0xd9] sm:$0xff]
      %v406 = vld [vmem:[%s294 + $0xe1] sm:$0xff]
      %v407 = vld [vmem:[%s294 + $0xf1] sm:$0xff]
      %v408 = vld [vmem:[%s294 + $0xf9] sm:$0xff]
      %v409 = vld [vmem:[%s294 + $0x109] sm:$0xff]
      %v410 = vld [vmem:[%s294 + $0x111] sm:$0xff]
      %v411 = vld [vmem:[%s294 + $0x121] sm:$0xff]
      %v412 = vld [vmem:[%s294 + $0x129] sm:$0xff]
      %v413 = vld [vmem:[%s294 + $0x139] sm:$0xff]
      %v414 = vld [vmem:[%s294 + $0x141] sm:$0xff]
      %v415 = vld [vmem:[%s294 + $0x151] sm:$0xff]
      %v416 = vld [vmem:[%s294 + $0x159] sm:$0xff]
      %v417 = vld [vmem:[%s294 + $0x169] sm:$0xff]
      %v418 = vld [vmem:[%s294 + $0x171] sm:$0xff]
      %419 = vst [vmem:[#allocation2 + $0x8] sm:$0xff] %v387
      %420 = vst [vmem:[#allocation2 + $0x50] sm:$0xff] %v388
      %421 = vst [vmem:[#allocation2 + $0x98] sm:$0xff] %v389
      %422 = vst [vmem:[#allocation2 + $0xe0] sm:$0xff] %v390
      %423 = vst [vmem:[#allocation2 + $0x128] sm:$0xff] %v391
      %424 = vst [vmem:[#allocation2 + $0x170] sm:$0xff] %v392
      %425 = vst [vmem:[#allocation2 + $0x1b8] sm:$0xff] %v393
      %426 = vst [vmem:[#allocation2 + $0x200] sm:$0xff] %v394
      %427 = vst [vmem:[#allocation2 + $0x248] sm:$0xff] %v395
      %428 = vst [vmem:[#allocation2 + $0x290] sm:$0xff] %v396
      %429 = vst [vmem:[#allocation2 + $0x2d8] sm:$0xff] %v397
      %430 = vst [vmem:[#allocation2 + $0x320] sm:$0xff] %v398
      %431 = vst [vmem:[#allocation2 + $0x368] sm:$0xff] %v399
      %432 = vst [vmem:[#allocation2 + $0x3b0] sm:$0xff] %v400
      %433 = vst [vmem:[#allocation2 + $0x3f8] sm:$0xff] %v401
      %434 = vst [vmem:[#allocation2 + $0x440] sm:$0xff] %v402
      %435 = vst [vmem:[#allocation2 + $0x488] sm:$0xff] %v403
      %436 = vst [vmem:[#allocation2 + $0x4d0] sm:$0xff] %v404
      %437 = vst [vmem:[#allocation2 + $0x518] sm:$0xff] %v405
      %438 = vst [vmem:[#allocation2 + $0x560] sm:$0xff] %v406
      %439 = vst [vmem:[#allocation2 + $0x5a8] sm:$0xff] %v407
      %440 = vst [vmem:[#allocation2 + $0x5f0] sm:$0xff] %v408
      %441 = vst [vmem:[#allocation2 + $0x638] sm:$0xff] %v409
      %442 = vst [vmem:[#allocation2 + $0x680] sm:$0xff] %v410
      %443 = vst [vmem:[#allocation2 + $0x6c8] sm:$0xff] %v411
      %444 = vst [vmem:[#allocation2 + $0x710] sm:$0xff] %v412
      %445 = vst [vmem:[#allocation2 + $0x758] sm:$0xff] %v413
      %446 = vst [vmem:[#allocation2 + $0x7a0] sm:$0xff] %v414
      %447 = vst [vmem:[#allocation2 + $0x7e8] sm:$0xff] %v415
      %448 = vst [vmem:[#allocation2 + $0x830] sm:$0xff] %v416
      %449 = vst [vmem:[#allocation2 + $0x878] sm:$0xff] %v417
      %450 = vst [vmem:[#allocation2 + $0x8c0] sm:$0xff] %v418
      %v451 = vld [vmem:[%s294 + $0x2] sm:$0xff]
      %v452 = vld [vmem:[%s294 + $0xa] sm:$0xff]
      %v453 = vld [vmem:[%s294 + $0x1a] sm:$0xff]
      %v454 = vld [vmem:[%s294 + $0x22] sm:$0xff]
      %v455 = vld [vmem:[%s294 + $0x32] sm:$0xff]
      %v456 = vld [vmem:[%s294 + $0x3a] sm:$0xff]
      %v457 = vld [vmem:[%s294 + $0x4a] sm:$0xff]
      %v458 = vld [vmem:[%s294 + $0x52] sm:$0xff]
      %v459 = vld [vmem:[%s294 + $0x62] sm:$0xff]
      %v460 = vld [vmem:[%s294 + $0x6a] sm:$0xff]
      %v461 = vld [vmem:[%s294 + $0x7a] sm:$0xff]
      %v462 = vld [vmem:[%s294 + $0x82] sm:$0xff]
      %v463 = vld [vmem:[%s294 + $0x92] sm:$0xff]
      %v464 = vld [vmem:[%s294 + $0x9a] sm:$0xff]
      %v465 = vld [vmem:[%s294 + $0xaa] sm:$0xff]
      %v466 = vld [vmem:[%s294 + $0xb2] sm:$0xff]
      %v467 = vld [vmem:[%s294 + $0xc2] sm:$0xff]
      %v468 = vld [vmem:[%s294 + $0xca] sm:$0xff]
      %v469 = vld [vmem:[%s294 + $0xda] sm:$0xff]
      %v470 = vld [vmem:[%s294 + $0xe2] sm:$0xff]
      %v471 = vld [vmem:[%s294 + $0xf2] sm:$0xff]
      %v472 = vld [vmem:[%s294 + $0xfa] sm:$0xff]
      %v473 = vld [vmem:[%s294 + $0x10a] sm:$0xff]
      %v474 = vld [vmem:[%s294 + $0x112] sm:$0xff]
      %v475 = vld [vmem:[%s294 + $0x122] sm:$0xff]
      %v476 = vld [vmem:[%s294 + $0x12a] sm:$0xff]
      %v477 = vld [vmem:[%s294 + $0x13a] sm:$0xff]
      %v478 = vld [vmem:[%s294 + $0x142] sm:$0xff]
      %v479 = vld [vmem:[%s294 + $0x152] sm:$0xff]
      %v480 = vld [vmem:[%s294 + $0x15a] sm:$0xff]
      %v481 = vld [vmem:[%s294 + $0x16a] sm:$0xff]
      %v482 = vld [vmem:[%s294 + $0x172] sm:$0xff]
      %483 = vst [vmem:[#allocation2 + $0x10] sm:$0xff] %v451
      %484 = vst [vmem:[#allocation2 + $0x58] sm:$0xff] %v452
      %485 = vst [vmem:[#allocation2 + $0xa0] sm:$0xff] %v453
      %486 = vst [vmem:[#allocation2 + $0xe8] sm:$0xff] %v454
      %487 = vst [vmem:[#allocation2 + $0x130] sm:$0xff] %v455
      %488 = vst [vmem:[#allocation2 + $0x178] sm:$0xff] %v456
      %489 = vst [vmem:[#allocation2 + $0x1c0] sm:$0xff] %v457
      %490 = vst [vmem:[#allocation2 + $0x208] sm:$0xff] %v458
      %491 = vst [vmem:[#allocation2 + $0x250] sm:$0xff] %v459
      %492 = vst [vmem:[#allocation2 + $0x298] sm:$0xff] %v460
      %493 = vst [vmem:[#allocation2 + $0x2e0] sm:$0xff] %v461
      %494 = vst [vmem:[#allocation2 + $0x328] sm:$0xff] %v462
      %495 = vst [vmem:[#allocation2 + $0x370] sm:$0xff] %v463
      %496 = vst [vmem:[#allocation2 + $0x3b8] sm:$0xff] %v464
      %497 = vst [vmem:[#allocation2 + $0x400] sm:$0xff] %v465
      %498 = vst [vmem:[#allocation2 + $0x448] sm:$0xff] %v466
      %499 = vst [vmem:[#allocation2 + $0x490] sm:$0xff] %v467
      %500 = vst [vmem:[#allocation2 + $0x4d8] sm:$0xff] %v468
      %501 = vst [vmem:[#allocation2 + $0x520] sm:$0xff] %v469
      %502 = vst [vmem:[#allocation2 + $0x568] sm:$0xff] %v470
      %503 = vst [vmem:[#allocation2 + $0x5b0] sm:$0xff] %v471
      %504 = vst [vmem:[#allocation2 + $0x5f8] sm:$0xff] %v472
      %505 = vst [vmem:[#allocation2 + $0x640] sm:$0xff] %v473
      %506 = vst [vmem:[#allocation2 + $0x688] sm:$0xff] %v474
      %507 = vst [vmem:[#allocation2 + $0x6d0] sm:$0xff] %v475
      %508 = vst [vmem:[#allocation2 + $0x718] sm:$0xff] %v476
      %509 = vst [vmem:[#allocation2 + $0x760] sm:$0xff] %v477
      %510 = vst [vmem:[#allocation2 + $0x7a8] sm:$0xff] %v478
      %511 = vst [vmem:[#allocation2 + $0x7f0] sm:$0xff] %v479
      %512 = vst [vmem:[#allocation2 + $0x838] sm:$0xff] %v480
      %513 = vst [vmem:[#allocation2 + $0x880] sm:$0xff] %v481
      %514 = vst [vmem:[#allocation2 + $0x8c8] sm:$0xff] %v482
      %s515 = scalar_lea.vmem %s294, 24
      %v516 = vld [vmem:[%s515] sm:$0xff]
      %v517 = vld [vmem:[%s515 + $0x8] sm:$0xff]
      %v518 = vld [vmem:[%s515 + $0x18] sm:$0xff]
      %v519 = vld [vmem:[%s515 + $0x20] sm:$0xff]
      %v520 = vld [vmem:[%s515 + $0x30] sm:$0xff]
      %v521 = vld [vmem:[%s515 + $0x38] sm:$0xff]
      %v522 = vld [vmem:[%s515 + $0x48] sm:$0xff]
      %v523 = vld [vmem:[%s515 + $0x50] sm:$0xff]
      %v524 = vld [vmem:[%s515 + $0x60] sm:$0xff]
      %v525 = vld [vmem:[%s515 + $0x68] sm:$0xff]
      %v526 = vld [vmem:[%s515 + $0x78] sm:$0xff]
      %v527 = vld [vmem:[%s515 + $0x80] sm:$0xff]
      %v528 = vld [vmem:[%s515 + $0x90] sm:$0xff]
      %v529 = vld [vmem:[%s515 + $0x98] sm:$0xff]
      %v530 = vld [vmem:[%s515 + $0xa8] sm:$0xff]
      %v531 = vld [vmem:[%s515 + $0xb0] sm:$0xff]
      %v532 = vld [vmem:[%s515 + $0xc0] sm:$0xff]
      %v533 = vld [vmem:[%s515 + $0xc8] sm:$0xff]
      %v534 = vld [vmem:[%s515 + $0xd8] sm:$0xff]
      %v535 = vld [vmem:[%s515 + $0xe0] sm:$0xff]
      %v536 = vld [vmem:[%s515 + $0xf0] sm:$0xff]
      %v537 = vld [vmem:[%s515 + $0xf8] sm:$0xff]
      %v538 = vld [vmem:[%s515 + $0x108] sm:$0xff]
      %v539 = vld [vmem:[%s515 + $0x110] sm:$0xff]
      %v540 = vld [vmem:[%s515 + $0x120] sm:$0xff]
      %v541 = vld [vmem:[%s515 + $0x128] sm:$0xff]
      %v542 = vld [vmem:[%s515 + $0x138] sm:$0xff]
      %v543 = vld [vmem:[%s515 + $0x140] sm:$0xff]
      %v544 = vld [vmem:[%s515 + $0x150] sm:$0xff]
      %v545 = vld [vmem:[%s515 + $0x158] sm:$0xff]
      %v546 = vld [vmem:[%s515 + $0x168] sm:$0xff]
      %v547 = vld [vmem:[%s515 + $0x170] sm:$0xff]
      %548 = vst [vmem:[#allocation2 + $0x18] sm:$0xff] %v516
      %549 = vst [vmem:[#allocation2 + $0x60] sm:$0xff] %v517
      %550 = vst [vmem:[#allocation2 + $0xa8] sm:$0xff] %v518
      %551 = vst [vmem:[#allocation2 + $0xf0] sm:$0xff] %v519
      %552 = vst [vmem:[#allocation2 + $0x138] sm:$0xff] %v520
      %553 = vst [vmem:[#allocation2 + $0x180] sm:$0xff] %v521
      %554 = vst [vmem:[#allocation2 + $0x1c8] sm:$0xff] %v522
      %555 = vst [vmem:[#allocation2 + $0x210] sm:$0xff] %v523
      %556 = vst [vmem:[#allocation2 + $0x258] sm:$0xff] %v524
      %557 = vst [vmem:[#allocation2 + $0x2a0] sm:$0xff] %v525
      %558 = vst [vmem:[#allocation2 + $0x2e8] sm:$0xff] %v526
      %559 = vst [vmem:[#allocation2 + $0x330] sm:$0xff] %v527
      %560 = vst [vmem:[#allocation2 + $0x378] sm:$0xff] %v528
      %561 = vst [vmem:[#allocation2 + $0x3c0] sm:$0xff] %v529
      %562 = vst [vmem:[#allocation2 + $0x408] sm:$0xff] %v530
      %563 = vst [vmem:[#allocation2 + $0x450] sm:$0xff] %v531
      %564 = vst [vmem:[#allocation2 + $0x498] sm:$0xff] %v532
      %565 = vst [vmem:[#allocation2 + $0x4e0] sm:$0xff] %v533
      %566 = vst [vmem:[#allocation2 + $0x528] sm:$0xff] %v534
      %567 = vst [vmem:[#allocation2 + $0x570] sm:$0xff] %v535
      %568 = vst [vmem:[#allocation2 + $0x5b8] sm:$0xff] %v536
      %569 = vst [vmem:[#allocation2 + $0x600] sm:$0xff] %v537
      %570 = vst [vmem:[#allocation2 + $0x648] sm:$0xff] %v538
      %571 = vst [vmem:[#allocation2 + $0x690] sm:$0xff] %v539
      %572 = vst [vmem:[#allocation2 + $0x6d8] sm:$0xff] %v540
      %573 = vst [vmem:[#allocation2 + $0x720] sm:$0xff] %v541
      %574 = vst [vmem:[#allocation2 + $0x768] sm:$0xff] %v542
      %575 = vst [vmem:[#allocation2 + $0x7b0] sm:$0xff] %v543
      %576 = vst [vmem:[#allocation2 + $0x7f8] sm:$0xff] %v544
      %577 = vst [vmem:[#allocation2 + $0x840] sm:$0xff] %v545
      %578 = vst [vmem:[#allocation2 + $0x888] sm:$0xff] %v546
      %579 = vst [vmem:[#allocation2 + $0x8d0] sm:$0xff] %v547
      %v580 = vld [vmem:[%s515 + $0x1] sm:$0xff]
      %v581 = vld [vmem:[%s515 + $0x9] sm:$0xff]
      %v582 = vld [vmem:[%s515 + $0x19] sm:$0xff]
      %v583 = vld [vmem:[%s515 + $0x21] sm:$0xff]
      %v584 = vld [vmem:[%s515 + $0x31] sm:$0xff]
      %v585 = vld [vmem:[%s515 + $0x39] sm:$0xff]
      %v586 = vld [vmem:[%s515 + $0x49] sm:$0xff]
      %v587 = vld [vmem:[%s515 + $0x51] sm:$0xff]
      %v588 = vld [vmem:[%s515 + $0x61] sm:$0xff]
      %v589 = vld [vmem:[%s515 + $0x69] sm:$0xff]
      %v590 = vld [vmem:[%s515 + $0x79] sm:$0xff]
      %v591 = vld [vmem:[%s515 + $0x81] sm:$0xff]
      %v592 = vld [vmem:[%s515 + $0x91] sm:$0xff]
      %v593 = vld [vmem:[%s515 + $0x99] sm:$0xff]
      %v594 = vld [vmem:[%s515 + $0xa9] sm:$0xff]
      %v595 = vld [vmem:[%s515 + $0xb1] sm:$0xff]
      %v596 = vld [vmem:[%s515 + $0xc1] sm:$0xff]
      %v597 = vld [vmem:[%s515 + $0xc9] sm:$0xff]
      %v598 = vld [vmem:[%s515 + $0xd9] sm:$0xff]
      %v599 = vld [vmem:[%s515 + $0xe1] sm:$0xff]
      %v600 = vld [vmem:[%s515 + $0xf1] sm:$0xff]
      %v601 = vld [vmem:[%s515 + $0xf9] sm:$0xff]
      %v602 = vld [vmem:[%s515 + $0x109] sm:$0xff]
      %v603 = vld [vmem:[%s515 + $0x111] sm:$0xff]
      %v604 = vld [vmem:[%s515 + $0x121] sm:$0xff]
      %v605 = vld [vmem:[%s515 + $0x129] sm:$0xff]
      %v606 = vld [vmem:[%s515 + $0x139] sm:$0xff]
      %v607 = vld [vmem:[%s515 + $0x141] sm:$0xff]
      %v608 = vld [vmem:[%s515 + $0x151] sm:$0xff]
      %v609 = vld [vmem:[%s515 + $0x159] sm:$0xff]
      %v610 = vld [vmem:[%s515 + $0x169] sm:$0xff]
      %v611 = vld [vmem:[%s515 + $0x171] sm:$0xff]
      %612 = vst [vmem:[#allocation2 + $0x20] sm:$0xff] %v580
      %613 = vst [vmem:[#allocation2 + $0x68] sm:$0xff] %v581
      %614 = vst [vmem:[#allocation2 + $0xb0] sm:$0xff] %v582
      %615 = vst [vmem:[#allocation2 + $0xf8] sm:$0xff] %v583
      %616 = vst [vmem:[#allocation2 + $0x140] sm:$0xff] %v584
      %617 = vst [vmem:[#allocation2 + $0x188] sm:$0xff] %v585
      %618 = vst [vmem:[#allocation2 + $0x1d0] sm:$0xff] %v586
      %619 = vst [vmem:[#allocation2 + $0x218] sm:$0xff] %v587
      %620 = vst [vmem:[#allocation2 + $0x260] sm:$0xff] %v588
      %621 = vst [vmem:[#allocation2 + $0x2a8] sm:$0xff] %v589
      %622 = vst [vmem:[#allocation2 + $0x2f0] sm:$0xff] %v590
      %623 = vst [vmem:[#allocation2 + $0x338] sm:$0xff] %v591
      %624 = vst [vmem:[#allocation2 + $0x380] sm:$0xff] %v592
      %625 = vst [vmem:[#allocation2 + $0x3c8] sm:$0xff] %v593
      %626 = vst [vmem:[#allocation2 + $0x410] sm:$0xff] %v594
      %627 = vst [vmem:[#allocation2 + $0x458] sm:$0xff] %v595
      %628 = vst [vmem:[#allocation2 + $0x4a0] sm:$0xff] %v596
      %629 = vst [vmem:[#allocation2 + $0x4e8] sm:$0xff] %v597
      %630 = vst [vmem:[#allocation2 + $0x530] sm:$0xff] %v598
      %631 = vst [vmem:[#allocation2 + $0x578] sm:$0xff] %v599
      %632 = vst [vmem:[#allocation2 + $0x5c0] sm:$0xff] %v600
      %633 = vst [vmem:[#allocation2 + $0x608] sm:$0xff] %v601
      %634 = vst [vmem:[#allocation2 + $0x650] sm:$0xff] %v602
      %635 = vst [vmem:[#allocation2 + $0x698] sm:$0xff] %v603
      %636 = vst [vmem:[#allocation2 + $0x6e0] sm:$0xff] %v604
      %637 = vst [vmem:[#allocation2 + $0x728] sm:$0xff] %v605
      %638 = vst [vmem:[#allocation2 + $0x770] sm:$0xff] %v606
      %639 = vst [vmem:[#allocation2 + $0x7b8] sm:$0xff] %v607
      %640 = vst [vmem:[#allocation2 + $0x800] sm:$0xff] %v608
      %641 = vst [vmem:[#allocation2 + $0x848] sm:$0xff] %v609
      %642 = vst [vmem:[#allocation2 + $0x890] sm:$0xff] %v610
      %643 = vst [vmem:[#allocation2 + $0x8d8] sm:$0xff] %v611
      %v644 = vld [vmem:[%s515 + $0x2] sm:$0xff]
      %v645 = vld [vmem:[%s515 + $0xa] sm:$0xff]
      %v646 = vld [vmem:[%s515 + $0x1a] sm:$0xff]
      %v647 = vld [vmem:[%s515 + $0x22] sm:$0xff]
      %v648 = vld [vmem:[%s515 + $0x32] sm:$0xff]
      %v649 = vld [vmem:[%s515 + $0x3a] sm:$0xff]
      %v650 = vld [vmem:[%s515 + $0x4a] sm:$0xff]
      %v651 = vld [vmem:[%s515 + $0x52] sm:$0xff]
      %v652 = vld [vmem:[%s515 + $0x62] sm:$0xff]
      %v653 = vld [vmem:[%s515 + $0x6a] sm:$0xff]
      %v654 = vld [vmem:[%s515 + $0x7a] sm:$0xff]
      %v655 = vld [vmem:[%s515 + $0x82] sm:$0xff]
      %v656 = vld [vmem:[%s515 + $0x92] sm:$0xff]
      %v657 = vld [vmem:[%s515 + $0x9a] sm:$0xff]
      %v658 = vld [vmem:[%s515 + $0xaa] sm:$0xff]
      %v659 = vld [vmem:[%s515 + $0xb2] sm:$0xff]
      %v660 = vld [vmem:[%s515 + $0xc2] sm:$0xff]
      %v661 = vld [vmem:[%s515 + $0xca] sm:$0xff]
      %v662 = vld [vmem:[%s515 + $0xda] sm:$0xff]
      %v663 = vld [vmem:[%s515 + $0xe2] sm:$0xff]
      %v664 = vld [vmem:[%s515 + $0xf2] sm:$0xff]
      %v665 = vld [vmem:[%s515 + $0xfa] sm:$0xff]
      %v666 = vld [vmem:[%s515 + $0x10a] sm:$0xff]
      %v667 = vld [vmem:[%s515 + $0x112] sm:$0xff]
      %v668 = vld [vmem:[%s515 + $0x122] sm:$0xff]
      %v669 = vld [vmem:[%s515 + $0x12a] sm:$0xff]
      %v670 = vld [vmem:[%s515 + $0x13a] sm:$0xff]
      %v671 = vld [vmem:[%s515 + $0x142] sm:$0xff]
      %v672 = vld [vmem:[%s515 + $0x152] sm:$0xff]
      %v673 = vld [vmem:[%s515 + $0x15a] sm:$0xff]
      %v674 = vld [vmem:[%s515 + $0x16a] sm:$0xff]
      %v675 = vld [vmem:[%s515 + $0x172] sm:$0xff]
      %676 = vst [vmem:[#allocation2 + $0x28] sm:$0xff] %v644
      %677 = vst [vmem:[#allocation2 + $0x70] sm:$0xff] %v645
      %678 = vst [vmem:[#allocation2 + $0xb8] sm:$0xff] %v646
      %679 = vst [vmem:[#allocation2 + $0x100] sm:$0xff] %v647
      %680 = vst [vmem:[#allocation2 + $0x148] sm:$0xff] %v648
      %681 = vst [vmem:[#allocation2 + $0x190] sm:$0xff] %v649
      %682 = vst [vmem:[#allocation2 + $0x1d8] sm:$0xff] %v650
      %683 = vst [vmem:[#allocation2 + $0x220] sm:$0xff] %v651
      %684 = vst [vmem:[#allocation2 + $0x268] sm:$0xff] %v652
      %685 = vst [vmem:[#allocation2 + $0x2b0] sm:$0xff] %v653
      %686 = vst [vmem:[#allocation2 + $0x2f8] sm:$0xff] %v654
      %687 = vst [vmem:[#allocation2 + $0x340] sm:$0xff] %v655
      %688 = vst [vmem:[#allocation2 + $0x388] sm:$0xff] %v656
      %689 = vst [vmem:[#allocation2 + $0x3d0] sm:$0xff] %v657
      %690 = vst [vmem:[#allocation2 + $0x418] sm:$0xff] %v658
      %691 = vst [vmem:[#allocation2 + $0x460] sm:$0xff] %v659
      %692 = vst [vmem:[#allocation2 + $0x4a8] sm:$0xff] %v660
      %693 = vst [vmem:[#allocation2 + $0x4f0] sm:$0xff] %v661
      %694 = vst [vmem:[#allocation2 + $0x538] sm:$0xff] %v662
      %695 = vst [vmem:[#allocation2 + $0x580] sm:$0xff] %v663
      %696 = vst [vmem:[#allocation2 + $0x5c8] sm:$0xff] %v664
      %697 = vst [vmem:[#allocation2 + $0x610] sm:$0xff] %v665
      %698 = vst [vmem:[#allocation2 + $0x658] sm:$0xff] %v666
      %699 = vst [vmem:[#allocation2 + $0x6a0] sm:$0xff] %v667
      %700 = vst [vmem:[#allocation2 + $0x6e8] sm:$0xff] %v668
      %701 = vst [vmem:[#allocation2 + $0x730] sm:$0xff] %v669
      %702 = vst [vmem:[#allocation2 + $0x778] sm:$0xff] %v670
      %703 = vst [vmem:[#allocation2 + $0x7c0] sm:$0xff] %v671
      %704 = vst [vmem:[#allocation2 + $0x808] sm:$0xff] %v672
      %705 = vst [vmem:[#allocation2 + $0x850] sm:$0xff] %v673
      %706 = vst [vmem:[#allocation2 + $0x898] sm:$0xff] %v674
      %707 = vst [vmem:[#allocation2 + $0x8e0] sm:$0xff] %v675
      %s708 = scalar_lea.vmem %s294, 48
      %v709 = vld [vmem:[%s708] sm:$0xff]
      %v710 = vld [vmem:[%s708 + $0x8] sm:$0xff]
      %v711 = vld [vmem:[%s708 + $0x18] sm:$0xff]
      %v712 = vld [vmem:[%s708 + $0x20] sm:$0xff]
      %v713 = vld [vmem:[%s708 + $0x30] sm:$0xff]
      %v714 = vld [vmem:[%s708 + $0x38] sm:$0xff]
      %v715 = vld [vmem:[%s708 + $0x48] sm:$0xff]
      %v716 = vld [vmem:[%s708 + $0x50] sm:$0xff]
      %v717 = vld [vmem:[%s708 + $0x60] sm:$0xff]
      %v718 = vld [vmem:[%s708 + $0x68] sm:$0xff]
      %v719 = vld [vmem:[%s708 + $0x78] sm:$0xff]
      %v720 = vld [vmem:[%s708 + $0x80] sm:$0xff]
      %v721 = vld [vmem:[%s708 + $0x90] sm:$0xff]
      %v722 = vld [vmem:[%s708 + $0x98] sm:$0xff]
      %v723 = vld [vmem:[%s708 + $0xa8] sm:$0xff]
      %v724 = vld [vmem:[%s708 + $0xb0] sm:$0xff]
      %v725 = vld [vmem:[%s708 + $0xc0] sm:$0xff]
      %v726 = vld [vmem:[%s708 + $0xc8] sm:$0xff]
      %v727 = vld [vmem:[%s708 + $0xd8] sm:$0xff]
      %v728 = vld [vmem:[%s708 + $0xe0] sm:$0xff]
      %v729 = vld [vmem:[%s708 + $0xf0] sm:$0xff]
      %v730 = vld [vmem:[%s708 + $0xf8] sm:$0xff]
      %v731 = vld [vmem:[%s708 + $0x108] sm:$0xff]
      %v732 = vld [vmem:[%s708 + $0x110] sm:$0xff]
      %v733 = vld [vmem:[%s708 + $0x120] sm:$0xff]
      %v734 = vld [vmem:[%s708 + $0x128] sm:$0xff]
      %v735 = vld [vmem:[%s708 + $0x138] sm:$0xff]
      %v736 = vld [vmem:[%s708 + $0x140] sm:$0xff]
      %v737 = vld [vmem:[%s708 + $0x150] sm:$0xff]
      %v738 = vld [vmem:[%s708 + $0x158] sm:$0xff]
      %v739 = vld [vmem:[%s708 + $0x168] sm:$0xff]
      %v740 = vld [vmem:[%s708 + $0x170] sm:$0xff]
      %741 = vst [vmem:[#allocation2 + $0x30] sm:$0xff] %v709
      %742 = vst [vmem:[#allocation2 + $0x78] sm:$0xff] %v710
      %743 = vst [vmem:[#allocation2 + $0xc0] sm:$0xff] %v711
      %744 = vst [vmem:[#allocation2 + $0x108] sm:$0xff] %v712
      %745 = vst [vmem:[#allocation2 + $0x150] sm:$0xff] %v713
      %746 = vst [vmem:[#allocation2 + $0x198] sm:$0xff] %v714
      %747 = vst [vmem:[#allocation2 + $0x1e0] sm:$0xff] %v715
      %748 = vst [vmem:[#allocation2 + $0x228] sm:$0xff] %v716
      %749 = vst [vmem:[#allocation2 + $0x270] sm:$0xff] %v717
      %750 = vst [vmem:[#allocation2 + $0x2b8] sm:$0xff] %v718
      %751 = vst [vmem:[#allocation2 + $0x300] sm:$0xff] %v719
      %752 = vst [vmem:[#allocation2 + $0x348] sm:$0xff] %v720
      %753 = vst [vmem:[#allocation2 + $0x390] sm:$0xff] %v721
      %754 = vst [vmem:[#allocation2 + $0x3d8] sm:$0xff] %v722
      %755 = vst [vmem:[#allocation2 + $0x420] sm:$0xff] %v723
      %756 = vst [vmem:[#allocation2 + $0x468] sm:$0xff] %v724
      %757 = vst [vmem:[#allocation2 + $0x4b0] sm:$0xff] %v725
      %758 = vst [vmem:[#allocation2 + $0x4f8] sm:$0xff] %v726
      %759 = vst [vmem:[#allocation2 + $0x540] sm:$0xff] %v727
      %760 = vst [vmem:[#allocation2 + $0x588] sm:$0xff] %v728
      %761 = vst [vmem:[#allocation2 + $0x5d0] sm:$0xff] %v729
      %762 = vst [vmem:[#allocation2 + $0x618] sm:$0xff] %v730
      %763 = vst [vmem:[#allocation2 + $0x660] sm:$0xff] %v731
      %764 = vst [vmem:[#allocation2 + $0x6a8] sm:$0xff] %v732
      %765 = vst [vmem:[#allocation2 + $0x6f0] sm:$0xff] %v733
      %766 = vst [vmem:[#allocation2 + $0x738] sm:$0xff] %v734
      %767 = vst [vmem:[#allocation2 + $0x780] sm:$0xff] %v735
      %768 = vst [vmem:[#allocation2 + $0x7c8] sm:$0xff] %v736
      %769 = vst [vmem:[#allocation2 + $0x810] sm:$0xff] %v737
      %770 = vst [vmem:[#allocation2 + $0x858] sm:$0xff] %v738
      %771 = vst [vmem:[#allocation2 + $0x8a0] sm:$0xff] %v739
      %772 = vst [vmem:[#allocation2 + $0x8e8] sm:$0xff] %v740
      %v773 = vld [vmem:[%s708 + $0x1] sm:$0xff]
      %v774 = vld [vmem:[%s708 + $0x9] sm:$0xff]
      %v775 = vld [vmem:[%s708 + $0x19] sm:$0xff]
      %v776 = vld [vmem:[%s708 + $0x21] sm:$0xff]
      %v777 = vld [vmem:[%s708 + $0x31] sm:$0xff]
      %v778 = vld [vmem:[%s708 + $0x39] sm:$0xff]
      %v779 = vld [vmem:[%s708 + $0x49] sm:$0xff]
      %v780 = vld [vmem:[%s708 + $0x51] sm:$0xff]
      %v781 = vld [vmem:[%s708 + $0x61] sm:$0xff]
      %v782 = vld [vmem:[%s708 + $0x69] sm:$0xff]
      %v783 = vld [vmem:[%s708 + $0x79] sm:$0xff]
      %v784 = vld [vmem:[%s708 + $0x81] sm:$0xff]
      %v785 = vld [vmem:[%s708 + $0x91] sm:$0xff]
      %v786 = vld [vmem:[%s708 + $0x99] sm:$0xff]
      %v787 = vld [vmem:[%s708 + $0xa9] sm:$0xff]
      %v788 = vld [vmem:[%s708 + $0xb1] sm:$0xff]
      %v789 = vld [vmem:[%s708 + $0xc1] sm:$0xff]
      %v790 = vld [vmem:[%s708 + $0xc9] sm:$0xff]
      %v791 = vld [vmem:[%s708 + $0xd9] sm:$0xff]
      %v792 = vld [vmem:[%s708 + $0xe1] sm:$0xff]
      %v793 = vld [vmem:[%s708 + $0xf1] sm:$0xff]
      %v794 = vld [vmem:[%s708 + $0xf9] sm:$0xff]
      %v795 = vld [vmem:[%s708 + $0x109] sm:$0xff]
      %v796 = vld [vmem:[%s708 + $0x111] sm:$0xff]
      %v797 = vld [vmem:[%s708 + $0x121] sm:$0xff]
      %v798 = vld [vmem:[%s708 + $0x129] sm:$0xff]
      %v799 = vld [vmem:[%s708 + $0x139] sm:$0xff]
      %v800 = vld [vmem:[%s708 + $0x141] sm:$0xff]
      %v801 = vld [vmem:[%s708 + $0x151] sm:$0xff]
      %v802 = vld [vmem:[%s708 + $0x159] sm:$0xff]
      %v803 = vld [vmem:[%s708 + $0x169] sm:$0xff]
      %v804 = vld [vmem:[%s708 + $0x171] sm:$0xff]
      %805 = vst [vmem:[#allocation2 + $0x38] sm:$0xff] %v773
      %806 = vst [vmem:[#allocation2 + $0x80] sm:$0xff] %v774
      %807 = vst [vmem:[#allocation2 + $0xc8] sm:$0xff] %v775
      %808 = vst [vmem:[#allocation2 + $0x110] sm:$0xff] %v776
      %809 = vst [vmem:[#allocation2 + $0x158] sm:$0xff] %v777
      %810 = vst [vmem:[#allocation2 + $0x1a0] sm:$0xff] %v778
      %811 = vst [vmem:[#allocation2 + $0x1e8] sm:$0xff] %v779
      %812 = vst [vmem:[#allocation2 + $0x230] sm:$0xff] %v780
      %813 = vst [vmem:[#allocation2 + $0x278] sm:$0xff] %v781
      %814 = vst [vmem:[#allocation2 + $0x2c0] sm:$0xff] %v782
      %815 = vst [vmem:[#allocation2 + $0x308] sm:$0xff] %v783
      %816 = vst [vmem:[#allocation2 + $0x350] sm:$0xff] %v784
      %817 = vst [vmem:[#allocation2 + $0x398] sm:$0xff] %v785
      %818 = vst [vmem:[#allocation2 + $0x3e0] sm:$0xff] %v786
      %819 = vst [vmem:[#allocation2 + $0x428] sm:$0xff] %v787
      %820 = vst [vmem:[#allocation2 + $0x470] sm:$0xff] %v788
      %821 = vst [vmem:[#allocation2 + $0x4b8] sm:$0xff] %v789
      %822 = vst [vmem:[#allocation2 + $0x500] sm:$0xff] %v790
      %823 = vst [vmem:[#allocation2 + $0x548] sm:$0xff] %v791
      %824 = vst [vmem:[#allocation2 + $0x590] sm:$0xff] %v792
      %825 = vst [vmem:[#allocation2 + $0x5d8] sm:$0xff] %v793
      %826 = vst [vmem:[#allocation2 + $0x620] sm:$0xff] %v794
      %827 = vst [vmem:[#allocation2 + $0x668] sm:$0xff] %v795
      %828 = vst [vmem:[#allocation2 + $0x6b0] sm:$0xff] %v796
      %829 = vst [vmem:[#allocation2 + $0x6f8] sm:$0xff] %v797
      %830 = vst [vmem:[#allocation2 + $0x740] sm:$0xff] %v798
      %831 = vst [vmem:[#allocation2 + $0x788] sm:$0xff] %v799
      %832 = vst [vmem:[#allocation2 + $0x7d0] sm:$0xff] %v800
      %833 = vst [vmem:[#allocation2 + $0x818] sm:$0xff] %v801
      %834 = vst [vmem:[#allocation2 + $0x860] sm:$0xff] %v802
      %835 = vst [vmem:[#allocation2 + $0x8a8] sm:$0xff] %v803
      %836 = vst [vmem:[#allocation2 + $0x8f0] sm:$0xff] %v804
      %v837 = vld [vmem:[%s708 + $0x2] sm:$0xff]
      %v838 = vld [vmem:[%s708 + $0xa] sm:$0xff]
      %v839 = vld [vmem:[%s708 + $0x1a] sm:$0xff]
      %v840 = vld [vmem:[%s708 + $0x22] sm:$0xff]
      %v841 = vld [vmem:[%s708 + $0x32] sm:$0xff]
      %v842 = vld [vmem:[%s708 + $0x3a] sm:$0xff]
      %v843 = vld [vmem:[%s708 + $0x4a] sm:$0xff]
      %v844 = vld [vmem:[%s708 + $0x52] sm:$0xff]
      %v845 = vld [vmem:[%s708 + $0x62] sm:$0xff]
      %v846 = vld [vmem:[%s708 + $0x6a] sm:$0xff]
      %v847 = vld [vmem:[%s708 + $0x7a] sm:$0xff]
      %v848 = vld [vmem:[%s708 + $0x82] sm:$0xff]
      %v849 = vld [vmem:[%s708 + $0x92] sm:$0xff]
      %v850 = vld [vmem:[%s708 + $0x9a] sm:$0xff]
      %v851 = vld [vmem:[%s708 + $0xaa] sm:$0xff]
      %v852 = vld [vmem:[%s708 + $0xb2] sm:$0xff]
      %v853 = vld [vmem:[%s708 + $0xc2] sm:$0xff]
      %v854 = vld [vmem:[%s708 + $0xca] sm:$0xff]
      %v855 = vld [vmem:[%s708 + $0xda] sm:$0xff]
      %v856 = vld [vmem:[%s708 + $0xe2] sm:$0xff]
      %v857 = vld [vmem:[%s708 + $0xf2] sm:$0xff]
      %v858 = vld [vmem:[%s708 + $0xfa] sm:$0xff]
      %v859 = vld [vmem:[%s708 + $0x10a] sm:$0xff]
      %v860 = vld [vmem:[%s708 + $0x112] sm:$0xff]
      %v861 = vld [vmem:[%s708 + $0x122] sm:$0xff]
      %v862 = vld [vmem:[%s708 + $0x12a] sm:$0xff]
      %v863 = vld [vmem:[%s708 + $0x13a] sm:$0xff]
      %v864 = vld [vmem:[%s708 + $0x142] sm:$0xff]
      %v865 = vld [vmem:[%s708 + $0x152] sm:$0xff]
      %v866 = vld [vmem:[%s708 + $0x15a] sm:$0xff]
      %v867 = vld [vmem:[%s708 + $0x16a] sm:$0xff]
      %v868 = vld [vmem:[%s708 + $0x172] sm:$0xff]
      %869 = vst [vmem:[#allocation2 + $0x40] sm:$0xff] %v837
      %870 = vst [vmem:[#allocation2 + $0x88] sm:$0xff] %v838
      %871 = vst [vmem:[#allocation2 + $0xd0] sm:$0xff] %v839
      %872 = vst [vmem:[#allocation2 + $0x118] sm:$0xff] %v840
      %873 = vst [vmem:[#allocation2 + $0x160] sm:$0xff] %v841
      %874 = vst [vmem:[#allocation2 + $0x1a8] sm:$0xff] %v842
      %875 = vst [vmem:[#allocation2 + $0x1f0] sm:$0xff] %v843
      %876 = vst [vmem:[#allocation2 + $0x238] sm:$0xff] %v844
      %877 = vst [vmem:[#allocation2 + $0x280] sm:$0xff] %v845
      %878 = vst [vmem:[#allocation2 + $0x2c8] sm:$0xff] %v846
      %879 = vst [vmem:[#allocation2 + $0x310] sm:$0xff] %v847
      %880 = vst [vmem:[#allocation2 + $0x358] sm:$0xff] %v848
      %881 = vst [vmem:[#allocation2 + $0x3a0] sm:$0xff] %v849
      %882 = vst [vmem:[#allocation2 + $0x3e8] sm:$0xff] %v850
      %883 = vst [vmem:[#allocation2 + $0x430] sm:$0xff] %v851
      %884 = vst [vmem:[#allocation2 + $0x478] sm:$0xff] %v852
      %885 = vst [vmem:[#allocation2 + $0x4c0] sm:$0xff] %v853
      %886 = vst [vmem:[#allocation2 + $0x508] sm:$0xff] %v854
      %887 = vst [vmem:[#allocation2 + $0x550] sm:$0xff] %v855
      %888 = vst [vmem:[#allocation2 + $0x598] sm:$0xff] %v856
      %889 = vst [vmem:[#allocation2 + $0x5e0] sm:$0xff] %v857
      %890 = vst [vmem:[#allocation2 + $0x628] sm:$0xff] %v858
      %891 = vst [vmem:[#allocation2 + $0x670] sm:$0xff] %v859
      %892 = vst [vmem:[#allocation2 + $0x6b8] sm:$0xff] %v860
      %893 = vst [vmem:[#allocation2 + $0x700] sm:$0xff] %v861
      %894 = vst [vmem:[#allocation2 + $0x748] sm:$0xff] %v862
      %895 = vst [vmem:[#allocation2 + $0x790] sm:$0xff] %v863
      %896 = vst [vmem:[#allocation2 + $0x7d8] sm:$0xff] %v864
      %897 = vst [vmem:[#allocation2 + $0x820] sm:$0xff] %v865
      %898 = vst [vmem:[#allocation2 + $0x868] sm:$0xff] %v866
      %899 = vst [vmem:[#allocation2 + $0x8b0] sm:$0xff] %v867
      %900 = vst [vmem:[#allocation2 + $0x8f8] sm:$0xff] %v868
      %v901 = vld [vmem:[#allocation2] sm:$0xff]
      %v902 = vld [vmem:[#allocation2 + $0x8] sm:$0xff]
      %v903 = vld [vmem:[#allocation2 + $0x10] sm:$0xff]
      %v904 = vld [vmem:[#allocation2 + $0x18] sm:$0xff]
      %v905 = vld [vmem:[#allocation2 + $0x20] sm:$0xff]
      %v906 = vld [vmem:[#allocation2 + $0x28] sm:$0xff]
      %v907 = vld [vmem:[#allocation2 + $0x30] sm:$0xff]
      %v908 = vld [vmem:[#allocation2 + $0x38] sm:$0xff]
      %v909 = vld [vmem:[#allocation2 + $0x40] sm:$0xff]
      %v910 = vld [vmem:[#allocation2 + $0x48] sm:$0xff]
      %v911 = vld [vmem:[#allocation2 + $0x50] sm:$0xff]
      %v912 = vld [vmem:[#allocation2 + $0x58] sm:$0xff]
      %v913 = vld [vmem:[#allocation2 + $0x60] sm:$0xff]
      %v914 = vld [vmem:[#allocation2 + $0x68] sm:$0xff]
      %v915 = vld [vmem:[#allocation2 + $0x70] sm:$0xff]
      %v916 = vld [vmem:[#allocation2 + $0x78] sm:$0xff]
      %v917 = vld [vmem:[#allocation2 + $0x80] sm:$0xff]
      %v918 = vld [vmem:[#allocation2 + $0x88] sm:$0xff]
      %v919 = vld [vmem:[#allocation2 + $0x90] sm:$0xff]
      %v920 = vld [vmem:[#allocation2 + $0x98] sm:$0xff]
      %v921 = vld [vmem:[#allocation2 + $0xa0] sm:$0xff]
      %v922 = vld [vmem:[#allocation2 + $0xa8] sm:$0xff]
      %v923 = vld [vmem:[#allocation2 + $0xb0] sm:$0xff]
      %v924 = vld [vmem:[#allocation2 + $0xb8] sm:$0xff]
      %v925 = vld [vmem:[#allocation2 + $0xc0] sm:$0xff]
      %v926 = vld [vmem:[#allocation2 + $0xc8] sm:$0xff]
      %v927 = vld [vmem:[#allocation2 + $0xd0] sm:$0xff]
      %v928 = vld [vmem:[#allocation2 + $0xd8] sm:$0xff]
      %v929 = vld [vmem:[#allocation2 + $0xe0] sm:$0xff]
      %v930 = vld [vmem:[#allocation2 + $0xe8] sm:$0xff]
      %v931 = vld [vmem:[#allocation2 + $0xf0] sm:$0xff]
      %v932 = vld [vmem:[#allocation2 + $0xf8] sm:$0xff]
      %v933 = vld [vmem:[#allocation2 + $0x100] sm:$0xff]
      %v934 = vld [vmem:[#allocation2 + $0x108] sm:$0xff]
      %v935 = vld [vmem:[#allocation2 + $0x110] sm:$0xff]
      %v936 = vld [vmem:[#allocation2 + $0x118] sm:$0xff]
      %v937 = vld [vmem:[#allocation2 + $0x120] sm:$0xff]
      %v938 = vld [vmem:[#allocation2 + $0x128] sm:$0xff]
      %v939 = vld [vmem:[#allocation2 + $0x130] sm:$0xff]
      %v940 = vld [vmem:[#allocation2 + $0x138] sm:$0xff]
      %v941 = vld [vmem:[#allocation2 + $0x140] sm:$0xff]
      %v942 = vld [vmem:[#allocation2 + $0x148] sm:$0xff]
      %v943 = vld [vmem:[#allocation2 + $0x150] sm:$0xff]
      %v944 = vld [vmem:[#allocation2 + $0x158] sm:$0xff]
      %v945 = vld [vmem:[#allocation2 + $0x160] sm:$0xff]
      %v946 = vld [vmem:[#allocation2 + $0x168] sm:$0xff]
      %v947 = vld [vmem:[#allocation2 + $0x170] sm:$0xff]
      %v948 = vld [vmem:[#allocation2 + $0x178] sm:$0xff]
      %v949 = vld [vmem:[#allocation2 + $0x180] sm:$0xff]
      %v950 = vld [vmem:[#allocation2 + $0x188] sm:$0xff]
      %v951 = vld [vmem:[#allocation2 + $0x190] sm:$0xff]
      %v952 = vld [vmem:[#allocation2 + $0x198] sm:$0xff]
      %v953 = vld [vmem:[#allocation2 + $0x1a0] sm:$0xff]
      %v954 = vld [vmem:[#allocation2 + $0x1a8] sm:$0xff]
      %v955 = vld [vmem:[#allocation2 + $0x1b0] sm:$0xff]
      %v956 = vld [vmem:[#allocation2 + $0x1b8] sm:$0xff]
      %v957 = vld [vmem:[#allocation2 + $0x1c0] sm:$0xff]
      %v958 = vld [vmem:[#allocation2 + $0x1c8] sm:$0xff]
      %v959 = vld [vmem:[#allocation2 + $0x1d0] sm:$0xff]
      %v960 = vld [vmem:[#allocation2 + $0x1d8] sm:$0xff]
      %v961 = vld [vmem:[#allocation2 + $0x1e0] sm:$0xff]
      %v962 = vld [vmem:[#allocation2 + $0x1e8] sm:$0xff]
      %v963 = vld [vmem:[#allocation2 + $0x1f0] sm:$0xff]
      %v964 = vld [vmem:[#allocation2 + $0x1f8] sm:$0xff]
      %v965 = vld [vmem:[#allocation2 + $0x200] sm:$0xff]
      %v966 = vld [vmem:[#allocation2 + $0x208] sm:$0xff]
      %v967 = vld [vmem:[#allocation2 + $0x210] sm:$0xff]
      %v968 = vld [vmem:[#allocation2 + $0x218] sm:$0xff]
      %v969 = vld [vmem:[#allocation2 + $0x220] sm:$0xff]
      %v970 = vld [vmem:[#allocation2 + $0x228] sm:$0xff]
      %v971 = vld [vmem:[#allocation2 + $0x230] sm:$0xff]
      %v972 = vld [vmem:[#allocation2 + $0x238] sm:$0xff]
      %v973 = vld [vmem:[#allocation2 + $0x240] sm:$0xff]
      %v974 = vld [vmem:[#allocation2 + $0x248] sm:$0xff]
      %v975 = vld [vmem:[#allocation2 + $0x250] sm:$0xff]
      %v976 = vld [vmem:[#allocation2 + $0x258] sm:$0xff]
      %v977 = vld [vmem:[#allocation2 + $0x260] sm:$0xff]
      %v978 = vld [vmem:[#allocation2 + $0x268] sm:$0xff]
      %v979 = vld [vmem:[#allocation2 + $0x270] sm:$0xff]
      %v980 = vld [vmem:[#allocation2 + $0x278] sm:$0xff]
      %v981 = vld [vmem:[#allocation2 + $0x280] sm:$0xff]
      %v982 = vld [vmem:[#allocation2 + $0x288] sm:$0xff]
      %v983 = vld [vmem:[#allocation2 + $0x290] sm:$0xff]
      %v984 = vld [vmem:[#allocation2 + $0x298] sm:$0xff]
      %v985 = vld [vmem:[#allocation2 + $0x2a0] sm:$0xff]
      %v986 = vld [vmem:[#allocation2 + $0x2a8] sm:$0xff]
      %v987 = vld [vmem:[#allocation2 + $0x2b0] sm:$0xff]
      %v988 = vld [vmem:[#allocation2 + $0x2b8] sm:$0xff]
      %v989 = vld [vmem:[#allocation2 + $0x2c0] sm:$0xff]
      %v990 = vld [vmem:[#allocation2 + $0x2c8] sm:$0xff]
      %v991 = vld [vmem:[#allocation2 + $0x2d0] sm:$0xff]
      %v992 = vld [vmem:[#allocation2 + $0x2d8] sm:$0xff]
      %v993 = vld [vmem:[#allocation2 + $0x2e0] sm:$0xff]
      %v994 = vld [vmem:[#allocation2 + $0x2e8] sm:$0xff]
      %v995 = vld [vmem:[#allocation2 + $0x2f0] sm:$0xff]
      %v996 = vld [vmem:[#allocation2 + $0x2f8] sm:$0xff]
      %v997 = vld [vmem:[#allocation2 + $0x300] sm:$0xff]
      %v998 = vld [vmem:[#allocation2 + $0x308] sm:$0xff]
      %v999 = vld [vmem:[#allocation2 + $0x310] sm:$0xff]
      %v1000 = vld [vmem:[#allocation2 + $0x318] sm:$0xff]
      %v1001 = vld [vmem:[#allocation2 + $0x320] sm:$0xff]
      %v1002 = vld [vmem:[#allocation2 + $0x328] sm:$0xff]
      %v1003 = vld [vmem:[#allocation2 + $0x330] sm:$0xff]
      %v1004 = vld [vmem:[#allocation2 + $0x338] sm:$0xff]
      %v1005 = vld [vmem:[#allocation2 + $0x340] sm:$0xff]
      %v1006 = vld [vmem:[#allocation2 + $0x348] sm:$0xff]
      %v1007 = vld [vmem:[#allocation2 + $0x350] sm:$0xff]
      %v1008 = vld [vmem:[#allocation2 + $0x358] sm:$0xff]
      %v1009 = vld [vmem:[#allocation2 + $0x360] sm:$0xff]
      %v1010 = vld [vmem:[#allocation2 + $0x368] sm:$0xff]
      %v1011 = vld [vmem:[#allocation2 + $0x370] sm:$0xff]
      %v1012 = vld [vmem:[#allocation2 + $0x378] sm:$0xff]
      %v1013 = vld [vmem:[#allocation2 + $0x380] sm:$0xff]
      %v1014 = vld [vmem:[#allocation2 + $0x388] sm:$0xff]
      %v1015 = vld [vmem:[#allocation2 + $0x390] sm:$0xff]
      %v1016 = vld [vmem:[#allocation2 + $0x398] sm:$0xff]
      %v1017 = vld [vmem:[#allocation2 + $0x3a0] sm:$0xff]
      %v1018 = vld [vmem:[#allocation2 + $0x3a8] sm:$0xff]
      %v1019 = vld [vmem:[#allocation2 + $0x3b0] sm:$0xff]
      %v1020 = vld [vmem:[#allocation2 + $0x3b8] sm:$0xff]
      %v1021 = vld [vmem:[#allocation2 + $0x3c0] sm:$0xff]
      %v1022 = vld [vmem:[#allocation2 + $0x3c8] sm:$0xff]
      %v1023 = vld [vmem:[#allocation2 + $0x3d0] sm:$0xff]
      %v1024 = vld [vmem:[#allocation2 + $0x3d8] sm:$0xff]
      %v1025 = vld [vmem:[#allocation2 + $0x3e0] sm:$0xff]
      %v1026 = vld [vmem:[#allocation2 + $0x3e8] sm:$0xff]
      %v1027 = vld [vmem:[#allocation2 + $0x3f0] sm:$0xff]
      %v1028 = vld [vmem:[#allocation2 + $0x3f8] sm:$0xff]
      %v1029 = vld [vmem:[#allocation2 + $0x400] sm:$0xff]
      %v1030 = vld [vmem:[#allocation2 + $0x408] sm:$0xff]
      %v1031 = vld [vmem:[#allocation2 + $0x410] sm:$0xff]
      %v1032 = vld [vmem:[#allocation2 + $0x418] sm:$0xff]
      %v1033 = vld [vmem:[#allocation2 + $0x420] sm:$0xff]
      %v1034 = vld [vmem:[#allocation2 + $0x428] sm:$0xff]
      %v1035 = vld [vmem:[#allocation2 + $0x430] sm:$0xff]
      %v1036 = vld [vmem:[#allocation2 + $0x438] sm:$0xff]
      %v1037 = vld [vmem:[#allocation2 + $0x440] sm:$0xff]
      %v1038 = vld [vmem:[#allocation2 + $0x448] sm:$0xff]
      %v1039 = vld [vmem:[#allocation2 + $0x450] sm:$0xff]
      %v1040 = vld [vmem:[#allocation2 + $0x458] sm:$0xff]
      %v1041 = vld [vmem:[#allocation2 + $0x460] sm:$0xff]
      %v1042 = vld [vmem:[#allocation2 + $0x468] sm:$0xff]
      %v1043 = vld [vmem:[#allocation2 + $0x470] sm:$0xff]
      %v1044 = vld [vmem:[#allocation2 + $0x478] sm:$0xff]
      %v1045 = vld [vmem:[#allocation2 + $0x480] sm:$0xff]
      %v1046 = vld [vmem:[#allocation2 + $0x488] sm:$0xff]
      %v1047 = vld [vmem:[#allocation2 + $0x490] sm:$0xff]
      %v1048 = vld [vmem:[#allocation2 + $0x498] sm:$0xff]
      %v1049 = vld [vmem:[#allocation2 + $0x4a0] sm:$0xff]
      %v1050 = vld [vmem:[#allocation2 + $0x4a8] sm:$0xff]
      %v1051 = vld [vmem:[#allocation2 + $0x4b0] sm:$0xff]
      %v1052 = vld [vmem:[#allocation2 + $0x4b8] sm:$0xff]
      %v1053 = vld [vmem:[#allocation2 + $0x4c0] sm:$0xff]
      %v1054 = vld [vmem:[#allocation2 + $0x4c8] sm:$0xff]
      %v1055 = vld [vmem:[#allocation2 + $0x4d0] sm:$0xff]
      %v1056 = vld [vmem:[#allocation2 + $0x4d8] sm:$0xff]
      %v1057 = vld [vmem:[#allocation2 + $0x4e0] sm:$0xff]
      %v1058 = vld [vmem:[#allocation2 + $0x4e8] sm:$0xff]
      %v1059 = vld [vmem:[#allocation2 + $0x4f0] sm:$0xff]
      %v1060 = vld [vmem:[#allocation2 + $0x4f8] sm:$0xff]
      %v1061 = vld [vmem:[#allocation2 + $0x500] sm:$0xff]
      %v1062 = vld [vmem:[#allocation2 + $0x508] sm:$0xff]
      %v1063 = vld [vmem:[#allocation2 + $0x510] sm:$0xff]
      %v1064 = vld [vmem:[#allocation2 + $0x518] sm:$0xff]
      %v1065 = vld [vmem:[#allocation2 + $0x520] sm:$0xff]
      %v1066 = vld [vmem:[#allocation2 + $0x528] sm:$0xff]
      %v1067 = vld [vmem:[#allocation2 + $0x530] sm:$0xff]
      %v1068 = vld [vmem:[#allocation2 + $0x538] sm:$0xff]
      %v1069 = vld [vmem:[#allocation2 + $0x540] sm:$0xff]
      %v1070 = vld [vmem:[#allocation2 + $0x548] sm:$0xff]
      %v1071 = vld [vmem:[#allocation2 + $0x550] sm:$0xff]
      %v1072 = vld [vmem:[#allocation2 + $0x558] sm:$0xff]
      %v1073 = vld [vmem:[#allocation2 + $0x560] sm:$0xff]
      %v1074 = vld [vmem:[#allocation2 + $0x568] sm:$0xff]
      %v1075 = vld [vmem:[#allocation2 + $0x570] sm:$0xff]
      %v1076 = vld [vmem:[#allocation2 + $0x578] sm:$0xff]
      %v1077 = vld [vmem:[#allocation2 + $0x580] sm:$0xff]
      %v1078 = vld [vmem:[#allocation2 + $0x588] sm:$0xff]
      %v1079 = vld [vmem:[#allocation2 + $0x590] sm:$0xff]
      %v1080 = vld [vmem:[#allocation2 + $0x598] sm:$0xff]
      %v1081 = vld [vmem:[#allocation2 + $0x5a0] sm:$0xff]
      %v1082 = vld [vmem:[#allocation2 + $0x5a8] sm:$0xff]
      %v1083 = vld [vmem:[#allocation2 + $0x5b0] sm:$0xff]
      %v1084 = vld [vmem:[#allocation2 + $0x5b8] sm:$0xff]
      %v1085 = vld [vmem:[#allocation2 + $0x5c0] sm:$0xff]
      %v1086 = vld [vmem:[#allocation2 + $0x5c8] sm:$0xff]
      %v1087 = vld [vmem:[#allocation2 + $0x5d0] sm:$0xff]
      %v1088 = vld [vmem:[#allocation2 + $0x5d8] sm:$0xff]
      %v1089 = vld [vmem:[#allocation2 + $0x5e0] sm:$0xff]
      %v1090 = vld [vmem:[#allocation2 + $0x5e8] sm:$0xff]
      %v1091 = vld [vmem:[#allocation2 + $0x5f0] sm:$0xff]
      %v1092 = vld [vmem:[#allocation2 + $0x5f8] sm:$0xff]
      %v1093 = vld [vmem:[#allocation2 + $0x600] sm:$0xff]
      %v1094 = vld [vmem:[#allocation2 + $0x608] sm:$0xff]
      %v1095 = vld [vmem:[#allocation2 + $0x610] sm:$0xff]
      %v1096 = vld [vmem:[#allocation2 + $0x618] sm:$0xff]
      %v1097 = vld [vmem:[#allocation2 + $0x620] sm:$0xff]
      %v1098 = vld [vmem:[#allocation2 + $0x628] sm:$0xff]
      %v1099 = vld [vmem:[#allocation2 + $0x630] sm:$0xff]
      %v1100 = vld [vmem:[#allocation2 + $0x638] sm:$0xff]
      %v1101 = vld [vmem:[#allocation2 + $0x640] sm:$0xff]
      %v1102 = vld [vmem:[#allocation2 + $0x648] sm:$0xff]
      %v1103 = vld [vmem:[#allocation2 + $0x650] sm:$0xff]
      %v1104 = vld [vmem:[#allocation2 + $0x658] sm:$0xff]
      %v1105 = vld [vmem:[#allocation2 + $0x660] sm:$0xff]
      %v1106 = vld [vmem:[#allocation2 + $0x668] sm:$0xff]
      %v1107 = vld [vmem:[#allocation2 + $0x670] sm:$0xff]
      %v1108 = vld [vmem:[#allocation2 + $0x678] sm:$0xff]
      %v1109 = vld [vmem:[#allocation2 + $0x680] sm:$0xff]
      %v1110 = vld [vmem:[#allocation2 + $0x688] sm:$0xff]
      %v1111 = vld [vmem:[#allocation2 + $0x690] sm:$0xff]
      %v1112 = vld [vmem:[#allocation2 + $0x698] sm:$0xff]
      %v1113 = vld [vmem:[#allocation2 + $0x6a0] sm:$0xff]
      %v1114 = vld [vmem:[#allocation2 + $0x6a8] sm:$0xff]
      %v1115 = vld [vmem:[#allocation2 + $0x6b0] sm:$0xff]
      %v1116 = vld [vmem:[#allocation2 + $0x6b8] sm:$0xff]
      %v1117 = vld [vmem:[#allocation2 + $0x6c0] sm:$0xff]
      %v1118 = vld [vmem:[#allocation2 + $0x6c8] sm:$0xff]
      %v1119 = vld [vmem:[#allocation2 + $0x6d0] sm:$0xff]
      %v1120 = vld [vmem:[#allocation2 + $0x6d8] sm:$0xff]
      %v1121 = vld [vmem:[#allocation2 + $0x6e0] sm:$0xff]
      %v1122 = vld [vmem:[#allocation2 + $0x6e8] sm:$0xff]
      %v1123 = vld [vmem:[#allocation2 + $0x6f0] sm:$0xff]
      %v1124 = vld [vmem:[#allocation2 + $0x6f8] sm:$0xff]
      %v1125 = vld [vmem:[#allocation2 + $0x700] sm:$0xff]
      %v1126 = vld [vmem:[#allocation2 + $0x708] sm:$0xff]
      %v1127 = vld [vmem:[#allocation2 + $0x710] sm:$0xff]
      %v1128 = vld [vmem:[#allocation2 + $0x718] sm:$0xff]
      %v1129 = vld [vmem:[#allocation2 + $0x720] sm:$0xff]
      %v1130 = vld [vmem:[#allocation2 + $0x728] sm:$0xff]
      %v1131 = vld [vmem:[#allocation2 + $0x730] sm:$0xff]
      %v1132 = vld [vmem:[#allocation2 + $0x738] sm:$0xff]
      %v1133 = vld [vmem:[#allocation2 + $0x740] sm:$0xff]
      %v1134 = vld [vmem:[#allocation2 + $0x748] sm:$0xff]
      %v1135 = vld [vmem:[#allocation2 + $0x750] sm:$0xff]
      %v1136 = vld [vmem:[#allocation2 + $0x758] sm:$0xff]
      %v1137 = vld [vmem:[#allocation2 + $0x760] sm:$0xff]
      %v1138 = vld [vmem:[#allocation2 + $0x768] sm:$0xff]
      %v1139 = vld [vmem:[#allocation2 + $0x770] sm:$0xff]
      %v1140 = vld [vmem:[#allocation2 + $0x778] sm:$0xff]
      %v1141 = vld [vmem:[#allocation2 + $0x780] sm:$0xff]
      %v1142 = vld [vmem:[#allocation2 + $0x788] sm:$0xff]
      %v1143 = vld [vmem:[#allocation2 + $0x790] sm:$0xff]
      %v1144 = vld [vmem:[#allocation2 + $0x798] sm:$0xff]
      %v1145 = vld [vmem:[#allocation2 + $0x7a0] sm:$0xff]
      %v1146 = vld [vmem:[#allocation2 + $0x7a8] sm:$0xff]
      %v1147 = vld [vmem:[#allocation2 + $0x7b0] sm:$0xff]
      %v1148 = vld [vmem:[#allocation2 + $0x7b8] sm:$0xff]
      %v1149 = vld [vmem:[#allocation2 + $0x7c0] sm:$0xff]
      %v1150 = vld [vmem:[#allocation2 + $0x7c8] sm:$0xff]
      %v1151 = vld [vmem:[#allocation2 + $0x7d0] sm:$0xff]
      %v1152 = vld [vmem:[#allocation2 + $0x7d8] sm:$0xff]
      %v1153 = vld [vmem:[#allocation2 + $0x7e0] sm:$0xff]
      %v1154 = vld [vmem:[#allocation2 + $0x7e8] sm:$0xff]
      %v1155 = vld [vmem:[#allocation2 + $0x7f0] sm:$0xff]
      %v1156 = vld [vmem:[#allocation2 + $0x7f8] sm:$0xff]
      %v1157 = vld [vmem:[#allocation2 + $0x800] sm:$0xff]
      %v1158 = vld [vmem:[#allocation2 + $0x808] sm:$0xff]
      %v1159 = vld [vmem:[#allocation2 + $0x810] sm:$0xff]
      %v1160 = vld [vmem:[#allocation2 + $0x818] sm:$0xff]
      %v1161 = vld [vmem:[#allocation2 + $0x820] sm:$0xff]
      %v1162 = vld [vmem:[#allocation2 + $0x828] sm:$0xff]
      %v1163 = vld [vmem:[#allocation2 + $0x830] sm:$0xff]
      %v1164 = vld [vmem:[#allocation2 + $0x838] sm:$0xff]
      %v1165 = vld [vmem:[#allocation2 + $0x840] sm:$0xff]
      %v1166 = vld [vmem:[#allocation2 + $0x848] sm:$0xff]
      %v1167 = vld [vmem:[#allocation2 + $0x850] sm:$0xff]
      %v1168 = vld [vmem:[#allocation2 + $0x858] sm:$0xff]
      %v1169 = vld [vmem:[#allocation2 + $0x860] sm:$0xff]
      %v1170 = vld [vmem:[#allocation2 + $0x868] sm:$0xff]
      %v1171 = vld [vmem:[#allocation2 + $0x870] sm:$0xff]
      %v1172 = vld [vmem:[#allocation2 + $0x878] sm:$0xff]
      %v1173 = vld [vmem:[#allocation2 + $0x880] sm:$0xff]
      %v1174 = vld [vmem:[#allocation2 + $0x888] sm:$0xff]
      %v1175 = vld [vmem:[#allocation2 + $0x890] sm:$0xff]
      %v1176 = vld [vmem:[#allocation2 + $0x898] sm:$0xff]
      %v1177 = vld [vmem:[#allocation2 + $0x8a0] sm:$0xff]
      %v1178 = vld [vmem:[#allocation2 + $0x8a8] sm:$0xff]
      %v1179 = vld [vmem:[#allocation2 + $0x8b0] sm:$0xff]
      %v1180 = vld [vmem:[#allocation2 + $0x8b8] sm:$0xff]
      %v1181 = vld [vmem:[#allocation2 + $0x8c0] sm:$0xff]
      %v1182 = vld [vmem:[#allocation2 + $0x8c8] sm:$0xff]
      %v1183 = vld [vmem:[#allocation2 + $0x8d0] sm:$0xff]
      %v1184 = vld [vmem:[#allocation2 + $0x8d8] sm:$0xff]
      %v1185 = vld [vmem:[#allocation2 + $0x8e0] sm:$0xff]
      %v1186 = vld [vmem:[#allocation2 + $0x8e8] sm:$0xff]
      %v1187 = vld [vmem:[#allocation2 + $0x8f0] sm:$0xff]
      %v1188 = vld [vmem:[#allocation2 + $0x8f8] sm:$0xff]
      %v1189 = vld [vmem:[%s298] sm:$0xff]
      %v1190 = vld [vmem:[%s298 + $0x8] sm:$0xff]
      %v1191 = vld [vmem:[%s298 + $0x10] sm:$0xff]
      %v1192 = vld [vmem:[%s298 + $0x18] sm:$0xff]
      %v1193 = vld [vmem:[%s298 + $0x20] sm:$0xff]
      %v1194 = vld [vmem:[%s298 + $0x28] sm:$0xff]
      %v1195 = vld [vmem:[%s298 + $0x30] sm:$0xff]
      %v1196 = vld [vmem:[%s298 + $0x38] sm:$0xff]
      %v1197 = vld [vmem:[%s298 + $0x40] sm:$0xff]
      %v1198 = vld [vmem:[%s298 + $0x48] sm:$0xff]
      %v1199 = vld [vmem:[%s298 + $0x50] sm:$0xff]
      %v1200 = vld [vmem:[%s298 + $0x58] sm:$0xff]
      %v1201 = vld [vmem:[%s298 + $0x60] sm:$0xff]
      %v1202 = vld [vmem:[%s298 + $0x68] sm:$0xff]
      %v1203 = vld [vmem:[%s298 + $0x70] sm:$0xff]
      %v1204 = vld [vmem:[%s298 + $0x78] sm:$0xff]
      %v1205 = vld [vmem:[%s298 + $0x80] sm:$0xff]
      %v1206 = vld [vmem:[%s298 + $0x88] sm:$0xff]
      %v1207 = vld [vmem:[%s298 + $0x90] sm:$0xff]
      %v1208 = vld [vmem:[%s298 + $0x98] sm:$0xff]
      %v1209 = vld [vmem:[%s298 + $0xa0] sm:$0xff]
      %v1210 = vld [vmem:[%s298 + $0xa8] sm:$0xff]
      %v1211 = vld [vmem:[%s298 + $0xb0] sm:$0xff]
      %v1212 = vld [vmem:[%s298 + $0xb8] sm:$0xff]
      %v1213 = vld [vmem:[%s298 + $0xc0] sm:$0xff]
      %v1214 = vld [vmem:[%s298 + $0xc8] sm:$0xff]
      %v1215 = vld [vmem:[%s298 + $0xd0] sm:$0xff]
      %v1216 = vld [vmem:[%s298 + $0xd8] sm:$0xff]
      %v1217 = vld [vmem:[%s298 + $0xe0] sm:$0xff]
      %v1218 = vld [vmem:[%s298 + $0xe8] sm:$0xff]
      %v1219 = vld [vmem:[%s298 + $0xf0] sm:$0xff]
      %v1220 = vld [vmem:[%s298 + $0xf8] sm:$0xff]
      %v1221 = vld [vmem:[%s298 + $0x100] sm:$0xff]
      %v1222 = vld [vmem:[%s298 + $0x108] sm:$0xff]
      %v1223 = vld [vmem:[%s298 + $0x110] sm:$0xff]
      %v1224 = vld [vmem:[%s298 + $0x118] sm:$0xff]
      %v1225 = vld [vmem:[%s298 + $0x120] sm:$0xff]
      %v1226 = vld [vmem:[%s298 + $0x128] sm:$0xff]
      %v1227 = vld [vmem:[%s298 + $0x130] sm:$0xff]
      %v1228 = vld [vmem:[%s298 + $0x138] sm:$0xff]
      %v1229 = vld [vmem:[%s298 + $0x140] sm:$0xff]
      %v1230 = vld [vmem:[%s298 + $0x148] sm:$0xff]
      %v1231 = vld [vmem:[%s298 + $0x150] sm:$0xff]
      %v1232 = vld [vmem:[%s298 + $0x158] sm:$0xff]
      %v1233 = vld [vmem:[%s298 + $0x160] sm:$0xff]
      %v1234 = vld [vmem:[%s298 + $0x168] sm:$0xff]
      %v1235 = vld [vmem:[%s298 + $0x170] sm:$0xff]
      %v1236 = vld [vmem:[%s298 + $0x178] sm:$0xff]
      %v1237 = vld [vmem:[%s298 + $0x180] sm:$0xff]
      %v1238 = vld [vmem:[%s298 + $0x188] sm:$0xff]
      %v1239 = vld [vmem:[%s298 + $0x190] sm:$0xff]
      %v1240 = vld [vmem:[%s298 + $0x198] sm:$0xff]
      %v1241 = vld [vmem:[%s298 + $0x1a0] sm:$0xff]
      %v1242 = vld [vmem:[%s298 + $0x1a8] sm:$0xff]
      %v1243 = vld [vmem:[%s298 + $0x1b0] sm:$0xff]
      %v1244 = vld [vmem:[%s298 + $0x1b8] sm:$0xff]
      %v1245 = vld [vmem:[%s298 + $0x1c0] sm:$0xff]
      %v1246 = vld [vmem:[%s298 + $0x1c8] sm:$0xff]
      %v1247 = vld [vmem:[%s298 + $0x1d0] sm:$0xff]
      %v1248 = vld [vmem:[%s298 + $0x1d8] sm:$0xff]
      %v1249 = vld [vmem:[%s298 + $0x1e0] sm:$0xff]
      %v1250 = vld [vmem:[%s298 + $0x1e8] sm:$0xff]
      %v1251 = vld [vmem:[%s298 + $0x1f0] sm:$0xff]
      %v1252 = vld [vmem:[%s298 + $0x1f8] sm:$0xff]
      %v1253 = vld [vmem:[%s298 + $0x200] sm:$0xff]
      %v1254 = vld [vmem:[%s298 + $0x208] sm:$0xff]
      %v1255 = vld [vmem:[%s298 + $0x210] sm:$0xff]
      %v1256 = vld [vmem:[%s298 + $0x218] sm:$0xff]
      %v1257 = vld [vmem:[%s298 + $0x220] sm:$0xff]
      %v1258 = vld [vmem:[%s298 + $0x228] sm:$0xff]
      %v1259 = vld [vmem:[%s298 + $0x230] sm:$0xff]
      %v1260 = vld [vmem:[%s298 + $0x238] sm:$0xff]
      %v1261 = vld [vmem:[%s298 + $0x240] sm:$0xff]
      %v1262 = vld [vmem:[%s298 + $0x248] sm:$0xff]
      %v1263 = vld [vmem:[%s298 + $0x250] sm:$0xff]
      %v1264 = vld [vmem:[%s298 + $0x258] sm:$0xff]
      %v1265 = vld [vmem:[%s298 + $0x260] sm:$0xff]
      %v1266 = vld [vmem:[%s298 + $0x268] sm:$0xff]
      %v1267 = vld [vmem:[%s298 + $0x270] sm:$0xff]
      %v1268 = vld [vmem:[%s298 + $0x278] sm:$0xff]
      %v1269 = vld [vmem:[%s298 + $0x280] sm:$0xff]
      %v1270 = vld [vmem:[%s298 + $0x288] sm:$0xff]
      %v1271 = vld [vmem:[%s298 + $0x290] sm:$0xff]
      %v1272 = vld [vmem:[%s298 + $0x298] sm:$0xff]
      %v1273 = vld [vmem:[%s298 + $0x2a0] sm:$0xff]
      %v1274 = vld [vmem:[%s298 + $0x2a8] sm:$0xff]
      %v1275 = vld [vmem:[%s298 + $0x2b0] sm:$0xff]
      %v1276 = vld [vmem:[%s298 + $0x2b8] sm:$0xff]
      %v1277 = vld [vmem:[%s298 + $0x2c0] sm:$0xff]
      %v1278 = vld [vmem:[%s298 + $0x2c8] sm:$0xff]
      %v1279 = vld [vmem:[%s298 + $0x2d0] sm:$0xff]
      %v1280 = vld [vmem:[%s298 + $0x2d8] sm:$0xff]
      %v1281 = vld [vmem:[%s298 + $0x2e0] sm:$0xff]
      %v1282 = vld [vmem:[%s298 + $0x2e8] sm:$0xff]
      %v1283 = vld [vmem:[%s298 + $0x2f0] sm:$0xff]
      %v1284 = vld [vmem:[%s298 + $0x2f8] sm:$0xff]
      %v1285 = vld [vmem:[%s298 + $0x300] sm:$0xff]
      %v1286 = vld [vmem:[%s298 + $0x308] sm:$0xff]
      %v1287 = vld [vmem:[%s298 + $0x310] sm:$0xff]
      %v1288 = vld [vmem:[%s298 + $0x318] sm:$0xff]
      %v1289 = vld [vmem:[%s298 + $0x320] sm:$0xff]
      %v1290 = vld [vmem:[%s298 + $0x328] sm:$0xff]
      %v1291 = vld [vmem:[%s298 + $0x330] sm:$0xff]
      %v1292 = vld [vmem:[%s298 + $0x338] sm:$0xff]
      %v1293 = vld [vmem:[%s298 + $0x340] sm:$0xff]
      %v1294 = vld [vmem:[%s298 + $0x348] sm:$0xff]
      %v1295 = vld [vmem:[%s298 + $0x350] sm:$0xff]
      %v1296 = vld [vmem:[%s298 + $0x358] sm:$0xff]
      %v1297 = vld [vmem:[%s298 + $0x360] sm:$0xff]
      %v1298 = vld [vmem:[%s298 + $0x368] sm:$0xff]
      %v1299 = vld [vmem:[%s298 + $0x370] sm:$0xff]
      %v1300 = vld [vmem:[%s298 + $0x378] sm:$0xff]
      %v1301 = vld [vmem:[%s298 + $0x380] sm:$0xff]
      %v1302 = vld [vmem:[%s298 + $0x388] sm:$0xff]
      %v1303 = vld [vmem:[%s298 + $0x390] sm:$0xff]
      %v1304 = vld [vmem:[%s298 + $0x398] sm:$0xff]
      %v1305 = vld [vmem:[%s298 + $0x3a0] sm:$0xff]
      %v1306 = vld [vmem:[%s298 + $0x3a8] sm:$0xff]
      %v1307 = vld [vmem:[%s298 + $0x3b0] sm:$0xff]
      %v1308 = vld [vmem:[%s298 + $0x3b8] sm:$0xff]
      %v1309 = vld [vmem:[%s298 + $0x3c0] sm:$0xff]
      %v1310 = vld [vmem:[%s298 + $0x3c8] sm:$0xff]
      %v1311 = vld [vmem:[%s298 + $0x3d0] sm:$0xff]
      %v1312 = vld [vmem:[%s298 + $0x3d8] sm:$0xff]
      %v1313 = vld [vmem:[%s298 + $0x3e0] sm:$0xff]
      %v1314 = vld [vmem:[%s298 + $0x3e8] sm:$0xff]
      %v1315 = vld [vmem:[%s298 + $0x3f0] sm:$0xff]
      %v1316 = vld [vmem:[%s298 + $0x3f8] sm:$0xff]
      %v1317 = vld [vmem:[%s298 + $0x400] sm:$0xff]
      %v1318 = vld [vmem:[%s298 + $0x408] sm:$0xff]
      %v1319 = vld [vmem:[%s298 + $0x410] sm:$0xff]
      %v1320 = vld [vmem:[%s298 + $0x418] sm:$0xff]
      %v1321 = vld [vmem:[%s298 + $0x420] sm:$0xff]
      %v1322 = vld [vmem:[%s298 + $0x428] sm:$0xff]
      %v1323 = vld [vmem:[%s298 + $0x430] sm:$0xff]
      %v1324 = vld [vmem:[%s298 + $0x438] sm:$0xff]
      %v1325 = vld [vmem:[%s298 + $0x440] sm:$0xff]
      %v1326 = vld [vmem:[%s298 + $0x448] sm:$0xff]
      %v1327 = vld [vmem:[%s298 + $0x450] sm:$0xff]
      %v1328 = vld [vmem:[%s298 + $0x458] sm:$0xff]
      %v1329 = vld [vmem:[%s298 + $0x460] sm:$0xff]
      %v1330 = vld [vmem:[%s298 + $0x468] sm:$0xff]
      %v1331 = vld [vmem:[%s298 + $0x470] sm:$0xff]
      %v1332 = vld [vmem:[%s298 + $0x478] sm:$0xff]
      %1333 = vmatprep.subr.mxu0 0.0
      %1334 = vmatpush1.msra.mxu0 %v1189
      %1335 = vmatprep.subr.mxu0 0.0
      %1336 = vmatpush1.msra.mxu0 %v1190
      %1337 = vmatprep.subr.mxu0 0.0
      %1338 = vmatpush1.msra.mxu0 %v1191
      %1339 = vmatprep.subr.mxu0 0.0
      %1340 = vmatpush1.msra.mxu0 %v1192
      %1341 = vmatprep.subr.mxu0 0.0
      %1342 = vmatpush1.msra.mxu0 %v1193
      %1343 = vmatprep.subr.mxu0 0.0
      %1344 = vmatpush1.msra.mxu0 %v1194
      %1345 = vmatprep.subr.mxu0 0.0
      %1346 = vmatpush1.msra.mxu0 %v1195
      %1347 = vmatprep.subr.mxu0 0.0
      %1348 = vmatpush1.msra.mxu0 %v1196
      %1349 = vmatprep.subr.mxu0 0.0
      %1350 = vmatpush1.msra.mxu0 %v1197
      %1351 = vmatprep.subr.mxu0 0.0
      %1352 = vmatpush1.msra.mxu0 %v1198
      %1353 = vmatprep.subr.mxu0 0.0
      %1354 = vmatpush1.msra.mxu0 %v1199
      %1355 = vmatprep.subr.mxu0 0.0
      %1356 = vmatpush1.msra.mxu0 %v1200
      %1357 = vmatprep.subr.mxu0 0.0
      %1358 = vmatpush1.msra.mxu0 %v1201
      %1359 = vmatprep.subr.mxu0 0.0
      %1360 = vmatpush1.msra.mxu0 %v1202
      %1361 = vmatprep.subr.mxu0 0.0
      %1362 = vmatpush1.msra.mxu0 %v1203
      %1363 = vmatprep.subr.mxu0 0.0
      %1364 = vmatpush1.msra.mxu0 %v1204
      %1365 = vmatprep.subr.mxu0 0.0
      %1366 = vmatpush1.msra.mxu0 %v1205
      %1367 = vmatprep.subr.mxu0 0.0
      %1368 = vmatpush1.msra.mxu0 %v1206
      %1369 = vmatprep.subr.mxu0 0.0
      %1370 = vmatpush1.msra.mxu0 %v1207
      %1371 = vmatprep.subr.mxu0 0.0
      %1372 = vmatpush1.msra.mxu0 %v1208
      %1373 = vmatprep.subr.mxu0 0.0
      %1374 = vmatpush1.msra.mxu0 %v1209
      %1375 = vmatprep.subr.mxu0 0.0
      %1376 = vmatpush1.msra.mxu0 %v1210
      %1377 = vmatprep.subr.mxu0 0.0
      %1378 = vmatpush1.msra.mxu0 %v1211
      %1379 = vmatprep.subr.mxu0 0.0
      %1380 = vmatpush1.msra.mxu0 %v1212
      %1381 = vmatprep.subr.mxu0 0.0
      %1382 = vmatpush1.msra.mxu0 %v1213
      %1383 = vmatprep.subr.mxu0 0.0
      %1384 = vmatpush1.msra.mxu0 %v1214
      %1385 = vmatprep.subr.mxu0 0.0
      %1386 = vmatpush1.msra.mxu0 %v1215
      %1387 = vmatprep.subr.mxu0 0.0
      %1388 = vmatpush1.msra.mxu0 %v1216
      %1389 = vmatprep.subr.mxu0 0.0
      %1390 = vmatpush1.msra.mxu0 %v1217
      %1391 = vmatprep.subr.mxu0 0.0
      %1392 = vmatpush1.msra.mxu0 %v1218
      %1393 = vmatprep.subr.mxu0 0.0
      %1394 = vmatpush1.msra.mxu0 %v1219
      %1395 = vmatprep.subr.mxu0 0.0
      %1396 = vmatpush1.msra.mxu0 %v1220
      %1397 = vmatprep.mubr.f32.mxu0 %v902
      %1398 = vmatmul.mubr.f32.gmra.mrb[0].mxu0 %v901
      %v1399 = vpop.f32.mrb[0].mxu0
      %v1400 = vadd.f32 0.0, %v1399
      %v1401 = vpop.f32.mrb[0].mxu0
      %1402 = vmatprep.mubr.f32.mxu0 %v911
      %1403 = vmatmul.mubr.f32.gmra.mrb[0].mxu0 %v910
      %v1404 = vpop.f32.mrb[0].mxu0
      %v1405 = vadd.f32 0.0, %v1404
      %v1406 = vpop.f32.mrb[0].mxu0
      %1407 = vmatprep.mubr.f32.mxu0 %v920
      %1408 = vmatmul.mubr.f32.gmra.mrb[0].mxu0 %v919
      %v1409 = vpop.f32.mrb[0].mxu0
      %v1410 = vadd.f32 0.0, %v1409
      %v1411 = vpop.f32.mrb[0].mxu0
      %1412 = vmatprep.mubr.f32.mxu0 %v929
      %1413 = vmatmul.mubr.f32.gmra.mrb[0].mxu0 %v928
      %v1414 = vpop.f32.mrb[0].mxu0
      %v1415 = vadd.f32 0.0, %v1414
      %v1416 = vpop.f32.mrb[0].mxu0
      %1417 = vmatprep.mubr.f32.mxu0 %v938
      %1418 = vmatmul.mubr.f32.gmra.mrb[0].mxu0 %v937
      %v1419 = vpop.f32.mrb[0].mxu0
      %v1420 = vadd.f32 0.0, %v1419
      %v1421 = vpop.f32.mrb[0].mxu0
      %1422 = vmatprep.mubr.f32.mxu0 %v947
      %1423 = vmatmul.mubr.f32.gmra.mrb[0].mxu0 %v946
      %v1424 = vpop.f32.mrb[0].mxu0
      %v1425 = vadd.f32 0.0, %v1424
      %v1426 = vpop.f32.mrb[0].mxu0
      %1427 = vmatprep.mubr.f32.mxu0 %v956
      %1428 = vmatmul.mubr.f32.gmra.mrb[0].mxu0 %v955
      %v1429 = vpop.f32.mrb[0].mxu0
      %v1430 = vadd.f32 0.0, %v1429
      %v1431 = vpop.f32.mrb[0].mxu0
      %1432 = vmatprep.mubr.f32.mxu0 %v965
      %1433 = vmatmul.mubr.f32.gmra.mrb[0].mxu0 %v964
      %v1434 = vpop.f32.mrb[0].mxu0
      %v1435 = vadd.f32 0.0, %v1434
      %v1436 = vpop.f32.mrb[0].mxu0
      %1437 = vmatprep.mubr.f32.mxu0 %v974
      %1438 = vmatmul.mubr.f32.gmra.mrb[0].mxu0 %v973
      %v1439 = vpop.f32.mrb[0].mxu0
      %v1440 = vadd.f32 0.0, %v1439
      %v1441 = vpop.f32.mrb[0].mxu0
      %1442 = vmatprep.mubr.f32.mxu0 %v983
      %1443 = vmatmul.mubr.f32.gmra.mrb[0].mxu0 %v982
      %v1444 = vpop.f32.mrb[0].mxu0
      %v1445 = vadd.f32 0.0, %v1444
      %v1446 = vpop.f32.mrb[0].mxu0
      %1447 = vmatprep.mubr.f32.mxu0 %v992
      %1448 = vmatmul.mubr.f32.gmra.mrb[0].mxu0 %v991
      %v1449 = vpop.f32.mrb[0].mxu0
      %v1450 = vadd.f32 0.0, %v1449
      %v1451 = vpop.f32.mrb[0].mxu0
      %1452 = vmatprep.mubr.f32.mxu0 %v1001
      %1453 = vmatmul.mubr.f32.gmra.mrb[0].mxu0 %v1000
      %v1454 = vpop.f32.mrb[0].mxu0
      %v1455 = vadd.f32 0.0, %v1454
      %v1456 = vpop.f32.mrb[0].mxu0
      %1457 = vmatprep.mubr.f32.mxu0 %v1010
      %1458 = vmatmul.mubr.f32.gmra.mrb[0].mxu0 %v1009
      %v1459 = vpop.f32.mrb[0].mxu0
      %v1460 = vadd.f32 0.0, %v1459
      %v1461 = vpop.f32.mrb[0].mxu0
      %1462 = vmatprep.mubr.f32.mxu0 %v1019
      %1463 = vmatmul.mubr.f32.gmra.mrb[0].mxu0 %v1018
      %v1464 = vpop.f32.mrb[0].mxu0
      %v1465 = vadd.f32 0.0, %v1464
      %v1466 = vpop.f32.mrb[0].mxu0
      %1467 = vmatprep.mubr.f32.mxu0 %v1028
      %1468 = vmatmul.mubr.f32.gmra.mrb[0].mxu0 %v1027
      %v1469 = vpop.f32.mrb[0].mxu0
      %v1470 = vadd.f32 0.0, %v1469
      %v1471 = vpop.f32.mrb[0].mxu0
      %1472 = vmatprep.mubr.f32.mxu0 %v1037
      %1473 = vmatmul.mubr.f32.gmra.mrb[0].mxu0 %v1036
      %v1474 = vpop.f32.mrb[0].mxu0
      %v1475 = vadd.f32 0.0, %v1474
      %v1476 = vpop.f32.mrb[0].mxu0
      %1477 = vmatprep.mubr.f32.mxu0 %v1046
      %1478 = vmatmul.mubr.f32.gmra.mrb[0].mxu0 %v1045
      %v1479 = vpop.f32.mrb[0].mxu0
      %v1480 = vadd.f32 0.0, %v1479
      %v1481 = vpop.f32.mrb[0].mxu0
      %1482 = vmatprep.mubr.f32.mxu0 %v1055
      %1483 = vmatmul.mubr.f32.gmra.mrb[0].mxu0 %v1054
      %v1484 = vpop.f32.mrb[0].mxu0
      %v1485 = vadd.f32 0.0, %v1484
      %v1486 = vpop.f32.mrb[0].mxu0
      %1487 = vmatprep.mubr.f32.mxu0 %v1064
      %1488 = vmatmul.mubr.f32.gmra.mrb[0].mxu0 %v1063
      %v1489 = vpop.f32.mrb[0].mxu0
      %v1490 = vadd.f32 0.0, %v1489
      %v1491 = vpop.f32.mrb[0].mxu0
      %1492 = vmatprep.mubr.f32.mxu0 %v1073
      %1493 = vmatmul.mubr.f32.gmra.mrb[0].mxu0 %v1072
      %v1494 = vpop.f32.mrb[0].mxu0
      %v1495 = vadd.f32 0.0, %v1494
      %v1496 = vpop.f32.mrb[0].mxu0
      %1497 = vmatprep.mubr.f32.mxu0 %v1082
      %1498 = vmatmul.mubr.f32.gmra.mrb[0].mxu0 %v1081
      %v1499 = vpop.f32.mrb[0].mxu0
      %v1500 = vadd.f32 0.0, %v1499
      %v1501 = vpop.f32.mrb[0].mxu0
      %1502 = vmatprep.mubr.f32.mxu0 %v1091
      %1503 = vmatmul.mubr.f32.gmra.mrb[0].mxu0 %v1090
      %v1504 = vpop.f32.mrb[0].mxu0
      %v1505 = vadd.f32 0.0, %v1504
      %v1506 = vpop.f32.mrb[0].mxu0
      %1507 = vmatprep.mubr.f32.mxu0 %v1100
      %1508 = vmatmul.mubr.f32.gmra.mrb[0].mxu0 %v1099
      %v1509 = vpop.f32.mrb[0].mxu0
      %v1510 = vadd.f32 0.0, %v1509
      %v1511 = vpop.f32.mrb[0].mxu0
      %1512 = vmatprep.mubr.f32.mxu0 %v1109
      %1513 = vmatmul.mubr.f32.gmra.mrb[0].mxu0 %v1108
      %v1514 = vpop.f32.mrb[0].mxu0
      %v1515 = vadd.f32 0.0, %v1514
      %v1516 = vpop.f32.mrb[0].mxu0
      %1517 = vmatprep.mubr.f32.mxu0 %v1118
      %1518 = vmatmul.mubr.f32.gmra.mrb[0].mxu0 %v1117
      %v1519 = vpop.f32.mrb[0].mxu0
      %v1520 = vadd.f32 0.0, %v1519
      %v1521 = vpop.f32.mrb[0].mxu0
      %1522 = vmatprep.mubr.f32.mxu0 %v1127
      %1523 = vmatmul.mubr.f32.gmra.mrb[0].mxu0 %v1126
      %v1524 = vpop.f32.mrb[0].mxu0
      %v1525 = vadd.f32 0.0, %v1524
      %v1526 = vpop.f32.mrb[0].mxu0
      %1527 = vmatprep.mubr.f32.mxu0 %v1136
      %1528 = vmatmul.mubr.f32.gmra.mrb[0].mxu0 %v1135
      %v1529 = vpop.f32.mrb[0].mxu0
      %v1530 = vadd.f32 0.0, %v1529
      %v1531 = vpop.f32.mrb[0].mxu0
      %1532 = vmatprep.mubr.f32.mxu0 %v1145
      %1533 = vmatmul.mubr.f32.gmra.mrb[0].mxu0 %v1144
      %v1534 = vpop.f32.mrb[0].mxu0
      %v1535 = vadd.f32 0.0, %v1534
      %v1536 = vpop.f32.mrb[0].mxu0
      %1537 = vmatprep.mubr.f32.mxu0 %v1154
      %1538 = vmatmul.mubr.f32.gmra.mrb[0].mxu0 %v1153
      %v1539 = vpop.f32.mrb[0].mxu0
      %v1540 = vadd.f32 0.0, %v1539
      %v1541 = vpop.f32.mrb[0].mxu0
      %1542 = vmatprep.mubr.f32.mxu0 %v1163
      %1543 = vmatmul.mubr.f32.gmra.mrb[0].mxu0 %v1162
      %v1544 = vpop.f32.mrb[0].mxu0
      %v1545 = vadd.f32 0.0, %v1544
      %v1546 = vpop.f32.mrb[0].mxu0
      %1547 = vmatprep.mubr.f32.mxu0 %v1172
      %1548 = vmatmul.mubr.f32.gmra.mrb[0].mxu0 %v1171
      %v1549 = vpop.f32.mrb[0].mxu0
      %v1550 = vadd.f32 0.0, %v1549
      %v1551 = vpop.f32.mrb[0].mxu0
      %1552 = vmatprep.mubr.f32.mxu0 %v1181
      %1553 = vmatmul.mubr.f32.gmra.mrb[0].mxu0 %v1180
      %v1554 = vpop.f32.mrb[0].mxu0
      %v1555 = vadd.f32 0.0, %v1554
      %v1556 = vpop.f32.mrb[0].mxu0
      %1557 = vdwg.mxu0
      %1558 = vmatprep.subr.mxu0 0.0
      %1559 = vmatpush1.msra.mxu0 %v1221
      %1560 = vmatprep.subr.mxu0 0.0
      %1561 = vmatpush1.msra.mxu0 %v1222
      %1562 = vmatprep.subr.mxu0 0.0
      %1563 = vmatpush1.msra.mxu0 %v1223
      %1564 = vmatprep.subr.mxu0 0.0
      %1565 = vmatpush1.msra.mxu0 %v1224
      %1566 = vmatprep.subr.mxu0 0.0
      %1567 = vmatpush1.msra.mxu0 %v1225
      %1568 = vmatprep.subr.mxu0 0.0
      %1569 = vmatpush1.msra.mxu0 %v1226
      %1570 = vmatprep.subr.mxu0 0.0
      %1571 = vmatpush1.msra.mxu0 %v1227
      %1572 = vmatprep.subr.mxu0 0.0
      %1573 = vmatpush1.msra.mxu0 %v1228
      %1574 = vmatprep.subr.mxu0 0.0
      %1575 = vmatpush1.msra.mxu0 %v1229
      %1576 = vmatprep.subr.mxu0 0.0
      %1577 = vmatpush1.msra.mxu0 %v1230
      %1578 = vmatprep.subr.mxu0 0.0
      %1579 = vmatpush1.msra.mxu0 %v1231
      %1580 = vmatprep.subr.mxu0 0.0
      %1581 = vmatpush1.msra.mxu0 %v1232
      %1582 = vmatprep.subr.mxu0 0.0
      %1583 = vmatpush1.msra.mxu0 %v1233
      %1584 = vmatprep.subr.mxu0 0.0
      %1585 = vmatpush1.msra.mxu0 %v1234
      %1586 = vmatprep.subr.mxu0 0.0
      %1587 = vmatpush1.msra.mxu0 %v1235
      %1588 = vmatprep.subr.mxu0 0.0
      %1589 = vmatpush1.msra.mxu0 %v1236
      %1590 = vmatprep.subr.mxu0 0.0
      %1591 = vmatpush1.msra.mxu0 %v1237
      %1592 = vmatprep.subr.mxu0 0.0
      %1593 = vmatpush1.msra.mxu0 %v1238
      %1594 = vmatprep.subr.mxu0 0.0
      %1595 = vmatpush1.msra.mxu0 %v1239
      %1596 = vmatprep.subr.mxu0 0.0
      %1597 = vmatpush1.msra.mxu0 %v1240
      %1598 = vmatprep.subr.mxu0 0.0
      %1599 = vmatpush1.msra.mxu0 %v1241
      %1600 = vmatprep.subr.mxu0 0.0
      %1601 = vmatpush1.msra.mxu0 %v1242
      %1602 = vmatprep.subr.mxu0 0.0
      %1603 = vmatpush1.msra.mxu0 %v1243
      %1604 = vmatprep.subr.mxu0 0.0
      %1605 = vmatpush1.msra.mxu0 %v1244
      %1606 = vmatprep.subr.mxu0 0.0
      %1607 = vmatpush1.msra.mxu0 %v1245
      %1608 = vmatprep.subr.mxu0 0.0
      %1609 = vmatpush1.msra.mxu0 %v1246
      %1610 = vmatprep.subr.mxu0 0.0
      %1611 = vmatpush1.msra.mxu0 %v1247
      %1612 = vmatprep.subr.mxu0 0.0
      %1613 = vmatpush1.msra.mxu0 %v1248
      %1614 = vmatprep.subr.mxu0 0.0
      %1615 = vmatpush1.msra.mxu0 %v1249
      %1616 = vmatprep.subr.mxu0 0.0
      %1617 = vmatpush1.msra.mxu0 %v1250
      %1618 = vmatprep.subr.mxu0 0.0
      %1619 = vmatpush1.msra.mxu0 %v1251
      %1620 = vmatprep.subr.mxu0 0.0
      %1621 = vmatpush1.msra.mxu0 %v1252
      %1622 = vmatprep.mubr.f32.mxu0 %v904
      %1623 = vmatmul.mubr.f32.gmra.mrb[0].mxu0 %v903
      %v1624 = vpop.f32.mrb[0].mxu0
      %v1625 = vadd.f32 %v1400, %v1624
      %v1626 = vpop.f32.mrb[0].mxu0
      %1627 = vmatprep.mubr.f32.mxu0 %v913
      %1628 = vmatmul.mubr.f32.gmra.mrb[0].mxu0 %v912
      %v1629 = vpop.f32.mrb[0].mxu0
      %v1630 = vadd.f32 %v1405, %v1629
      %v1631 = vpop.f32.mrb[0].mxu0
      %1632 = vmatprep.mubr.f32.mxu0 %v922
      %1633 = vmatmul.mubr.f32.gmra.mrb[0].mxu0 %v921
      %v1634 = vpop.f32.mrb[0].mxu0
      %v1635 = vadd.f32 %v1410, %v1634
      %v1636 = vpop.f32.mrb[0].mxu0
      %1637 = vmatprep.mubr.f32.mxu0 %v931
      %1638 = vmatmul.mubr.f32.gmra.mrb[0].mxu0 %v930
      %v1639 = vpop.f32.mrb[0].mxu0
      %v1640 = vadd.f32 %v1415, %v1639
      %v1641 = vpop.f32.mrb[0].mxu0
      %1642 = vmatprep.mubr.f32.mxu0 %v940
      %1643 = vmatmul.mubr.f32.gmra.mrb[0].mxu0 %v939
      %v1644 = vpop.f32.mrb[0].mxu0
      %v1645 = vadd.f32 %v1420, %v1644
      %v1646 = vpop.f32.mrb[0].mxu0
      %1647 = vmatprep.mubr.f32.mxu0 %v949
      %1648 = vmatmul.mubr.f32.gmra.mrb[0].mxu0 %v948
      %v1649 = vpop.f32.mrb[0].mxu0
      %v1650 = vadd.f32 %v1425, %v1649
      %v1651 = vpop.f32.mrb[0].mxu0
      %1652 = vmatprep.mubr.f32.mxu0 %v958
      %1653 = vmatmul.mubr.f32.gmra.mrb[0].mxu0 %v957
      %v1654 = vpop.f32.mrb[0].mxu0
      %v1655 = vadd.f32 %v1430, %v1654
      %v1656 = vpop.f32.mrb[0].mxu0
      %1657 = vmatprep.mubr.f32.mxu0 %v967
      %1658 = vmatmul.mubr.f32.gmra.mrb[0].mxu0 %v966
      %v1659 = vpop.f32.mrb[0].mxu0
      %v1660 = vadd.f32 %v1435, %v1659
      %v1661 = vpop.f32.mrb[0].mxu0
      %1662 = vmatprep.mubr.f32.mxu0 %v976
      %1663 = vmatmul.mubr.f32.gmra.mrb[0].mxu0 %v975
      %v1664 = vpop.f32.mrb[0].mxu0
      %v1665 = vadd.f32 %v1440, %v1664
      %v1666 = vpop.f32.mrb[0].mxu0
      %1667 = vmatprep.mubr.f32.mxu0 %v985
      %1668 = vmatmul.mubr.f32.gmra.mrb[0].mxu0 %v984
      %v1669 = vpop.f32.mrb[0].mxu0
      %v1670 = vadd.f32 %v1445, %v1669
      %v1671 = vpop.f32.mrb[0].mxu0
      %1672 = vmatprep.mubr.f32.mxu0 %v994
      %1673 = vmatmul.mubr.f32.gmra.mrb[0].mxu0 %v993
      %v1674 = vpop.f32.mrb[0].mxu0
      %v1675 = vadd.f32 %v1450, %v1674
      %v1676 = vpop.f32.mrb[0].mxu0
      %1677 = vmatprep.mubr.f32.mxu0 %v1003
      %1678 = vmatmul.mubr.f32.gmra.mrb[0].mxu0 %v1002
      %v1679 = vpop.f32.mrb[0].mxu0
      %v1680 = vadd.f32 %v1455, %v1679
      %v1681 = vpop.f32.mrb[0].mxu0
      %1682 = vmatprep.mubr.f32.mxu0 %v1012
      %1683 = vmatmul.mubr.f32.gmra.mrb[0].mxu0 %v1011
      %v1684 = vpop.f32.mrb[0].mxu0
      %v1685 = vadd.f32 %v1460, %v1684
      %v1686 = vpop.f32.mrb[0].mxu0
      %1687 = vmatprep.mubr.f32.mxu0 %v1021
      %1688 = vmatmul.mubr.f32.gmra.mrb[0].mxu0 %v1020
      %v1689 = vpop.f32.mrb[0].mxu0
      %v1690 = vadd.f32 %v1465, %v1689
      %v1691 = vpop.f32.mrb[0].mxu0
      %1692 = vmatprep.mubr.f32.mxu0 %v1030
      %1693 = vmatmul.mubr.f32.gmra.mrb[0].mxu0 %v1029
      %v1694 = vpop.f32.mrb[0].mxu0
      %v1695 = vadd.f32 %v1470, %v1694
      %v1696 = vpop.f32.mrb[0].mxu0
      %1697 = vmatprep.mubr.f32.mxu0 %v1039
      %1698 = vmatmul.mubr.f32.gmra.mrb[0].mxu0 %v1038
      %v1699 = vpop.f32.mrb[0].mxu0
      %v1700 = vadd.f32 %v1475, %v1699
      %v1701 = vpop.f32.mrb[0].mxu0
      %1702 = vmatprep.mubr.f32.mxu0 %v1048
      %1703 = vmatmul.mubr.f32.gmra.mrb[0].mxu0 %v1047
      %v1704 = vpop.f32.mrb[0].mxu0
      %v1705 = vadd.f32 %v1480, %v1704
      %v1706 = vpop.f32.mrb[0].mxu0
      %1707 = vmatprep.mubr.f32.mxu0 %v1057
      %1708 = vmatmul.mubr.f32.gmra.mrb[0].mxu0 %v1056
      %v1709 = vpop.f32.mrb[0].mxu0
      %v1710 = vadd.f32 %v1485, %v1709
      %v1711 = vpop.f32.mrb[0].mxu0
      %1712 = vmatprep.mubr.f32.mxu0 %v1066
      %1713 = vmatmul.mubr.f32.gmra.mrb[0].mxu0 %v1065
      %v1714 = vpop.f32.mrb[0].mxu0
      %v1715 = vadd.f32 %v1490, %v1714
      %v1716 = vpop.f32.mrb[0].mxu0
      %1717 = vmatprep.mubr.f32.mxu0 %v1075
      %1718 = vmatmul.mubr.f32.gmra.mrb[0].mxu0 %v1074
      %v1719 = vpop.f32.mrb[0].mxu0
      %v1720 = vadd.f32 %v1495, %v1719
      %v1721 = vpop.f32.mrb[0].mxu0
      %1722 = vmatprep.mubr.f32.mxu0 %v1084
      %1723 = vmatmul.mubr.f32.gmra.mrb[0].mxu0 %v1083
      %v1724 = vpop.f32.mrb[0].mxu0
      %v1725 = vadd.f32 %v1500, %v1724
      %v1726 = vpop.f32.mrb[0].mxu0
      %1727 = vmatprep.mubr.f32.mxu0 %v1093
      %1728 = vmatmul.mubr.f32.gmra.mrb[0].mxu0 %v1092
      %v1729 = vpop.f32.mrb[0].mxu0
      %v1730 = vadd.f32 %v1505, %v1729
      %v1731 = vpop.f32.mrb[0].mxu0
      %1732 = vmatprep.mubr.f32.mxu0 %v1102
      %1733 = vmatmul.mubr.f32.gmra.mrb[0].mxu0 %v1101
      %v1734 = vpop.f32.mrb[0].mxu0
      %v1735 = vadd.f32 %v1510, %v1734
      %v1736 = vpop.f32.mrb[0].mxu0
      %1737 = vmatprep.mubr.f32.mxu0 %v1111
      %1738 = vmatmul.mubr.f32.gmra.mrb[0].mxu0 %v1110
      %v1739 = vpop.f32.mrb[0].mxu0
      %v1740 = vadd.f32 %v1515, %v1739
      %v1741 = vpop.f32.mrb[0].mxu0
      %1742 = vmatprep.mubr.f32.mxu0 %v1120
      %1743 = vmatmul.mubr.f32.gmra.mrb[0].mxu0 %v1119
      %v1744 = vpop.f32.mrb[0].mxu0
      %v1745 = vadd.f32 %v1520, %v1744
      %v1746 = vpop.f32.mrb[0].mxu0
      %1747 = vmatprep.mubr.f32.mxu0 %v1129
      %1748 = vmatmul.mubr.f32.gmra.mrb[0].mxu0 %v1128
      %v1749 = vpop.f32.mrb[0].mxu0
      %v1750 = vadd.f32 %v1525, %v1749
      %v1751 = vpop.f32.mrb[0].mxu0
      %1752 = vmatprep.mubr.f32.mxu0 %v1138
      %1753 = vmatmul.mubr.f32.gmra.mrb[0].mxu0 %v1137
      %v1754 = vpop.f32.mrb[0].mxu0
      %v1755 = vadd.f32 %v1530, %v1754
      %v1756 = vpop.f32.mrb[0].mxu0
      %1757 = vmatprep.mubr.f32.mxu0 %v1147
      %1758 = vmatmul.mubr.f32.gmra.mrb[0].mxu0 %v1146
      %v1759 = vpop.f32.mrb[0].mxu0
      %v1760 = vadd.f32 %v1535, %v1759
      %v1761 = vpop.f32.mrb[0].mxu0
      %1762 = vmatprep.mubr.f32.mxu0 %v1156
      %1763 = vmatmul.mubr.f32.gmra.mrb[0].mxu0 %v1155
      %v1764 = vpop.f32.mrb[0].mxu0
      %v1765 = vadd.f32 %v1540, %v1764
      %v1766 = vpop.f32.mrb[0].mxu0
      %1767 = vmatprep.mubr.f32.mxu0 %v1165
      %1768 = vmatmul.mubr.f32.gmra.mrb[0].mxu0 %v1164
      %v1769 = vpop.f32.mrb[0].mxu0
      %v1770 = vadd.f32 %v1545, %v1769
      %v1771 = vpop.f32.mrb[0].mxu0
      %1772 = vmatprep.mubr.f32.mxu0 %v1174
      %1773 = vmatmul.mubr.f32.gmra.mrb[0].mxu0 %v1173
      %v1774 = vpop.f32.mrb[0].mxu0
      %v1775 = vadd.f32 %v1550, %v1774
      %v1776 = vpop.f32.mrb[0].mxu0
      %1777 = vmatprep.mubr.f32.mxu0 %v1183
      %1778 = vmatmul.mubr.f32.gmra.mrb[0].mxu0 %v1182
      %v1779 = vpop.f32.mrb[0].mxu0
      %v1780 = vadd.f32 %v1555, %v1779
      %v1781 = vpop.f32.mrb[0].mxu0
      %1782 = vdwg.mxu0
      %1783 = vmatprep.subr.mxu0 0.0
      %1784 = vmatpush1.msra.mxu0 %v1253
      %1785 = vmatprep.subr.mxu0 0.0
      %1786 = vmatpush1.msra.mxu0 %v1254
      %1787 = vmatprep.subr.mxu0 0.0
      %1788 = vmatpush1.msra.mxu0 %v1255
      %1789 = vmatprep.subr.mxu0 0.0
      %1790 = vmatpush1.msra.mxu0 %v1256
      %1791 = vmatprep.subr.mxu0 0.0
      %1792 = vmatpush1.msra.mxu0 %v1257
      %1793 = vmatprep.subr.mxu0 0.0
      %1794 = vmatpush1.msra.mxu0 %v1258
      %1795 = vmatprep.subr.mxu0 0.0
      %1796 = vmatpush1.msra.mxu0 %v1259
      %1797 = vmatprep.subr.mxu0 0.0
      %1798 = vmatpush1.msra.mxu0 %v1260
      %1799 = vmatprep.subr.mxu0 0.0
      %1800 = vmatpush1.msra.mxu0 %v1261
      %1801 = vmatprep.subr.mxu0 0.0
      %1802 = vmatpush1.msra.mxu0 %v1262
      %1803 = vmatprep.subr.mxu0 0.0
      %1804 = vmatpush1.msra.mxu0 %v1263
      %1805 = vmatprep.subr.mxu0 0.0
      %1806 = vmatpush1.msra.mxu0 %v1264
      %1807 = vmatprep.subr.mxu0 0.0
      %1808 = vmatpush1.msra.mxu0 %v1265
      %1809 = vmatprep.subr.mxu0 0.0
      %1810 = vmatpush1.msra.mxu0 %v1266
      %1811 = vmatprep.subr.mxu0 0.0
      %1812 = vmatpush1.msra.mxu0 %v1267
      %1813 = vmatprep.subr.mxu0 0.0
      %1814 = vmatpush1.msra.mxu0 %v1268
      %1815 = vmatprep.subr.mxu0 0.0
      %1816 = vmatpush1.msra.mxu0 %v1269
      %1817 = vmatprep.subr.mxu0 0.0
      %1818 = vmatpush1.msra.mxu0 %v1270
      %1819 = vmatprep.subr.mxu0 0.0
      %1820 = vmatpush1.msra.mxu0 %v1271
      %1821 = vmatprep.subr.mxu0 0.0
      %1822 = vmatpush1.msra.mxu0 %v1272
      %1823 = vmatprep.subr.mxu0 0.0
      %1824 = vmatpush1.msra.mxu0 %v1273
      %1825 = vmatprep.subr.mxu0 0.0
      %1826 = vmatpush1.msra.mxu0 %v1274
      %1827 = vmatprep.subr.mxu0 0.0
      %1828 = vmatpush1.msra.mxu0 %v1275
      %1829 = vmatprep.subr.mxu0 0.0
      %1830 = vmatpush1.msra.mxu0 %v1276
      %1831 = vmatprep.subr.mxu0 0.0
      %1832 = vmatpush1.msra.mxu0 %v1277
      %1833 = vmatprep.subr.mxu0 0.0
      %1834 = vmatpush1.msra.mxu0 %v1278
      %1835 = vmatprep.subr.mxu0 0.0
      %1836 = vmatpush1.msra.mxu0 %v1279
      %1837 = vmatprep.subr.mxu0 0.0
      %1838 = vmatpush1.msra.mxu0 %v1280
      %1839 = vmatprep.subr.mxu0 0.0
      %1840 = vmatpush1.msra.mxu0 %v1281
      %1841 = vmatprep.subr.mxu0 0.0
      %1842 = vmatpush1.msra.mxu0 %v1282
      %1843 = vmatprep.subr.mxu0 0.0
      %1844 = vmatpush1.msra.mxu0 %v1283
      %1845 = vmatprep.subr.mxu0 0.0
      %1846 = vmatpush1.msra.mxu0 %v1284
      %1847 = vmatprep.mubr.f32.mxu0 %v906
      %1848 = vmatmul.mubr.f32.gmra.mrb[0].mxu0 %v905
      %v1849 = vpop.f32.mrb[0].mxu0
      %v1850 = vadd.f32 %v1625, %v1849
      %v1851 = vpop.f32.mrb[0].mxu0
      %1852 = vmatprep.mubr.f32.mxu0 %v915
      %1853 = vmatmul.mubr.f32.gmra.mrb[0].mxu0 %v914
      %v1854 = vpop.f32.mrb[0].mxu0
      %v1855 = vadd.f32 %v1630, %v1854
      %v1856 = vpop.f32.mrb[0].mxu0
      %1857 = vmatprep.mubr.f32.mxu0 %v924
      %1858 = vmatmul.mubr.f32.gmra.mrb[0].mxu0 %v923
      %v1859 = vpop.f32.mrb[0].mxu0
      %v1860 = vadd.f32 %v1635, %v1859
      %v1861 = vpop.f32.mrb[0].mxu0
      %1862 = vmatprep.mubr.f32.mxu0 %v933
      %1863 = vmatmul.mubr.f32.gmra.mrb[0].mxu0 %v932
      %v1864 = vpop.f32.mrb[0].mxu0
      %v1865 = vadd.f32 %v1640, %v1864
      %v1866 = vpop.f32.mrb[0].mxu0
      %1867 = vmatprep.mubr.f32.mxu0 %v942
      %1868 = vmatmul.mubr.f32.gmra.mrb[0].mxu0 %v941
      %v1869 = vpop.f32.mrb[0].mxu0
      %v1870 = vadd.f32 %v1645, %v1869
      %v1871 = vpop.f32.mrb[0].mxu0
      %1872 = vmatprep.mubr.f32.mxu0 %v951
      %1873 = vmatmul.mubr.f32.gmra.mrb[0].mxu0 %v950
      %v1874 = vpop.f32.mrb[0].mxu0
      %v1875 = vadd.f32 %v1650, %v1874
      %v1876 = vpop.f32.mrb[0].mxu0
      %1877 = vmatprep.mubr.f32.mxu0 %v960
      %1878 = vmatmul.mubr.f32.gmra.mrb[0].mxu0 %v959
      %v1879 = vpop.f32.mrb[0].mxu0
      %v1880 = vadd.f32 %v1655, %v1879
      %v1881 = vpop.f32.mrb[0].mxu0
      %1882 = vmatprep.mubr.f32.mxu0 %v969
      %1883 = vmatmul.mubr.f32.gmra.mrb[0].mxu0 %v968
      %v1884 = vpop.f32.mrb[0].mxu0
      %v1885 = vadd.f32 %v1660, %v1884
      %v1886 = vpop.f32.mrb[0].mxu0
      %1887 = vmatprep.mubr.f32.mxu0 %v978
      %1888 = vmatmul.mubr.f32.gmra.mrb[0].mxu0 %v977
      %v1889 = vpop.f32.mrb[0].mxu0
      %v1890 = vadd.f32 %v1665, %v1889
      %v1891 = vpop.f32.mrb[0].mxu0
      %1892 = vmatprep.mubr.f32.mxu0 %v987
      %1893 = vmatmul.mubr.f32.gmra.mrb[0].mxu0 %v986
      %v1894 = vpop.f32.mrb[0].mxu0
      %v1895 = vadd.f32 %v1670, %v1894
      %v1896 = vpop.f32.mrb[0].mxu0
      %1897 = vmatprep.mubr.f32.mxu0 %v996
      %1898 = vmatmul.mubr.f32.gmra.mrb[0].mxu0 %v995
      %v1899 = vpop.f32.mrb[0].mxu0
      %v1900 = vadd.f32 %v1675, %v1899
      %v1901 = vpop.f32.mrb[0].mxu0
      %1902 = vmatprep.mubr.f32.mxu0 %v1005
      %1903 = vmatmul.mubr.f32.gmra.mrb[0].mxu0 %v1004
      %v1904 = vpop.f32.mrb[0].mxu0
      %v1905 = vadd.f32 %v1680, %v1904
      %v1906 = vpop.f32.mrb[0].mxu0
      %1907 = vmatprep.mubr.f32.mxu0 %v1014
      %1908 = vmatmul.mubr.f32.gmra.mrb[0].mxu0 %v1013
      %v1909 = vpop.f32.mrb[0].mxu0
      %v1910 = vadd.f32 %v1685, %v1909
      %v1911 = vpop.f32.mrb[0].mxu0
      %1912 = vmatprep.mubr.f32.mxu0 %v1023
      %1913 = vmatmul.mubr.f32.gmra.mrb[0].mxu0 %v1022
      %v1914 = vpop.f32.mrb[0].mxu0
      %v1915 = vadd.f32 %v1690, %v1914
      %v1916 = vpop.f32.mrb[0].mxu0
      %1917 = vmatprep.mubr.f32.mxu0 %v1032
      %1918 = vmatmul.mubr.f32.gmra.mrb[0].mxu0 %v1031
      %v1919 = vpop.f32.mrb[0].mxu0
      %v1920 = vadd.f32 %v1695, %v1919
      %v1921 = vpop.f32.mrb[0].mxu0
      %1922 = vmatprep.mubr.f32.mxu0 %v1041
      %1923 = vmatmul.mubr.f32.gmra.mrb[0].mxu0 %v1040
      %v1924 = vpop.f32.mrb[0].mxu0
      %v1925 = vadd.f32 %v1700, %v1924
      %v1926 = vpop.f32.mrb[0].mxu0
      %1927 = vmatprep.mubr.f32.mxu0 %v1050
      %1928 = vmatmul.mubr.f32.gmra.mrb[0].mxu0 %v1049
      %v1929 = vpop.f32.mrb[0].mxu0
      %v1930 = vadd.f32 %v1705, %v1929
      %v1931 = vpop.f32.mrb[0].mxu0
      %1932 = vmatprep.mubr.f32.mxu0 %v1059
      %1933 = vmatmul.mubr.f32.gmra.mrb[0].mxu0 %v1058
      %v1934 = vpop.f32.mrb[0].mxu0
      %v1935 = vadd.f32 %v1710, %v1934
      %v1936 = vpop.f32.mrb[0].mxu0
      %1937 = vmatprep.mubr.f32.mxu0 %v1068
      %1938 = vmatmul.mubr.f32.gmra.mrb[0].mxu0 %v1067
      %v1939 = vpop.f32.mrb[0].mxu0
      %v1940 = vadd.f32 %v1715, %v1939
      %v1941 = vpop.f32.mrb[0].mxu0
      %1942 = vmatprep.mubr.f32.mxu0 %v1077
      %1943 = vmatmul.mubr.f32.gmra.mrb[0].mxu0 %v1076
      %v1944 = vpop.f32.mrb[0].mxu0
      %v1945 = vadd.f32 %v1720, %v1944
      %v1946 = vpop.f32.mrb[0].mxu0
      %1947 = vmatprep.mubr.f32.mxu0 %v1086
      %1948 = vmatmul.mubr.f32.gmra.mrb[0].mxu0 %v1085
      %v1949 = vpop.f32.mrb[0].mxu0
      %v1950 = vadd.f32 %v1725, %v1949
      %v1951 = vpop.f32.mrb[0].mxu0
      %1952 = vmatprep.mubr.f32.mxu0 %v1095
      %1953 = vmatmul.mubr.f32.gmra.mrb[0].mxu0 %v1094
      %v1954 = vpop.f32.mrb[0].mxu0
      %v1955 = vadd.f32 %v1730, %v1954
      %v1956 = vpop.f32.mrb[0].mxu0
      %1957 = vmatprep.mubr.f32.mxu0 %v1104
      %1958 = vmatmul.mubr.f32.gmra.mrb[0].mxu0 %v1103
      %v1959 = vpop.f32.mrb[0].mxu0
      %v1960 = vadd.f32 %v1735, %v1959
      %v1961 = vpop.f32.mrb[0].mxu0
      %1962 = vmatprep.mubr.f32.mxu0 %v1113
      %1963 = vmatmul.mubr.f32.gmra.mrb[0].mxu0 %v1112
      %v1964 = vpop.f32.mrb[0].mxu0
      %v1965 = vadd.f32 %v1740, %v1964
      %v1966 = vpop.f32.mrb[0].mxu0
      %1967 = vmatprep.mubr.f32.mxu0 %v1122
      %1968 = vmatmul.mubr.f32.gmra.mrb[0].mxu0 %v1121
      %v1969 = vpop.f32.mrb[0].mxu0
      %v1970 = vadd.f32 %v1745, %v1969
      %v1971 = vpop.f32.mrb[0].mxu0
      %1972 = vmatprep.mubr.f32.mxu0 %v1131
      %1973 = vmatmul.mubr.f32.gmra.mrb[0].mxu0 %v1130
      %v1974 = vpop.f32.mrb[0].mxu0
      %v1975 = vadd.f32 %v1750, %v1974
      %v1976 = vpop.f32.mrb[0].mxu0
      %1977 = vmatprep.mubr.f32.mxu0 %v1140
      %1978 = vmatmul.mubr.f32.gmra.mrb[0].mxu0 %v1139
      %v1979 = vpop.f32.mrb[0].mxu0
      %v1980 = vadd.f32 %v1755, %v1979
      %v1981 = vpop.f32.mrb[0].mxu0
      %1982 = vmatprep.mubr.f32.mxu0 %v1149
      %1983 = vmatmul.mubr.f32.gmra.mrb[0].mxu0 %v1148
      %v1984 = vpop.f32.mrb[0].mxu0
      %v1985 = vadd.f32 %v1760, %v1984
      %v1986 = vpop.f32.mrb[0].mxu0
      %1987 = vmatprep.mubr.f32.mxu0 %v1158
      %1988 = vmatmul.mubr.f32.gmra.mrb[0].mxu0 %v1157
      %v1989 = vpop.f32.mrb[0].mxu0
      %v1990 = vadd.f32 %v1765, %v1989
      %v1991 = vpop.f32.mrb[0].mxu0
      %1992 = vmatprep.mubr.f32.mxu0 %v1167
      %1993 = vmatmul.mubr.f32.gmra.mrb[0].mxu0 %v1166
      %v1994 = vpop.f32.mrb[0].mxu0
      %v1995 = vadd.f32 %v1770, %v1994
      %v1996 = vpop.f32.mrb[0].mxu0
      %1997 = vmatprep.mubr.f32.mxu0 %v1176
      %1998 = vmatmul.mubr.f32.gmra.mrb[0].mxu0 %v1175
      %v1999 = vpop.f32.mrb[0].mxu0
      %v2000 = vadd.f32 %v1775, %v1999
      %v2001 = vpop.f32.mrb[0].mxu0
      %2002 = vmatprep.mubr.f32.mxu0 %v1185
      %2003 = vmatmul.mubr.f32.gmra.mrb[0].mxu0 %v1184
      %v2004 = vpop.f32.mrb[0].mxu0
      %v2005 = vadd.f32 %v1780, %v2004
      %v2006 = vpop.f32.mrb[0].mxu0
      %2007 = vdwg.mxu0
      %2008 = vmatprep.subr.mxu0 0.0
      %2009 = vmatpush1.msra.mxu0 %v1285
      %2010 = vmatprep.subr.mxu0 0.0
      %2011 = vmatpush1.msra.mxu0 %v1286
      %2012 = vmatprep.subr.mxu0 0.0
      %2013 = vmatpush1.msra.mxu0 %v1287
      %2014 = vmatprep.subr.mxu0 0.0
      %2015 = vmatpush1.msra.mxu0 %v1288
      %2016 = vmatprep.subr.mxu0 0.0
      %2017 = vmatpush1.msra.mxu0 %v1289
      %2018 = vmatprep.subr.mxu0 0.0
      %2019 = vmatpush1.msra.mxu0 %v1290
      %2020 = vmatprep.subr.mxu0 0.0
      %2021 = vmatpush1.msra.mxu0 %v1291
      %2022 = vmatprep.subr.mxu0 0.0
      %2023 = vmatpush1.msra.mxu0 %v1292
      %2024 = vmatprep.subr.mxu0 0.0
      %2025 = vmatpush1.msra.mxu0 %v1293
      %2026 = vmatprep.subr.mxu0 0.0
      %2027 = vmatpush1.msra.mxu0 %v1294
      %2028 = vmatprep.subr.mxu0 0.0
      %2029 = vmatpush1.msra.mxu0 %v1295
      %2030 = vmatprep.subr.mxu0 0.0
      %2031 = vmatpush1.msra.mxu0 %v1296
      %2032 = vmatprep.subr.mxu0 0.0
      %2033 = vmatpush1.msra.mxu0 %v1297
      %2034 = vmatprep.subr.mxu0 0.0
      %2035 = vmatpush1.msra.mxu0 %v1298
      %2036 = vmatprep.subr.mxu0 0.0
      %2037 = vmatpush1.msra.mxu0 %v1299
      %2038 = vmatprep.subr.mxu0 0.0
      %2039 = vmatpush1.msra.mxu0 %v1300
      %2040 = vmatprep.subr.mxu0 0.0
      %2041 = vmatpush1.msra.mxu0 %v1301
      %2042 = vmatprep.subr.mxu0 0.0
      %2043 = vmatpush1.msra.mxu0 %v1302
      %2044 = vmatprep.subr.mxu0 0.0
      %2045 = vmatpush1.msra.mxu0 %v1303
      %2046 = vmatprep.subr.mxu0 0.0
      %2047 = vmatpush1.msra.mxu0 %v1304
      %2048 = vmatprep.subr.mxu0 0.0
      %2049 = vmatpush1.msra.mxu0 %v1305
      %2050 = vmatprep.subr.mxu0 0.0
      %2051 = vmatpush1.msra.mxu0 %v1306
      %2052 = vmatprep.subr.mxu0 0.0
      %2053 = vmatpush1.msra.mxu0 %v1307
      %2054 = vmatprep.subr.mxu0 0.0
      %2055 = vmatpush1.msra.mxu0 %v1308
      %2056 = vmatprep.subr.mxu0 0.0
      %2057 = vmatpush1.msra.mxu0 %v1309
      %2058 = vmatprep.subr.mxu0 0.0
      %2059 = vmatpush1.msra.mxu0 %v1310
      %2060 = vmatprep.subr.mxu0 0.0
      %2061 = vmatpush1.msra.mxu0 %v1311
      %2062 = vmatprep.subr.mxu0 0.0
      %2063 = vmatpush1.msra.mxu0 %v1312
      %2064 = vmatprep.subr.mxu0 0.0
      %2065 = vmatpush1.msra.mxu0 %v1313
      %2066 = vmatprep.subr.mxu0 0.0
      %2067 = vmatpush1.msra.mxu0 %v1314
      %2068 = vmatprep.subr.mxu0 0.0
      %2069 = vmatpush1.msra.mxu0 %v1315
      %2070 = vmatprep.subr.mxu0 0.0
      %2071 = vmatpush1.msra.mxu0 %v1316
      %2072 = vmatprep.mubr.f32.mxu0 %v908
      %2073 = vmatmul.mubr.f32.gmra.mrb[0].mxu0 %v907
      %v2074 = vpop.f32.mrb[0].mxu0
      %v2075 = vadd.f32 %v1850, %v2074
      %v2076 = vpop.f32.mrb[0].mxu0
      %2077 = vmatprep.mubr.f32.mxu0 %v917
      %2078 = vmatmul.mubr.f32.gmra.mrb[0].mxu0 %v916
      %v2079 = vpop.f32.mrb[0].mxu0
      %v2080 = vadd.f32 %v1855, %v2079
      %v2081 = vpop.f32.mrb[0].mxu0
      %2082 = vmatprep.mubr.f32.mxu0 %v926
      %2083 = vmatmul.mubr.f32.gmra.mrb[0].mxu0 %v925
      %v2084 = vpop.f32.mrb[0].mxu0
      %v2085 = vadd.f32 %v1860, %v2084
      %v2086 = vpop.f32.mrb[0].mxu0
      %2087 = vmatprep.mubr.f32.mxu0 %v935
      %2088 = vmatmul.mubr.f32.gmra.mrb[0].mxu0 %v934
      %v2089 = vpop.f32.mrb[0].mxu0
      %v2090 = vadd.f32 %v1865, %v2089
      %v2091 = vpop.f32.mrb[0].mxu0
      %2092 = vmatprep.mubr.f32.mxu0 %v944
      %2093 = vmatmul.mubr.f32.gmra.mrb[0].mxu0 %v943
      %v2094 = vpop.f32.mrb[0].mxu0
      %v2095 = vadd.f32 %v1870, %v2094
      %v2096 = vpop.f32.mrb[0].mxu0
      %2097 = vmatprep.mubr.f32.mxu0 %v953
      %2098 = vmatmul.mubr.f32.gmra.mrb[0].mxu0 %v952
      %v2099 = vpop.f32.mrb[0].mxu0
      %v2100 = vadd.f32 %v1875, %v2099
      %v2101 = vpop.f32.mrb[0].mxu0
      %2102 = vmatprep.mubr.f32.mxu0 %v962
      %2103 = vmatmul.mubr.f32.gmra.mrb[0].mxu0 %v961
      %v2104 = vpop.f32.mrb[0].mxu0
      %v2105 = vadd.f32 %v1880, %v2104
      %v2106 = vpop.f32.mrb[0].mxu0
      %2107 = vmatprep.mubr.f32.mxu0 %v971
      %2108 = vmatmul.mubr.f32.gmra.mrb[0].mxu0 %v970
      %v2109 = vpop.f32.mrb[0].mxu0
      %v2110 = vadd.f32 %v1885, %v2109
      %v2111 = vpop.f32.mrb[0].mxu0
      %2112 = vmatprep.mubr.f32.mxu0 %v980
      %2113 = vmatmul.mubr.f32.gmra.mrb[0].mxu0 %v979
      %v2114 = vpop.f32.mrb[0].mxu0
      %v2115 = vadd.f32 %v1890, %v2114
      %v2116 = vpop.f32.mrb[0].mxu0
      %2117 = vmatprep.mubr.f32.mxu0 %v989
      %2118 = vmatmul.mubr.f32.gmra.mrb[0].mxu0 %v988
      %v2119 = vpop.f32.mrb[0].mxu0
      %v2120 = vadd.f32 %v1895, %v2119
      %v2121 = vpop.f32.mrb[0].mxu0
      %2122 = vmatprep.mubr.f32.mxu0 %v998
      %2123 = vmatmul.mubr.f32.gmra.mrb[0].mxu0 %v997
      %v2124 = vpop.f32.mrb[0].mxu0
      %v2125 = vadd.f32 %v1900, %v2124
      %v2126 = vpop.f32.mrb[0].mxu0
      %2127 = vmatprep.mubr.f32.mxu0 %v1007
      %2128 = vmatmul.mubr.f32.gmra.mrb[0].mxu0 %v1006
      %v2129 = vpop.f32.mrb[0].mxu0
      %v2130 = vadd.f32 %v1905, %v2129
      %v2131 = vpop.f32.mrb[0].mxu0
      %2132 = vmatprep.mubr.f32.mxu0 %v1016
      %2133 = vmatmul.mubr.f32.gmra.mrb[0].mxu0 %v1015
      %v2134 = vpop.f32.mrb[0].mxu0
      %v2135 = vadd.f32 %v1910, %v2134
      %v2136 = vpop.f32.mrb[0].mxu0
      %2137 = vmatprep.mubr.f32.mxu0 %v1025
      %2138 = vmatmul.mubr.f32.gmra.mrb[0].mxu0 %v1024
      %v2139 = vpop.f32.mrb[0].mxu0
      %v2140 = vadd.f32 %v1915, %v2139
      %v2141 = vpop.f32.mrb[0].mxu0
      %2142 = vmatprep.mubr.f32.mxu0 %v1034
      %2143 = vmatmul.mubr.f32.gmra.mrb[0].mxu0 %v1033
      %v2144 = vpop.f32.mrb[0].mxu0
      %v2145 = vadd.f32 %v1920, %v2144
      %v2146 = vpop.f32.mrb[0].mxu0
      %2147 = vmatprep.mubr.f32.mxu0 %v1043
      %2148 = vmatmul.mubr.f32.gmra.mrb[0].mxu0 %v1042
      %v2149 = vpop.f32.mrb[0].mxu0
      %v2150 = vadd.f32 %v1925, %v2149
      %v2151 = vpop.f32.mrb[0].mxu0
      %2152 = vmatprep.mubr.f32.mxu0 %v1052
      %2153 = vmatmul.mubr.f32.gmra.mrb[0].mxu0 %v1051
      %v2154 = vpop.f32.mrb[0].mxu0
      %v2155 = vadd.f32 %v1930, %v2154
      %v2156 = vpop.f32.mrb[0].mxu0
      %2157 = vmatprep.mubr.f32.mxu0 %v1061
      %2158 = vmatmul.mubr.f32.gmra.mrb[0].mxu0 %v1060
      %v2159 = vpop.f32.mrb[0].mxu0
      %v2160 = vadd.f32 %v1935, %v2159
      %v2161 = vpop.f32.mrb[0].mxu0
      %2162 = vmatprep.mubr.f32.mxu0 %v1070
      %2163 = vmatmul.mubr.f32.gmra.mrb[0].mxu0 %v1069
      %v2164 = vpop.f32.mrb[0].mxu0
      %v2165 = vadd.f32 %v1940, %v2164
      %v2166 = vpop.f32.mrb[0].mxu0
      %2167 = vmatprep.mubr.f32.mxu0 %v1079
      %2168 = vmatmul.mubr.f32.gmra.mrb[0].mxu0 %v1078
      %v2169 = vpop.f32.mrb[0].mxu0
      %v2170 = vadd.f32 %v1945, %v2169
      %v2171 = vpop.f32.mrb[0].mxu0
      %2172 = vmatprep.mubr.f32.mxu0 %v1088
      %2173 = vmatmul.mubr.f32.gmra.mrb[0].mxu0 %v1087
      %v2174 = vpop.f32.mrb[0].mxu0
      %v2175 = vadd.f32 %v1950, %v2174
      %v2176 = vpop.f32.mrb[0].mxu0
      %2177 = vmatprep.mubr.f32.mxu0 %v1097
      %2178 = vmatmul.mubr.f32.gmra.mrb[0].mxu0 %v1096
      %v2179 = vpop.f32.mrb[0].mxu0
      %v2180 = vadd.f32 %v1955, %v2179
      %v2181 = vpop.f32.mrb[0].mxu0
      %2182 = vmatprep.mubr.f32.mxu0 %v1106
      %2183 = vmatmul.mubr.f32.gmra.mrb[0].mxu0 %v1105
      %v2184 = vpop.f32.mrb[0].mxu0
      %v2185 = vadd.f32 %v1960, %v2184
      %v2186 = vpop.f32.mrb[0].mxu0
      %2187 = vmatprep.mubr.f32.mxu0 %v1115
      %2188 = vmatmul.mubr.f32.gmra.mrb[0].mxu0 %v1114
      %v2189 = vpop.f32.mrb[0].mxu0
      %v2190 = vadd.f32 %v1965, %v2189
      %v2191 = vpop.f32.mrb[0].mxu0
      %2192 = vmatprep.mubr.f32.mxu0 %v1124
      %2193 = vmatmul.mubr.f32.gmra.mrb[0].mxu0 %v1123
      %v2194 = vpop.f32.mrb[0].mxu0
      %v2195 = vadd.f32 %v1970, %v2194
      %v2196 = vpop.f32.mrb[0].mxu0
      %2197 = vmatprep.mubr.f32.mxu0 %v1133
      %2198 = vmatmul.mubr.f32.gmra.mrb[0].mxu0 %v1132
      %v2199 = vpop.f32.mrb[0].mxu0
      %v2200 = vadd.f32 %v1975, %v2199
      %v2201 = vpop.f32.mrb[0].mxu0
      %2202 = vmatprep.mubr.f32.mxu0 %v1142
      %2203 = vmatmul.mubr.f32.gmra.mrb[0].mxu0 %v1141
      %v2204 = vpop.f32.mrb[0].mxu0
      %v2205 = vadd.f32 %v1980, %v2204
      %v2206 = vpop.f32.mrb[0].mxu0
      %2207 = vmatprep.mubr.f32.mxu0 %v1151
      %2208 = vmatmul.mubr.f32.gmra.mrb[0].mxu0 %v1150
      %v2209 = vpop.f32.mrb[0].mxu0
      %v2210 = vadd.f32 %v1985, %v2209
      %v2211 = vpop.f32.mrb[0].mxu0
      %2212 = vmatprep.mubr.f32.mxu0 %v1160
      %2213 = vmatmul.mubr.f32.gmra.mrb[0].mxu0 %v1159
      %v2214 = vpop.f32.mrb[0].mxu0
      %v2215 = vadd.f32 %v1990, %v2214
      %v2216 = vpop.f32.mrb[0].mxu0
      %2217 = vmatprep.mubr.f32.mxu0 %v1169
      %2218 = vmatmul.mubr.f32.gmra.mrb[0].mxu0 %v1168
      %v2219 = vpop.f32.mrb[0].mxu0
      %v2220 = vadd.f32 %v1995, %v2219
      %v2221 = vpop.f32.mrb[0].mxu0
      %2222 = vmatprep.mubr.f32.mxu0 %v1178
      %2223 = vmatmul.mubr.f32.gmra.mrb[0].mxu0 %v1177
      %v2224 = vpop.f32.mrb[0].mxu0
      %v2225 = vadd.f32 %v2000, %v2224
      %v2226 = vpop.f32.mrb[0].mxu0
      %2227 = vmatprep.mubr.f32.mxu0 %v1187
      %2228 = vmatmul.mubr.f32.gmra.mrb[0].mxu0 %v1186
      %v2229 = vpop.f32.mrb[0].mxu0
      %v2230 = vadd.f32 %v2005, %v2229
      %v2231 = vpop.f32.mrb[0].mxu0
      %2232 = vdwg.mxu0
      %2233 = vmatprep.subr.mxu0 0.0
      %2234 = vmatpush1.msra.mxu0 %v1317
      %2235 = vmatprep.subr.mxu0 0.0
      %2236 = vmatpush1.msra.mxu0 %v1318
      %2237 = vmatprep.subr.mxu0 0.0
      %2238 = vmatpush1.msra.mxu0 %v1319
      %2239 = vmatprep.subr.mxu0 0.0
      %2240 = vmatpush1.msra.mxu0 %v1320
      %2241 = vmatprep.subr.mxu0 0.0
      %2242 = vmatpush1.msra.mxu0 %v1321
      %2243 = vmatprep.subr.mxu0 0.0
      %2244 = vmatpush1.msra.mxu0 %v1322
      %2245 = vmatprep.subr.mxu0 0.0
      %2246 = vmatpush1.msra.mxu0 %v1323
      %2247 = vmatprep.subr.mxu0 0.0
      %2248 = vmatpush1.msra.mxu0 %v1324
      %2249 = vmatprep.subr.mxu0 0.0
      %2250 = vmatpush1.msra.mxu0 %v1325
      %2251 = vmatprep.subr.mxu0 0.0
      %2252 = vmatpush1.msra.mxu0 %v1326
      %2253 = vmatprep.subr.mxu0 0.0
      %2254 = vmatpush1.msra.mxu0 %v1327
      %2255 = vmatprep.subr.mxu0 0.0
      %2256 = vmatpush1.msra.mxu0 %v1328
      %2257 = vmatprep.subr.mxu0 0.0
      %2258 = vmatpush1.msra.mxu0 %v1329
      %2259 = vmatprep.subr.mxu0 0.0
      %2260 = vmatpush1.msra.mxu0 %v1330
      %2261 = vmatprep.subr.mxu0 0.0
      %2262 = vmatpush1.msra.mxu0 %v1331
      %2263 = vmatprep.subr.mxu0 0.0
      %2264 = vmatpush1.msra.mxu0 %v1332
      %2265 = vmatprep.subr.mxu0 0.0
      %2266 = vmatpush1.msra.mxu0 0.0
      %2267 = vmatprep.subr.mxu0 0.0
      %2268 = vmatpush1.msra.mxu0 0.0
      %2269 = vmatprep.subr.mxu0 0.0
      %2270 = vmatpush1.msra.mxu0 0.0
      %2271 = vmatprep.subr.mxu0 0.0
      %2272 = vmatpush1.msra.mxu0 0.0
      %2273 = vmatprep.subr.mxu0 0.0
      %2274 = vmatpush1.msra.mxu0 0.0
      %2275 = vmatprep.subr.mxu0 0.0
      %2276 = vmatpush1.msra.mxu0 0.0
      %2277 = vmatprep.subr.mxu0 0.0
      %2278 = vmatpush1.msra.mxu0 0.0
      %2279 = vmatprep.subr.mxu0 0.0
      %2280 = vmatpush1.msra.mxu0 0.0
      %2281 = vmatprep.subr.mxu0 0.0
      %2282 = vmatpush1.msra.mxu0 0.0
      %2283 = vmatprep.subr.mxu0 0.0
      %2284 = vmatpush1.msra.mxu0 0.0
      %2285 = vmatprep.subr.mxu0 0.0
      %2286 = vmatpush1.msra.mxu0 0.0
      %2287 = vmatprep.subr.mxu0 0.0
      %2288 = vmatpush1.msra.mxu0 0.0
      %2289 = vmatprep.subr.mxu0 0.0
      %2290 = vmatpush1.msra.mxu0 0.0
      %2291 = vmatprep.subr.mxu0 0.0
      %2292 = vmatpush1.msra.mxu0 0.0
      %2293 = vmatprep.subr.mxu0 0.0
      %2294 = vmatpush1.msra.mxu0 0.0
      %2295 = vmatprep.subr.mxu0 0.0
      %2296 = vmatpush1.msra.mxu0 0.0
      %2297 = vmatprep.mubr.f32.mxu0 0.0
      %2298 = vmatmul.mubr.f32.gmra.mrb[0].mxu0 %v909
      %v2299 = vpop.f32.mrb[0].mxu0
      %v2300 = vadd.f32 %v2075, %v2299
      %v2301 = vpop.f32.mrb[0].mxu0
      %2302 = vmatprep.mubr.f32.mxu0 0.0
      %2303 = vmatmul.mubr.f32.gmra.mrb[0].mxu0 %v918
      %v2304 = vpop.f32.mrb[0].mxu0
      %v2305 = vadd.f32 %v2080, %v2304
      %v2306 = vpop.f32.mrb[0].mxu0
      %2307 = vmatprep.mubr.f32.mxu0 0.0
      %2308 = vmatmul.mubr.f32.gmra.mrb[0].mxu0 %v927
      %v2309 = vpop.f32.mrb[0].mxu0
      %v2310 = vadd.f32 %v2085, %v2309
      %v2311 = vpop.f32.mrb[0].mxu0
      %2312 = vmatprep.mubr.f32.mxu0 0.0
      %2313 = vmatmul.mubr.f32.gmra.mrb[0].mxu0 %v936
      %v2314 = vpop.f32.mrb[0].mxu0
      %v2315 = vadd.f32 %v2090, %v2314
      %v2316 = vpop.f32.mrb[0].mxu0
      %2317 = vmatprep.mubr.f32.mxu0 0.0
      %2318 = vmatmul.mubr.f32.gmra.mrb[0].mxu0 %v945
      %v2319 = vpop.f32.mrb[0].mxu0
      %v2320 = vadd.f32 %v2095, %v2319
      %v2321 = vpop.f32.mrb[0].mxu0
      %2322 = vmatprep.mubr.f32.mxu0 0.0
      %2323 = vmatmul.mubr.f32.gmra.mrb[0].mxu0 %v954
      %v2324 = vpop.f32.mrb[0].mxu0
      %v2325 = vadd.f32 %v2100, %v2324
      %v2326 = vpop.f32.mrb[0].mxu0
      %2327 = vmatprep.mubr.f32.mxu0 0.0
      %2328 = vmatmul.mubr.f32.gmra.mrb[0].mxu0 %v963
      %v2329 = vpop.f32.mrb[0].mxu0
      %v2330 = vadd.f32 %v2105, %v2329
      %v2331 = vpop.f32.mrb[0].mxu0
      %2332 = vmatprep.mubr.f32.mxu0 0.0
      %2333 = vmatmul.mubr.f32.gmra.mrb[0].mxu0 %v972
      %v2334 = vpop.f32.mrb[0].mxu0
      %v2335 = vadd.f32 %v2110, %v2334
      %v2336 = vpop.f32.mrb[0].mxu0
      %2337 = vmatprep.mubr.f32.mxu0 0.0
      %2338 = vmatmul.mubr.f32.gmra.mrb[0].mxu0 %v981
      %v2339 = vpop.f32.mrb[0].mxu0
      %v2340 = vadd.f32 %v2115, %v2339
      %v2341 = vpop.f32.mrb[0].mxu0
      %2342 = vmatprep.mubr.f32.mxu0 0.0
      %2343 = vmatmul.mubr.f32.gmra.mrb[0].mxu0 %v990
      %v2344 = vpop.f32.mrb[0].mxu0
      %v2345 = vadd.f32 %v2120, %v2344
      %v2346 = vpop.f32.mrb[0].mxu0
      %2347 = vmatprep.mubr.f32.mxu0 0.0
      %2348 = vmatmul.mubr.f32.gmra.mrb[0].mxu0 %v999
      %v2349 = vpop.f32.mrb[0].mxu0
      %v2350 = vadd.f32 %v2125, %v2349
      %v2351 = vpop.f32.mrb[0].mxu0
      %2352 = vmatprep.mubr.f32.mxu0 0.0
      %2353 = vmatmul.mubr.f32.gmra.mrb[0].mxu0 %v1008
      %v2354 = vpop.f32.mrb[0].mxu0
      %v2355 = vadd.f32 %v2130, %v2354
      %v2356 = vpop.f32.mrb[0].mxu0
      %2357 = vmatprep.mubr.f32.mxu0 0.0
      %2358 = vmatmul.mubr.f32.gmra.mrb[0].mxu0 %v1017
      %v2359 = vpop.f32.mrb[0].mxu0
      %v2360 = vadd.f32 %v2135, %v2359
      %v2361 = vpop.f32.mrb[0].mxu0
      %2362 = vmatprep.mubr.f32.mxu0 0.0
      %2363 = vmatmul.mubr.f32.gmra.mrb[0].mxu0 %v1026
      %v2364 = vpop.f32.mrb[0].mxu0
      %v2365 = vadd.f32 %v2140, %v2364
      %v2366 = vpop.f32.mrb[0].mxu0
      %2367 = vmatprep.mubr.f32.mxu0 0.0
      %2368 = vmatmul.mubr.f32.gmra.mrb[0].mxu0 %v1035
      %v2369 = vpop.f32.mrb[0].mxu0
      %v2370 = vadd.f32 %v2145, %v2369
      %v2371 = vpop.f32.mrb[0].mxu0
      %2372 = vmatprep.mubr.f32.mxu0 0.0
      %2373 = vmatmul.mubr.f32.gmra.mrb[0].mxu0 %v1044
      %v2374 = vpop.f32.mrb[0].mxu0
      %v2375 = vadd.f32 %v2150, %v2374
      %v2376 = vpop.f32.mrb[0].mxu0
      %2377 = vmatprep.mubr.f32.mxu0 0.0
      %2378 = vmatmul.mubr.f32.gmra.mrb[0].mxu0 %v1053
      %v2379 = vpop.f32.mrb[0].mxu0
      %v2380 = vadd.f32 %v2155, %v2379
      %v2381 = vpop.f32.mrb[0].mxu0
      %2382 = vmatprep.mubr.f32.mxu0 0.0
      %2383 = vmatmul.mubr.f32.gmra.mrb[0].mxu0 %v1062
      %v2384 = vpop.f32.mrb[0].mxu0
      %v2385 = vadd.f32 %v2160, %v2384
      %v2386 = vpop.f32.mrb[0].mxu0
      %2387 = vmatprep.mubr.f32.mxu0 0.0
      %2388 = vmatmul.mubr.f32.gmra.mrb[0].mxu0 %v1071
      %v2389 = vpop.f32.mrb[0].mxu0
      %v2390 = vadd.f32 %v2165, %v2389
      %v2391 = vpop.f32.mrb[0].mxu0
      %2392 = vmatprep.mubr.f32.mxu0 0.0
      %2393 = vmatmul.mubr.f32.gmra.mrb[0].mxu0 %v1080
      %v2394 = vpop.f32.mrb[0].mxu0
      %v2395 = vadd.f32 %v2170, %v2394
      %v2396 = vpop.f32.mrb[0].mxu0
      %2397 = vmatprep.mubr.f32.mxu0 0.0
      %2398 = vmatmul.mubr.f32.gmra.mrb[0].mxu0 %v1089
      %v2399 = vpop.f32.mrb[0].mxu0
      %v2400 = vadd.f32 %v2175, %v2399
      %v2401 = vpop.f32.mrb[0].mxu0
      %2402 = vmatprep.mubr.f32.mxu0 0.0
      %2403 = vmatmul.mubr.f32.gmra.mrb[0].mxu0 %v1098
      %v2404 = vpop.f32.mrb[0].mxu0
      %v2405 = vadd.f32 %v2180, %v2404
      %v2406 = vpop.f32.mrb[0].mxu0
      %2407 = vmatprep.mubr.f32.mxu0 0.0
      %2408 = vmatmul.mubr.f32.gmra.mrb[0].mxu0 %v1107
      %v2409 = vpop.f32.mrb[0].mxu0
      %v2410 = vadd.f32 %v2185, %v2409
      %v2411 = vpop.f32.mrb[0].mxu0
      %2412 = vmatprep.mubr.f32.mxu0 0.0
      %2413 = vmatmul.mubr.f32.gmra.mrb[0].mxu0 %v1116
      %v2414 = vpop.f32.mrb[0].mxu0
      %v2415 = vadd.f32 %v2190, %v2414
      %v2416 = vpop.f32.mrb[0].mxu0
      %2417 = vmatprep.mubr.f32.mxu0 0.0
      %2418 = vmatmul.mubr.f32.gmra.mrb[0].mxu0 %v1125
      %v2419 = vpop.f32.mrb[0].mxu0
      %v2420 = vadd.f32 %v2195, %v2419
      %v2421 = vpop.f32.mrb[0].mxu0
      %2422 = vmatprep.mubr.f32.mxu0 0.0
      %2423 = vmatmul.mubr.f32.gmra.mrb[0].mxu0 %v1134
      %v2424 = vpop.f32.mrb[0].mxu0
      %v2425 = vadd.f32 %v2200, %v2424
      %v2426 = vpop.f32.mrb[0].mxu0
      %2427 = vmatprep.mubr.f32.mxu0 0.0
      %2428 = vmatmul.mubr.f32.gmra.mrb[0].mxu0 %v1143
      %v2429 = vpop.f32.mrb[0].mxu0
      %v2430 = vadd.f32 %v2205, %v2429
      %v2431 = vpop.f32.mrb[0].mxu0
      %2432 = vmatprep.mubr.f32.mxu0 0.0
      %2433 = vmatmul.mubr.f32.gmra.mrb[0].mxu0 %v1152
      %v2434 = vpop.f32.mrb[0].mxu0
      %v2435 = vadd.f32 %v2210, %v2434
      %v2436 = vpop.f32.mrb[0].mxu0
      %2437 = vmatprep.mubr.f32.mxu0 0.0
      %2438 = vmatmul.mubr.f32.gmra.mrb[0].mxu0 %v1161
      %v2439 = vpop.f32.mrb[0].mxu0
      %v2440 = vadd.f32 %v2215, %v2439
      %v2441 = vpop.f32.mrb[0].mxu0
      %2442 = vmatprep.mubr.f32.mxu0 0.0
      %2443 = vmatmul.mubr.f32.gmra.mrb[0].mxu0 %v1170
      %v2444 = vpop.f32.mrb[0].mxu0
      %v2445 = vadd.f32 %v2220, %v2444
      %v2446 = vpop.f32.mrb[0].mxu0
      %2447 = vmatprep.mubr.f32.mxu0 0.0
      %2448 = vmatmul.mubr.f32.gmra.mrb[0].mxu0 %v1179
      %v2449 = vpop.f32.mrb[0].mxu0
      %v2450 = vadd.f32 %v2225, %v2449
      %v2451 = vpop.f32.mrb[0].mxu0
      %2452 = vmatprep.mubr.f32.mxu0 0.0
      %2453 = vmatmul.mubr.f32.gmra.mrb[0].mxu0 %v1188
      %v2454 = vpop.f32.mrb[0].mxu0
      %v2455 = vadd.f32 %v2230, %v2454
      %v2456 = vpop.f32.mrb[0].mxu0
      %2457 = vdwg.mxu0
      %v2459 = vlaneseq
      %v2460 = vshrl.u32 %v2459, 7
      %v2461 = vsub.s32 0, %v2460
      %v2462 = vrot.slane %v321, %v2461
      %v2464 = vmul.f32 %v2300, %v2462
      %v2465 = vmul.f32 %v2305, %v2462
      %v2466 = vmul.f32 %v2310, %v2462
      %v2467 = vmul.f32 %v2315, %v2462
      %v2468 = vmul.f32 %v2320, %v2462
      %v2469 = vmul.f32 %v2325, %v2462
      %v2470 = vmul.f32 %v2330, %v2462
      %v2471 = vmul.f32 %v2335, %v2462
      %v2472 = vmul.f32 %v2340, %v2462
      %v2473 = vmul.f32 %v2345, %v2462
      %v2474 = vmul.f32 %v2350, %v2462
      %v2475 = vmul.f32 %v2355, %v2462
      %v2476 = vmul.f32 %v2360, %v2462
      %v2477 = vmul.f32 %v2365, %v2462
      %v2478 = vmul.f32 %v2370, %v2462
      %v2479 = vmul.f32 %v2375, %v2462
      %v2480 = vmul.f32 %v2380, %v2462
      %v2481 = vmul.f32 %v2385, %v2462
      %v2482 = vmul.f32 %v2390, %v2462
      %v2483 = vmul.f32 %v2395, %v2462
      %v2484 = vmul.f32 %v2400, %v2462
      %v2485 = vmul.f32 %v2405, %v2462
      %v2486 = vmul.f32 %v2410, %v2462
      %v2487 = vmul.f32 %v2415, %v2462
      %v2488 = vmul.f32 %v2420, %v2462
      %v2489 = vmul.f32 %v2425, %v2462
      %v2490 = vmul.f32 %v2430, %v2462
      %v2491 = vmul.f32 %v2435, %v2462
      %v2492 = vmul.f32 %v2440, %v2462
      %v2493 = vmul.f32 %v2445, %v2462
      %v2494 = vmul.f32 %v2450, %v2462
      %v2495 = vmul.f32 %v2455, %v2462
      %v2497 = vlaneseq
      %v2498 = vshrl.u32 %v2497, 7
      %v2499 = vsub.s32 0, %v2498
      %v2500 = vrot.slane %v322, %v2499
      %v2502 = vadd.f32 %v2464, %v2500
      %v2503 = vadd.f32 %v2465, %v2500
      %v2504 = vadd.f32 %v2466, %v2500
      %v2505 = vadd.f32 %v2467, %v2500
      %v2506 = vadd.f32 %v2468, %v2500
      %v2507 = vadd.f32 %v2469, %v2500
      %v2508 = vadd.f32 %v2470, %v2500
      %v2509 = vadd.f32 %v2471, %v2500
      %v2510 = vadd.f32 %v2472, %v2500
      %v2511 = vadd.f32 %v2473, %v2500
      %v2512 = vadd.f32 %v2474, %v2500
      %v2513 = vadd.f32 %v2475, %v2500
      %v2514 = vadd.f32 %v2476, %v2500
      %v2515 = vadd.f32 %v2477, %v2500
      %v2516 = vadd.f32 %v2478, %v2500
      %v2517 = vadd.f32 %v2479, %v2500
      %v2518 = vadd.f32 %v2480, %v2500
      %v2519 = vadd.f32 %v2481, %v2500
      %v2520 = vadd.f32 %v2482, %v2500
      %v2521 = vadd.f32 %v2483, %v2500
      %v2522 = vadd.f32 %v2484, %v2500
      %v2523 = vadd.f32 %v2485, %v2500
      %v2524 = vadd.f32 %v2486, %v2500
      %v2525 = vadd.f32 %v2487, %v2500
      %v2526 = vadd.f32 %v2488, %v2500
      %v2527 = vadd.f32 %v2489, %v2500
      %v2528 = vadd.f32 %v2490, %v2500
      %v2529 = vadd.f32 %v2491, %v2500
      %v2530 = vadd.f32 %v2492, %v2500
      %v2531 = vadd.f32 %v2493, %v2500
      %v2532 = vadd.f32 %v2494, %v2500
      %v2533 = vadd.f32 %v2495, %v2500
      %v2534 = vld [vmem:[%s312] sm:$0xff]
      %v2535 = vld [vmem:[%s312 + $0x8] sm:$0xff]
      %v2536 = vld [vmem:[%s312 + $0x10] sm:$0xff]
      %v2537 = vld [vmem:[%s312 + $0x18] sm:$0xff]
      %v2538 = vld [vmem:[%s312 + $0x20] sm:$0xff]
      %v2539 = vld [vmem:[%s312 + $0x28] sm:$0xff]
      %v2540 = vld [vmem:[%s312 + $0x30] sm:$0xff]
      %v2541 = vld [vmem:[%s312 + $0x38] sm:$0xff]
      %v2542 = vld [vmem:[%s312 + $0x40] sm:$0xff]
      %v2543 = vld [vmem:[%s312 + $0x48] sm:$0xff]
      %v2544 = vld [vmem:[%s312 + $0x50] sm:$0xff]
      %v2545 = vld [vmem:[%s312 + $0x58] sm:$0xff]
      %v2546 = vld [vmem:[%s312 + $0x60] sm:$0xff]
      %v2547 = vld [vmem:[%s312 + $0x68] sm:$0xff]
      %v2548 = vld [vmem:[%s312 + $0x70] sm:$0xff]
      %v2549 = vld [vmem:[%s312 + $0x78] sm:$0xff]
      %v2550 = vld [vmem:[%s312 + $0x80] sm:$0xff]
      %v2551 = vld [vmem:[%s312 + $0x88] sm:$0xff]
      %v2552 = vld [vmem:[%s312 + $0x90] sm:$0xff]
      %v2553 = vld [vmem:[%s312 + $0x98] sm:$0xff]
      %v2554 = vld [vmem:[%s312 + $0xa0] sm:$0xff]
      %v2555 = vld [vmem:[%s312 + $0xa8] sm:$0xff]
      %v2556 = vld [vmem:[%s312 + $0xb0] sm:$0xff]
      %v2557 = vld [vmem:[%s312 + $0xb8] sm:$0xff]
      %v2558 = vld [vmem:[%s312 + $0xc0] sm:$0xff]
      %v2559 = vld [vmem:[%s312 + $0xc8] sm:$0xff]
      %v2560 = vld [vmem:[%s312 + $0xd0] sm:$0xff]
      %v2561 = vld [vmem:[%s312 + $0xd8] sm:$0xff]
      %v2562 = vld [vmem:[%s312 + $0xe0] sm:$0xff]
      %v2563 = vld [vmem:[%s312 + $0xe8] sm:$0xff]
      %v2564 = vld [vmem:[%s312 + $0xf0] sm:$0xff]
      %v2565 = vld [vmem:[%s312 + $0xf8] sm:$0xff]
      %v2566 = vadd.f32 %v2502, %v2534
      %v2567 = vadd.f32 %v2503, %v2535
      %v2568 = vadd.f32 %v2504, %v2536
      %v2569 = vadd.f32 %v2505, %v2537
      %v2570 = vadd.f32 %v2506, %v2538
      %v2571 = vadd.f32 %v2507, %v2539
      %v2572 = vadd.f32 %v2508, %v2540
      %v2573 = vadd.f32 %v2509, %v2541
      %v2574 = vadd.f32 %v2510, %v2542
      %v2575 = vadd.f32 %v2511, %v2543
      %v2576 = vadd.f32 %v2512, %v2544
      %v2577 = vadd.f32 %v2513, %v2545
      %v2578 = vadd.f32 %v2514, %v2546
      %v2579 = vadd.f32 %v2515, %v2547
      %v2580 = vadd.f32 %v2516, %v2548
      %v2581 = vadd.f32 %v2517, %v2549
      %v2582 = vadd.f32 %v2518, %v2550
      %v2583 = vadd.f32 %v2519, %v2551
      %v2584 = vadd.f32 %v2520, %v2552
      %v2585 = vadd.f32 %v2521, %v2553
      %v2586 = vadd.f32 %v2522, %v2554
      %v2587 = vadd.f32 %v2523, %v2555
      %v2588 = vadd.f32 %v2524, %v2556
      %v2589 = vadd.f32 %v2525, %v2557
      %v2590 = vadd.f32 %v2526, %v2558
      %v2591 = vadd.f32 %v2527, %v2559
      %v2592 = vadd.f32 %v2528, %v2560
      %v2593 = vadd.f32 %v2529, %v2561
      %v2594 = vadd.f32 %v2530, %v2562
      %v2595 = vadd.f32 %v2531, %v2563
      %v2596 = vadd.f32 %v2532, %v2564
      %v2597 = vadd.f32 %v2533, %v2565
      %v2598 = vmax.f32 %v2566, 0.0
      %v2599 = vmax.f32 %v2567, 0.0
      %v2600 = vmax.f32 %v2568, 0.0
      %v2601 = vmax.f32 %v2569, 0.0
      %v2602 = vmax.f32 %v2570, 0.0
      %v2603 = vmax.f32 %v2571, 0.0
      %v2604 = vmax.f32 %v2572, 0.0
      %v2605 = vmax.f32 %v2573, 0.0
      %v2606 = vmax.f32 %v2574, 0.0
      %v2607 = vmax.f32 %v2575, 0.0
      %v2608 = vmax.f32 %v2576, 0.0
      %v2609 = vmax.f32 %v2577, 0.0
      %v2610 = vmax.f32 %v2578, 0.0
      %v2611 = vmax.f32 %v2579, 0.0
      %v2612 = vmax.f32 %v2580, 0.0
      %v2613 = vmax.f32 %v2581, 0.0
      %v2614 = vmax.f32 %v2582, 0.0
      %v2615 = vmax.f32 %v2583, 0.0
      %v2616 = vmax.f32 %v2584, 0.0
      %v2617 = vmax.f32 %v2585, 0.0
      %v2618 = vmax.f32 %v2586, 0.0
      %v2619 = vmax.f32 %v2587, 0.0
      %v2620 = vmax.f32 %v2588, 0.0
      %v2621 = vmax.f32 %v2589, 0.0
      %v2622 = vmax.f32 %v2590, 0.0
      %v2623 = vmax.f32 %v2591, 0.0
      %v2624 = vmax.f32 %v2592, 0.0
      %v2625 = vmax.f32 %v2593, 0.0
      %v2626 = vmax.f32 %v2594, 0.0
      %v2627 = vmax.f32 %v2595, 0.0
      %v2628 = vmax.f32 %v2596, 0.0
      %v2629 = vmax.f32 %v2597, 0.0
      %2630 = vst [vmem:[%s320] sm:$0xff] %v2598
      %2631 = vst [vmem:[%s320 + $0x8] sm:$0xff] %v2599
      %2632 = vst [vmem:[%s320 + $0x10] sm:$0xff] %v2600
      %2633 = vst [vmem:[%s320 + $0x18] sm:$0xff] %v2601
      %2634 = vst [vmem:[%s320 + $0x20] sm:$0xff] %v2602
      %2635 = vst [vmem:[%s320 + $0x28] sm:$0xff] %v2603
      %2636 = vst [vmem:[%s320 + $0x30] sm:$0xff] %v2604
      %2637 = vst [vmem:[%s320 + $0x38] sm:$0xff] %v2605
      %2638 = vst [vmem:[%s320 + $0x40] sm:$0xff] %v2606
      %2639 = vst [vmem:[%s320 + $0x48] sm:$0xff] %v2607
      %2640 = vst [vmem:[%s320 + $0x50] sm:$0xff] %v2608
      %2641 = vst [vmem:[%s320 + $0x58] sm:$0xff] %v2609
      %2642 = vst [vmem:[%s320 + $0x60] sm:$0xff] %v2610
      %2643 = vst [vmem:[%s320 + $0x68] sm:$0xff] %v2611
      %2644 = vst [vmem:[%s320 + $0x70] sm:$0xff] %v2612
      %2645 = vst [vmem:[%s320 + $0x78] sm:$0xff] %v2613
      %2646 = vst [vmem:[%s320 + $0x80] sm:$0xff] %v2614
      %2647 = vst [vmem:[%s320 + $0x88] sm:$0xff] %v2615
      %2648 = vst [vmem:[%s320 + $0x90] sm:$0xff] %v2616
      %2649 = vst [vmem:[%s320 + $0x98] sm:$0xff] %v2617
      %2650 = vst [vmem:[%s320 + $0xa0] sm:$0xff] %v2618
      %2651 = vst [vmem:[%s320 + $0xa8] sm:$0xff] %v2619
      %2652 = vst [vmem:[%s320 + $0xb0] sm:$0xff] %v2620
      %2653 = vst [vmem:[%s320 + $0xb8] sm:$0xff] %v2621
      %2654 = vst [vmem:[%s320 + $0xc0] sm:$0xff] %v2622
      %2655 = vst [vmem:[%s320 + $0xc8] sm:$0xff] %v2623
      %2656 = vst [vmem:[%s320 + $0xd0] sm:$0xff] %v2624
      %2657 = vst [vmem:[%s320 + $0xd8] sm:$0xff] %v2625
      %2658 = vst [vmem:[%s320 + $0xe0] sm:$0xff] %v2626
      %2659 = vst [vmem:[%s320 + $0xe8] sm:$0xff] %v2627
      %2660 = vst [vmem:[%s320 + $0xf0] sm:$0xff] %v2628
      %2661 = vst [vmem:[%s320 + $0xf8] sm:$0xff] %v2629
      %p2662 = scmp.lt.s32.totalorder %s20, 1
      %s2663 = scalar_select %p2662, %s20, 1
      %p2664 = scmp.lt.s32.totalorder %s21, 0
      %s2665 = scalar_select %p2664, %s21, 0
      %s2666 = smul.addr %s2663, 32
      %s2667 = sadd.s32 %s2665, %s2666
      %s2668 = smul.addr %s2667, 8
      %s2669 = scalar_lea.vmem %s5, %s2668
      // Predicated region
      $region41: #{basic_block_forward.3} parent=39 // pred_check
        %p2670 = pneg %p180
      $region42: #{basic_block_forward.3} parent=39 // pred_check_branch
        %2672 = sbr.rel (%p2670) target = $region44
      $region43: #{basic_block_forward.3} parent=39 // pred_region
        _
      $region44: #{basic_block_forward.3} parent=39 // pred_fallthru
        _
    $region40: #{basic_block_forward.3} parent=5 // pred_fallthru
      _
    %p2673 = scmp.le.s32.totalorder 2, %s11
    // Predicated region
    $region45: #{basic_block_forward.3} parent=5 // pred_check
      %p2674 = pneg %p2673
    $region46: #{basic_block_forward.3} parent=5 // pred_check_branch
      %2676 = sbr.rel (%p2674) target = $region48
    $region47: #{basic_block_forward.3} parent=5 // pred_region
      %s2677 = ssub.s32 %s11, 2
      // Predicated region
      $region49: #{basic_block_forward.3} parent=47 // pred_check
        %p2678 = pneg %p186
      $region50: #{basic_block_forward.3} parent=47 // pred_check_branch
        %2680 = sbr.rel (%p2678) target = $region52
      $region51: #{basic_block_forward.3} parent=47 // pred_region
        %p2681 = scmp.lt.s32.totalorder %s22, 1
        %s2682 = scalar_select %p2681, %s22, 1
        %p2683 = scmp.lt.s32.totalorder %s23, 0
        %s2684 = scalar_select %p2683, %s23, 0
        %s2685 = smul.addr %s2682, 32
        %s2686 = sadd.s32 %s2684, %s2685
        %s2687 = smul.addr %s2686, 8
        %s2688 = scalar_lea.vmem %s5, %s2687
      $region52: #{basic_block_forward.3} parent=47 // pred_fallthru
        _
    $region48: #{basic_block_forward.3} parent=5 // pred_fallthru
      _
  $region6: #{basic_block_forward.3} parent=0 // loop_footer
    %s15 = sadd.s32 1, %s11
  $region7: #{basic_block_forward.3} parent=0 // loop_footer_branch
    %10 = sbr.rel target = $region3
  $region8: #{basic_block_forward.3} parent=0 // loop_exit
    _

// kernel: basic_block_forward.2
$region0: #{basic_block_forward.2}
  #allocation0 [shape = 'u32[]', space=smem, size = 0x4, offset = 0x4, fixed_abs, tag = 'smem constant byte address 0x4 - core index']
  #allocation1 [shape = 'u32[144,128]{1,0:T(1,128)}', space=vmem, size = 0x12000, scoped, tag = 'internal scratch']
  #allocation2 [shape = 'f32[256,1152]{1,0:T(8,128)}', space=vmem, size = 0x120000, scoped, tag = 'scratch operand']
  %s0 = inlined_call_operand.vmem [shape: f32[2,18,18,128], index: 0, kind: input, shape index: {}]
  %s1 = inlined_call_operand.vmem [shape: f32[1152,128], index: 1, kind: input, shape index: {}]
  %s2 = inlined_call_operand.vmem [shape: f32[1,128], index: 2, kind: input, shape index: {}]
  %s3 = inlined_call_operand.vmem [shape: f32[1,128], index: 3, kind: input, shape index: {}]
  %s4 = inlined_call_operand.vmem [shape: f32[2,16,16,128], index: 4, kind: output, shape index: {}]
  %s5 = sld [smem:[#allocation0]]
  $region49: #{basic_block_forward.2} parent=0
    _
  %s7 = ssub.s32 1, %s5
  %s8 = scalar_select 0, %s7, %s5
  loop: start=0, step=1, limit=4
  $region2: #{basic_block_forward.2} parent=0 // loop_pre_header
    _
  $region3: #{basic_block_forward.2} parent=0 // loop_header
    %s10 = sphi 0, %s14
    %p11 = scmp.ge.s32.totalorder %s10, 4
    %s17 = sphi 0, %s29
    %s18 = sphi 0, %s25
    %s19 = sphi 0, %s17
    %s20 = sphi 0, %s18
    %s21 = sphi 0, %s19
    %s22 = sphi 0, %s20
    %s32 = sphi 0, %s34
    %s35 = sphi 0, %s32
    %s36 = sphi 0, %s35
    %s52 = sphi 0, %s36
    %s58 = sphi 0, %s60
    %s61 = sphi 0, %s58
    %s62 = sphi 0, %s61
    %s78 = sphi 0, %s62
    %s84 = sphi 0, %s86
    %s87 = sphi 0, %s84
    %s88 = sphi 0, %s87
    %s104 = sphi 0, %s88
    %s110 = sphi 0, %s112
    %s113 = sphi 0, %s110
    %s114 = sphi 0, %s113
    %s130 = sphi 0, %s114
    %s138 = sphi 0, %s140
    %s141 = sphi 0, %s138
    %s142 = sphi 0, %s141
    %s158 = sphi 0, %s142
  $region4: #{basic_block_forward.2} parent=0 // loop_header_branch
    %13 = sbr.rel (%p11) target = $region8
  $region5: #{basic_block_forward.2} parent=0 // loop_body
    %s15 = ssub.s32 %s10, 1
    %s16 = ssub.s32 %s10, 2
    %s23 = sadd.s32 1, %s18
    %p24 = scmp.ge.s32.totalorder %s23, 1
    %s25 = scalar_select %p24, 0, %s23
    %s26 = sadd.s32 1, %s17
    %s27 = scalar_select %p24, %s26, %s17
    %p28 = scmp.ge.s32.totalorder %s27, 2
    %s29 = scalar_select %p28, 0, %s27
    %s30 = ssub.s32 %s17, %s29
    %p31 = scmp.eq.s32.totalorder %s30, 0
    %s33 = sadd.s32 %s32, 1
    %s34 = scalar_select %p31, %s32, %s33
    %p37 = pneg %p31
    %p38 = scmp.eq.s32.totalorder %s10, 1
    %p39 = por %p37, %p38
    %p40 = scmp.ne.s32.totalorder %s32, %s35
    %p41 = scmp.eq.s32.totalorder %s10, 0
    %p42 = por %p40, %p41
    %p43 = scmp.ne.s32.totalorder %s32, %s35
    %p44 = scmp.eq.s32.totalorder %s15, 1
    %p45 = por %p43, %p44
    %p46 = scmp.ne.s32.totalorder %s35, %s36
    %p47 = scmp.eq.s32.totalorder %s15, 0
    %p48 = por %p46, %p47
    %p49 = scmp.ne.s32.totalorder %s35, %s36
    %p50 = scmp.eq.s32.totalorder %s16, 1
    %p51 = por %p49, %p50
    %p53 = scmp.ne.s32.totalorder %s36, %s52
    %p54 = scmp.eq.s32.totalorder %s16, 0
    %p55 = por %p53, %p54
    %s56 = ssub.s32 %s18, %s25
    %p57 = scmp.eq.s32.totalorder %s56, 0
    %s59 = sadd.s32 %s58, 1
    %s60 = scalar_select %p57, %s58, %s59
    %p63 = pneg %p57
    %p64 = scmp.eq.s32.totalorder %s10, 1
    %p65 = por %p63, %p64
    %p66 = scmp.ne.s32.totalorder %s58, %s61
    %p67 = scmp.eq.s32.totalorder %s10, 0
    %p68 = por %p66, %p67
    %p69 = scmp.ne.s32.totalorder %s58, %s61
    %p70 = scmp.eq.s32.totalorder %s15, 1
    %p71 = por %p69, %p70
    %p72 = scmp.ne.s32.totalorder %s61, %s62
    %p73 = scmp.eq.s32.totalorder %s15, 0
    %p74 = por %p72, %p73
    %p75 = scmp.ne.s32.totalorder %s61, %s62
    %p76 = scmp.eq.s32.totalorder %s16, 1
    %p77 = por %p75, %p76
    %p79 = scmp.ne.s32.totalorder %s62, %s78
    %p80 = scmp.eq.s32.totalorder %s16, 0
    %p81 = por %p79, %p80
    %s82 = ssub.s32 %s18, %s25
    %p83 = scmp.eq.s32.totalorder %s82, 0
    %s85 = sadd.s32 %s84, 1
    %s86 = scalar_select %p83, %s84, %s85
    %p89 = pneg %p83
    %p90 = scmp.eq.s32.totalorder %s10, 1
    %p91 = por %p89, %p90
    %p92 = scmp.ne.s32.totalorder %s84, %s87
    %p93 = scmp.eq.s32.totalorder %s10, 0
    %p94 = por %p92, %p93
    %p95 = scmp.ne.s32.totalorder %s84, %s87
    %p96 = scmp.eq.s32.totalorder %s15, 1
    %p97 = por %p95, %p96
    %p98 = scmp.ne.s32.totalorder %s87, %s88
    %p99 = scmp.eq.s32.totalorder %s15, 0
    %p100 = por %p98, %p99
    %p101 = scmp.ne.s32.totalorder %s87, %s88
    %p102 = scmp.eq.s32.totalorder %s16, 1
    %p103 = por %p101, %p102
    %p105 = scmp.ne.s32.totalorder %s88, %s104
    %p106 = scmp.eq.s32.totalorder %s16, 0
    %p107 = por %p105, %p106
    %s108 = ssub.s32 %s18, %s25
    %p109 = scmp.eq.s32.totalorder %s108, 0
    %s111 = sadd.s32 %s110, 1
    %s112 = scalar_select %p109, %s110, %s111
    %p115 = pneg %p109
    %p116 = scmp.eq.s32.totalorder %s10, 1
    %p117 = por %p115, %p116
    %p118 = scmp.ne.s32.totalorder %s110, %s113
    %p119 = scmp.eq.s32.totalorder %s10, 0
    %p120 = por %p118, %p119
    %p121 = scmp.ne.s32.totalorder %s110, %s113
    %p122 = scmp.eq.s32.totalorder %s15, 1
    %p123 = por %p121, %p122
    %p124 = scmp.ne.s32.totalorder %s113, %s114
    %p125 = scmp.eq.s32.totalorder %s15, 0
    %p126 = por %p124, %p125
    %p127 = scmp.ne.s32.totalorder %s113, %s114
    %p128 = scmp.eq.s32.totalorder %s16, 1
    %p129 = por %p127, %p128
    %p131 = scmp.ne.s32.totalorder %s114, %s130
    %p132 = scmp.eq.s32.totalorder %s16, 0
    %p133 = por %p131, %p132
    %s134 = ssub.s32 %s17, %s29
    %s135 = ssub.s32 %s18, %s25
    %s136 = sor.u32 %s134, %s135
    %p137 = scmp.eq.s32.totalorder %s136, 0
    %s139 = sadd.s32 %s138, 1
    %s140 = scalar_select %p137, %s138, %s139
    %p143 = pneg %p137
    %p144 = scmp.eq.s32.totalorder %s10, 1
    %p145 = por %p143, %p144
    %p146 = scmp.ne.s32.totalorder %s138, %s141
    %p147 = scmp.eq.s32.totalorder %s10, 0
    %p148 = por %p146, %p147
    %p149 = scmp.ne.s32.totalorder %s138, %s141
    %p150 = scmp.eq.s32.totalorder %s15, 1
    %p151 = por %p149, %p150
    %p152 = scmp.ne.s32.totalorder %s141, %s142
    %p153 = scmp.eq.s32.totalorder %s15, 0
    %p154 = por %p152, %p153
    %p155 = scmp.ne.s32.totalorder %s141, %s142
    %p156 = scmp.eq.s32.totalorder %s16, 1
    %p157 = por %p155, %p156
    %p159 = scmp.ne.s32.totalorder %s142, %s158
    %p160 = scmp.eq.s32.totalorder %s16, 0
    %p161 = por %p159, %p160
    %p162 = scmp.le.s32.totalorder 1, %s10
    %p163 = scmp.lt.s32.totalorder %s10, 3
    %p164 = pnand %p162, %p163
    %p165 = pneg %p164
    // Predicated region
    $region9: #{basic_block_forward.2} parent=5 // pred_check
      _
    $region10: #{basic_block_forward.2} parent=5 // pred_check_branch
      %167 = sbr.rel (%p164) target = $region12
    $region11: #{basic_block_forward.2} parent=5 // pred_region
      %s168 = ssub.s32 %s10, 1
      // Predicated region
      $region13: #{basic_block_forward.2} parent=11 // pred_check
        %p169 = pneg %p74
      $region14: #{basic_block_forward.2} parent=11 // pred_check_branch
        %171 = sbr.rel (%p169) target = $region16
      $region15: #{basic_block_forward.2} parent=11 // pred_region
        %p172 = scmp.lt.s32.totalorder %s20, 0
        %s173 = scalar_select %p172, %s20, 0
        %s174 = smul.addr %s173, 8
        %s175 = scalar_lea.vmem %s1, %s174
      $region16: #{basic_block_forward.2} parent=11 // pred_fallthru
        _
      // Predicated region
      $region17: #{basic_block_forward.2} parent=11 // pred_check
        %p176 = pneg %p100
      $region18: #{basic_block_forward.2} parent=11 // pred_check_branch
        %178 = sbr.rel (%p176) target = $region20
      $region19: #{basic_block_forward.2} parent=11 // pred_region
        %p179 = scmp.lt.s32.totalorder %s20, 0
        %s180 = scalar_select %p179, %s20, 0
        %s181 = scalar_lea.vmem %s2, %s180
      $region20: #{basic_block_forward.2} parent=11 // pred_fallthru
        _
      // Predicated region
      $region21: #{basic_block_forward.2} parent=11 // pred_check
        %p182 = pneg %p126
      $region22: #{basic_block_forward.2} parent=11 // pred_check_branch
        %184 = sbr.rel (%p182) target = $region24
      $region23: #{basic_block_forward.2} parent=11 // pred_region
        %p185 = scmp.lt.s32.totalorder %s20, 0
        %s186 = scalar_select %p185, %s20, 0
        %s187 = scalar_lea.vmem %s3, %s186
      $region24: #{basic_block_forward.2} parent=11 // pred_fallthru
        _
    $region12: #{basic_block_forward.2} parent=5 // pred_fallthru
      _
    %p188 = scmp.lt.s32.totalorder %s10, 2
    // Predicated region
    $region25: #{basic_block_forward.2} parent=5 // pred_check
      %p189 = pneg %p188
    $region26: #{basic_block_forward.2} parent=5 // pred_check_branch
      %191 = sbr.rel (%p189) target = $region28
    $region27: #{basic_block_forward.2} parent=5 // pred_region
      // Predicated region
      $region29: #{basic_block_forward.2} parent=27 // pred_check
        %p192 = pneg %p42
      $region30: #{basic_block_forward.2} parent=27 // pred_check_branch
        %194 = sbr.rel (%p192) target = $region32
      $region31: #{basic_block_forward.2} parent=27 // pred_region
        %p195 = scmp.lt.s32.totalorder %s17, 1
        %s196 = scalar_select %p195, %s17, 1
        %s197 = smul.addr %s196, 54
        %s198 = smul.addr %s197, 8
        %s199 = scalar_lea.vmem %s0, %s198
      $region32: #{basic_block_forward.2} parent=27 // pred_fallthru
        _
    $region28: #{basic_block_forward.2} parent=5 // pred_fallthru
      _
    %p200 = scmp.le.s32.totalorder 1, %s10
    %p201 = scmp.lt.s32.totalorder %s10, 3
    %p202 = pnand %p200, %p201
    %p203 = pneg %p202
    // Predicated region
    $region33: #{basic_block_forward.2} parent=5 // pred_check
      _
    $region34: #{basic_block_forward.2} parent=5 // pred_check_branch
      %205 = sbr.rel (%p202) target = $region36
    $region35: #{basic_block_forward.2} parent=5 // pred_region
      %s206 = ssub.s32 %s10, 1
      %p207 = scmp.lt.s32.totalorder %s19, 1
      %s208 = scalar_select %p207, %s19, 1
      %s209 = smul.addr %s208, 54
      %s210 = smul.addr %s209, 8
      %s211 = scalar_lea.vmem %s0, %s210
      %p212 = pneg %p48
      %p213 = pneg %p45
      %p214 = scmp.lt.s32.totalorder %s20, 0
      %s215 = scalar_select %p214, %s20, 0
      %s216 = smul.addr %s215, 8
      %s217 = scalar_lea.vmem %s1, %s216
      %p218 = pneg %p74
      %p219 = pneg %p71
      %p220 = scmp.lt.s32.totalorder %s20, 0
      %s221 = scalar_select %p220, %s20, 0
      %s222 = scalar_lea.vmem %s2, %s221
      %p223 = pneg %p100
      %p224 = pneg %p97
      %p225 = scmp.lt.s32.totalorder %s20, 0
      %s226 = scalar_select %p225, %s20, 0
      %s227 = scalar_lea.vmem %s3, %s226
      %p228 = pneg %p126
      %p229 = pneg %p123
      %p230 = pneg %p154
      %p231 = pneg %p151
      %p232 = scmp.lt.s32.totalorder %s19, 1
      %s233 = scalar_select %p232, %s19, 1
      %p234 = scmp.lt.s32.totalorder %s20, 0
      %s235 = scalar_select %p234, %s20, 0
      %s236 = smul.addr %s233, 32
      %s237 = sadd.s32 %s235, %s236
      %s238 = smul.addr %s237, 8
      %s239 = scalar_lea.vmem %s4, %s238
      %p240 = scmp.lt.s32.totalorder %s19, 1
      %s241 = scalar_select %p240, %s19, 1
      %s242 = smul.addr %s241, 54
      %s243 = smul.addr %s242, 8
      %s244 = scalar_lea.vmem %s0, %s243
      %p245 = scmp.lt.s32.totalorder %s20, 0
      %s246 = scalar_select %p245, %s20, 0
      %s247 = smul.addr %s246, 8
      %s248 = scalar_lea.vmem %s1, %s247
      %p249 = scmp.lt.s32.totalorder %s20, 0
      %s250 = scalar_select %p249, %s20, 0
      %s251 = scalar_lea.vmem %s2, %s250
      %p252 = scmp.lt.s32.totalorder %s20, 0
      %s253 = scalar_select %p252, %s20, 0
      %s254 = scalar_lea.vmem %s3, %s253
      %p255 = scmp.lt.s32.totalorder %s19, 1
      %s256 = scalar_select %p255, %s19, 1
      %p257 = scmp.lt.s32.totalorder %s20, 0
      %s258 = scalar_select %p257, %s20, 0
      %s259 = smul.addr %s256, 32
      %s260 = sadd.s32 %s258, %s259
      %s261 = smul.addr %s260, 8
      %s262 = scalar_lea.vmem %s4, %s261
      %v263 = vld [vmem:[%s251] sm:$0x1]
      %v264 = vld [vmem:[%s254] sm:$0x1]
      %v265 = vld [vmem:[%s244] sm:$0xff]
      %v266 = vld [vmem:[%s244 + $0x8] sm:$0xff]
      %v267 = vld [vmem:[%s244 + $0x18] sm:$0xff]
      %v268 = vld [vmem:[%s244 + $0x20] sm:$0xff]
      %v269 = vld [vmem:[%s244 + $0x30] sm:$0xff]
      %v270 = vld [vmem:[%s244 + $0x38] sm:$0xff]
      %v271 = vld [vmem:[%s244 + $0x48] sm:$0xff]
      %v272 = vld [vmem:[%s244 + $0x50] sm:$0xff]
      %v273 = vld [vmem:[%s244 + $0x60] sm:$0xff]
      %v274 = vld [vmem:[%s244 + $0x68] sm:$0xff]
      %v275 = vld [vmem:[%s244 + $0x78] sm:$0xff]
      %v276 = vld [vmem:[%s244 + $0x80] sm:$0xff]
      %v277 = vld [vmem:[%s244 + $0x90] sm:$0xff]
      %v278 = vld [vmem:[%s244 + $0x98] sm:$0xff]
      %v279 = vld [vmem:[%s244 + $0xa8] sm:$0xff]
      %v280 = vld [vmem:[%s244 + $0xb0] sm:$0xff]
      %v281 = vld [vmem:[%s244 + $0xc0] sm:$0xff]
      %v282 = vld [vmem:[%s244 + $0xc8] sm:$0xff]
      %v283 = vld [vmem:[%s244 + $0xd8] sm:$0xff]
      %v284 = vld [vmem:[%s244 + $0xe0] sm:$0xff]
      %v285 = vld [vmem:[%s244 + $0xf0] sm:$0xff]
      %v286 = vld [vmem:[%s244 + $0xf8] sm:$0xff]
      %v287 = vld [vmem:[%s244 + $0x108] sm:$0xff]
      %v288 = vld [vmem:[%s244 + $0x110] sm:$0xff]
      %v289 = vld [vmem:[%s244 + $0x120] sm:$0xff]
      %v290 = vld [vmem:[%s244 + $0x128] sm:$0xff]
      %v291 = vld [vmem:[%s244 + $0x138] sm:$0xff]
      %v292 = vld [vmem:[%s244 + $0x140] sm:$0xff]
      %v293 = vld [vmem:[%s244 + $0x150] sm:$0xff]
      %v294 = vld [vmem:[%s244 + $0x158] sm:$0xff]
      %v295 = vld [vmem:[%s244 + $0x168] sm:$0xff]
      %v296 = vld [vmem:[%s244 + $0x170] sm:$0xff]
      %297 = vst [vmem:[#allocation2] sm:$0xff] %v265
      %298 = vst [vmem:[#allocation2 + $0x48] sm:$0xff] %v266
      %299 = vst [vmem:[#allocation2 + $0x90] sm:$0xff] %v267
      %300 = vst [vmem:[#allocation2 + $0xd8] sm:$0xff] %v268
      %301 = vst [vmem:[#allocation2 + $0x120] sm:$0xff] %v269
      %302 = vst [vmem:[#allocation2 + $0x168] sm:$0xff] %v270
      %303 = vst [vmem:[#allocation2 + $0x1b0] sm:$0xff] %v271
      %304 = vst [vmem:[#allocation2 + $0x1f8] sm:$0xff] %v272
      %305 = vst [vmem:[#allocation2 + $0x240] sm:$0xff] %v273
      %306 = vst [vmem:[#allocation2 + $0x288] sm:$0xff] %v274
      %307 = vst [vmem:[#allocation2 + $0x2d0] sm:$0xff] %v275
      %308 = vst [vmem:[#allocation2 + $0x318] sm:$0xff] %v276
      %309 = vst [vmem:[#allocation2 + $0x360] sm:$0xff] %v277
      %310 = vst [vmem:[#allocation2 + $0x3a8] sm:$0xff] %v278
      %311 = vst [vmem:[#allocation2 + $0x3f0] sm:$0xff] %v279
      %312 = vst [vmem:[#allocation2 + $0x438] sm:$0xff] %v280
      %313 = vst [vmem:[#allocation2 + $0x480] sm:$0xff] %v281
      %314 = vst [vmem:[#allocation2 + $0x4c8] sm:$0xff] %v282
      %315 = vst [vmem:[#allocation2 + $0x510] sm:$0xff] %v283
      %316 = vst [vmem:[#allocation2 + $0x558] sm:$0xff] %v284
      %317 = vst [vmem:[#allocation2 + $0x5a0] sm:$0xff] %v285
      %318 = vst [vmem:[#allocation2 + $0x5e8] sm:$0xff] %v286
      %319 = vst [vmem:[#allocation2 + $0x630] sm:$0xff] %v287
      %320 = vst [vmem:[#allocation2 + $0x678] sm:$0xff] %v288
      %321 = vst [vmem:[#allocation2 + $0x6c0] sm:$0xff] %v289
      %322 = vst [vmem:[#allocation2 + $0x708] sm:$0xff] %v290
      %323 = vst [vmem:[#allocation2 + $0x750] sm:$0xff] %v291
      %324 = vst [vmem:[#allocation2 + $0x798] sm:$0xff] %v292
      %325 = vst [vmem:[#allocation2 + $0x7e0] sm:$0xff] %v293
      %326 = vst [vmem:[#allocation2 + $0x828] sm:$0xff] %v294
      %327 = vst [vmem:[#allocation2 + $0x870] sm:$0xff] %v295
      %328 = vst [vmem:[#allocation2 + $0x8b8] sm:$0xff] %v296
      %v329 = vld [vmem:[%s244 + $0x1] sm:$0xff]
      %v330 = vld [vmem:[%s244 + $0x9] sm:$0xff]
      %v331 = vld [vmem:[%s244 + $0x19] sm:$0xff]
      %v332 = vld [vmem:[%s244 + $0x21] sm:$0xff]
      %v333 = vld [vmem:[%s244 + $0x31] sm:$0xff]
      %v334 = vld [vmem:[%s244 + $0x39] sm:$0xff]
      %v335 = vld [vmem:[%s244 + $0x49] sm:$0xff]
      %v336 = vld [vmem:[%s244 + $0x51] sm:$0xff]
      %v337 = vld [vmem:[%s244 + $0x61] sm:$0xff]
      %v338 = vld [vmem:[%s244 + $0x69] sm:$0xff]
      %v339 = vld [vmem:[%s244 + $0x79] sm:$0xff]
      %v340 = vld [vmem:[%s244 + $0x81] sm:$0xff]
      %v341 = vld [vmem:[%s244 + $0x91] sm:$0xff]
      %v342 = vld [vmem:[%s244 + $0x99] sm:$0xff]
      %v343 = vld [vmem:[%s244 + $0xa9] sm:$0xff]
      %v344 = vld [vmem:[%s244 + $0xb1] sm:$0xff]
      %v345 = vld [vmem:[%s244 + $0xc1] sm:$0xff]
      %v346 = vld [vmem:[%s244 + $0xc9] sm:$0xff]
      %v347 = vld [vmem:[%s244 + $0xd9] sm:$0xff]
      %v348 = vld [vmem:[%s244 + $0xe1] sm:$0xff]
      %v349 = vld [vmem:[%s244 + $0xf1] sm:$0xff]
      %v350 = vld [vmem:[%s244 + $0xf9] sm:$0xff]
      %v351 = vld [vmem:[%s244 + $0x109] sm:$0xff]
      %v352 = vld [vmem:[%s244 + $0x111] sm:$0xff]
      %v353 = vld [vmem:[%s244 + $0x121] sm:$0xff]
      %v354 = vld [vmem:[%s244 + $0x129] sm:$0xff]
      %v355 = vld [vmem:[%s244 + $0x139] sm:$0xff]
      %v356 = vld [vmem:[%s244 + $0x141] sm:$0xff]
      %v357 = vld [vmem:[%s244 + $0x151] sm:$0xff]
      %v358 = vld [vmem:[%s244 + $0x159] sm:$0xff]
      %v359 = vld [vmem:[%s244 + $0x169] sm:$0xff]
      %v360 = vld [vmem:[%s244 + $0x171] sm:$0xff]
      %361 = vst [vmem:[#allocation2 + $0x8] sm:$0xff] %v329
      %362 = vst [vmem:[#allocation2 + $0x50] sm:$0xff] %v330
      %363 = vst [vmem:[#allocation2 + $0x98] sm:$0xff] %v331
      %364 = vst [vmem:[#allocation2 + $0xe0] sm:$0xff] %v332
      %365 = vst [vmem:[#allocation2 + $0x128] sm:$0xff] %v333
      %366 = vst [vmem:[#allocation2 + $0x170] sm:$0xff] %v334
      %367 = vst [vmem:[#allocation2 + $0x1b8] sm:$0xff] %v335
      %368 = vst [vmem:[#allocation2 + $0x200] sm:$0xff] %v336
      %369 = vst [vmem:[#allocation2 + $0x248] sm:$0xff] %v337
      %370 = vst [vmem:[#allocation2 + $0x290] sm:$0xff] %v338
      %371 = vst [vmem:[#allocation2 + $0x2d8] sm:$0xff] %v339
      %372 = vst [vmem:[#allocation2 + $0x320] sm:$0xff] %v340
      %373 = vst [vmem:[#allocation2 + $0x368] sm:$0xff] %v341
      %374 = vst [vmem:[#allocation2 + $0x3b0] sm:$0xff] %v342
      %375 = vst [vmem:[#allocation2 + $0x3f8] sm:$0xff] %v343
      %376 = vst [vmem:[#allocation2 + $0x440] sm:$0xff] %v344
      %377 = vst [vmem:[#allocation2 + $0x488] sm:$0xff] %v345
      %378 = vst [vmem:[#allocation2 + $0x4d0] sm:$0xff] %v346
      %379 = vst [vmem:[#allocation2 + $0x518] sm:$0xff] %v347
      %380 = vst [vmem:[#allocation2 + $0x560] sm:$0xff] %v348
      %381 = vst [vmem:[#allocation2 + $0x5a8] sm:$0xff] %v349
      %382 = vst [vmem:[#allocation2 + $0x5f0] sm:$0xff] %v350
      %383 = vst [vmem:[#allocation2 + $0x638] sm:$0xff] %v351
      %384 = vst [vmem:[#allocation2 + $0x680] sm:$0xff] %v352
      %385 = vst [vmem:[#allocation2 + $0x6c8] sm:$0xff] %v353
      %386 = vst [vmem:[#allocation2 + $0x710] sm:$0xff] %v354
      %387 = vst [vmem:[#allocation2 + $0x758] sm:$0xff] %v355
      %388 = vst [vmem:[#allocation2 + $0x7a0] sm:$0xff] %v356
      %389 = vst [vmem:[#allocation2 + $0x7e8] sm:$0xff] %v357
      %390 = vst [vmem:[#allocation2 + $0x830] sm:$0xff] %v358
      %391 = vst [vmem:[#allocation2 + $0x878] sm:$0xff] %v359
      %392 = vst [vmem:[#allocation2 + $0x8c0] sm:$0xff] %v360
      %v393 = vld [vmem:[%s244 + $0x2] sm:$0xff]
      %v394 = vld [vmem:[%s244 + $0xa] sm:$0xff]
      %v395 = vld [vmem:[%s244 + $0x1a] sm:$0xff]
      %v396 = vld [vmem:[%s244 + $0x22] sm:$0xff]
      %v397 = vld [vmem:[%s244 + $0x32] sm:$0xff]
      %v398 = vld [vmem:[%s244 + $0x3a] sm:$0xff]
      %v399 = vld [vmem:[%s244 + $0x4a] sm:$0xff]
      %v400 = vld [vmem:[%s244 + $0x52] sm:$0xff]
      %v401 = vld [vmem:[%s244 + $0x62] sm:$0xff]
      %v402 = vld [vmem:[%s244 + $0x6a] sm:$0xff]
      %v403 = vld [vmem:[%s244 + $0x7a] sm:$0xff]
      %v404 = vld [vmem:[%s244 + $0x82] sm:$0xff]
      %v405 = vld [vmem:[%s244 + $0x92] sm:$0xff]
      %v406 = vld [vmem:[%s244 + $0x9a] sm:$0xff]
      %v407 = vld [vmem:[%s244 + $0xaa] sm:$0xff]
      %v408 = vld [vmem:[%s244 + $0xb2] sm:$0xff]
      %v409 = vld [vmem:[%s244 + $0xc2] sm:$0xff]
      %v410 = vld [vmem:[%s244 + $0xca] sm:$0xff]
      %v411 = vld [vmem:[%s244 + $0xda] sm:$0xff]
      %v412 = vld [vmem:[%s244 + $0xe2] sm:$0xff]
      %v413 = vld [vmem:[%s244 + $0xf2] sm:$0xff]
      %v414 = vld [vmem:[%s244 + $0xfa] sm:$0xff]
      %v415 = vld [vmem:[%s244 + $0x10a] sm:$0xff]
      %v416 = vld [vmem:[%s244 + $0x112] sm:$0xff]
      %v417 = vld [vmem:[%s244 + $0x122] sm:$0xff]
      %v418 = vld [vmem:[%s244 + $0x12a] sm:$0xff]
      %v419 = vld [vmem:[%s244 + $0x13a] sm:$0xff]
      %v420 = vld [vmem:[%s244 + $0x142] sm:$0xff]
      %v421 = vld [vmem:[%s244 + $0x152] sm:$0xff]
      %v422 = vld [vmem:[%s244 + $0x15a] sm:$0xff]
      %v423 = vld [vmem:[%s244 + $0x16a] sm:$0xff]
      %v424 = vld [vmem:[%s244 + $0x172] sm:$0xff]
      %425 = vst [vmem:[#allocation2 + $0x10] sm:$0xff] %v393
      %426 = vst [vmem:[#allocation2 + $0x58] sm:$0xff] %v394
      %427 = vst [vmem:[#allocation2 + $0xa0] sm:$0xff] %v395
      %428 = vst [vmem:[#allocation2 + $0xe8] sm:$0xff] %v396
      %429 = vst [vmem:[#allocation2 + $0x130] sm:$0xff] %v397
      %430 = vst [vmem:[#allocation2 + $0x178] sm:$0xff] %v398
      %431 = vst [vmem:[#allocation2 + $0x1c0] sm:$0xff] %v399
      %432 = vst [vmem:[#allocation2 + $0x208] sm:$0xff] %v400
      %433 = vst [vmem:[#allocation2 + $0x250] sm:$0xff] %v401
      %434 = vst [vmem:[#allocation2 + $0x298] sm:$0xff] %v402
      %435 = vst [vmem:[#allocation2 + $0x2e0] sm:$0xff] %v403
      %436 = vst [vmem:[#allocation2 + $0x328] sm:$0xff] %v404
      %437 = vst [vmem:[#allocation2 + $0x370] sm:$0xff] %v405
      %438 = vst [vmem:[#allocation2 + $0x3b8] sm:$0xff] %v406
      %439 = vst [vmem:[#allocation2 + $0x400] sm:$0xff] %v407
      %440 = vst [vmem:[#allocation2 + $0x448] sm:$0xff] %v408
      %441 = vst [vmem:[#allocation2 + $0x490] sm:$0xff] %v409
      %442 = vst [vmem:[#allocation2 + $0x4d8] sm:$0xff] %v410
      %443 = vst [vmem:[#allocation2 + $0x520] sm:$0xff] %v411
      %444 = vst [vmem:[#allocation2 + $0x568] sm:$0xff] %v412
      %445 = vst [vmem:[#allocation2 + $0x5b0] sm:$0xff] %v413
      %446 = vst [vmem:[#allocation2 + $0x5f8] sm:$0xff] %v414
      %447 = vst [vmem:[#allocation2 + $0x640] sm:$0xff] %v415
      %448 = vst [vmem:[#allocation2 + $0x688] sm:$0xff] %v416
      %449 = vst [vmem:[#allocation2 + $0x6d0] sm:$0xff] %v417
      %450 = vst [vmem:[#allocation2 + $0x718] sm:$0xff] %v418
      %451 = vst [vmem:[#allocation2 + $0x760] sm:$0xff] %v419
      %452 = vst [vmem:[#allocation2 + $0x7a8] sm:$0xff] %v420
      %453 = vst [vmem:[#allocation2 + $0x7f0] sm:$0xff] %v421
      %454 = vst [vmem:[#allocation2 + $0x838] sm:$0xff] %v422
      %455 = vst [vmem:[#allocation2 + $0x880] sm:$0xff] %v423
      %456 = vst [vmem:[#allocation2 + $0x8c8] sm:$0xff] %v424
      %s457 = scalar_lea.vmem %s244, 24
      %v458 = vld [vmem:[%s457] sm:$0xff]
      %v459 = vld [vmem:[%s457 + $0x8] sm:$0xff]
      %v460 = vld [vmem:[%s457 + $0x18] sm:$0xff]
      %v461 = vld [vmem:[%s457 + $0x20] sm:$0xff]
      %v462 = vld [vmem:[%s457 + $0x30] sm:$0xff]
      %v463 = vld [vmem:[%s457 + $0x38] sm:$0xff]
      %v464 = vld [vmem:[%s457 + $0x48] sm:$0xff]
      %v465 = vld [vmem:[%s457 + $0x50] sm:$0xff]
      %v466 = vld [vmem:[%s457 + $0x60] sm:$0xff]
      %v467 = vld [vmem:[%s457 + $0x68] sm:$0xff]
      %v468 = vld [vmem:[%s457 + $0x78] sm:$0xff]
      %v469 = vld [vmem:[%s457 + $0x80] sm:$0xff]
      %v470 = vld [vmem:[%s457 + $0x90] sm:$0xff]
      %v471 = vld [vmem:[%s457 + $0x98] sm:$0xff]
      %v472 = vld [vmem:[%s457 + $0xa8] sm:$0xff]
      %v473 = vld [vmem:[%s457 + $0xb0] sm:$0xff]
      %v474 = vld [vmem:[%s457 + $0xc0] sm:$0xff]
      %v475 = vld [vmem:[%s457 + $0xc8] sm:$0xff]
      %v476 = vld [vmem:[%s457 + $0xd8] sm:$0xff]
      %v477 = vld [vmem:[%s457 + $0xe0] sm:$0xff]
      %v478 = vld [vmem:[%s457 + $0xf0] sm:$0xff]
      %v479 = vld [vmem:[%s457 + $0xf8] sm:$0xff]
      %v480 = vld [vmem:[%s457 + $0x108] sm:$0xff]
      %v481 = vld [vmem:[%s457 + $0x110] sm:$0xff]
      %v482 = vld [vmem:[%s457 + $0x120] sm:$0xff]
      %v483 = vld [vmem:[%s457 + $0x128] sm:$0xff]
      %v484 = vld [vmem:[%s457 + $0x138] sm:$0xff]
      %v485 = vld [vmem:[%s457 + $0x140] sm:$0xff]
      %v486 = vld [vmem:[%s457 + $0x150] sm:$0xff]
      %v487 = vld [vmem:[%s457 + $0x158] sm:$0xff]
      %v488 = vld [vmem:[%s457 + $0x168] sm:$0xff]
      %v489 = vld [vmem:[%s457 + $0x170] sm:$0xff]
      %490 = vst [vmem:[#allocation2 + $0x18] sm:$0xff] %v458
      %491 = vst [vmem:[#allocation2 + $0x60] sm:$0xff] %v459
      %492 = vst [vmem:[#allocation2 + $0xa8] sm:$0xff] %v460
      %493 = vst [vmem:[#allocation2 + $0xf0] sm:$0xff] %v461
      %494 = vst [vmem:[#allocation2 + $0x138] sm:$0xff] %v462
      %495 = vst [vmem:[#allocation2 + $0x180] sm:$0xff] %v463
      %496 = vst [vmem:[#allocation2 + $0x1c8] sm:$0xff] %v464
      %497 = vst [vmem:[#allocation2 + $0x210] sm:$0xff] %v465
      %498 = vst [vmem:[#allocation2 + $0x258] sm:$0xff] %v466
      %499 = vst [vmem:[#allocation2 + $0x2a0] sm:$0xff] %v467
      %500 = vst [vmem:[#allocation2 + $0x2e8] sm:$0xff] %v468
      %501 = vst [vmem:[#allocation2 + $0x330] sm:$0xff] %v469
      %502 = vst [vmem:[#allocation2 + $0x378] sm:$0xff] %v470
      %503 = vst [vmem:[#allocation2 + $0x3c0] sm:$0xff] %v471
      %504 = vst [vmem:[#allocation2 + $0x408] sm:$0xff] %v472
      %505 = vst [vmem:[#allocation2 + $0x450] sm:$0xff] %v473
      %506 = vst [vmem:[#allocation2 + $0x498] sm:$0xff] %v474
      %507 = vst [vmem:[#allocation2 + $0x4e0] sm:$0xff] %v475
      %508 = vst [vmem:[#allocation2 + $0x528] sm:$0xff] %v476
      %509 = vst [vmem:[#allocation2 + $0x570] sm:$0xff] %v477
      %510 = vst [vmem:[#allocation2 + $0x5b8] sm:$0xff] %v478
      %511 = vst [vmem:[#allocation2 + $0x600] sm:$0xff] %v479
      %512 = vst [vmem:[#allocation2 + $0x648] sm:$0xff] %v480
      %513 = vst [vmem:[#allocation2 + $0x690] sm:$0xff] %v481
      %514 = vst [vmem:[#allocation2 + $0x6d8] sm:$0xff] %v482
      %515 = vst [vmem:[#allocation2 + $0x720] sm:$0xff] %v483
      %516 = vst [vmem:[#allocation2 + $0x768] sm:$0xff] %v484
      %517 = vst [vmem:[#allocation2 + $0x7b0] sm:$0xff] %v485
      %518 = vst [vmem:[#allocation2 + $0x7f8] sm:$0xff] %v486
      %519 = vst [vmem:[#allocation2 + $0x840] sm:$0xff] %v487
      %520 = vst [vmem:[#allocation2 + $0x888] sm:$0xff] %v488
      %521 = vst [vmem:[#allocation2 + $0x8d0] sm:$0xff] %v489
      %v522 = vld [vmem:[%s457 + $0x1] sm:$0xff]
      %v523 = vld [vmem:[%s457 + $0x9] sm:$0xff]
      %v524 = vld [vmem:[%s457 + $0x19] sm:$0xff]
      %v525 = vld [vmem:[%s457 + $0x21] sm:$0xff]
      %v526 = vld [vmem:[%s457 + $0x31] sm:$0xff]
      %v527 = vld [vmem:[%s457 + $0x39] sm:$0xff]
      %v528 = vld [vmem:[%s457 + $0x49] sm:$0xff]
      %v529 = vld [vmem:[%s457 + $0x51] sm:$0xff]
      %v530 = vld [vmem:[%s457 + $0x61] sm:$0xff]
      %v531 = vld [vmem:[%s457 + $0x69] sm:$0xff]
      %v532 = vld [vmem:[%s457 + $0x79] sm:$0xff]
      %v533 = vld [vmem:[%s457 + $0x81] sm:$0xff]
      %v534 = vld [vmem:[%s457 + $0x91] sm:$0xff]
      %v535 = vld [vmem:[%s457 + $0x99] sm:$0xff]
      %v536 = vld [vmem:[%s457 + $0xa9] sm:$0xff]
      %v537 = vld [vmem:[%s457 + $0xb1] sm:$0xff]
      %v538 = vld [vmem:[%s457 + $0xc1] sm:$0xff]
      %v539 = vld [vmem:[%s457 + $0xc9] sm:$0xff]
      %v540 = vld [vmem:[%s457 + $0xd9] sm:$0xff]
      %v541 = vld [vmem:[%s457 + $0xe1] sm:$0xff]
      %v542 = vld [vmem:[%s457 + $0xf1] sm:$0xff]
      %v543 = vld [vmem:[%s457 + $0xf9] sm:$0xff]
      %v544 = vld [vmem:[%s457 + $0x109] sm:$0xff]
      %v545 = vld [vmem:[%s457 + $0x111] sm:$0xff]
      %v546 = vld [vmem:[%s457 + $0x121] sm:$0xff]
      %v547 = vld [vmem:[%s457 + $0x129] sm:$0xff]
      %v548 = vld [vmem:[%s457 + $0x139] sm:$0xff]
      %v549 = vld [vmem:[%s457 + $0x141] sm:$0xff]
      %v550 = vld [vmem:[%s457 + $0x151] sm:$0xff]
      %v551 = vld [vmem:[%s457 + $0x159] sm:$0xff]
      %v552 = vld [vmem:[%s457 + $0x169] sm:$0xff]
      %v553 = vld [vmem:[%s457 + $0x171] sm:$0xff]
      %554 = vst [vmem:[#allocation2 + $0x20] sm:$0xff] %v522
      %555 = vst [vmem:[#allocation2 + $0x68] sm:$0xff] %v523
      %556 = vst [vmem:[#allocation2 + $0xb0] sm:$0xff] %v524
      %557 = vst [vmem:[#allocation2 + $0xf8] sm:$0xff] %v525
      %558 = vst [vmem:[#allocation2 + $0x140] sm:$0xff] %v526
      %559 = vst [vmem:[#allocation2 + $0x188] sm:$0xff] %v527
      %560 = vst [vmem:[#allocation2 + $0x1d0] sm:$0xff] %v528
      %561 = vst [vmem:[#allocation2 + $0x218] sm:$0xff] %v529
      %562 = vst [vmem:[#allocation2 + $0x260] sm:$0xff] %v530
      %563 = vst [vmem:[#allocation2 + $0x2a8] sm:$0xff] %v531
      %564 = vst [vmem:[#allocation2 + $0x2f0] sm:$0xff] %v532
      %565 = vst [vmem:[#allocation2 + $0x338] sm:$0xff] %v533
      %566 = vst [vmem:[#allocation2 + $0x380] sm:$0xff] %v534
      %567 = vst [vmem:[#allocation2 + $0x3c8] sm:$0xff] %v535
      %568 = vst [vmem:[#allocation2 + $0x410] sm:$0xff] %v536
      %569 = vst [vmem:[#allocation2 + $0x458] sm:$0xff] %v537
      %570 = vst [vmem:[#allocation2 + $0x4a0] sm:$0xff] %v538
      %571 = vst [vmem:[#allocation2 + $0x4e8] sm:$0xff] %v539
      %572 = vst [vmem:[#allocation2 + $0x530] sm:$0xff] %v540
      %573 = vst [vmem:[#allocation2 + $0x578] sm:$0xff] %v541
      %574 = vst [vmem:[#allocation2 + $0x5c0] sm:$0xff] %v542
      %575 = vst [vmem:[#allocation2 + $0x608] sm:$0xff] %v543
      %576 = vst [vmem:[#allocation2 + $0x650] sm:$0xff] %v544
      %577 = vst [vmem:[#allocation2 + $0x698] sm:$0xff] %v545
      %578 = vst [vmem:[#allocation2 + $0x6e0] sm:$0xff] %v546
      %579 = vst [vmem:[#allocation2 + $0x728] sm:$0xff] %v547
      %580 = vst [vmem:[#allocation2 + $0x770] sm:$0xff] %v548
      %581 = vst [vmem:[#allocation2 + $0x7b8] sm:$0xff] %v549
      %582 = vst [vmem:[#allocation2 + $0x800] sm:$0xff] %v550
      %583 = vst [vmem:[#allocation2 + $0x848] sm:$0xff] %v551
      %584 = vst [vmem:[#allocation2 + $0x890] sm:$0xff] %v552
      %585 = vst [vmem:[#allocation2 + $0x8d8] sm:$0xff] %v553
      %v586 = vld [vmem:[%s457 + $0x2] sm:$0xff]
      %v587 = vld [vmem:[%s457 + $0xa] sm:$0xff]
      %v588 = vld [vmem:[%s457 + $0x1a] sm:$0xff]
      %v589 = vld [vmem:[%s457 + $0x22] sm:$0xff]
      %v590 = vld [vmem:[%s457 + $0x32] sm:$0xff]
      %v591 = vld [vmem:[%s457 + $0x3a] sm:$0xff]
      %v592 = vld [vmem:[%s457 + $0x4a] sm:$0xff]
      %v593 = vld [vmem:[%s457 + $0x52] sm:$0xff]
      %v594 = vld [vmem:[%s457 + $0x62] sm:$0xff]
      %v595 = vld [vmem:[%s457 + $0x6a] sm:$0xff]
      %v596 = vld [vmem:[%s457 + $0x7a] sm:$0xff]
      %v597 = vld [vmem:[%s457 + $0x82] sm:$0xff]
      %v598 = vld [vmem:[%s457 + $0x92] sm:$0xff]
      %v599 = vld [vmem:[%s457 + $0x9a] sm:$0xff]
      %v600 = vld [vmem:[%s457 + $0xaa] sm:$0xff]
      %v601 = vld [vmem:[%s457 + $0xb2] sm:$0xff]
      %v602 = vld [vmem:[%s457 + $0xc2] sm:$0xff]
      %v603 = vld [vmem:[%s457 + $0xca] sm:$0xff]
      %v604 = vld [vmem:[%s457 + $0xda] sm:$0xff]
      %v605 = vld [vmem:[%s457 + $0xe2] sm:$0xff]
      %v606 = vld [vmem:[%s457 + $0xf2] sm:$0xff]
      %v607 = vld [vmem:[%s457 + $0xfa] sm:$0xff]
      %v608 = vld [vmem:[%s457 + $0x10a] sm:$0xff]
      %v609 = vld [vmem:[%s457 + $0x112] sm:$0xff]
      %v610 = vld [vmem:[%s457 + $0x122] sm:$0xff]
      %v611 = vld [vmem:[%s457 + $0x12a] sm:$0xff]
      %v612 = vld [vmem:[%s457 + $0x13a] sm:$0xff]
      %v613 = vld [vmem:[%s457 + $0x142] sm:$0xff]
      %v614 = vld [vmem:[%s457 + $0x152] sm:$0xff]
      %v615 = vld [vmem:[%s457 + $0x15a] sm:$0xff]
      %v616 = vld [vmem:[%s457 + $0x16a] sm:$0xff]
      %v617 = vld [vmem:[%s457 + $0x172] sm:$0xff]
      %618 = vst [vmem:[#allocation2 + $0x28] sm:$0xff] %v586
      %619 = vst [vmem:[#allocation2 + $0x70] sm:$0xff] %v587
      %620 = vst [vmem:[#allocation2 + $0xb8] sm:$0xff] %v588
      %621 = vst [vmem:[#allocation2 + $0x100] sm:$0xff] %v589
      %622 = vst [vmem:[#allocation2 + $0x148] sm:$0xff] %v590
      %623 = vst [vmem:[#allocation2 + $0x190] sm:$0xff] %v591
      %624 = vst [vmem:[#allocation2 + $0x1d8] sm:$0xff] %v592
      %625 = vst [vmem:[#allocation2 + $0x220] sm:$0xff] %v593
      %626 = vst [vmem:[#allocation2 + $0x268] sm:$0xff] %v594
      %627 = vst [vmem:[#allocation2 + $0x2b0] sm:$0xff] %v595
      %628 = vst [vmem:[#allocation2 + $0x2f8] sm:$0xff] %v596
      %629 = vst [vmem:[#allocation2 + $0x340] sm:$0xff] %v597
      %630 = vst [vmem:[#allocation2 + $0x388] sm:$0xff] %v598
      %631 = vst [vmem:[#allocation2 + $0x3d0] sm:$0xff] %v599
      %632 = vst [vmem:[#allocation2 + $0x418] sm:$0xff] %v600
      %633 = vst [vmem:[#allocation2 + $0x460] sm:$0xff] %v601
      %634 = vst [vmem:[#allocation2 + $0x4a8] sm:$0xff] %v602
      %635 = vst [vmem:[#allocation2 + $0x4f0] sm:$0xff] %v603
      %636 = vst [vmem:[#allocation2 + $0x538] sm:$0xff] %v604
      %637 = vst [vmem:[#allocation2 + $0x580] sm:$0xff] %v605
      %638 = vst [vmem:[#allocation2 + $0x5c8] sm:$0xff] %v606
      %639 = vst [vmem:[#allocation2 + $0x610] sm:$0xff] %v607
      %640 = vst [vmem:[#allocation2 + $0x658] sm:$0xff] %v608
      %641 = vst [vmem:[#allocation2 + $0x6a0] sm:$0xff] %v609
      %642 = vst [vmem:[#allocation2 + $0x6e8] sm:$0xff] %v610
      %643 = vst [vmem:[#allocation2 + $0x730] sm:$0xff] %v611
      %644 = vst [vmem:[#allocation2 + $0x778] sm:$0xff] %v612
      %645 = vst [vmem:[#allocation2 + $0x7c0] sm:$0xff] %v613
      %646 = vst [vmem:[#allocation2 + $0x808] sm:$0xff] %v614
      %647 = vst [vmem:[#allocation2 + $0x850] sm:$0xff] %v615
      %648 = vst [vmem:[#allocation2 + $0x898] sm:$0xff] %v616
      %649 = vst [vmem:[#allocation2 + $0x8e0] sm:$0xff] %v617
      %s650 = scalar_lea.vmem %s244, 48
      %v651 = vld [vmem:[%s650] sm:$0xff]
      %v652 = vld [vmem:[%s650 + $0x8] sm:$0xff]
      %v653 = vld [vmem:[%s650 + $0x18] sm:$0xff]
      %v654 = vld [vmem:[%s650 + $0x20] sm:$0xff]
      %v655 = vld [vmem:[%s650 + $0x30] sm:$0xff]
      %v656 = vld [vmem:[%s650 + $0x38] sm:$0xff]
      %v657 = vld [vmem:[%s650 + $0x48] sm:$0xff]
      %v658 = vld [vmem:[%s650 + $0x50] sm:$0xff]
      %v659 = vld [vmem:[%s650 + $0x60] sm:$0xff]
      %v660 = vld [vmem:[%s650 + $0x68] sm:$0xff]
      %v661 = vld [vmem:[%s650 + $0x78] sm:$0xff]
      %v662 = vld [vmem:[%s650 + $0x80] sm:$0xff]
      %v663 = vld [vmem:[%s650 + $0x90] sm:$0xff]
      %v664 = vld [vmem:[%s650 + $0x98] sm:$0xff]
      %v665 = vld [vmem:[%s650 + $0xa8] sm:$0xff]
      %v666 = vld [vmem:[%s650 + $0xb0] sm:$0xff]
      %v667 = vld [vmem:[%s650 + $0xc0] sm:$0xff]
      %v668 = vld [vmem:[%s650 + $0xc8] sm:$0xff]
      %v669 = vld [vmem:[%s650 + $0xd8] sm:$0xff]
      %v670 = vld [vmem:[%s650 + $0xe0] sm:$0xff]
      %v671 = vld [vmem:[%s650 + $0xf0] sm:$0xff]
      %v672 = vld [vmem:[%s650 + $0xf8] sm:$0xff]
      %v673 = vld [vmem:[%s650 + $0x108] sm:$0xff]
      %v674 = vld [vmem:[%s650 + $0x110] sm:$0xff]
      %v675 = vld [vmem:[%s650 + $0x120] sm:$0xff]
      %v676 = vld [vmem:[%s650 + $0x128] sm:$0xff]
      %v677 = vld [vmem:[%s650 + $0x138] sm:$0xff]
      %v678 = vld [vmem:[%s650 + $0x140] sm:$0xff]
      %v679 = vld [vmem:[%s650 + $0x150] sm:$0xff]
      %v680 = vld [vmem:[%s650 + $0x158] sm:$0xff]
      %v681 = vld [vmem:[%s650 + $0x168] sm:$0xff]
      %v682 = vld [vmem:[%s650 + $0x170] sm:$0xff]
      %683 = vst [vmem:[#allocation2 + $0x30] sm:$0xff] %v651
      %684 = vst [vmem:[#allocation2 + $0x78] sm:$0xff] %v652
      %685 = vst [vmem:[#allocation2 + $0xc0] sm:$0xff] %v653
      %686 = vst [vmem:[#allocation2 + $0x108] sm:$0xff] %v654
      %687 = vst [vmem:[#allocation2 + $0x150] sm:$0xff] %v655
      %688 = vst [vmem:[#allocation2 + $0x198] sm:$0xff] %v656
      %689 = vst [vmem:[#allocation2 + $0x1e0] sm:$0xff] %v657
      %690 = vst [vmem:[#allocation2 + $0x228] sm:$0xff] %v658
      %691 = vst [vmem:[#allocation2 + $0x270] sm:$0xff] %v659
      %692 = vst [vmem:[#allocation2 + $0x2b8] sm:$0xff] %v660
      %693 = vst [vmem:[#allocation2 + $0x300] sm:$0xff] %v661
      %694 = vst [vmem:[#allocation2 + $0x348] sm:$0xff] %v662
      %695 = vst [vmem:[#allocation2 + $0x390] sm:$0xff] %v663
      %696 = vst [vmem:[#allocation2 + $0x3d8] sm:$0xff] %v664
      %697 = vst [vmem:[#allocation2 + $0x420] sm:$0xff] %v665
      %698 = vst [vmem:[#allocation2 + $0x468] sm:$0xff] %v666
      %699 = vst [vmem:[#allocation2 + $0x4b0] sm:$0xff] %v667
      %700 = vst [vmem:[#allocation2 + $0x4f8] sm:$0xff] %v668
      %701 = vst [vmem:[#allocation2 + $0x540] sm:$0xff] %v669
      %702 = vst [vmem:[#allocation2 + $0x588] sm:$0xff] %v670
      %703 = vst [vmem:[#allocation2 + $0x5d0] sm:$0xff] %v671
      %704 = vst [vmem:[#allocation2 + $0x618] sm:$0xff] %v672
      %705 = vst [vmem:[#allocation2 + $0x660] sm:$0xff] %v673
      %706 = vst [vmem:[#allocation2 + $0x6a8] sm:$0xff] %v674
      %707 = vst [vmem:[#allocation2 + $0x6f0] sm:$0xff] %v675
      %708 = vst [vmem:[#allocation2 + $0x738] sm:$0xff] %v676
      %709 = vst [vmem:[#allocation2 + $0x780] sm:$0xff] %v677
      %710 = vst [vmem:[#allocation2 + $0x7c8] sm:$0xff] %v678
      %711 = vst [vmem:[#allocation2 + $0x810] sm:$0xff] %v679
      %712 = vst [vmem:[#allocation2 + $0x858] sm:$0xff] %v680
      %713 = vst [vmem:[#allocation2 + $0x8a0] sm:$0xff] %v681
      %714 = vst [vmem:[#allocation2 + $0x8e8] sm:$0xff] %v682
      %v715 = vld [vmem:[%s650 + $0x1] sm:$0xff]
      %v716 = vld [vmem:[%s650 + $0x9] sm:$0xff]
      %v717 = vld [vmem:[%s650 + $0x19] sm:$0xff]
      %v718 = vld [vmem:[%s650 + $0x21] sm:$0xff]
      %v719 = vld [vmem:[%s650 + $0x31] sm:$0xff]
      %v720 = vld [vmem:[%s650 + $0x39] sm:$0xff]
      %v721 = vld [vmem:[%s650 + $0x49] sm:$0xff]
      %v722 = vld [vmem:[%s650 + $0x51] sm:$0xff]
      %v723 = vld [vmem:[%s650 + $0x61] sm:$0xff]
      %v724 = vld [vmem:[%s650 + $0x69] sm:$0xff]
      %v725 = vld [vmem:[%s650 + $0x79] sm:$0xff]
      %v726 = vld [vmem:[%s650 + $0x81] sm:$0xff]
      %v727 = vld [vmem:[%s650 + $0x91] sm:$0xff]
      %v728 = vld [vmem:[%s650 + $0x99] sm:$0xff]
      %v729 = vld [vmem:[%s650 + $0xa9] sm:$0xff]
      %v730 = vld [vmem:[%s650 + $0xb1] sm:$0xff]
      %v731 = vld [vmem:[%s650 + $0xc1] sm:$0xff]
      %v732 = vld [vmem:[%s650 + $0xc9] sm:$0xff]
      %v733 = vld [vmem:[%s650 + $0xd9] sm:$0xff]
      %v734 = vld [vmem:[%s650 + $0xe1] sm:$0xff]
      %v735 = vld [vmem:[%s650 + $0xf1] sm:$0xff]
      %v736 = vld [vmem:[%s650 + $0xf9] sm:$0xff]
      %v737 = vld [vmem:[%s650 + $0x109] sm:$0xff]
      %v738 = vld [vmem:[%s650 + $0x111] sm:$0xff]
      %v739 = vld [vmem:[%s650 + $0x121] sm:$0xff]
      %v740 = vld [vmem:[%s650 + $0x129] sm:$0xff]
      %v741 = vld [vmem:[%s650 + $0x139] sm:$0xff]
      %v742 = vld [vmem:[%s650 + $0x141] sm:$0xff]
      %v743 = vld [vmem:[%s650 + $0x151] sm:$0xff]
      %v744 = vld [vmem:[%s650 + $0x159] sm:$0xff]
      %v745 = vld [vmem:[%s650 + $0x169] sm:$0xff]
      %v746 = vld [vmem:[%s650 + $0x171] sm:$0xff]
      %747 = vst [vmem:[#allocation2 + $0x38] sm:$0xff] %v715
      %748 = vst [vmem:[#allocation2 + $0x80] sm:$0xff] %v716
      %749 = vst [vmem:[#allocation2 + $0xc8] sm:$0xff] %v717
      %750 = vst [vmem:[#allocation2 + $0x110] sm:$0xff] %v718
      %751 = vst [vmem:[#allocation2 + $0x158] sm:$0xff] %v719
      %752 = vst [vmem:[#allocation2 + $0x1a0] sm:$0xff] %v720
      %753 = vst [vmem:[#allocation2 + $0x1e8] sm:$0xff] %v721
      %754 = vst [vmem:[#allocation2 + $0x230] sm:$0xff] %v722
      %755 = vst [vmem:[#allocation2 + $0x278] sm:$0xff] %v723
      %756 = vst [vmem:[#allocation2 + $0x2c0] sm:$0xff] %v724
      %757 = vst [vmem:[#allocation2 + $0x308] sm:$0xff] %v725
      %758 = vst [vmem:[#allocation2 + $0x350] sm:$0xff] %v726
      %759 = vst [vmem:[#allocation2 + $0x398] sm:$0xff] %v727
      %760 = vst [vmem:[#allocation2 + $0x3e0] sm:$0xff] %v728
      %761 = vst [vmem:[#allocation2 + $0x428] sm:$0xff] %v729
      %762 = vst [vmem:[#allocation2 + $0x470] sm:$0xff] %v730
      %763 = vst [vmem:[#allocation2 + $0x4b8] sm:$0xff] %v731
      %764 = vst [vmem:[#allocation2 + $0x500] sm:$0xff] %v732
      %765 = vst [vmem:[#allocation2 + $0x548] sm:$0xff] %v733
      %766 = vst [vmem:[#allocation2 + $0x590] sm:$0xff] %v734
      %767 = vst [vmem:[#allocation2 + $0x5d8] sm:$0xff] %v735
      %768 = vst [vmem:[#allocation2 + $0x620] sm:$0xff] %v736
      %769 = vst [vmem:[#allocation2 + $0x668] sm:$0xff] %v737
      %770 = vst [vmem:[#allocation2 + $0x6b0] sm:$0xff] %v738
      %771 = vst [vmem:[#allocation2 + $0x6f8] sm:$0xff] %v739
      %772 = vst [vmem:[#allocation2 + $0x740] sm:$0xff] %v740
      %773 = vst [vmem:[#allocation2 + $0x788] sm:$0xff] %v741
      %774 = vst [vmem:[#allocation2 + $0x7d0] sm:$0xff] %v742
      %775 = vst [vmem:[#allocation2 + $0x818] sm:$0xff] %v743
      %776 = vst [vmem:[#allocation2 + $0x860] sm:$0xff] %v744
      %777 = vst [vmem:[#allocation2 + $0x8a8] sm:$0xff] %v745
      %778 = vst [vmem:[#allocation2 + $0x8f0] sm:$0xff] %v746
      %v779 = vld [vmem:[%s650 + $0x2] sm:$0xff]
      %v780 = vld [vmem:[%s650 + $0xa] sm:$0xff]
      %v781 = vld [vmem:[%s650 + $0x1a] sm:$0xff]
      %v782 = vld [vmem:[%s650 + $0x22] sm:$0xff]
      %v783 = vld [vmem:[%s650 + $0x32] sm:$0xff]
      %v784 = vld [vmem:[%s650 + $0x3a] sm:$0xff]
      %v785 = vld [vmem:[%s650 + $0x4a] sm:$0xff]
      %v786 = vld [vmem:[%s650 + $0x52] sm:$0xff]
      %v787 = vld [vmem:[%s650 + $0x62] sm:$0xff]
      %v788 = vld [vmem:[%s650 + $0x6a] sm:$0xff]
      %v789 = vld [vmem:[%s650 + $0x7a] sm:$0xff]
      %v790 = vld [vmem:[%s650 + $0x82] sm:$0xff]
      %v791 = vld [vmem:[%s650 + $0x92] sm:$0xff]
      %v792 = vld [vmem:[%s650 + $0x9a] sm:$0xff]
      %v793 = vld [vmem:[%s650 + $0xaa] sm:$0xff]
      %v794 = vld [vmem:[%s650 + $0xb2] sm:$0xff]
      %v795 = vld [vmem:[%s650 + $0xc2] sm:$0xff]
      %v796 = vld [vmem:[%s650 + $0xca] sm:$0xff]
      %v797 = vld [vmem:[%s650 + $0xda] sm:$0xff]
      %v798 = vld [vmem:[%s650 + $0xe2] sm:$0xff]
      %v799 = vld [vmem:[%s650 + $0xf2] sm:$0xff]
      %v800 = vld [vmem:[%s650 + $0xfa] sm:$0xff]
      %v801 = vld [vmem:[%s650 + $0x10a] sm:$0xff]
      %v802 = vld [vmem:[%s650 + $0x112] sm:$0xff]
      %v803 = vld [vmem:[%s650 + $0x122] sm:$0xff]
      %v804 = vld [vmem:[%s650 + $0x12a] sm:$0xff]
      %v805 = vld [vmem:[%s650 + $0x13a] sm:$0xff]
      %v806 = vld [vmem:[%s650 + $0x142] sm:$0xff]
      %v807 = vld [vmem:[%s650 + $0x152] sm:$0xff]
      %v808 = vld [vmem:[%s650 + $0x15a] sm:$0xff]
      %v809 = vld [vmem:[%s650 + $0x16a] sm:$0xff]
      %v810 = vld [vmem:[%s650 + $0x172] sm:$0xff]
      %811 = vst [vmem:[#allocation2 + $0x40] sm:$0xff] %v779
      %812 = vst [vmem:[#allocation2 + $0x88] sm:$0xff] %v780
      %813 = vst [vmem:[#allocation2 + $0xd0] sm:$0xff] %v781
      %814 = vst [vmem:[#allocation2 + $0x118] sm:$0xff] %v782
      %815 = vst [vmem:[#allocation2 + $0x160] sm:$0xff] %v783
      %816 = vst [vmem:[#allocation2 + $0x1a8] sm:$0xff] %v784
      %817 = vst [vmem:[#allocation2 + $0x1f0] sm:$0xff] %v785
      %818 = vst [vmem:[#allocation2 + $0x238] sm:$0xff] %v786
      %819 = vst [vmem:[#allocation2 + $0x280] sm:$0xff] %v787
      %820 = vst [vmem:[#allocation2 + $0x2c8] sm:$0xff] %v788
      %821 = vst [vmem:[#allocation2 + $0x310] sm:$0xff] %v789
      %822 = vst [vmem:[#allocation2 + $0x358] sm:$0xff] %v790
      %823 = vst [vmem:[#allocation2 + $0x3a0] sm:$0xff] %v791
      %824 = vst [vmem:[#allocation2 + $0x3e8] sm:$0xff] %v792
      %825 = vst [vmem:[#allocation2 + $0x430] sm:$0xff] %v793
      %826 = vst [vmem:[#allocation2 + $0x478] sm:$0xff] %v794
      %827 = vst [vmem:[#allocation2 + $0x4c0] sm:$0xff] %v795
      %828 = vst [vmem:[#allocation2 + $0x508] sm:$0xff] %v796
      %829 = vst [vmem:[#allocation2 + $0x550] sm:$0xff] %v797
      %830 = vst [vmem:[#allocation2 + $0x598] sm:$0xff] %v798
      %831 = vst [vmem:[#allocation2 + $0x5e0] sm:$0xff] %v799
      %832 = vst [vmem:[#allocation2 + $0x628] sm:$0xff] %v800
      %833 = vst [vmem:[#allocation2 + $0x670] sm:$0xff] %v801
      %834 = vst [vmem:[#allocation2 + $0x6b8] sm:$0xff] %v802
      %835 = vst [vmem:[#allocation2 + $0x700] sm:$0xff] %v803
      %836 = vst [vmem:[#allocation2 + $0x748] sm:$0xff] %v804
      %837 = vst [vmem:[#allocation2 + $0x790] sm:$0xff] %v805
      %838 = vst [vmem:[#allocation2 + $0x7d8] sm:$0xff] %v806
      %839 = vst [vmem:[#allocation2 + $0x820] sm:$0xff] %v807
      %840 = vst [vmem:[#allocation2 + $0x868] sm:$0xff] %v808
      %841 = vst [vmem:[#allocation2 + $0x8b0] sm:$0xff] %v809
      %842 = vst [vmem:[#allocation2 + $0x8f8] sm:$0xff] %v810
      %v843 = vld [vmem:[#allocation2] sm:$0xff]
      %v844 = vld [vmem:[#allocation2 + $0x8] sm:$0xff]
      %v845 = vld [vmem:[#allocation2 + $0x10] sm:$0xff]
      %v846 = vld [vmem:[#allocation2 + $0x18] sm:$0xff]
      %v847 = vld [vmem:[#allocation2 + $0x20] sm:$0xff]
      %v848 = vld [vmem:[#allocation2 + $0x28] sm:$0xff]
      %v849 = vld [vmem:[#allocation2 + $0x30] sm:$0xff]
      %v850 = vld [vmem:[#allocation2 + $0x38] sm:$0xff]
      %v851 = vld [vmem:[#allocation2 + $0x40] sm:$0xff]
      %v852 = vld [vmem:[#allocation2 + $0x48] sm:$0xff]
      %v853 = vld [vmem:[#allocation2 + $0x50] sm:$0xff]
      %v854 = vld [vmem:[#allocation2 + $0x58] sm:$0xff]
      %v855 = vld [vmem:[#allocation2 + $0x60] sm:$0xff]
      %v856 = vld [vmem:[#allocation2 + $0x68] sm:$0xff]
      %v857 = vld [vmem:[#allocation2 + $0x70] sm:$0xff]
      %v858 = vld [vmem:[#allocation2 + $0x78] sm:$0xff]
      %v859 = vld [vmem:[#allocation2 + $0x80] sm:$0xff]
      %v860 = vld [vmem:[#allocation2 + $0x88] sm:$0xff]
      %v861 = vld [vmem:[#allocation2 + $0x90] sm:$0xff]
      %v862 = vld [vmem:[#allocation2 + $0x98] sm:$0xff]
      %v863 = vld [vmem:[#allocation2 + $0xa0] sm:$0xff]
      %v864 = vld [vmem:[#allocation2 + $0xa8] sm:$0xff]
      %v865 = vld [vmem:[#allocation2 + $0xb0] sm:$0xff]
      %v866 = vld [vmem:[#allocation2 + $0xb8] sm:$0xff]
      %v867 = vld [vmem:[#allocation2 + $0xc0] sm:$0xff]
      %v868 = vld [vmem:[#allocation2 + $0xc8] sm:$0xff]
      %v869 = vld [vmem:[#allocation2 + $0xd0] sm:$0xff]
      %v870 = vld [vmem:[#allocation2 + $0xd8] sm:$0xff]
      %v871 = vld [vmem:[#allocation2 + $0xe0] sm:$0xff]
      %v872 = vld [vmem:[#allocation2 + $0xe8] sm:$0xff]
      %v873 = vld [vmem:[#allocation2 + $0xf0] sm:$0xff]
      %v874 = vld [vmem:[#allocation2 + $0xf8] sm:$0xff]
      %v875 = vld [vmem:[#allocation2 + $0x100] sm:$0xff]
      %v876 = vld [vmem:[#allocation2 + $0x108] sm:$0xff]
      %v877 = vld [vmem:[#allocation2 + $0x110] sm:$0xff]
      %v878 = vld [vmem:[#allocation2 + $0x118] sm:$0xff]
      %v879 = vld [vmem:[#allocation2 + $0x120] sm:$0xff]
      %v880 = vld [vmem:[#allocation2 + $0x128] sm:$0xff]
      %v881 = vld [vmem:[#allocation2 + $0x130] sm:$0xff]
      %v882 = vld [vmem:[#allocation2 + $0x138] sm:$0xff]
      %v883 = vld [vmem:[#allocation2 + $0x140] sm:$0xff]
      %v884 = vld [vmem:[#allocation2 + $0x148] sm:$0xff]
      %v885 = vld [vmem:[#allocation2 + $0x150] sm:$0xff]
      %v886 = vld [vmem:[#allocation2 + $0x158] sm:$0xff]
      %v887 = vld [vmem:[#allocation2 + $0x160] sm:$0xff]
      %v888 = vld [vmem:[#allocation2 + $0x168] sm:$0xff]
      %v889 = vld [vmem:[#allocation2 + $0x170] sm:$0xff]
      %v890 = vld [vmem:[#allocation2 + $0x178] sm:$0xff]
      %v891 = vld [vmem:[#allocation2 + $0x180] sm:$0xff]
      %v892 = vld [vmem:[#allocation2 + $0x188] sm:$0xff]
      %v893 = vld [vmem:[#allocation2 + $0x190] sm:$0xff]
      %v894 = vld [vmem:[#allocation2 + $0x198] sm:$0xff]
      %v895 = vld [vmem:[#allocation2 + $0x1a0] sm:$0xff]
      %v896 = vld [vmem:[#allocation2 + $0x1a8] sm:$0xff]
      %v897 = vld [vmem:[#allocation2 + $0x1b0] sm:$0xff]
      %v898 = vld [vmem:[#allocation2 + $0x1b8] sm:$0xff]
      %v899 = vld [vmem:[#allocation2 + $0x1c0] sm:$0xff]
      %v900 = vld [vmem:[#allocation2 + $0x1c8] sm:$0xff]
      %v901 = vld [vmem:[#allocation2 + $0x1d0] sm:$0xff]
      %v902 = vld [vmem:[#allocation2 + $0x1d8] sm:$0xff]
      %v903 = vld [vmem:[#allocation2 + $0x1e0] sm:$0xff]
      %v904 = vld [vmem:[#allocation2 + $0x1e8] sm:$0xff]
      %v905 = vld [vmem:[#allocation2 + $0x1f0] sm:$0xff]
      %v906 = vld [vmem:[#allocation2 + $0x1f8] sm:$0xff]
      %v907 = vld [vmem:[#allocation2 + $0x200] sm:$0xff]
      %v908 = vld [vmem:[#allocation2 + $0x208] sm:$0xff]
      %v909 = vld [vmem:[#allocation2 + $0x210] sm:$0xff]
      %v910 = vld [vmem:[#allocation2 + $0x218] sm:$0xff]
      %v911 = vld [vmem:[#allocation2 + $0x220] sm:$0xff]
      %v912 = vld [vmem:[#allocation2 + $0x228] sm:$0xff]
      %v913 = vld [vmem:[#allocation2 + $0x230] sm:$0xff]
      %v914 = vld [vmem:[#allocation2 + $0x238] sm:$0xff]
      %v915 = vld [vmem:[#allocation2 + $0x240] sm:$0xff]
      %v916 = vld [vmem:[#allocation2 + $0x248] sm:$0xff]
      %v917 = vld [vmem:[#allocation2 + $0x250] sm:$0xff]
      %v918 = vld [vmem:[#allocation2 + $0x258] sm:$0xff]
      %v919 = vld [vmem:[#allocation2 + $0x260] sm:$0xff]
      %v920 = vld [vmem:[#allocation2 + $0x268] sm:$0xff]
      %v921 = vld [vmem:[#allocation2 + $0x270] sm:$0xff]
      %v922 = vld [vmem:[#allocation2 + $0x278] sm:$0xff]
      %v923 = vld [vmem:[#allocation2 + $0x280] sm:$0xff]
      %v924 = vld [vmem:[#allocation2 + $0x288] sm:$0xff]
      %v925 = vld [vmem:[#allocation2 + $0x290] sm:$0xff]
      %v926 = vld [vmem:[#allocation2 + $0x298] sm:$0xff]
      %v927 = vld [vmem:[#allocation2 + $0x2a0] sm:$0xff]
      %v928 = vld [vmem:[#allocation2 + $0x2a8] sm:$0xff]
      %v929 = vld [vmem:[#allocation2 + $0x2b0] sm:$0xff]
      %v930 = vld [vmem:[#allocation2 + $0x2b8] sm:$0xff]
      %v931 = vld [vmem:[#allocation2 + $0x2c0] sm:$0xff]
      %v932 = vld [vmem:[#allocation2 + $0x2c8] sm:$0xff]
      %v933 = vld [vmem:[#allocation2 + $0x2d0] sm:$0xff]
      %v934 = vld [vmem:[#allocation2 + $0x2d8] sm:$0xff]
      %v935 = vld [vmem:[#allocation2 + $0x2e0] sm:$0xff]
      %v936 = vld [vmem:[#allocation2 + $0x2e8] sm:$0xff]
      %v937 = vld [vmem:[#allocation2 + $0x2f0] sm:$0xff]
      %v938 = vld [vmem:[#allocation2 + $0x2f8] sm:$0xff]
      %v939 = vld [vmem:[#allocation2 + $0x300] sm:$0xff]
      %v940 = vld [vmem:[#allocation2 + $0x308] sm:$0xff]
      %v941 = vld [vmem:[#allocation2 + $0x310] sm:$0xff]
      %v942 = vld [vmem:[#allocation2 + $0x318] sm:$0xff]
      %v943 = vld [vmem:[#allocation2 + $0x320] sm:$0xff]
      %v944 = vld [vmem:[#allocation2 + $0x328] sm:$0xff]
      %v945 = vld [vmem:[#allocation2 + $0x330] sm:$0xff]
      %v946 = vld [vmem:[#allocation2 + $0x338] sm:$0xff]
      %v947 = vld [vmem:[#allocation2 + $0x340] sm:$0xff]
      %v948 = vld [vmem:[#allocation2 + $0x348] sm:$0xff]
      %v949 = vld [vmem:[#allocation2 + $0x350] sm:$0xff]
      %v950 = vld [vmem:[#allocation2 + $0x358] sm:$0xff]
      %v951 = vld [vmem:[#allocation2 + $0x360] sm:$0xff]
      %v952 = vld [vmem:[#allocation2 + $0x368] sm:$0xff]
      %v953 = vld [vmem:[#allocation2 + $0x370] sm:$0xff]
      %v954 = vld [vmem:[#allocation2 + $0x378] sm:$0xff]
      %v955 = vld [vmem:[#allocation2 + $0x380] sm:$0xff]
      %v956 = vld [vmem:[#allocation2 + $0x388] sm:$0xff]
      %v957 = vld [vmem:[#allocation2 + $0x390] sm:$0xff]
      %v958 = vld [vmem:[#allocation2 + $0x398] sm:$0xff]
      %v959 = vld [vmem:[#allocation2 + $0x3a0] sm:$0xff]
      %v960 = vld [vmem:[#allocation2 + $0x3a8] sm:$0xff]
      %v961 = vld [vmem:[#allocation2 + $0x3b0] sm:$0xff]
      %v962 = vld [vmem:[#allocation2 + $0x3b8] sm:$0xff]
      %v963 = vld [vmem:[#allocation2 + $0x3c0] sm:$0xff]
      %v964 = vld [vmem:[#allocation2 + $0x3c8] sm:$0xff]
      %v965 = vld [vmem:[#allocation2 + $0x3d0] sm:$0xff]
      %v966 = vld [vmem:[#allocation2 + $0x3d8] sm:$0xff]
      %v967 = vld [vmem:[#allocation2 + $0x3e0] sm:$0xff]
      %v968 = vld [vmem:[#allocation2 + $0x3e8] sm:$0xff]
      %v969 = vld [vmem:[#allocation2 + $0x3f0] sm:$0xff]
      %v970 = vld [vmem:[#allocation2 + $0x3f8] sm:$0xff]
      %v971 = vld [vmem:[#allocation2 + $0x400] sm:$0xff]
      %v972 = vld [vmem:[#allocation2 + $0x408] sm:$0xff]
      %v973 = vld [vmem:[#allocation2 + $0x410] sm:$0xff]
      %v974 = vld [vmem:[#allocation2 + $0x418] sm:$0xff]
      %v975 = vld [vmem:[#allocation2 + $0x420] sm:$0xff]
      %v976 = vld [vmem:[#allocation2 + $0x428] sm:$0xff]
      %v977 = vld [vmem:[#allocation2 + $0x430] sm:$0xff]
      %v978 = vld [vmem:[#allocation2 + $0x438] sm:$0xff]
      %v979 = vld [vmem:[#allocation2 + $0x440] sm:$0xff]
      %v980 = vld [vmem:[#allocation2 + $0x448] sm:$0xff]
      %v981 = vld [vmem:[#allocation2 + $0x450] sm:$0xff]
      %v982 = vld [vmem:[#allocation2 + $0x458] sm:$0xff]
      %v983 = vld [vmem:[#allocation2 + $0x460] sm:$0xff]
      %v984 = vld [vmem:[#allocation2 + $0x468] sm:$0xff]
      %v985 = vld [vmem:[#allocation2 + $0x470] sm:$0xff]
      %v986 = vld [vmem:[#allocation2 + $0x478] sm:$0xff]
      %v987 = vld [vmem:[#allocation2 + $0x480] sm:$0xff]
      %v988 = vld [vmem:[#allocation2 + $0x488] sm:$0xff]
      %v989 = vld [vmem:[#allocation2 + $0x490] sm:$0xff]
      %v990 = vld [vmem:[#allocation2 + $0x498] sm:$0xff]
      %v991 = vld [vmem:[#allocation2 + $0x4a0] sm:$0xff]
      %v992 = vld [vmem:[#allocation2 + $0x4a8] sm:$0xff]
      %v993 = vld [vmem:[#allocation2 + $0x4b0] sm:$0xff]
      %v994 = vld [vmem:[#allocation2 + $0x4b8] sm:$0xff]
      %v995 = vld [vmem:[#allocation2 + $0x4c0] sm:$0xff]
      %v996 = vld [vmem:[#allocation2 + $0x4c8] sm:$0xff]
      %v997 = vld [vmem:[#allocation2 + $0x4d0] sm:$0xff]
      %v998 = vld [vmem:[#allocation2 + $0x4d8] sm:$0xff]
      %v999 = vld [vmem:[#allocation2 + $0x4e0] sm:$0xff]
      %v1000 = vld [vmem:[#allocation2 + $0x4e8] sm:$0xff]
      %v1001 = vld [vmem:[#allocation2 + $0x4f0] sm:$0xff]
      %v1002 = vld [vmem:[#allocation2 + $0x4f8] sm:$0xff]
      %v1003 = vld [vmem:[#allocation2 + $0x500] sm:$0xff]
      %v1004 = vld [vmem:[#allocation2 + $0x508] sm:$0xff]
      %v1005 = vld [vmem:[#allocation2 + $0x510] sm:$0xff]
      %v1006 = vld [vmem:[#allocation2 + $0x518] sm:$0xff]
      %v1007 = vld [vmem:[#allocation2 + $0x520] sm:$0xff]
      %v1008 = vld [vmem:[#allocation2 + $0x528] sm:$0xff]
      %v1009 = vld [vmem:[#allocation2 + $0x530] sm:$0xff]
      %v1010 = vld [vmem:[#allocation2 + $0x538] sm:$0xff]
      %v1011 = vld [vmem:[#allocation2 + $0x540] sm:$0xff]
      %v1012 = vld [vmem:[#allocation2 + $0x548] sm:$0xff]
      %v1013 = vld [vmem:[#allocation2 + $0x550] sm:$0xff]
      %v1014 = vld [vmem:[#allocation2 + $0x558] sm:$0xff]
      %v1015 = vld [vmem:[#allocation2 + $0x560] sm:$0xff]
      %v1016 = vld [vmem:[#allocation2 + $0x568] sm:$0xff]
      %v1017 = vld [vmem:[#allocation2 + $0x570] sm:$0xff]
      %v1018 = vld [vmem:[#allocation2 + $0x578] sm:$0xff]
      %v1019 = vld [vmem:[#allocation2 + $0x580] sm:$0xff]
      %v1020 = vld [vmem:[#allocation2 + $0x588] sm:$0xff]
      %v1021 = vld [vmem:[#allocation2 + $0x590] sm:$0xff]
      %v1022 = vld [vmem:[#allocation2 + $0x598] sm:$0xff]
      %v1023 = vld [vmem:[#allocation2 + $0x5a0] sm:$0xff]
      %v1024 = vld [vmem:[#allocation2 + $0x5a8] sm:$0xff]
      %v1025 = vld [vmem:[#allocation2 + $0x5b0] sm:$0xff]
      %v1026 = vld [vmem:[#allocation2 + $0x5b8] sm:$0xff]
      %v1027 = vld [vmem:[#allocation2 + $0x5c0] sm:$0xff]
      %v1028 = vld [vmem:[#allocation2 + $0x5c8] sm:$0xff]
      %v1029 = vld [vmem:[#allocation2 + $0x5d0] sm:$0xff]
      %v1030 = vld [vmem:[#allocation2 + $0x5d8] sm:$0xff]
      %v1031 = vld [vmem:[#allocation2 + $0x5e0] sm:$0xff]
      %v1032 = vld [vmem:[#allocation2 + $0x5e8] sm:$0xff]
      %v1033 = vld [vmem:[#allocation2 + $0x5f0] sm:$0xff]
      %v1034 = vld [vmem:[#allocation2 + $0x5f8] sm:$0xff]
      %v1035 = vld [vmem:[#allocation2 + $0x600] sm:$0xff]
      %v1036 = vld [vmem:[#allocation2 + $0x608] sm:$0xff]
      %v1037 = vld [vmem:[#allocation2 + $0x610] sm:$0xff]
      %v1038 = vld [vmem:[#allocation2 + $0x618] sm:$0xff]
      %v1039 = vld [vmem:[#allocation2 + $0x620] sm:$0xff]
      %v1040 = vld [vmem:[#allocation2 + $0x628] sm:$0xff]
      %v1041 = vld [vmem:[#allocation2 + $0x630] sm:$0xff]
      %v1042 = vld [vmem:[#allocation2 + $0x638] sm:$0xff]
      %v1043 = vld [vmem:[#allocation2 + $0x640] sm:$0xff]
      %v1044 = vld [vmem:[#allocation2 + $0x648] sm:$0xff]
      %v1045 = vld [vmem:[#allocation2 + $0x650] sm:$0xff]
      %v1046 = vld [vmem:[#allocation2 + $0x658] sm:$0xff]
      %v1047 = vld [vmem:[#allocation2 + $0x660] sm:$0xff]
      %v1048 = vld [vmem:[#allocation2 + $0x668] sm:$0xff]
      %v1049 = vld [vmem:[#allocation2 + $0x670] sm:$0xff]
      %v1050 = vld [vmem:[#allocation2 + $0x678] sm:$0xff]
      %v1051 = vld [vmem:[#allocation2 + $0x680] sm:$0xff]
      %v1052 = vld [vmem:[#allocation2 + $0x688] sm:$0xff]
      %v1053 = vld [vmem:[#allocation2 + $0x690] sm:$0xff]
      %v1054 = vld [vmem:[#allocation2 + $0x698] sm:$0xff]
      %v1055 = vld [vmem:[#allocation2 + $0x6a0] sm:$0xff]
      %v1056 = vld [vmem:[#allocation2 + $0x6a8] sm:$0xff]
      %v1057 = vld [vmem:[#allocation2 + $0x6b0] sm:$0xff]
      %v1058 = vld [vmem:[#allocation2 + $0x6b8] sm:$0xff]
      %v1059 = vld [vmem:[#allocation2 + $0x6c0] sm:$0xff]
      %v1060 = vld [vmem:[#allocation2 + $0x6c8] sm:$0xff]
      %v1061 = vld [vmem:[#allocation2 + $0x6d0] sm:$0xff]
      %v1062 = vld [vmem:[#allocation2 + $0x6d8] sm:$0xff]
      %v1063 = vld [vmem:[#allocation2 + $0x6e0] sm:$0xff]
      %v1064 = vld [vmem:[#allocation2 + $0x6e8] sm:$0xff]
      %v1065 = vld [vmem:[#allocation2 + $0x6f0] sm:$0xff]
      %v1066 = vld [vmem:[#allocation2 + $0x6f8] sm:$0xff]
      %v1067 = vld [vmem:[#allocation2 + $0x700] sm:$0xff]
      %v1068 = vld [vmem:[#allocation2 + $0x708] sm:$0xff]
      %v1069 = vld [vmem:[#allocation2 + $0x710] sm:$0xff]
      %v1070 = vld [vmem:[#allocation2 + $0x718] sm:$0xff]
      %v1071 = vld [vmem:[#allocation2 + $0x720] sm:$0xff]
      %v1072 = vld [vmem:[#allocation2 + $0x728] sm:$0xff]
      %v1073 = vld [vmem:[#allocation2 + $0x730] sm:$0xff]
      %v1074 = vld [vmem:[#allocation2 + $0x738] sm:$0xff]
      %v1075 = vld [vmem:[#allocation2 + $0x740] sm:$0xff]
      %v1076 = vld [vmem:[#allocation2 + $0x748] sm:$0xff]
      %v1077 = vld [vmem:[#allocation2 + $0x750] sm:$0xff]
      %v1078 = vld [vmem:[#allocation2 + $0x758] sm:$0xff]
      %v1079 = vld [vmem:[#allocation2 + $0x760] sm:$0xff]
      %v1080 = vld [vmem:[#allocation2 + $0x768] sm:$0xff]
      %v1081 = vld [vmem:[#allocation2 + $0x770] sm:$0xff]
      %v1082 = vld [vmem:[#allocation2 + $0x778] sm:$0xff]
      %v1083 = vld [vmem:[#allocation2 + $0x780] sm:$0xff]
      %v1084 = vld [vmem:[#allocation2 + $0x788] sm:$0xff]
      %v1085 = vld [vmem:[#allocation2 + $0x790] sm:$0xff]
      %v1086 = vld [vmem:[#allocation2 + $0x798] sm:$0xff]
      %v1087 = vld [vmem:[#allocation2 + $0x7a0] sm:$0xff]
      %v1088 = vld [vmem:[#allocation2 + $0x7a8] sm:$0xff]
      %v1089 = vld [vmem:[#allocation2 + $0x7b0] sm:$0xff]
      %v1090 = vld [vmem:[#allocation2 + $0x7b8] sm:$0xff]
      %v1091 = vld [vmem:[#allocation2 + $0x7c0] sm:$0xff]
      %v1092 = vld [vmem:[#allocation2 + $0x7c8] sm:$0xff]
      %v1093 = vld [vmem:[#allocation2 + $0x7d0] sm:$0xff]
      %v1094 = vld [vmem:[#allocation2 + $0x7d8] sm:$0xff]
      %v1095 = vld [vmem:[#allocation2 + $0x7e0] sm:$0xff]
      %v1096 = vld [vmem:[#allocation2 + $0x7e8] sm:$0xff]
      %v1097 = vld [vmem:[#allocation2 + $0x7f0] sm:$0xff]
      %v1098 = vld [vmem:[#allocation2 + $0x7f8] sm:$0xff]
      %v1099 = vld [vmem:[#allocation2 + $0x800] sm:$0xff]
      %v1100 = vld [vmem:[#allocation2 + $0x808] sm:$0xff]
      %v1101 = vld [vmem:[#allocation2 + $0x810] sm:$0xff]
      %v1102 = vld [vmem:[#allocation2 + $0x818] sm:$0xff]
      %v1103 = vld [vmem:[#allocation2 + $0x820] sm:$0xff]
      %v1104 = vld [vmem:[#allocation2 + $0x828] sm:$0xff]
      %v1105 = vld [vmem:[#allocation2 + $0x830] sm:$0xff]
      %v1106 = vld [vmem:[#allocation2 + $0x838] sm:$0xff]
      %v1107 = vld [vmem:[#allocation2 + $0x840] sm:$0xff]
      %v1108 = vld [vmem:[#allocation2 + $0x848] sm:$0xff]
      %v1109 = vld [vmem:[#allocation2 + $0x850] sm:$0xff]
      %v1110 = vld [vmem:[#allocation2 + $0x858] sm:$0xff]
      %v1111 = vld [vmem:[#allocation2 + $0x860] sm:$0xff]
      %v1112 = vld [vmem:[#allocation2 + $0x868] sm:$0xff]
      %v1113 = vld [vmem:[#allocation2 + $0x870] sm:$0xff]
      %v1114 = vld [vmem:[#allocation2 + $0x878] sm:$0xff]
      %v1115 = vld [vmem:[#allocation2 + $0x880] sm:$0xff]
      %v1116 = vld [vmem:[#allocation2 + $0x888] sm:$0xff]
      %v1117 = vld [vmem:[#allocation2 + $0x890] sm:$0xff]
      %v1118 = vld [vmem:[#allocation2 + $0x898] sm:$0xff]
      %v1119 = vld [vmem:[#allocation2 + $0x8a0] sm:$0xff]
      %v1120 = vld [vmem:[#allocation2 + $0x8a8] sm:$0xff]
      %v1121 = vld [vmem:[#allocation2 + $0x8b0] sm:$0xff]
      %v1122 = vld [vmem:[#allocation2 + $0x8b8] sm:$0xff]
      %v1123 = vld [vmem:[#allocation2 + $0x8c0] sm:$0xff]
      %v1124 = vld [vmem:[#allocation2 + $0x8c8] sm:$0xff]
      %v1125 = vld [vmem:[#allocation2 + $0x8d0] sm:$0xff]
      %v1126 = vld [vmem:[#allocation2 + $0x8d8] sm:$0xff]
      %v1127 = vld [vmem:[#allocation2 + $0x8e0] sm:$0xff]
      %v1128 = vld [vmem:[#allocation2 + $0x8e8] sm:$0xff]
      %v1129 = vld [vmem:[#allocation2 + $0x8f0] sm:$0xff]
      %v1130 = vld [vmem:[#allocation2 + $0x8f8] sm:$0xff]
      %v1131 = vld [vmem:[%s248] sm:$0xff]
      %v1132 = vld [vmem:[%s248 + $0x8] sm:$0xff]
      %v1133 = vld [vmem:[%s248 + $0x10] sm:$0xff]
      %v1134 = vld [vmem:[%s248 + $0x18] sm:$0xff]
      %v1135 = vld [vmem:[%s248 + $0x20] sm:$0xff]
      %v1136 = vld [vmem:[%s248 + $0x28] sm:$0xff]
      %v1137 = vld [vmem:[%s248 + $0x30] sm:$0xff]
      %v1138 = vld [vmem:[%s248 + $0x38] sm:$0xff]
      %v1139 = vld [vmem:[%s248 + $0x40] sm:$0xff]
      %v1140 = vld [vmem:[%s248 + $0x48] sm:$0xff]
      %v1141 = vld [vmem:[%s248 + $0x50] sm:$0xff]
      %v1142 = vld [vmem:[%s248 + $0x58] sm:$0xff]
      %v1143 = vld [vmem:[%s248 + $0x60] sm:$0xff]
      %v1144 = vld [vmem:[%s248 + $0x68] sm:$0xff]
      %v1145 = vld [vmem:[%s248 + $0x70] sm:$0xff]
      %v1146 = vld [vmem:[%s248 + $0x78] sm:$0xff]
      %v1147 = vld [vmem:[%s248 + $0x80] sm:$0xff]
      %v1148 = vld [vmem:[%s248 + $0x88] sm:$0xff]
      %v1149 = vld [vmem:[%s248 + $0x90] sm:$0xff]
      %v1150 = vld [vmem:[%s248 + $0x98] sm:$0xff]
      %v1151 = vld [vmem:[%s248 + $0xa0] sm:$0xff]
      %v1152 = vld [vmem:[%s248 + $0xa8] sm:$0xff]
      %v1153 = vld [vmem:[%s248 + $0xb0] sm:$0xff]
      %v1154 = vld [vmem:[%s248 + $0xb8] sm:$0xff]
      %v1155 = vld [vmem:[%s248 + $0xc0] sm:$0xff]
      %v1156 = vld [vmem:[%s248 + $0xc8] sm:$0xff]
      %v1157 = vld [vmem:[%s248 + $0xd0] sm:$0xff]
      %v1158 = vld [vmem:[%s248 + $0xd8] sm:$0xff]
      %v1159 = vld [vmem:[%s248 + $0xe0] sm:$0xff]
      %v1160 = vld [vmem:[%s248 + $0xe8] sm:$0xff]
      %v1161 = vld [vmem:[%s248 + $0xf0] sm:$0xff]
      %v1162 = vld [vmem:[%s248 + $0xf8] sm:$0xff]
      %v1163 = vld [vmem:[%s248 + $0x100] sm:$0xff]
      %v1164 = vld [vmem:[%s248 + $0x108] sm:$0xff]
      %v1165 = vld [vmem:[%s248 + $0x110] sm:$0xff]
      %v1166 = vld [vmem:[%s248 + $0x118] sm:$0xff]
      %v1167 = vld [vmem:[%s248 + $0x120] sm:$0xff]
      %v1168 = vld [vmem:[%s248 + $0x128] sm:$0xff]
      %v1169 = vld [vmem:[%s248 + $0x130] sm:$0xff]
      %v1170 = vld [vmem:[%s248 + $0x138] sm:$0xff]
      %v1171 = vld [vmem:[%s248 + $0x140] sm:$0xff]
      %v1172 = vld [vmem:[%s248 + $0x148] sm:$0xff]
      %v1173 = vld [vmem:[%s248 + $0x150] sm:$0xff]
      %v1174 = vld [vmem:[%s248 + $0x158] sm:$0xff]
      %v1175 = vld [vmem:[%s248 + $0x160] sm:$0xff]
      %v1176 = vld [vmem:[%s248 + $0x168] sm:$0xff]
      %v1177 = vld [vmem:[%s248 + $0x170] sm:$0xff]
      %v1178 = vld [vmem:[%s248 + $0x178] sm:$0xff]
      %v1179 = vld [vmem:[%s248 + $0x180] sm:$0xff]
      %v1180 = vld [vmem:[%s248 + $0x188] sm:$0xff]
      %v1181 = vld [vmem:[%s248 + $0x190] sm:$0xff]
      %v1182 = vld [vmem:[%s248 + $0x198] sm:$0xff]
      %v1183 = vld [vmem:[%s248 + $0x1a0] sm:$0xff]
      %v1184 = vld [vmem:[%s248 + $0x1a8] sm:$0xff]
      %v1185 = vld [vmem:[%s248 + $0x1b0] sm:$0xff]
      %v1186 = vld [vmem:[%s248 + $0x1b8] sm:$0xff]
      %v1187 = vld [vmem:[%s248 + $0x1c0] sm:$0xff]
      %v1188 = vld [vmem:[%s248 + $0x1c8] sm:$0xff]
      %v1189 = vld [vmem:[%s248 + $0x1d0] sm:$0xff]
      %v1190 = vld [vmem:[%s248 + $0x1d8] sm:$0xff]
      %v1191 = vld [vmem:[%s248 + $0x1e0] sm:$0xff]
      %v1192 = vld [vmem:[%s248 + $0x1e8] sm:$0xff]
      %v1193 = vld [vmem:[%s248 + $0x1f0] sm:$0xff]
      %v1194 = vld [vmem:[%s248 + $0x1f8] sm:$0xff]
      %v1195 = vld [vmem:[%s248 + $0x200] sm:$0xff]
      %v1196 = vld [vmem:[%s248 + $0x208] sm:$0xff]
      %v1197 = vld [vmem:[%s248 + $0x210] sm:$0xff]
      %v1198 = vld [vmem:[%s248 + $0x218] sm:$0xff]
      %v1199 = vld [vmem:[%s248 + $0x220] sm:$0xff]
      %v1200 = vld [vmem:[%s248 + $0x228] sm:$0xff]
      %v1201 = vld [vmem:[%s248 + $0x230] sm:$0xff]
      %v1202 = vld [vmem:[%s248 + $0x238] sm:$0xff]
      %v1203 = vld [vmem:[%s248 + $0x240] sm:$0xff]
      %v1204 = vld [vmem:[%s248 + $0x248] sm:$0xff]
      %v1205 = vld [vmem:[%s248 + $0x250] sm:$0xff]
      %v1206 = vld [vmem:[%s248 + $0x258] sm:$0xff]
      %v1207 = vld [vmem:[%s248 + $0x260] sm:$0xff]
      %v1208 = vld [vmem:[%s248 + $0x268] sm:$0xff]
      %v1209 = vld [vmem:[%s248 + $0x270] sm:$0xff]
      %v1210 = vld [vmem:[%s248 + $0x278] sm:$0xff]
      %v1211 = vld [vmem:[%s248 + $0x280] sm:$0xff]
      %v1212 = vld [vmem:[%s248 + $0x288] sm:$0xff]
      %v1213 = vld [vmem:[%s248 + $0x290] sm:$0xff]
      %v1214 = vld [vmem:[%s248 + $0x298] sm:$0xff]
      %v1215 = vld [vmem:[%s248 + $0x2a0] sm:$0xff]
      %v1216 = vld [vmem:[%s248 + $0x2a8] sm:$0xff]
      %v1217 = vld [vmem:[%s248 + $0x2b0] sm:$0xff]
      %v1218 = vld [vmem:[%s248 + $0x2b8] sm:$0xff]
      %v1219 = vld [vmem:[%s248 + $0x2c0] sm:$0xff]
      %v1220 = vld [vmem:[%s248 + $0x2c8] sm:$0xff]
      %v1221 = vld [vmem:[%s248 + $0x2d0] sm:$0xff]
      %v1222 = vld [vmem:[%s248 + $0x2d8] sm:$0xff]
      %v1223 = vld [vmem:[%s248 + $0x2e0] sm:$0xff]
      %v1224 = vld [vmem:[%s248 + $0x2e8] sm:$0xff]
      %v1225 = vld [vmem:[%s248 + $0x2f0] sm:$0xff]
      %v1226 = vld [vmem:[%s248 + $0x2f8] sm:$0xff]
      %v1227 = vld [vmem:[%s248 + $0x300] sm:$0xff]
      %v1228 = vld [vmem:[%s248 + $0x308] sm:$0xff]
      %v1229 = vld [vmem:[%s248 + $0x310] sm:$0xff]
      %v1230 = vld [vmem:[%s248 + $0x318] sm:$0xff]
      %v1231 = vld [vmem:[%s248 + $0x320] sm:$0xff]
      %v1232 = vld [vmem:[%s248 + $0x328] sm:$0xff]
      %v1233 = vld [vmem:[%s248 + $0x330] sm:$0xff]
      %v1234 = vld [vmem:[%s248 + $0x338] sm:$0xff]
      %v1235 = vld [vmem:[%s248 + $0x340] sm:$0xff]
      %v1236 = vld [vmem:[%s248 + $0x348] sm:$0xff]
      %v1237 = vld [vmem:[%s248 + $0x350] sm:$0xff]
      %v1238 = vld [vmem:[%s248 + $0x358] sm:$0xff]
      %v1239 = vld [vmem:[%s248 + $0x360] sm:$0xff]
      %v1240 = vld [vmem:[%s248 + $0x368] sm:$0xff]
      %v1241 = vld [vmem:[%s248 + $0x370] sm:$0xff]
      %v1242 = vld [vmem:[%s248 + $0x378] sm:$0xff]
      %v1243 = vld [vmem:[%s248 + $0x380] sm:$0xff]
      %v1244 = vld [vmem:[%s248 + $0x388] sm:$0xff]
      %v1245 = vld [vmem:[%s248 + $0x390] sm:$0xff]
      %v1246 = vld [vmem:[%s248 + $0x398] sm:$0xff]
      %v1247 = vld [vmem:[%s248 + $0x3a0] sm:$0xff]
      %v1248 = vld [vmem:[%s248 + $0x3a8] sm:$0xff]
      %v1249 = vld [vmem:[%s248 + $0x3b0] sm:$0xff]
      %v1250 = vld [vmem:[%s248 + $0x3b8] sm:$0xff]
      %v1251 = vld [vmem:[%s248 + $0x3c0] sm:$0xff]
      %v1252 = vld [vmem:[%s248 + $0x3c8] sm:$0xff]
      %v1253 = vld [vmem:[%s248 + $0x3d0] sm:$0xff]
      %v1254 = vld [vmem:[%s248 + $0x3d8] sm:$0xff]
      %v1255 = vld [vmem:[%s248 + $0x3e0] sm:$0xff]
      %v1256 = vld [vmem:[%s248 + $0x3e8] sm:$0xff]
      %v1257 = vld [vmem:[%s248 + $0x3f0] sm:$0xff]
      %v1258 = vld [vmem:[%s248 + $0x3f8] sm:$0xff]
      %v1259 = vld [vmem:[%s248 + $0x400] sm:$0xff]
      %v1260 = vld [vmem:[%s248 + $0x408] sm:$0xff]
      %v1261 = vld [vmem:[%s248 + $0x410] sm:$0xff]
      %v1262 = vld [vmem:[%s248 + $0x418] sm:$0xff]
      %v1263 = vld [vmem:[%s248 + $0x420] sm:$0xff]
      %v1264 = vld [vmem:[%s248 + $0x428] sm:$0xff]
      %v1265 = vld [vmem:[%s248 + $0x430] sm:$0xff]
      %v1266 = vld [vmem:[%s248 + $0x438] sm:$0xff]
      %v1267 = vld [vmem:[%s248 + $0x440] sm:$0xff]
      %v1268 = vld [vmem:[%s248 + $0x448] sm:$0xff]
      %v1269 = vld [vmem:[%s248 + $0x450] sm:$0xff]
      %v1270 = vld [vmem:[%s248 + $0x458] sm:$0xff]
      %v1271 = vld [vmem:[%s248 + $0x460] sm:$0xff]
      %v1272 = vld [vmem:[%s248 + $0x468] sm:$0xff]
      %v1273 = vld [vmem:[%s248 + $0x470] sm:$0xff]
      %v1274 = vld [vmem:[%s248 + $0x478] sm:$0xff]
      %1275 = vmatprep.subr.mxu0 0.0
      %1276 = vmatpush1.msra.mxu0 %v1131
      %1277 = vmatprep.subr.mxu0 0.0
      %1278 = vmatpush1.msra.mxu0 %v1132
      %1279 = vmatprep.subr.mxu0 0.0
      %1280 = vmatpush1.msra.mxu0 %v1133
      %1281 = vmatprep.subr.mxu0 0.0
      %1282 = vmatpush1.msra.mxu0 %v1134
      %1283 = vmatprep.subr.mxu0 0.0
      %1284 = vmatpush1.msra.mxu0 %v1135
      %1285 = vmatprep.subr.mxu0 0.0
      %1286 = vmatpush1.msra.mxu0 %v1136
      %1287 = vmatprep.subr.mxu0 0.0
      %1288 = vmatpush1.msra.mxu0 %v1137
      %1289 = vmatprep.subr.mxu0 0.0
      %1290 = vmatpush1.msra.mxu0 %v1138
      %1291 = vmatprep.subr.mxu0 0.0
      %1292 = vmatpush1.msra.mxu0 %v1139
      %1293 = vmatprep.subr.mxu0 0.0
      %1294 = vmatpush1.msra.mxu0 %v1140
      %1295 = vmatprep.subr.mxu0 0.0
      %1296 = vmatpush1.msra.mxu0 %v1141
      %1297 = vmatprep.subr.mxu0 0.0
      %1298 = vmatpush1.msra.mxu0 %v1142
      %1299 = vmatprep.subr.mxu0 0.0
      %1300 = vmatpush1.msra.mxu0 %v1143
      %1301 = vmatprep.subr.mxu0 0.0
      %1302 = vmatpush1.msra.mxu0 %v1144
      %1303 = vmatprep.subr.mxu0 0.0
      %1304 = vmatpush1.msra.mxu0 %v1145
      %1305 = vmatprep.subr.mxu0 0.0
      %1306 = vmatpush1.msra.mxu0 %v1146
      %1307 = vmatprep.subr.mxu0 0.0
      %1308 = vmatpush1.msra.mxu0 %v1147
      %1309 = vmatprep.subr.mxu0 0.0
      %1310 = vmatpush1.msra.mxu0 %v1148
      %1311 = vmatprep.subr.mxu0 0.0
      %1312 = vmatpush1.msra.mxu0 %v1149
      %1313 = vmatprep.subr.mxu0 0.0
      %1314 = vmatpush1.msra.mxu0 %v1150
      %1315 = vmatprep.subr.mxu0 0.0
      %1316 = vmatpush1.msra.mxu0 %v1151
      %1317 = vmatprep.subr.mxu0 0.0
      %1318 = vmatpush1.msra.mxu0 %v1152
      %1319 = vmatprep.subr.mxu0 0.0
      %1320 = vmatpush1.msra.mxu0 %v1153
      %1321 = vmatprep.subr.mxu0 0.0
      %1322 = vmatpush1.msra.mxu0 %v1154
      %1323 = vmatprep.subr.mxu0 0.0
      %1324 = vmatpush1.msra.mxu0 %v1155
      %1325 = vmatprep.subr.mxu0 0.0
      %1326 = vmatpush1.msra.mxu0 %v1156
      %1327 = vmatprep.subr.mxu0 0.0
      %1328 = vmatpush1.msra.mxu0 %v1157
      %1329 = vmatprep.subr.mxu0 0.0
      %1330 = vmatpush1.msra.mxu0 %v1158
      %1331 = vmatprep.subr.mxu0 0.0
      %1332 = vmatpush1.msra.mxu0 %v1159
      %1333 = vmatprep.subr.mxu0 0.0
      %1334 = vmatpush1.msra.mxu0 %v1160
      %1335 = vmatprep.subr.mxu0 0.0
      %1336 = vmatpush1.msra.mxu0 %v1161
      %1337 = vmatprep.subr.mxu0 0.0
      %1338 = vmatpush1.msra.mxu0 %v1162
      %1339 = vmatprep.mubr.f32.mxu0 %v844
      %1340 = vmatmul.mubr.f32.gmra.mrb[0].mxu0 %v843
      %v1341 = vpop.f32.mrb[0].mxu0
      %v1342 = vadd.f32 0.0, %v1341
      %v1343 = vpop.f32.mrb[0].mxu0
      %1344 = vmatprep.mubr.f32.mxu0 %v853
      %1345 = vmatmul.mubr.f32.gmra.mrb[0].mxu0 %v852
      %v1346 = vpop.f32.mrb[0].mxu0
      %v1347 = vadd.f32 0.0, %v1346
      %v1348 = vpop.f32.mrb[0].mxu0
      %1349 = vmatprep.mubr.f32.mxu0 %v862
      %1350 = vmatmul.mubr.f32.gmra.mrb[0].mxu0 %v861
      %v1351 = vpop.f32.mrb[0].mxu0
      %v1352 = vadd.f32 0.0, %v1351
      %v1353 = vpop.f32.mrb[0].mxu0
      %1354 = vmatprep.mubr.f32.mxu0 %v871
      %1355 = vmatmul.mubr.f32.gmra.mrb[0].mxu0 %v870
      %v1356 = vpop.f32.mrb[0].mxu0
      %v1357 = vadd.f32 0.0, %v1356
      %v1358 = vpop.f32.mrb[0].mxu0
      %1359 = vmatprep.mubr.f32.mxu0 %v880
      %1360 = vmatmul.mubr.f32.gmra.mrb[0].mxu0 %v879
      %v1361 = vpop.f32.mrb[0].mxu0
      %v1362 = vadd.f32 0.0, %v1361
      %v1363 = vpop.f32.mrb[0].mxu0
      %1364 = vmatprep.mubr.f32.mxu0 %v889
      %1365 = vmatmul.mubr.f32.gmra.mrb[0].mxu0 %v888
      %v1366 = vpop.f32.mrb[0].mxu0
      %v1367 = vadd.f32 0.0, %v1366
      %v1368 = vpop.f32.mrb[0].mxu0
      %1369 = vmatprep.mubr.f32.mxu0 %v898
      %1370 = vmatmul.mubr.f32.gmra.mrb[0].mxu0 %v897
      %v1371 = vpop.f32.mrb[0].mxu0
      %v1372 = vadd.f32 0.0, %v1371
      %v1373 = vpop.f32.mrb[0].mxu0
      %1374 = vmatprep.mubr.f32.mxu0 %v907
      %1375 = vmatmul.mubr.f32.gmra.mrb[0].mxu0 %v906
      %v1376 = vpop.f32.mrb[0].mxu0
      %v1377 = vadd.f32 0.0, %v1376
      %v1378 = vpop.f32.mrb[0].mxu0
      %1379 = vmatprep.mubr.f32.mxu0 %v916
      %1380 = vmatmul.mubr.f32.gmra.mrb[0].mxu0 %v915
      %v1381 = vpop.f32.mrb[0].mxu0
      %v1382 = vadd.f32 0.0, %v1381
      %v1383 = vpop.f32.mrb[0].mxu0
      %1384 = vmatprep.mubr.f32.mxu0 %v925
      %1385 = vmatmul.mubr.f32.gmra.mrb[0].mxu0 %v924
      %v1386 = vpop.f32.mrb[0].mxu0
      %v1387 = vadd.f32 0.0, %v1386
      %v1388 = vpop.f32.mrb[0].mxu0
      %1389 = vmatprep.mubr.f32.mxu0 %v934
      %1390 = vmatmul.mubr.f32.gmra.mrb[0].mxu0 %v933
      %v1391 = vpop.f32.mrb[0].mxu0
      %v1392 = vadd.f32 0.0, %v1391
      %v1393 = vpop.f32.mrb[0].mxu0
      %1394 = vmatprep.mubr.f32.mxu0 %v943
      %1395 = vmatmul.mubr.f32.gmra.mrb[0].mxu0 %v942
      %v1396 = vpop.f32.mrb[0].mxu0
      %v1397 = vadd.f32 0.0, %v1396
      %v1398 = vpop.f32.mrb[0].mxu0
      %1399 = vmatprep.mubr.f32.mxu0 %v952
      %1400 = vmatmul.mubr.f32.gmra.mrb[0].mxu0 %v951
      %v1401 = vpop.f32.mrb[0].mxu0
      %v1402 = vadd.f32 0.0, %v1401
      %v1403 = vpop.f32.mrb[0].mxu0
      %1404 = vmatprep.mubr.f32.mxu0 %v961
      %1405 = vmatmul.mubr.f32.gmra.mrb[0].mxu0 %v960
      %v1406 = vpop.f32.mrb[0].mxu0
      %v1407 = vadd.f32 0.0, %v1406
      %v1408 = vpop.f32.mrb[0].mxu0
      %1409 = vmatprep.mubr.f32.mxu0 %v970
      %1410 = vmatmul.mubr.f32.gmra.mrb[0].mxu0 %v969
      %v1411 = vpop.f32.mrb[0].mxu0
      %v1412 = vadd.f32 0.0, %v1411
      %v1413 = vpop.f32.mrb[0].mxu0
      %1414 = vmatprep.mubr.f32.mxu0 %v979
      %1415 = vmatmul.mubr.f32.gmra.mrb[0].mxu0 %v978
      %v1416 = vpop.f32.mrb[0].mxu0
      %v1417 = vadd.f32 0.0, %v1416
      %v1418 = vpop.f32.mrb[0].mxu0
      %1419 = vmatprep.mubr.f32.mxu0 %v988
      %1420 = vmatmul.mubr.f32.gmra.mrb[0].mxu0 %v987
      %v1421 = vpop.f32.mrb[0].mxu0
      %v1422 = vadd.f32 0.0, %v1421
      %v1423 = vpop.f32.mrb[0].mxu0
      %1424 = vmatprep.mubr.f32.mxu0 %v997
      %1425 = vmatmul.mubr.f32.gmra.mrb[0].mxu0 %v996
      %v1426 = vpop.f32.mrb[0].mxu0
      %v1427 = vadd.f32 0.0, %v1426
      %v1428 = vpop.f32.mrb[0].mxu0
      %1429 = vmatprep.mubr.f32.mxu0 %v1006
      %1430 = vmatmul.mubr.f32.gmra.mrb[0].mxu0 %v1005
      %v1431 = vpop.f32.mrb[0].mxu0
      %v1432 = vadd.f32 0.0, %v1431
      %v1433 = vpop.f32.mrb[0].mxu0
      %1434 = vmatprep.mubr.f32.mxu0 %v1015
      %1435 = vmatmul.mubr.f32.gmra.mrb[0].mxu0 %v1014
      %v1436 = vpop.f32.mrb[0].mxu0
      %v1437 = vadd.f32 0.0, %v1436
      %v1438 = vpop.f32.mrb[0].mxu0
      %1439 = vmatprep.mubr.f32.mxu0 %v1024
      %1440 = vmatmul.mubr.f32.gmra.mrb[0].mxu0 %v1023
      %v1441 = vpop.f32.mrb[0].mxu0
      %v1442 = vadd.f32 0.0, %v1441
      %v1443 = vpop.f32.mrb[0].mxu0
      %1444 = vmatprep.mubr.f32.mxu0 %v1033
      %1445 = vmatmul.mubr.f32.gmra.mrb[0].mxu0 %v1032
      %v1446 = vpop.f32.mrb[0].mxu0
      %v1447 = vadd.f32 0.0, %v1446
      %v1448 = vpop.f32.mrb[0].mxu0
      %1449 = vmatprep.mubr.f32.mxu0 %v1042
      %1450 = vmatmul.mubr.f32.gmra.mrb[0].mxu0 %v1041
      %v1451 = vpop.f32.mrb[0].mxu0
      %v1452 = vadd.f32 0.0, %v1451
      %v1453 = vpop.f32.mrb[0].mxu0
      %1454 = vmatprep.mubr.f32.mxu0 %v1051
      %1455 = vmatmul.mubr.f32.gmra.mrb[0].mxu0 %v1050
      %v1456 = vpop.f32.mrb[0].mxu0
      %v1457 = vadd.f32 0.0, %v1456
      %v1458 = vpop.f32.mrb[0].mxu0
      %1459 = vmatprep.mubr.f32.mxu0 %v1060
      %1460 = vmatmul.mubr.f32.gmra.mrb[0].mxu0 %v1059
      %v1461 = vpop.f32.mrb[0].mxu0
      %v1462 = vadd.f32 0.0, %v1461
      %v1463 = vpop.f32.mrb[0].mxu0
      %1464 = vmatprep.mubr.f32.mxu0 %v1069
      %1465 = vmatmul.mubr.f32.gmra.mrb[0].mxu0 %v1068
      %v1466 = vpop.f32.mrb[0].mxu0
      %v1467 = vadd.f32 0.0, %v1466
      %v1468 = vpop.f32.mrb[0].mxu0
      %1469 = vmatprep.mubr.f32.mxu0 %v1078
      %1470 = vmatmul.mubr.f32.gmra.mrb[0].mxu0 %v1077
      %v1471 = vpop.f32.mrb[0].mxu0
      %v1472 = vadd.f32 0.0, %v1471
      %v1473 = vpop.f32.mrb[0].mxu0
      %1474 = vmatprep.mubr.f32.mxu0 %v1087
      %1475 = vmatmul.mubr.f32.gmra.mrb[0].mxu0 %v1086
      %v1476 = vpop.f32.mrb[0].mxu0
      %v1477 = vadd.f32 0.0, %v1476
      %v1478 = vpop.f32.mrb[0].mxu0
      %1479 = vmatprep.mubr.f32.mxu0 %v1096
      %1480 = vmatmul.mubr.f32.gmra.mrb[0].mxu0 %v1095
      %v1481 = vpop.f32.mrb[0].mxu0
      %v1482 = vadd.f32 0.0, %v1481
      %v1483 = vpop.f32.mrb[0].mxu0
      %1484 = vmatprep.mubr.f32.mxu0 %v1105
      %1485 = vmatmul.mubr.f32.gmra.mrb[0].mxu0 %v1104
      %v1486 = vpop.f32.mrb[0].mxu0
      %v1487 = vadd.f32 0.0, %v1486
      %v1488 = vpop.f32.mrb[0].mxu0
      %1489 = vmatprep.mubr.f32.mxu0 %v1114
      %1490 = vmatmul.mubr.f32.gmra.mrb[0].mxu0 %v1113
      %v1491 = vpop.f32.mrb[0].mxu0
      %v1492 = vadd.f32 0.0, %v1491
      %v1493 = vpop.f32.mrb[0].mxu0
      %1494 = vmatprep.mubr.f32.mxu0 %v1123
      %1495 = vmatmul.mubr.f32.gmra.mrb[0].mxu0 %v1122
      %v1496 = vpop.f32.mrb[0].mxu0
      %v1497 = vadd.f32 0.0, %v1496
      %v1498 = vpop.f32.mrb[0].mxu0
      %1499 = vdwg.mxu0
      %1500 = vmatprep.subr.mxu0 0.0
      %1501 = vmatpush1.msra.mxu0 %v1163
      %1502 = vmatprep.subr.mxu0 0.0
      %1503 = vmatpush1.msra.mxu0 %v1164
      %1504 = vmatprep.subr.mxu0 0.0
      %1505 = vmatpush1.msra.mxu0 %v1165
      %1506 = vmatprep.subr.mxu0 0.0
      %1507 = vmatpush1.msra.mxu0 %v1166
      %1508 = vmatprep.subr.mxu0 0.0
      %1509 = vmatpush1.msra.mxu0 %v1167
      %1510 = vmatprep.subr.mxu0 0.0
      %1511 = vmatpush1.msra.mxu0 %v1168
      %1512 = vmatprep.subr.mxu0 0.0
      %1513 = vmatpush1.msra.mxu0 %v1169
      %1514 = vmatprep.subr.mxu0 0.0
      %1515 = vmatpush1.msra.mxu0 %v1170
      %1516 = vmatprep.subr.mxu0 0.0
      %1517 = vmatpush1.msra.mxu0 %v1171
      %1518 = vmatprep.subr.mxu0 0.0
      %1519 = vmatpush1.msra.mxu0 %v1172
      %1520 = vmatprep.subr.mxu0 0.0
      %1521 = vmatpush1.msra.mxu0 %v1173
      %1522 = vmatprep.subr.mxu0 0.0
      %1523 = vmatpush1.msra.mxu0 %v1174
      %1524 = vmatprep.subr.mxu0 0.0
      %1525 = vmatpush1.msra.mxu0 %v1175
      %1526 = vmatprep.subr.mxu0 0.0
      %1527 = vmatpush1.msra.mxu0 %v1176
      %1528 = vmatprep.subr.mxu0 0.0
      %1529 = vmatpush1.msra.mxu0 %v1177
      %1530 = vmatprep.subr.mxu0 0.0
      %1531 = vmatpush1.msra.mxu0 %v1178
      %1532 = vmatprep.subr.mxu0 0.0
      %1533 = vmatpush1.msra.mxu0 %v1179
      %1534 = vmatprep.subr.mxu0 0.0
      %1535 = vmatpush1.msra.mxu0 %v1180
      %1536 = vmatprep.subr.mxu0 0.0
      %1537 = vmatpush1.msra.mxu0 %v1181
      %1538 = vmatprep.subr.mxu0 0.0
      %1539 = vmatpush1.msra.mxu0 %v1182
      %1540 = vmatprep.subr.mxu0 0.0
      %1541 = vmatpush1.msra.mxu0 %v1183
      %1542 = vmatprep.subr.mxu0 0.0
      %1543 = vmatpush1.msra.mxu0 %v1184
      %1544 = vmatprep.subr.mxu0 0.0
      %1545 = vmatpush1.msra.mxu0 %v1185
      %1546 = vmatprep.subr.mxu0 0.0
      %1547 = vmatpush1.msra.mxu0 %v1186
      %1548 = vmatprep.subr.mxu0 0.0
      %1549 = vmatpush1.msra.mxu0 %v1187
      %1550 = vmatprep.subr.mxu0 0.0
      %1551 = vmatpush1.msra.mxu0 %v1188
      %1552 = vmatprep.subr.mxu0 0.0
      %1553 = vmatpush1.msra.mxu0 %v1189
      %1554 = vmatprep.subr.mxu0 0.0
      %1555 = vmatpush1.msra.mxu0 %v1190
      %1556 = vmatprep.subr.mxu0 0.0
      %1557 = vmatpush1.msra.mxu0 %v1191
      %1558 = vmatprep.subr.mxu0 0.0
      %1559 = vmatpush1.msra.mxu0 %v1192
      %1560 = vmatprep.subr.mxu0 0.0
      %1561 = vmatpush1.msra.mxu0 %v1193
      %1562 = vmatprep.subr.mxu0 0.0
      %1563 = vmatpush1.msra.mxu0 %v1194
      %1564 = vmatprep.mubr.f32.mxu0 %v846
      %1565 = vmatmul.mubr.f32.gmra.mrb[0].mxu0 %v845
      %v1566 = vpop.f32.mrb[0].mxu0
      %v1567 = vadd.f32 %v1342, %v1566
      %v1568 = vpop.f32.mrb[0].mxu0
      %1569 = vmatprep.mubr.f32.mxu0 %v855
      %1570 = vmatmul.mubr.f32.gmra.mrb[0].mxu0 %v854
      %v1571 = vpop.f32.mrb[0].mxu0
      %v1572 = vadd.f32 %v1347, %v1571
      %v1573 = vpop.f32.mrb[0].mxu0
      %1574 = vmatprep.mubr.f32.mxu0 %v864
      %1575 = vmatmul.mubr.f32.gmra.mrb[0].mxu0 %v863
      %v1576 = vpop.f32.mrb[0].mxu0
      %v1577 = vadd.f32 %v1352, %v1576
      %v1578 = vpop.f32.mrb[0].mxu0
      %1579 = vmatprep.mubr.f32.mxu0 %v873
      %1580 = vmatmul.mubr.f32.gmra.mrb[0].mxu0 %v872
      %v1581 = vpop.f32.mrb[0].mxu0
      %v1582 = vadd.f32 %v1357, %v1581
      %v1583 = vpop.f32.mrb[0].mxu0
      %1584 = vmatprep.mubr.f32.mxu0 %v882
      %1585 = vmatmul.mubr.f32.gmra.mrb[0].mxu0 %v881
      %v1586 = vpop.f32.mrb[0].mxu0
      %v1587 = vadd.f32 %v1362, %v1586
      %v1588 = vpop.f32.mrb[0].mxu0
      %1589 = vmatprep.mubr.f32.mxu0 %v891
      %1590 = vmatmul.mubr.f32.gmra.mrb[0].mxu0 %v890
      %v1591 = vpop.f32.mrb[0].mxu0
      %v1592 = vadd.f32 %v1367, %v1591
      %v1593 = vpop.f32.mrb[0].mxu0
      %1594 = vmatprep.mubr.f32.mxu0 %v900
      %1595 = vmatmul.mubr.f32.gmra.mrb[0].mxu0 %v899
      %v1596 = vpop.f32.mrb[0].mxu0
      %v1597 = vadd.f32 %v1372, %v1596
      %v1598 = vpop.f32.mrb[0].mxu0
      %1599 = vmatprep.mubr.f32.mxu0 %v909
      %1600 = vmatmul.mubr.f32.gmra.mrb[0].mxu0 %v908
      %v1601 = vpop.f32.mrb[0].mxu0
      %v1602 = vadd.f32 %v1377, %v1601
      %v1603 = vpop.f32.mrb[0].mxu0
      %1604 = vmatprep.mubr.f32.mxu0 %v918
      %1605 = vmatmul.mubr.f32.gmra.mrb[0].mxu0 %v917
      %v1606 = vpop.f32.mrb[0].mxu0
      %v1607 = vadd.f32 %v1382, %v1606
      %v1608 = vpop.f32.mrb[0].mxu0
      %1609 = vmatprep.mubr.f32.mxu0 %v927
      %1610 = vmatmul.mubr.f32.gmra.mrb[0].mxu0 %v926
      %v1611 = vpop.f32.mrb[0].mxu0
      %v1612 = vadd.f32 %v1387, %v1611
      %v1613 = vpop.f32.mrb[0].mxu0
      %1614 = vmatprep.mubr.f32.mxu0 %v936
      %1615 = vmatmul.mubr.f32.gmra.mrb[0].mxu0 %v935
      %v1616 = vpop.f32.mrb[0].mxu0
      %v1617 = vadd.f32 %v1392, %v1616
      %v1618 = vpop.f32.mrb[0].mxu0
      %1619 = vmatprep.mubr.f32.mxu0 %v945
      %1620 = vmatmul.mubr.f32.gmra.mrb[0].mxu0 %v944
      %v1621 = vpop.f32.mrb[0].mxu0
      %v1622 = vadd.f32 %v1397, %v1621
      %v1623 = vpop.f32.mrb[0].mxu0
      %1624 = vmatprep.mubr.f32.mxu0 %v954
      %1625 = vmatmul.mubr.f32.gmra.mrb[0].mxu0 %v953
      %v1626 = vpop.f32.mrb[0].mxu0
      %v1627 = vadd.f32 %v1402, %v1626
      %v1628 = vpop.f32.mrb[0].mxu0
      %1629 = vmatprep.mubr.f32.mxu0 %v963
      %1630 = vmatmul.mubr.f32.gmra.mrb[0].mxu0 %v962
      %v1631 = vpop.f32.mrb[0].mxu0
      %v1632 = vadd.f32 %v1407, %v1631
      %v1633 = vpop.f32.mrb[0].mxu0
      %1634 = vmatprep.mubr.f32.mxu0 %v972
      %1635 = vmatmul.mubr.f32.gmra.mrb[0].mxu0 %v971
      %v1636 = vpop.f32.mrb[0].mxu0
      %v1637 = vadd.f32 %v1412, %v1636
      %v1638 = vpop.f32.mrb[0].mxu0
      %1639 = vmatprep.mubr.f32.mxu0 %v981
      %1640 = vmatmul.mubr.f32.gmra.mrb[0].mxu0 %v980
      %v1641 = vpop.f32.mrb[0].mxu0
      %v1642 = vadd.f32 %v1417, %v1641
      %v1643 = vpop.f32.mrb[0].mxu0
      %1644 = vmatprep.mubr.f32.mxu0 %v990
      %1645 = vmatmul.mubr.f32.gmra.mrb[0].mxu0 %v989
      %v1646 = vpop.f32.mrb[0].mxu0
      %v1647 = vadd.f32 %v1422, %v1646
      %v1648 = vpop.f32.mrb[0].mxu0
      %1649 = vmatprep.mubr.f32.mxu0 %v999
      %1650 = vmatmul.mubr.f32.gmra.mrb[0].mxu0 %v998
      %v1651 = vpop.f32.mrb[0].mxu0
      %v1652 = vadd.f32 %v1427, %v1651
      %v1653 = vpop.f32.mrb[0].mxu0
      %1654 = vmatprep.mubr.f32.mxu0 %v1008
      %1655 = vmatmul.mubr.f32.gmra.mrb[0].mxu0 %v1007
      %v1656 = vpop.f32.mrb[0].mxu0
      %v1657 = vadd.f32 %v1432, %v1656
      %v1658 = vpop.f32.mrb[0].mxu0
      %1659 = vmatprep.mubr.f32.mxu0 %v1017
      %1660 = vmatmul.mubr.f32.gmra.mrb[0].mxu0 %v1016
      %v1661 = vpop.f32.mrb[0].mxu0
      %v1662 = vadd.f32 %v1437, %v1661
      %v1663 = vpop.f32.mrb[0].mxu0
      %1664 = vmatprep.mubr.f32.mxu0 %v1026
      %1665 = vmatmul.mubr.f32.gmra.mrb[0].mxu0 %v1025
      %v1666 = vpop.f32.mrb[0].mxu0
      %v1667 = vadd.f32 %v1442, %v1666
      %v1668 = vpop.f32.mrb[0].mxu0
      %1669 = vmatprep.mubr.f32.mxu0 %v1035
      %1670 = vmatmul.mubr.f32.gmra.mrb[0].mxu0 %v1034
      %v1671 = vpop.f32.mrb[0].mxu0
      %v1672 = vadd.f32 %v1447, %v1671
      %v1673 = vpop.f32.mrb[0].mxu0
      %1674 = vmatprep.mubr.f32.mxu0 %v1044
      %1675 = vmatmul.mubr.f32.gmra.mrb[0].mxu0 %v1043
      %v1676 = vpop.f32.mrb[0].mxu0
      %v1677 = vadd.f32 %v1452, %v1676
      %v1678 = vpop.f32.mrb[0].mxu0
      %1679 = vmatprep.mubr.f32.mxu0 %v1053
      %1680 = vmatmul.mubr.f32.gmra.mrb[0].mxu0 %v1052
      %v1681 = vpop.f32.mrb[0].mxu0
      %v1682 = vadd.f32 %v1457, %v1681
      %v1683 = vpop.f32.mrb[0].mxu0
      %1684 = vmatprep.mubr.f32.mxu0 %v1062
      %1685 = vmatmul.mubr.f32.gmra.mrb[0].mxu0 %v1061
      %v1686 = vpop.f32.mrb[0].mxu0
      %v1687 = vadd.f32 %v1462, %v1686
      %v1688 = vpop.f32.mrb[0].mxu0
      %1689 = vmatprep.mubr.f32.mxu0 %v1071
      %1690 = vmatmul.mubr.f32.gmra.mrb[0].mxu0 %v1070
      %v1691 = vpop.f32.mrb[0].mxu0
      %v1692 = vadd.f32 %v1467, %v1691
      %v1693 = vpop.f32.mrb[0].mxu0
      %1694 = vmatprep.mubr.f32.mxu0 %v1080
      %1695 = vmatmul.mubr.f32.gmra.mrb[0].mxu0 %v1079
      %v1696 = vpop.f32.mrb[0].mxu0
      %v1697 = vadd.f32 %v1472, %v1696
      %v1698 = vpop.f32.mrb[0].mxu0
      %1699 = vmatprep.mubr.f32.mxu0 %v1089
      %1700 = vmatmul.mubr.f32.gmra.mrb[0].mxu0 %v1088
      %v1701 = vpop.f32.mrb[0].mxu0
      %v1702 = vadd.f32 %v1477, %v1701
      %v1703 = vpop.f32.mrb[0].mxu0
      %1704 = vmatprep.mubr.f32.mxu0 %v1098
      %1705 = vmatmul.mubr.f32.gmra.mrb[0].mxu0 %v1097
      %v1706 = vpop.f32.mrb[0].mxu0
      %v1707 = vadd.f32 %v1482, %v1706
      %v1708 = vpop.f32.mrb[0].mxu0
      %1709 = vmatprep.mubr.f32.mxu0 %v1107
      %1710 = vmatmul.mubr.f32.gmra.mrb[0].mxu0 %v1106
      %v1711 = vpop.f32.mrb[0].mxu0
      %v1712 = vadd.f32 %v1487, %v1711
      %v1713 = vpop.f32.mrb[0].mxu0
      %1714 = vmatprep.mubr.f32.mxu0 %v1116
      %1715 = vmatmul.mubr.f32.gmra.mrb[0].mxu0 %v1115
      %v1716 = vpop.f32.mrb[0].mxu0
      %v1717 = vadd.f32 %v1492, %v1716
      %v1718 = vpop.f32.mrb[0].mxu0
      %1719 = vmatprep.mubr.f32.mxu0 %v1125
      %1720 = vmatmul.mubr.f32.gmra.mrb[0].mxu0 %v1124
      %v1721 = vpop.f32.mrb[0].mxu0
      %v1722 = vadd.f32 %v1497, %v1721
      %v1723 = vpop.f32.mrb[0].mxu0
      %1724 = vdwg.mxu0
      %1725 = vmatprep.subr.mxu0 0.0
      %1726 = vmatpush1.msra.mxu0 %v1195
      %1727 = vmatprep.subr.mxu0 0.0
      %1728 = vmatpush1.msra.mxu0 %v1196
      %1729 = vmatprep.subr.mxu0 0.0
      %1730 = vmatpush1.msra.mxu0 %v1197
      %1731 = vmatprep.subr.mxu0 0.0
      %1732 = vmatpush1.msra.mxu0 %v1198
      %1733 = vmatprep.subr.mxu0 0.0
      %1734 = vmatpush1.msra.mxu0 %v1199
      %1735 = vmatprep.subr.mxu0 0.0
      %1736 = vmatpush1.msra.mxu0 %v1200
      %1737 = vmatprep.subr.mxu0 0.0
      %1738 = vmatpush1.msra.mxu0 %v1201
      %1739 = vmatprep.subr.mxu0 0.0
      %1740 = vmatpush1.msra.mxu0 %v1202
      %1741 = vmatprep.subr.mxu0 0.0
      %1742 = vmatpush1.msra.mxu0 %v1203
      %1743 = vmatprep.subr.mxu0 0.0
      %1744 = vmatpush1.msra.mxu0 %v1204
      %1745 = vmatprep.subr.mxu0 0.0
      %1746 = vmatpush1.msra.mxu0 %v1205
      %1747 = vmatprep.subr.mxu0 0.0
      %1748 = vmatpush1.msra.mxu0 %v1206
      %1749 = vmatprep.subr.mxu0 0.0
      %1750 = vmatpush1.msra.mxu0 %v1207
      %1751 = vmatprep.subr.mxu0 0.0
      %1752 = vmatpush1.msra.mxu0 %v1208
      %1753 = vmatprep.subr.mxu0 0.0
      %1754 = vmatpush1.msra.mxu0 %v1209
      %1755 = vmatprep.subr.mxu0 0.0
      %1756 = vmatpush1.msra.mxu0 %v1210
      %1757 = vmatprep.subr.mxu0 0.0
      %1758 = vmatpush1.msra.mxu0 %v1211
      %1759 = vmatprep.subr.mxu0 0.0
      %1760 = vmatpush1.msra.mxu0 %v1212
      %1761 = vmatprep.subr.mxu0 0.0
      %1762 = vmatpush1.msra.mxu0 %v1213
      %1763 = vmatprep.subr.mxu0 0.0
      %1764 = vmatpush1.msra.mxu0 %v1214
      %1765 = vmatprep.subr.mxu0 0.0
      %1766 = vmatpush1.msra.mxu0 %v1215
      %1767 = vmatprep.subr.mxu0 0.0
      %1768 = vmatpush1.msra.mxu0 %v1216
      %1769 = vmatprep.subr.mxu0 0.0
      %1770 = vmatpush1.msra.mxu0 %v1217
      %1771 = vmatprep.subr.mxu0 0.0
      %1772 = vmatpush1.msra.mxu0 %v1218
      %1773 = vmatprep.subr.mxu0 0.0
      %1774 = vmatpush1.msra.mxu0 %v1219
      %1775 = vmatprep.subr.mxu0 0.0
      %1776 = vmatpush1.msra.mxu0 %v1220
      %1777 = vmatprep.subr.mxu0 0.0
      %1778 = vmatpush1.msra.mxu0 %v1221
      %1779 = vmatprep.subr.mxu0 0.0
      %1780 = vmatpush1.msra.mxu0 %v1222
      %1781 = vmatprep.subr.mxu0 0.0
      %1782 = vmatpush1.msra.mxu0 %v1223
      %1783 = vmatprep.subr.mxu0 0.0
      %1784 = vmatpush1.msra.mxu0 %v1224
      %1785 = vmatprep.subr.mxu0 0.0
      %1786 = vmatpush1.msra.mxu0 %v1225
      %1787 = vmatprep.subr.mxu0 0.0
      %1788 = vmatpush1.msra.mxu0 %v1226
      %1789 = vmatprep.mubr.f32.mxu0 %v848
      %1790 = vmatmul.mubr.f32.gmra.mrb[0].mxu0 %v847
      %v1791 = vpop.f32.mrb[0].mxu0
      %v1792 = vadd.f32 %v1567, %v1791
      %v1793 = vpop.f32.mrb[0].mxu0
      %1794 = vmatprep.mubr.f32.mxu0 %v857
      %1795 = vmatmul.mubr.f32.gmra.mrb[0].mxu0 %v856
      %v1796 = vpop.f32.mrb[0].mxu0
      %v1797 = vadd.f32 %v1572, %v1796
      %v1798 = vpop.f32.mrb[0].mxu0
      %1799 = vmatprep.mubr.f32.mxu0 %v866
      %1800 = vmatmul.mubr.f32.gmra.mrb[0].mxu0 %v865
      %v1801 = vpop.f32.mrb[0].mxu0
      %v1802 = vadd.f32 %v1577, %v1801
      %v1803 = vpop.f32.mrb[0].mxu0
      %1804 = vmatprep.mubr.f32.mxu0 %v875
      %1805 = vmatmul.mubr.f32.gmra.mrb[0].mxu0 %v874
      %v1806 = vpop.f32.mrb[0].mxu0
      %v1807 = vadd.f32 %v1582, %v1806
      %v1808 = vpop.f32.mrb[0].mxu0
      %1809 = vmatprep.mubr.f32.mxu0 %v884
      %1810 = vmatmul.mubr.f32.gmra.mrb[0].mxu0 %v883
      %v1811 = vpop.f32.mrb[0].mxu0
      %v1812 = vadd.f32 %v1587, %v1811
      %v1813 = vpop.f32.mrb[0].mxu0
      %1814 = vmatprep.mubr.f32.mxu0 %v893
      %1815 = vmatmul.mubr.f32.gmra.mrb[0].mxu0 %v892
      %v1816 = vpop.f32.mrb[0].mxu0
      %v1817 = vadd.f32 %v1592, %v1816
      %v1818 = vpop.f32.mrb[0].mxu0
      %1819 = vmatprep.mubr.f32.mxu0 %v902
      %1820 = vmatmul.mubr.f32.gmra.mrb[0].mxu0 %v901
      %v1821 = vpop.f32.mrb[0].mxu0
      %v1822 = vadd.f32 %v1597, %v1821
      %v1823 = vpop.f32.mrb[0].mxu0
      %1824 = vmatprep.mubr.f32.mxu0 %v911
      %1825 = vmatmul.mubr.f32.gmra.mrb[0].mxu0 %v910
      %v1826 = vpop.f32.mrb[0].mxu0
      %v1827 = vadd.f32 %v1602, %v1826
      %v1828 = vpop.f32.mrb[0].mxu0
      %1829 = vmatprep.mubr.f32.mxu0 %v920
      %1830 = vmatmul.mubr.f32.gmra.mrb[0].mxu0 %v919
      %v1831 = vpop.f32.mrb[0].mxu0
      %v1832 = vadd.f32 %v1607, %v1831
      %v1833 = vpop.f32.mrb[0].mxu0
      %1834 = vmatprep.mubr.f32.mxu0 %v929
      %1835 = vmatmul.mubr.f32.gmra.mrb[0].mxu0 %v928
      %v1836 = vpop.f32.mrb[0].mxu0
      %v1837 = vadd.f32 %v1612, %v1836
      %v1838 = vpop.f32.mrb[0].mxu0
      %1839 = vmatprep.mubr.f32.mxu0 %v938
      %1840 = vmatmul.mubr.f32.gmra.mrb[0].mxu0 %v937
      %v1841 = vpop.f32.mrb[0].mxu0
      %v1842 = vadd.f32 %v1617, %v1841
      %v1843 = vpop.f32.mrb[0].mxu0
      %1844 = vmatprep.mubr.f32.mxu0 %v947
      %1845 = vmatmul.mubr.f32.gmra.mrb[0].mxu0 %v946
      %v1846 = vpop.f32.mrb[0].mxu0
      %v1847 = vadd.f32 %v1622, %v1846
      %v1848 = vpop.f32.mrb[0].mxu0
      %1849 = vmatprep.mubr.f32.mxu0 %v956
      %1850 = vmatmul.mubr.f32.gmra.mrb[0].mxu0 %v955
      %v1851 = vpop.f32.mrb[0].mxu0
      %v1852 = vadd.f32 %v1627, %v1851
      %v1853 = vpop.f32.mrb[0].mxu0
      %1854 = vmatprep.mubr.f32.mxu0 %v965
      %1855 = vmatmul.mubr.f32.gmra.mrb[0].mxu0 %v964
      %v1856 = vpop.f32.mrb[0].mxu0
      %v1857 = vadd.f32 %v1632, %v1856
      %v1858 = vpop.f32.mrb[0].mxu0
      %1859 = vmatprep.mubr.f32.mxu0 %v974
      %1860 = vmatmul.mubr.f32.gmra.mrb[0].mxu0 %v973
      %v1861 = vpop.f32.mrb[0].mxu0
      %v1862 = vadd.f32 %v1637, %v1861
      %v1863 = vpop.f32.mrb[0].mxu0
      %1864 = vmatprep.mubr.f32.mxu0 %v983
      %1865 = vmatmul.mubr.f32.gmra.mrb[0].mxu0 %v982
      %v1866 = vpop.f32.mrb[0].mxu0
      %v1867 = vadd.f32 %v1642, %v1866
      %v1868 = vpop.f32.mrb[0].mxu0
      %1869 = vmatprep.mubr.f32.mxu0 %v992
      %1870 = vmatmul.mubr.f32.gmra.mrb[0].mxu0 %v991
      %v1871 = vpop.f32.mrb[0].mxu0
      %v1872 = vadd.f32 %v1647, %v1871
      %v1873 = vpop.f32.mrb[0].mxu0
      %1874 = vmatprep.mubr.f32.mxu0 %v1001
      %1875 = vmatmul.mubr.f32.gmra.mrb[0].mxu0 %v1000
      %v1876 = vpop.f32.mrb[0].mxu0
      %v1877 = vadd.f32 %v1652, %v1876
      %v1878 = vpop.f32.mrb[0].mxu0
      %1879 = vmatprep.mubr.f32.mxu0 %v1010
      %1880 = vmatmul.mubr.f32.gmra.mrb[0].mxu0 %v1009
      %v1881 = vpop.f32.mrb[0].mxu0
      %v1882 = vadd.f32 %v1657, %v1881
      %v1883 = vpop.f32.mrb[0].mxu0
      %1884 = vmatprep.mubr.f32.mxu0 %v1019
      %1885 = vmatmul.mubr.f32.gmra.mrb[0].mxu0 %v1018
      %v1886 = vpop.f32.mrb[0].mxu0
      %v1887 = vadd.f32 %v1662, %v1886
      %v1888 = vpop.f32.mrb[0].mxu0
      %1889 = vmatprep.mubr.f32.mxu0 %v1028
      %1890 = vmatmul.mubr.f32.gmra.mrb[0].mxu0 %v1027
      %v1891 = vpop.f32.mrb[0].mxu0
      %v1892 = vadd.f32 %v1667, %v1891
      %v1893 = vpop.f32.mrb[0].mxu0
      %1894 = vmatprep.mubr.f32.mxu0 %v1037
      %1895 = vmatmul.mubr.f32.gmra.mrb[0].mxu0 %v1036
      %v1896 = vpop.f32.mrb[0].mxu0
      %v1897 = vadd.f32 %v1672, %v1896
      %v1898 = vpop.f32.mrb[0].mxu0
      %1899 = vmatprep.mubr.f32.mxu0 %v1046
      %1900 = vmatmul.mubr.f32.gmra.mrb[0].mxu0 %v1045
      %v1901 = vpop.f32.mrb[0].mxu0
      %v1902 = vadd.f32 %v1677, %v1901
      %v1903 = vpop.f32.mrb[0].mxu0
      %1904 = vmatprep.mubr.f32.mxu0 %v1055
      %1905 = vmatmul.mubr.f32.gmra.mrb[0].mxu0 %v1054
      %v1906 = vpop.f32.mrb[0].mxu0
      %v1907 = vadd.f32 %v1682, %v1906
      %v1908 = vpop.f32.mrb[0].mxu0
      %1909 = vmatprep.mubr.f32.mxu0 %v1064
      %1910 = vmatmul.mubr.f32.gmra.mrb[0].mxu0 %v1063
      %v1911 = vpop.f32.mrb[0].mxu0
      %v1912 = vadd.f32 %v1687, %v1911
      %v1913 = vpop.f32.mrb[0].mxu0
      %1914 = vmatprep.mubr.f32.mxu0 %v1073
      %1915 = vmatmul.mubr.f32.gmra.mrb[0].mxu0 %v1072
      %v1916 = vpop.f32.mrb[0].mxu0
      %v1917 = vadd.f32 %v1692, %v1916
      %v1918 = vpop.f32.mrb[0].mxu0
      %1919 = vmatprep.mubr.f32.mxu0 %v1082
      %1920 = vmatmul.mubr.f32.gmra.mrb[0].mxu0 %v1081
      %v1921 = vpop.f32.mrb[0].mxu0
      %v1922 = vadd.f32 %v1697, %v1921
      %v1923 = vpop.f32.mrb[0].mxu0
      %1924 = vmatprep.mubr.f32.mxu0 %v1091
      %1925 = vmatmul.mubr.f32.gmra.mrb[0].mxu0 %v1090
      %v1926 = vpop.f32.mrb[0].mxu0
      %v1927 = vadd.f32 %v1702, %v1926
      %v1928 = vpop.f32.mrb[0].mxu0
      %1929 = vmatprep.mubr.f32.mxu0 %v1100
      %1930 = vmatmul.mubr.f32.gmra.mrb[0].mxu0 %v1099
      %v1931 = vpop.f32.mrb[0].mxu0
      %v1932 = vadd.f32 %v1707, %v1931
      %v1933 = vpop.f32.mrb[0].mxu0
      %1934 = vmatprep.mubr.f32.mxu0 %v1109
      %1935 = vmatmul.mubr.f32.gmra.mrb[0].mxu0 %v1108
      %v1936 = vpop.f32.mrb[0].mxu0
      %v1937 = vadd.f32 %v1712, %v1936
      %v1938 = vpop.f32.mrb[0].mxu0
      %1939 = vmatprep.mubr.f32.mxu0 %v1118
      %1940 = vmatmul.mubr.f32.gmra.mrb[0].mxu0 %v1117
      %v1941 = vpop.f32.mrb[0].mxu0
      %v1942 = vadd.f32 %v1717, %v1941
      %v1943 = vpop.f32.mrb[0].mxu0
      %1944 = vmatprep.mubr.f32.mxu0 %v1127
      %1945 = vmatmul.mubr.f32.gmra.mrb[0].mxu0 %v1126
      %v1946 = vpop.f32.mrb[0].mxu0
      %v1947 = vadd.f32 %v1722, %v1946
      %v1948 = vpop.f32.mrb[0].mxu0
      %1949 = vdwg.mxu0
      %1950 = vmatprep.subr.mxu0 0.0
      %1951 = vmatpush1.msra.mxu0 %v1227
      %1952 = vmatprep.subr.mxu0 0.0
      %1953 = vmatpush1.msra.mxu0 %v1228
      %1954 = vmatprep.subr.mxu0 0.0
      %1955 = vmatpush1.msra.mxu0 %v1229
      %1956 = vmatprep.subr.mxu0 0.0
      %1957 = vmatpush1.msra.mxu0 %v1230
      %1958 = vmatprep.subr.mxu0 0.0
      %1959 = vmatpush1.msra.mxu0 %v1231
      %1960 = vmatprep.subr.mxu0 0.0
      %1961 = vmatpush1.msra.mxu0 %v1232
      %1962 = vmatprep.subr.mxu0 0.0
      %1963 = vmatpush1.msra.mxu0 %v1233
      %1964 = vmatprep.subr.mxu0 0.0
      %1965 = vmatpush1.msra.mxu0 %v1234
      %1966 = vmatprep.subr.mxu0 0.0
      %1967 = vmatpush1.msra.mxu0 %v1235
      %1968 = vmatprep.subr.mxu0 0.0
      %1969 = vmatpush1.msra.mxu0 %v1236
      %1970 = vmatprep.subr.mxu0 0.0
      %1971 = vmatpush1.msra.mxu0 %v1237
      %1972 = vmatprep.subr.mxu0 0.0
      %1973 = vmatpush1.msra.mxu0 %v1238
      %1974 = vmatprep.subr.mxu0 0.0
      %1975 = vmatpush1.msra.mxu0 %v1239
      %1976 = vmatprep.subr.mxu0 0.0
      %1977 = vmatpush1.msra.mxu0 %v1240
      %1978 = vmatprep.subr.mxu0 0.0
      %1979 = vmatpush1.msra.mxu0 %v1241
      %1980 = vmatprep.subr.mxu0 0.0
      %1981 = vmatpush1.msra.mxu0 %v1242
      %1982 = vmatprep.subr.mxu0 0.0
      %1983 = vmatpush1.msra.mxu0 %v1243
      %1984 = vmatprep.subr.mxu0 0.0
      %1985 = vmatpush1.msra.mxu0 %v1244
      %1986 = vmatprep.subr.mxu0 0.0
      %1987 = vmatpush1.msra.mxu0 %v1245
      %1988 = vmatprep.subr.mxu0 0.0
      %1989 = vmatpush1.msra.mxu0 %v1246
      %1990 = vmatprep.subr.mxu0 0.0
      %1991 = vmatpush1.msra.mxu0 %v1247
      %1992 = vmatprep.subr.mxu0 0.0
      %1993 = vmatpush1.msra.mxu0 %v1248
      %1994 = vmatprep.subr.mxu0 0.0
      %1995 = vmatpush1.msra.mxu0 %v1249
      %1996 = vmatprep.subr.mxu0 0.0
      %1997 = vmatpush1.msra.mxu0 %v1250
      %1998 = vmatprep.subr.mxu0 0.0
      %1999 = vmatpush1.msra.mxu0 %v1251
      %2000 = vmatprep.subr.mxu0 0.0
      %2001 = vmatpush1.msra.mxu0 %v1252
      %2002 = vmatprep.subr.mxu0 0.0
      %2003 = vmatpush1.msra.mxu0 %v1253
      %2004 = vmatprep.subr.mxu0 0.0
      %2005 = vmatpush1.msra.mxu0 %v1254
      %2006 = vmatprep.subr.mxu0 0.0
      %2007 = vmatpush1.msra.mxu0 %v1255
      %2008 = vmatprep.subr.mxu0 0.0
      %2009 = vmatpush1.msra.mxu0 %v1256
      %2010 = vmatprep.subr.mxu0 0.0
      %2011 = vmatpush1.msra.mxu0 %v1257
      %2012 = vmatprep.subr.mxu0 0.0
      %2013 = vmatpush1.msra.mxu0 %v1258
      %2014 = vmatprep.mubr.f32.mxu0 %v850
      %2015 = vmatmul.mubr.f32.gmra.mrb[0].mxu0 %v849
      %v2016 = vpop.f32.mrb[0].mxu0
      %v2017 = vadd.f32 %v1792, %v2016
      %v2018 = vpop.f32.mrb[0].mxu0
      %2019 = vmatprep.mubr.f32.mxu0 %v859
      %2020 = vmatmul.mubr.f32.gmra.mrb[0].mxu0 %v858
      %v2021 = vpop.f32.mrb[0].mxu0
      %v2022 = vadd.f32 %v1797, %v2021
      %v2023 = vpop.f32.mrb[0].mxu0
      %2024 = vmatprep.mubr.f32.mxu0 %v868
      %2025 = vmatmul.mubr.f32.gmra.mrb[0].mxu0 %v867
      %v2026 = vpop.f32.mrb[0].mxu0
      %v2027 = vadd.f32 %v1802, %v2026
      %v2028 = vpop.f32.mrb[0].mxu0
      %2029 = vmatprep.mubr.f32.mxu0 %v877
      %2030 = vmatmul.mubr.f32.gmra.mrb[0].mxu0 %v876
      %v2031 = vpop.f32.mrb[0].mxu0
      %v2032 = vadd.f32 %v1807, %v2031
      %v2033 = vpop.f32.mrb[0].mxu0
      %2034 = vmatprep.mubr.f32.mxu0 %v886
      %2035 = vmatmul.mubr.f32.gmra.mrb[0].mxu0 %v885
      %v2036 = vpop.f32.mrb[0].mxu0
      %v2037 = vadd.f32 %v1812, %v2036
      %v2038 = vpop.f32.mrb[0].mxu0
      %2039 = vmatprep.mubr.f32.mxu0 %v895
      %2040 = vmatmul.mubr.f32.gmra.mrb[0].mxu0 %v894
      %v2041 = vpop.f32.mrb[0].mxu0
      %v2042 = vadd.f32 %v1817, %v2041
      %v2043 = vpop.f32.mrb[0].mxu0
      %2044 = vmatprep.mubr.f32.mxu0 %v904
      %2045 = vmatmul.mubr.f32.gmra.mrb[0].mxu0 %v903
      %v2046 = vpop.f32.mrb[0].mxu0
      %v2047 = vadd.f32 %v1822, %v2046
      %v2048 = vpop.f32.mrb[0].mxu0
      %2049 = vmatprep.mubr.f32.mxu0 %v913
      %2050 = vmatmul.mubr.f32.gmra.mrb[0].mxu0 %v912
      %v2051 = vpop.f32.mrb[0].mxu0
      %v2052 = vadd.f32 %v1827, %v2051
      %v2053 = vpop.f32.mrb[0].mxu0
      %2054 = vmatprep.mubr.f32.mxu0 %v922
      %2055 = vmatmul.mubr.f32.gmra.mrb[0].mxu0 %v921
      %v2056 = vpop.f32.mrb[0].mxu0
      %v2057 = vadd.f32 %v1832, %v2056
      %v2058 = vpop.f32.mrb[0].mxu0
      %2059 = vmatprep.mubr.f32.mxu0 %v931
      %2060 = vmatmul.mubr.f32.gmra.mrb[0].mxu0 %v930
      %v2061 = vpop.f32.mrb[0].mxu0
      %v2062 = vadd.f32 %v1837, %v2061
      %v2063 = vpop.f32.mrb[0].mxu0
      %2064 = vmatprep.mubr.f32.mxu0 %v940
      %2065 = vmatmul.mubr.f32.gmra.mrb[0].mxu0 %v939
      %v2066 = vpop.f32.mrb[0].mxu0
      %v2067 = vadd.f32 %v1842, %v2066
      %v2068 = vpop.f32.mrb[0].mxu0
      %2069 = vmatprep.mubr.f32.mxu0 %v949
      %2070 = vmatmul.mubr.f32.gmra.mrb[0].mxu0 %v948
      %v2071 = vpop.f32.mrb[0].mxu0
      %v2072 = vadd.f32 %v1847, %v2071
      %v2073 = vpop.f32.mrb[0].mxu0
      %2074 = vmatprep.mubr.f32.mxu0 %v958
      %2075 = vmatmul.mubr.f32.gmra.mrb[0].mxu0 %v957
      %v2076 = vpop.f32.mrb[0].mxu0
      %v2077 = vadd.f32 %v1852, %v2076
      %v2078 = vpop.f32.mrb[0].mxu0
      %2079 = vmatprep.mubr.f32.mxu0 %v967
      %2080 = vmatmul.mubr.f32.gmra.mrb[0].mxu0 %v966
      %v2081 = vpop.f32.mrb[0].mxu0
      %v2082 = vadd.f32 %v1857, %v2081
      %v2083 = vpop.f32.mrb[0].mxu0
      %2084 = vmatprep.mubr.f32.mxu0 %v976
      %2085 = vmatmul.mubr.f32.gmra.mrb[0].mxu0 %v975
      %v2086 = vpop.f32.mrb[0].mxu0
      %v2087 = vadd.f32 %v1862, %v2086
      %v2088 = vpop.f32.mrb[0].mxu0
      %2089 = vmatprep.mubr.f32.mxu0 %v985
      %2090 = vmatmul.mubr.f32.gmra.mrb[0].mxu0 %v984
      %v2091 = vpop.f32.mrb[0].mxu0
      %v2092 = vadd.f32 %v1867, %v2091
      %v2093 = vpop.f32.mrb[0].mxu0
      %2094 = vmatprep.mubr.f32.mxu0 %v994
      %2095 = vmatmul.mubr.f32.gmra.mrb[0].mxu0 %v993
      %v2096 = vpop.f32.mrb[0].mxu0
      %v2097 = vadd.f32 %v1872, %v2096
      %v2098 = vpop.f32.mrb[0].mxu0
      %2099 = vmatprep.mubr.f32.mxu0 %v1003
      %2100 = vmatmul.mubr.f32.gmra.mrb[0].mxu0 %v1002
      %v2101 = vpop.f32.mrb[0].mxu0
      %v2102 = vadd.f32 %v1877, %v2101
      %v2103 = vpop.f32.mrb[0].mxu0
      %2104 = vmatprep.mubr.f32.mxu0 %v1012
      %2105 = vmatmul.mubr.f32.gmra.mrb[0].mxu0 %v1011
      %v2106 = vpop.f32.mrb[0].mxu0
      %v2107 = vadd.f32 %v1882, %v2106
      %v2108 = vpop.f32.mrb[0].mxu0
      %2109 = vmatprep.mubr.f32.mxu0 %v1021
      %2110 = vmatmul.mubr.f32.gmra.mrb[0].mxu0 %v1020
      %v2111 = vpop.f32.mrb[0].mxu0
      %v2112 = vadd.f32 %v1887, %v2111
      %v2113 = vpop.f32.mrb[0].mxu0
      %2114 = vmatprep.mubr.f32.mxu0 %v1030
      %2115 = vmatmul.mubr.f32.gmra.mrb[0].mxu0 %v1029
      %v2116 = vpop.f32.mrb[0].mxu0
      %v2117 = vadd.f32 %v1892, %v2116
      %v2118 = vpop.f32.mrb[0].mxu0
      %2119 = vmatprep.mubr.f32.mxu0 %v1039
      %2120 = vmatmul.mubr.f32.gmra.mrb[0].mxu0 %v1038
      %v2121 = vpop.f32.mrb[0].mxu0
      %v2122 = vadd.f32 %v1897, %v2121
      %v2123 = vpop.f32.mrb[0].mxu0
      %2124 = vmatprep.mubr.f32.mxu0 %v1048
      %2125 = vmatmul.mubr.f32.gmra.mrb[0].mxu0 %v1047
      %v2126 = vpop.f32.mrb[0].mxu0
      %v2127 = vadd.f32 %v1902, %v2126
      %v2128 = vpop.f32.mrb[0].mxu0
      %2129 = vmatprep.mubr.f32.mxu0 %v1057
      %2130 = vmatmul.mubr.f32.gmra.mrb[0].mxu0 %v1056
      %v2131 = vpop.f32.mrb[0].mxu0
      %v2132 = vadd.f32 %v1907, %v2131
      %v2133 = vpop.f32.mrb[0].mxu0
      %2134 = vmatprep.mubr.f32.mxu0 %v1066
      %2135 = vmatmul.mubr.f32.gmra.mrb[0].mxu0 %v1065
      %v2136 = vpop.f32.mrb[0].mxu0
      %v2137 = vadd.f32 %v1912, %v2136
      %v2138 = vpop.f32.mrb[0].mxu0
      %2139 = vmatprep.mubr.f32.mxu0 %v1075
      %2140 = vmatmul.mubr.f32.gmra.mrb[0].mxu0 %v1074
      %v2141 = vpop.f32.mrb[0].mxu0
      %v2142 = vadd.f32 %v1917, %v2141
      %v2143 = vpop.f32.mrb[0].mxu0
      %2144 = vmatprep.mubr.f32.mxu0 %v1084
      %2145 = vmatmul.mubr.f32.gmra.mrb[0].mxu0 %v1083
      %v2146 = vpop.f32.mrb[0].mxu0
      %v2147 = vadd.f32 %v1922, %v2146
      %v2148 = vpop.f32.mrb[0].mxu0
      %2149 = vmatprep.mubr.f32.mxu0 %v1093
      %2150 = vmatmul.mubr.f32.gmra.mrb[0].mxu0 %v1092
      %v2151 = vpop.f32.mrb[0].mxu0
      %v2152 = vadd.f32 %v1927, %v2151
      %v2153 = vpop.f32.mrb[0].mxu0
      %2154 = vmatprep.mubr.f32.mxu0 %v1102
      %2155 = vmatmul.mubr.f32.gmra.mrb[0].mxu0 %v1101
      %v2156 = vpop.f32.mrb[0].mxu0
      %v2157 = vadd.f32 %v1932, %v2156
      %v2158 = vpop.f32.mrb[0].mxu0
      %2159 = vmatprep.mubr.f32.mxu0 %v1111
      %2160 = vmatmul.mubr.f32.gmra.mrb[0].mxu0 %v1110
      %v2161 = vpop.f32.mrb[0].mxu0
      %v2162 = vadd.f32 %v1937, %v2161
      %v2163 = vpop.f32.mrb[0].mxu0
      %2164 = vmatprep.mubr.f32.mxu0 %v1120
      %2165 = vmatmul.mubr.f32.gmra.mrb[0].mxu0 %v1119
      %v2166 = vpop.f32.mrb[0].mxu0
      %v2167 = vadd.f32 %v1942, %v2166
      %v2168 = vpop.f32.mrb[0].mxu0
      %2169 = vmatprep.mubr.f32.mxu0 %v1129
      %2170 = vmatmul.mubr.f32.gmra.mrb[0].mxu0 %v1128
      %v2171 = vpop.f32.mrb[0].mxu0
      %v2172 = vadd.f32 %v1947, %v2171
      %v2173 = vpop.f32.mrb[0].mxu0
      %2174 = vdwg.mxu0
      %2175 = vmatprep.subr.mxu0 0.0
      %2176 = vmatpush1.msra.mxu0 %v1259
      %2177 = vmatprep.subr.mxu0 0.0
      %2178 = vmatpush1.msra.mxu0 %v1260
      %2179 = vmatprep.subr.mxu0 0.0
      %2180 = vmatpush1.msra.mxu0 %v1261
      %2181 = vmatprep.subr.mxu0 0.0
      %2182 = vmatpush1.msra.mxu0 %v1262
      %2183 = vmatprep.subr.mxu0 0.0
      %2184 = vmatpush1.msra.mxu0 %v1263
      %2185 = vmatprep.subr.mxu0 0.0
      %2186 = vmatpush1.msra.mxu0 %v1264
      %2187 = vmatprep.subr.mxu0 0.0
      %2188 = vmatpush1.msra.mxu0 %v1265
      %2189 = vmatprep.subr.mxu0 0.0
      %2190 = vmatpush1.msra.mxu0 %v1266
      %2191 = vmatprep.subr.mxu0 0.0
      %2192 = vmatpush1.msra.mxu0 %v1267
      %2193 = vmatprep.subr.mxu0 0.0
      %2194 = vmatpush1.msra.mxu0 %v1268
      %2195 = vmatprep.subr.mxu0 0.0
      %2196 = vmatpush1.msra.mxu0 %v1269
      %2197 = vmatprep.subr.mxu0 0.0
      %2198 = vmatpush1.msra.mxu0 %v1270
      %2199 = vmatprep.subr.mxu0 0.0
      %2200 = vmatpush1.msra.mxu0 %v1271
      %2201 = vmatprep.subr.mxu0 0.0
      %2202 = vmatpush1.msra.mxu0 %v1272
      %2203 = vmatprep.subr.mxu0 0.0
      %2204 = vmatpush1.msra.mxu0 %v1273
      %2205 = vmatprep.subr.mxu0 0.0
      %2206 = vmatpush1.msra.mxu0 %v1274
      %2207 = vmatprep.subr.mxu0 0.0
      %2208 = vmatpush1.msra.mxu0 0.0
      %2209 = vmatprep.subr.mxu0 0.0
      %2210 = vmatpush1.msra.mxu0 0.0
      %2211 = vmatprep.subr.mxu0 0.0
      %2212 = vmatpush1.msra.mxu0 0.0
      %2213 = vmatprep.subr.mxu0 0.0
      %2214 = vmatpush1.msra.mxu0 0.0
      %2215 = vmatprep.subr.mxu0 0.0
      %2216 = vmatpush1.msra.mxu0 0.0
      %2217 = vmatprep.subr.mxu0 0.0
      %2218 = vmatpush1.msra.mxu0 0.0
      %2219 = vmatprep.subr.mxu0 0.0
      %2220 = vmatpush1.msra.mxu0 0.0
      %2221 = vmatprep.subr.mxu0 0.0
      %2222 = vmatpush1.msra.mxu0 0.0
      %2223 = vmatprep.subr.mxu0 0.0
      %2224 = vmatpush1.msra.mxu0 0.0
      %2225 = vmatprep.subr.mxu0 0.0
      %2226 = vmatpush1.msra.mxu0 0.0
      %2227 = vmatprep.subr.mxu0 0.0
      %2228 = vmatpush1.msra.mxu0 0.0
      %2229 = vmatprep.subr.mxu0 0.0
      %2230 = vmatpush1.msra.mxu0 0.0
      %2231 = vmatprep.subr.mxu0 0.0
      %2232 = vmatpush1.msra.mxu0 0.0
      %2233 = vmatprep.subr.mxu0 0.0
      %2234 = vmatpush1.msra.mxu0 0.0
      %2235 = vmatprep.subr.mxu0 0.0
      %2236 = vmatpush1.msra.mxu0 0.0
      %2237 = vmatprep.subr.mxu0 0.0
      %2238 = vmatpush1.msra.mxu0 0.0
      %2239 = vmatprep.mubr.f32.mxu0 0.0
      %2240 = vmatmul.mubr.f32.gmra.mrb[0].mxu0 %v851
      %v2241 = vpop.f32.mrb[0].mxu0
      %v2242 = vadd.f32 %v2017, %v2241
      %v2243 = vpop.f32.mrb[0].mxu0
      %2244 = vmatprep.mubr.f32.mxu0 0.0
      %2245 = vmatmul.mubr.f32.gmra.mrb[0].mxu0 %v860
      %v2246 = vpop.f32.mrb[0].mxu0
      %v2247 = vadd.f32 %v2022, %v2246
      %v2248 = vpop.f32.mrb[0].mxu0
      %2249 = vmatprep.mubr.f32.mxu0 0.0
      %2250 = vmatmul.mubr.f32.gmra.mrb[0].mxu0 %v869
      %v2251 = vpop.f32.mrb[0].mxu0
      %v2252 = vadd.f32 %v2027, %v2251
      %v2253 = vpop.f32.mrb[0].mxu0
      %2254 = vmatprep.mubr.f32.mxu0 0.0
      %2255 = vmatmul.mubr.f32.gmra.mrb[0].mxu0 %v878
      %v2256 = vpop.f32.mrb[0].mxu0
      %v2257 = vadd.f32 %v2032, %v2256
      %v2258 = vpop.f32.mrb[0].mxu0
      %2259 = vmatprep.mubr.f32.mxu0 0.0
      %2260 = vmatmul.mubr.f32.gmra.mrb[0].mxu0 %v887
      %v2261 = vpop.f32.mrb[0].mxu0
      %v2262 = vadd.f32 %v2037, %v2261
      %v2263 = vpop.f32.mrb[0].mxu0
      %2264 = vmatprep.mubr.f32.mxu0 0.0
      %2265 = vmatmul.mubr.f32.gmra.mrb[0].mxu0 %v896
      %v2266 = vpop.f32.mrb[0].mxu0
      %v2267 = vadd.f32 %v2042, %v2266
      %v2268 = vpop.f32.mrb[0].mxu0
      %2269 = vmatprep.mubr.f32.mxu0 0.0
      %2270 = vmatmul.mubr.f32.gmra.mrb[0].mxu0 %v905
      %v2271 = vpop.f32.mrb[0].mxu0
      %v2272 = vadd.f32 %v2047, %v2271
      %v2273 = vpop.f32.mrb[0].mxu0
      %2274 = vmatprep.mubr.f32.mxu0 0.0
      %2275 = vmatmul.mubr.f32.gmra.mrb[0].mxu0 %v914
      %v2276 = vpop.f32.mrb[0].mxu0
      %v2277 = vadd.f32 %v2052, %v2276
      %v2278 = vpop.f32.mrb[0].mxu0
      %2279 = vmatprep.mubr.f32.mxu0 0.0
      %2280 = vmatmul.mubr.f32.gmra.mrb[0].mxu0 %v923
      %v2281 = vpop.f32.mrb[0].mxu0
      %v2282 = vadd.f32 %v2057, %v2281
      %v2283 = vpop.f32.mrb[0].mxu0
      %2284 = vmatprep.mubr.f32.mxu0 0.0
      %2285 = vmatmul.mubr.f32.gmra.mrb[0].mxu0 %v932
      %v2286 = vpop.f32.mrb[0].mxu0
      %v2287 = vadd.f32 %v2062, %v2286
      %v2288 = vpop.f32.mrb[0].mxu0
      %2289 = vmatprep.mubr.f32.mxu0 0.0
      %2290 = vmatmul.mubr.f32.gmra.mrb[0].mxu0 %v941
      %v2291 = vpop.f32.mrb[0].mxu0
      %v2292 = vadd.f32 %v2067, %v2291
      %v2293 = vpop.f32.mrb[0].mxu0
      %2294 = vmatprep.mubr.f32.mxu0 0.0
      %2295 = vmatmul.mubr.f32.gmra.mrb[0].mxu0 %v950
      %v2296 = vpop.f32.mrb[0].mxu0
      %v2297 = vadd.f32 %v2072, %v2296
      %v2298 = vpop.f32.mrb[0].mxu0
      %2299 = vmatprep.mubr.f32.mxu0 0.0
      %2300 = vmatmul.mubr.f32.gmra.mrb[0].mxu0 %v959
      %v2301 = vpop.f32.mrb[0].mxu0
      %v2302 = vadd.f32 %v2077, %v2301
      %v2303 = vpop.f32.mrb[0].mxu0
      %2304 = vmatprep.mubr.f32.mxu0 0.0
      %2305 = vmatmul.mubr.f32.gmra.mrb[0].mxu0 %v968
      %v2306 = vpop.f32.mrb[0].mxu0
      %v2307 = vadd.f32 %v2082, %v2306
      %v2308 = vpop.f32.mrb[0].mxu0
      %2309 = vmatprep.mubr.f32.mxu0 0.0
      %2310 = vmatmul.mubr.f32.gmra.mrb[0].mxu0 %v977
      %v2311 = vpop.f32.mrb[0].mxu0
      %v2312 = vadd.f32 %v2087, %v2311
      %v2313 = vpop.f32.mrb[0].mxu0
      %2314 = vmatprep.mubr.f32.mxu0 0.0
      %2315 = vmatmul.mubr.f32.gmra.mrb[0].mxu0 %v986
      %v2316 = vpop.f32.mrb[0].mxu0
      %v2317 = vadd.f32 %v2092, %v2316
      %v2318 = vpop.f32.mrb[0].mxu0
      %2319 = vmatprep.mubr.f32.mxu0 0.0
      %2320 = vmatmul.mubr.f32.gmra.mrb[0].mxu0 %v995
      %v2321 = vpop.f32.mrb[0].mxu0
      %v2322 = vadd.f32 %v2097, %v2321
      %v2323 = vpop.f32.mrb[0].mxu0
      %2324 = vmatprep.mubr.f32.mxu0 0.0
      %2325 = vmatmul.mubr.f32.gmra.mrb[0].mxu0 %v1004
      %v2326 = vpop.f32.mrb[0].mxu0
      %v2327 = vadd.f32 %v2102, %v2326
      %v2328 = vpop.f32.mrb[0].mxu0
      %2329 = vmatprep.mubr.f32.mxu0 0.0
      %2330 = vmatmul.mubr.f32.gmra.mrb[0].mxu0 %v1013
      %v2331 = vpop.f32.mrb[0].mxu0
      %v2332 = vadd.f32 %v2107, %v2331
      %v2333 = vpop.f32.mrb[0].mxu0
      %2334 = vmatprep.mubr.f32.mxu0 0.0
      %2335 = vmatmul.mubr.f32.gmra.mrb[0].mxu0 %v1022
      %v2336 = vpop.f32.mrb[0].mxu0
      %v2337 = vadd.f32 %v2112, %v2336
      %v2338 = vpop.f32.mrb[0].mxu0
      %2339 = vmatprep.mubr.f32.mxu0 0.0
      %2340 = vmatmul.mubr.f32.gmra.mrb[0].mxu0 %v1031
      %v2341 = vpop.f32.mrb[0].mxu0
      %v2342 = vadd.f32 %v2117, %v2341
      %v2343 = vpop.f32.mrb[0].mxu0
      %2344 = vmatprep.mubr.f32.mxu0 0.0
      %2345 = vmatmul.mubr.f32.gmra.mrb[0].mxu0 %v1040
      %v2346 = vpop.f32.mrb[0].mxu0
      %v2347 = vadd.f32 %v2122, %v2346
      %v2348 = vpop.f32.mrb[0].mxu0
      %2349 = vmatprep.mubr.f32.mxu0 0.0
      %2350 = vmatmul.mubr.f32.gmra.mrb[0].mxu0 %v1049
      %v2351 = vpop.f32.mrb[0].mxu0
      %v2352 = vadd.f32 %v2127, %v2351
      %v2353 = vpop.f32.mrb[0].mxu0
      %2354 = vmatprep.mubr.f32.mxu0 0.0
      %2355 = vmatmul.mubr.f32.gmra.mrb[0].mxu0 %v1058
      %v2356 = vpop.f32.mrb[0].mxu0
      %v2357 = vadd.f32 %v2132, %v2356
      %v2358 = vpop.f32.mrb[0].mxu0
      %2359 = vmatprep.mubr.f32.mxu0 0.0
      %2360 = vmatmul.mubr.f32.gmra.mrb[0].mxu0 %v1067
      %v2361 = vpop.f32.mrb[0].mxu0
      %v2362 = vadd.f32 %v2137, %v2361
      %v2363 = vpop.f32.mrb[0].mxu0
      %2364 = vmatprep.mubr.f32.mxu0 0.0
      %2365 = vmatmul.mubr.f32.gmra.mrb[0].mxu0 %v1076
      %v2366 = vpop.f32.mrb[0].mxu0
      %v2367 = vadd.f32 %v2142, %v2366
      %v2368 = vpop.f32.mrb[0].mxu0
      %2369 = vmatprep.mubr.f32.mxu0 0.0
      %2370 = vmatmul.mubr.f32.gmra.mrb[0].mxu0 %v1085
      %v2371 = vpop.f32.mrb[0].mxu0
      %v2372 = vadd.f32 %v2147, %v2371
      %v2373 = vpop.f32.mrb[0].mxu0
      %2374 = vmatprep.mubr.f32.mxu0 0.0
      %2375 = vmatmul.mubr.f32.gmra.mrb[0].mxu0 %v1094
      %v2376 = vpop.f32.mrb[0].mxu0
      %v2377 = vadd.f32 %v2152, %v2376
      %v2378 = vpop.f32.mrb[0].mxu0
      %2379 = vmatprep.mubr.f32.mxu0 0.0
      %2380 = vmatmul.mubr.f32.gmra.mrb[0].mxu0 %v1103
      %v2381 = vpop.f32.mrb[0].mxu0
      %v2382 = vadd.f32 %v2157, %v2381
      %v2383 = vpop.f32.mrb[0].mxu0
      %2384 = vmatprep.mubr.f32.mxu0 0.0
      %2385 = vmatmul.mubr.f32.gmra.mrb[0].mxu0 %v1112
      %v2386 = vpop.f32.mrb[0].mxu0
      %v2387 = vadd.f32 %v2162, %v2386
      %v2388 = vpop.f32.mrb[0].mxu0
      %2389 = vmatprep.mubr.f32.mxu0 0.0
      %2390 = vmatmul.mubr.f32.gmra.mrb[0].mxu0 %v1121
      %v2391 = vpop.f32.mrb[0].mxu0
      %v2392 = vadd.f32 %v2167, %v2391
      %v2393 = vpop.f32.mrb[0].mxu0
      %2394 = vmatprep.mubr.f32.mxu0 0.0
      %2395 = vmatmul.mubr.f32.gmra.mrb[0].mxu0 %v1130
      %v2396 = vpop.f32.mrb[0].mxu0
      %v2397 = vadd.f32 %v2172, %v2396
      %v2398 = vpop.f32.mrb[0].mxu0
      %2399 = vdwg.mxu0
      %v2401 = vlaneseq
      %v2402 = vshrl.u32 %v2401, 7
      %v2403 = vsub.s32 0, %v2402
      %v2404 = vrot.slane %v263, %v2403
      %v2406 = vmul.f32 %v2242, %v2404
      %v2407 = vmul.f32 %v2247, %v2404
      %v2408 = vmul.f32 %v2252, %v2404
      %v2409 = vmul.f32 %v2257, %v2404
      %v2410 = vmul.f32 %v2262, %v2404
      %v2411 = vmul.f32 %v2267, %v2404
      %v2412 = vmul.f32 %v2272, %v2404
      %v2413 = vmul.f32 %v2277, %v2404
      %v2414 = vmul.f32 %v2282, %v2404
      %v2415 = vmul.f32 %v2287, %v2404
      %v2416 = vmul.f32 %v2292, %v2404
      %v2417 = vmul.f32 %v2297, %v2404
      %v2418 = vmul.f32 %v2302, %v2404
      %v2419 = vmul.f32 %v2307, %v2404
      %v2420 = vmul.f32 %v2312, %v2404
      %v2421 = vmul.f32 %v2317, %v2404
      %v2422 = vmul.f32 %v2322, %v2404
      %v2423 = vmul.f32 %v2327, %v2404
      %v2424 = vmul.f32 %v2332, %v2404
      %v2425 = vmul.f32 %v2337, %v2404
      %v2426 = vmul.f32 %v2342, %v2404
      %v2427 = vmul.f32 %v2347, %v2404
      %v2428 = vmul.f32 %v2352, %v2404
      %v2429 = vmul.f32 %v2357, %v2404
      %v2430 = vmul.f32 %v2362, %v2404
      %v2431 = vmul.f32 %v2367, %v2404
      %v2432 = vmul.f32 %v2372, %v2404
      %v2433 = vmul.f32 %v2377, %v2404
      %v2434 = vmul.f32 %v2382, %v2404
      %v2435 = vmul.f32 %v2387, %v2404
      %v2436 = vmul.f32 %v2392, %v2404
      %v2437 = vmul.f32 %v2397, %v2404
      %v2439 = vlaneseq
      %v2440 = vshrl.u32 %v2439, 7
      %v2441 = vsub.s32 0, %v2440
      %v2442 = vrot.slane %v264, %v2441
      %v2444 = vadd.f32 %v2406, %v2442
      %v2445 = vadd.f32 %v2407, %v2442
      %v2446 = vadd.f32 %v2408, %v2442
      %v2447 = vadd.f32 %v2409, %v2442
      %v2448 = vadd.f32 %v2410, %v2442
      %v2449 = vadd.f32 %v2411, %v2442
      %v2450 = vadd.f32 %v2412, %v2442
      %v2451 = vadd.f32 %v2413, %v2442
      %v2452 = vadd.f32 %v2414, %v2442
      %v2453 = vadd.f32 %v2415, %v2442
      %v2454 = vadd.f32 %v2416, %v2442
      %v2455 = vadd.f32 %v2417, %v2442
      %v2456 = vadd.f32 %v2418, %v2442
      %v2457 = vadd.f32 %v2419, %v2442
      %v2458 = vadd.f32 %v2420, %v2442
      %v2459 = vadd.f32 %v2421, %v2442
      %v2460 = vadd.f32 %v2422, %v2442
      %v2461 = vadd.f32 %v2423, %v2442
      %v2462 = vadd.f32 %v2424, %v2442
      %v2463 = vadd.f32 %v2425, %v2442
      %v2464 = vadd.f32 %v2426, %v2442
      %v2465 = vadd.f32 %v2427, %v2442
      %v2466 = vadd.f32 %v2428, %v2442
      %v2467 = vadd.f32 %v2429, %v2442
      %v2468 = vadd.f32 %v2430, %v2442
      %v2469 = vadd.f32 %v2431, %v2442
      %v2470 = vadd.f32 %v2432, %v2442
      %v2471 = vadd.f32 %v2433, %v2442
      %v2472 = vadd.f32 %v2434, %v2442
      %v2473 = vadd.f32 %v2435, %v2442
      %v2474 = vadd.f32 %v2436, %v2442
      %v2475 = vadd.f32 %v2437, %v2442
      %v2476 = vmax.f32 %v2444, 0.0
      %v2477 = vmax.f32 %v2445, 0.0
      %v2478 = vmax.f32 %v2446, 0.0
      %v2479 = vmax.f32 %v2447, 0.0
      %v2480 = vmax.f32 %v2448, 0.0
      %v2481 = vmax.f32 %v2449, 0.0
      %v2482 = vmax.f32 %v2450, 0.0
      %v2483 = vmax.f32 %v2451, 0.0
      %v2484 = vmax.f32 %v2452, 0.0
      %v2485 = vmax.f32 %v2453, 0.0
      %v2486 = vmax.f32 %v2454, 0.0
      %v2487 = vmax.f32 %v2455, 0.0
      %v2488 = vmax.f32 %v2456, 0.0
      %v2489 = vmax.f32 %v2457, 0.0
      %v2490 = vmax.f32 %v2458, 0.0
      %v2491 = vmax.f32 %v2459, 0.0
      %v2492 = vmax.f32 %v2460, 0.0
      %v2493 = vmax.f32 %v2461, 0.0
      %v2494 = vmax.f32 %v2462, 0.0
      %v2495 = vmax.f32 %v2463, 0.0
      %v2496 = vmax.f32 %v2464, 0.0
      %v2497 = vmax.f32 %v2465, 0.0
      %v2498 = vmax.f32 %v2466, 0.0
      %v2499 = vmax.f32 %v2467, 0.0
      %v2500 = vmax.f32 %v2468, 0.0
      %v2501 = vmax.f32 %v2469, 0.0
      %v2502 = vmax.f32 %v2470, 0.0
      %v2503 = vmax.f32 %v2471, 0.0
      %v2504 = vmax.f32 %v2472, 0.0
      %v2505 = vmax.f32 %v2473, 0.0
      %v2506 = vmax.f32 %v2474, 0.0
      %v2507 = vmax.f32 %v2475, 0.0
      %2508 = vst [vmem:[%s262] sm:$0xff] %v2476
      %2509 = vst [vmem:[%s262 + $0x8] sm:$0xff] %v2477
      %2510 = vst [vmem:[%s262 + $0x10] sm:$0xff] %v2478
      %2511 = vst [vmem:[%s262 + $0x18] sm:$0xff] %v2479
      %2512 = vst [vmem:[%s262 + $0x20] sm:$0xff] %v2480
      %2513 = vst [vmem:[%s262 + $0x28] sm:$0xff] %v2481
      %2514 = vst [vmem:[%s262 + $0x30] sm:$0xff] %v2482
      %2515 = vst [vmem:[%s262 + $0x38] sm:$0xff] %v2483
      %2516 = vst [vmem:[%s262 + $0x40] sm:$0xff] %v2484
      %2517 = vst [vmem:[%s262 + $0x48] sm:$0xff] %v2485
      %2518 = vst [vmem:[%s262 + $0x50] sm:$0xff] %v2486
      %2519 = vst [vmem:[%s262 + $0x58] sm:$0xff] %v2487
      %2520 = vst [vmem:[%s262 + $0x60] sm:$0xff] %v2488
      %2521 = vst [vmem:[%s262 + $0x68] sm:$0xff] %v2489
      %2522 = vst [vmem:[%s262 + $0x70] sm:$0xff] %v2490
      %2523 = vst [vmem:[%s262 + $0x78] sm:$0xff] %v2491
      %2524 = vst [vmem:[%s262 + $0x80] sm:$0xff] %v2492
      %2525 = vst [vmem:[%s262 + $0x88] sm:$0xff] %v2493
      %2526 = vst [vmem:[%s262 + $0x90] sm:$0xff] %v2494
      %2527 = vst [vmem:[%s262 + $0x98] sm:$0xff] %v2495
      %2528 = vst [vmem:[%s262 + $0xa0] sm:$0xff] %v2496
      %2529 = vst [vmem:[%s262 + $0xa8] sm:$0xff] %v2497
      %2530 = vst [vmem:[%s262 + $0xb0] sm:$0xff] %v2498
      %2531 = vst [vmem:[%s262 + $0xb8] sm:$0xff] %v2499
      %2532 = vst [vmem:[%s262 + $0xc0] sm:$0xff] %v2500
      %2533 = vst [vmem:[%s262 + $0xc8] sm:$0xff] %v2501
      %2534 = vst [vmem:[%s262 + $0xd0] sm:$0xff] %v2502
      %2535 = vst [vmem:[%s262 + $0xd8] sm:$0xff] %v2503
      %2536 = vst [vmem:[%s262 + $0xe0] sm:$0xff] %v2504
      %2537 = vst [vmem:[%s262 + $0xe8] sm:$0xff] %v2505
      %2538 = vst [vmem:[%s262 + $0xf0] sm:$0xff] %v2506
      %2539 = vst [vmem:[%s262 + $0xf8] sm:$0xff] %v2507
      %p2540 = scmp.lt.s32.totalorder %s19, 1
      %s2541 = scalar_select %p2540, %s19, 1
      %p2542 = scmp.lt.s32.totalorder %s20, 0
      %s2543 = scalar_select %p2542, %s20, 0
      %s2544 = smul.addr %s2541, 32
      %s2545 = sadd.s32 %s2543, %s2544
      %s2546 = smul.addr %s2545, 8
      %s2547 = scalar_lea.vmem %s4, %s2546
      // Predicated region
      $region37: #{basic_block_forward.2} parent=35 // pred_check
        %p2548 = pneg %p151
      $region38: #{basic_block_forward.2} parent=35 // pred_check_branch
        %2550 = sbr.rel (%p2548) target = $region40
      $region39: #{basic_block_forward.2} parent=35 // pred_region
        _
      $region40: #{basic_block_forward.2} parent=35 // pred_fallthru
        _
    $region36: #{basic_block_forward.2} parent=5 // pred_fallthru
      _
    %p2551 = scmp.le.s32.totalorder 2, %s10
    // Predicated region
    $region41: #{basic_block_forward.2} parent=5 // pred_check
      %p2552 = pneg %p2551
    $region42: #{basic_block_forward.2} parent=5 // pred_check_branch
      %2554 = sbr.rel (%p2552) target = $region44
    $region43: #{basic_block_forward.2} parent=5 // pred_region
      %s2555 = ssub.s32 %s10, 2
      // Predicated region
      $region45: #{basic_block_forward.2} parent=43 // pred_check
        %p2556 = pneg %p157
      $region46: #{basic_block_forward.2} parent=43 // pred_check_branch
        %2558 = sbr.rel (%p2556) target = $region48
      $region47: #{basic_block_forward.2} parent=43 // pred_region
        %p2559 = scmp.lt.s32.totalorder %s21, 1
        %s2560 = scalar_select %p2559, %s21, 1
        %p2561 = scmp.lt.s32.totalorder %s22, 0
        %s2562 = scalar_select %p2561, %s22, 0
        %s2563 = smul.addr %s2560, 32
        %s2564 = sadd.s32 %s2562, %s2563
        %s2565 = smul.addr %s2564, 8
        %s2566 = scalar_lea.vmem %s4, %s2565
      $region48: #{basic_block_forward.2} parent=43 // pred_fallthru
        _
    $region44: #{basic_block_forward.2} parent=5 // pred_fallthru
      _
  $region6: #{basic_block_forward.2} parent=0 // loop_footer
    %s14 = sadd.s32 1, %s10
  $region7: #{basic_block_forward.2} parent=0 // loop_footer_branch
    %9 = sbr.rel target = $region3
  $region8: #{basic_block_forward.2} parent=0 // loop_exit
    _

</llo_original>
